<compile_context>
chip_gen: v6e
topology: v6e:2x2x1
jax: 0.10.0
libtpu: 0.0.40
codegen_flags: <defaults>
</compile_context>

<pallas_src>
import functools
import math

import jax
import jax.numpy as jnp
from jax import lax
from jax.experimental import pallas as pl
from jax.experimental.pallas import tpu as pltpu

EPS = 1e-5  # nn.InstanceNorm2d default eps


def _round_up(x, m):
    return ((x + m - 1) // m) * m


def _pick_hc(H, Wpad, cmax, cap=32, col_budget_bytes=4 * 1024 * 1024):
    """Largest even divisor of H (<= cap) whose folded-K matmul operand
    (Hc*Wpad, 9*cmax) f32 stays inside a modest VMEM temporary budget."""
    hc = 2
    for d in range(2, cap + 1, 2):
        if H % d == 0 and d * Wpad * 9 * cmax * 4 <= col_budget_bytes:
            hc = d
    return hc


def _conv_block_in_kernel(x_ref, w1_ref, w2_ref, o_ref, xp1_ref, xp2_ref, zp_ref,
                          *, H, W, Wpad, Cin, Cout, Hc):
    """One batch element: (conv3x3 -> IN -> id) x2, then 2x2/stride-2 max pool.

    x_ref  : (1, H, W, Cin)         input tile (Cin already padded to >= 8)
    w1_ref : (9*Cin, Cout)          conv1 taps, row = (dh*3 + dw)*Cin + ci
    w2_ref : (9*Cout, Cout)         conv2 taps
    o_ref  : (1, H//2, W//2, Cout)  output tile
    xp1_ref: (H+2, Wpad, Cin)       zero-haloed conv1 input, interior cols [8, W+8)
    xp2_ref: (H+2, Wpad, Cout)      zero-haloed conv2 input / conv1 staging
    zp_ref : (H//2, W, Cout)        row-pooled RAW conv2 output
    """
    Ho, Wo = H // 2, W // 2
    nchunks = H // Hc
    n = Hc * Wpad
    inv_hw = 1.0 / (H * W)

    def zero_halo(xp_ref, C):
        # SAME-padding requires a zero halo; the interior is fully rewritten
        # every step, so only the halo is written here (per step, because the
        # scratch is per-TensorCore when the batch axis runs "parallel").
        zrow = jnp.zeros((1, Wpad, C), jnp.float32)
        xp_ref[0:1] = zrow
        xp_ref[H + 1:H + 2] = zrow
        xp_ref[1:H + 1, 0:8, :] = jnp.zeros((H, 8, C), jnp.float32)
        xp_ref[1:H + 1, W + 8:Wpad, :] = jnp.zeros((H, Wpad - W - 8, C), jnp.float32)

    zero_halo(xp1_ref, Cin)
    zero_halo(xp2_ref, Cout)

    # In-kernel halo padding: interior write is sublane-aligned (offset 8).
    xp1_ref[1:H + 1, 8:W + 8, :] = x_ref[0]

    def conv_chunk(xp_ref, w_ref, cin, c):
        # 3x3 SAME conv on output rows [c*Hc, c*Hc + Hc): all 9 taps folded into
        # ONE matmul with K = 9*cin.  Each dh row-block is flattened to
        # (Hc*Wpad, cin) (free: Wpad % 8 == 0); the dw = 0/2 neighbours come
        # from +/-1 sublane rotations whose wrap-around only pollutes the
        # discarded halo columns.
        h0 = pl.multiple_of(c * Hc, Hc)
        pieces = []
        for dh in range(3):
            flat = xp_ref[pl.ds(h0 + dh, Hc)].reshape(n, cin)
            pieces += [pltpu.roll(flat, shift=1, axis=0),      # dw = 0 (reads q-1)
                       flat,                                   # dw = 1
                       pltpu.roll(flat, shift=n - 1, axis=0)]  # dw = 2 (reads q+1)
        col = jnp.concatenate(pieces, axis=1)                  # (n, 9*cin)
        acc = jnp.dot(col, w_ref[...], preferred_element_type=jnp.float32)
        return acc.reshape(Hc, Wpad, Cout)[:, 8:W + 8, :]      # valid (Hc, W, Cout)

    def conv_stage(xp_ref, w_ref, cin, store_chunk):
        # Conv, chunk by chunk, with the InstanceNorm statistics (sum and
        # sum-of-squares) fused into the loop -> no stats re-read of y.
        def body(c, carry):
            s1, s2 = carry
            y = conv_chunk(xp_ref, w_ref, cin, c)
            yf = y.reshape(Hc * W, Cout)
            s1 = s1 + jnp.sum(yf, axis=0, keepdims=True)
            s2 = s2 + jnp.sum(yf * yf, axis=0, keepdims=True)
            store_chunk(c, y)
            return s1, s2

        zero = jnp.zeros((1, Cout), jnp.float32)
        s1, s2 = lax.fori_loop(0, nchunks, body, (zero, zero), unroll=True)
        mean = s1 * inv_hw
        var = s2 * inv_hw - mean * mean          # single-pass biased variance (f32)
        return mean, lax.rsqrt(var + EPS)

    # ---- Stage 1: conv1 -> IN -> LeakyReLU(slope=1.0) == identity ------------
    # Raw conv1 output is staged directly in xp2's interior and normalised in
    # place; the conv bias cancels exactly under InstanceNorm(affine=False).
    def store1(c, y):
        xp2_ref[pl.ds(c * Hc + 1, Hc), 8:W + 8, :] = y

    mean1, inv1 = conv_stage(xp1_ref, w1_ref, Cin, store1)
    xp2_ref[1:H + 1, 8:W + 8, :] = (xp2_ref[1:H + 1, 8:W + 8, :] - mean1) * inv1

    # ---- Stage 2: conv2 -> IN -> identity -> 2x2/stride-2 max pool -----------
    # IN stats come from the full raw conv2 output; rows are pooled per chunk
    # (layout-free leading-dim reshape), columns once at the end, and the 4x
    # smaller pooled tensor is normalised (IN commutes with max-pool).
    def store2(c, y):
        zh = jnp.max(y.reshape(Hc // 2, 2, W, Cout), axis=1)   # row pool
        zp_ref[pl.ds(c * (Hc // 2), Hc // 2)] = zh

    mean2, inv2 = conv_stage(xp2_ref, w2_ref, Cout, store2)

    # TODO(synk): the (Ho, Wo, 2, Cout) reshape retiles the minor dims; for large
    # W a roll+even-select (or channel-major layout) would avoid this small relayout.
    zc = jnp.max(zp_ref[...].reshape(Ho, Wo, 2, Cout), axis=2)  # column pool
    o_ref[0] = (zc - mean2) * inv2


def _pack_conv_weight(w_oihw, cin_padded):
    """(Cout, Cin, 3, 3) torch layout -> (9*cin_padded, Cout), row = (dh*3+dw)*cin + ci."""
    cout, cin, kh, kw = w_oihw.shape
    assert (kh, kw) == (3, 3)
    w = jnp.transpose(w_oihw, (2, 3, 1, 0)).astype(jnp.float32)  # (3, 3, Cin, Cout)
    if cin_padded != cin:
        w = jnp.pad(w, ((0, 0), (0, 0), (0, cin_padded - cin), (0, 0)))
    return w.reshape(9 * cin_padded, cout)


def conv_block_in_forward(x_nchw, w1, b1, w2, b2):
    """Fused Conv_block_IN forward.  x_nchw: (N, Cin, H, W) float32 (NCHW).

    w1: (Cout, Cin, 3, 3), w2: (Cout, Cout, 3, 3).  b1/b2 are accepted for
    parameter fidelity but unused: a conv bias is cancelled exactly by the
    immediately-following InstanceNorm2d(affine=False).
    """
    del b1, b2
    N, Cin, H, W = x_nchw.shape
    Cout = w1.shape[0]
    assert H % 2 == 0 and W % 2 == 0, "2x2 pool stage expects even spatial dims"
    # TODO(synk): ceil_mode max-pool for odd H/W is not implemented.
    # TODO(synk): for N == 1 on v7x, a Cout-split second stage would keep both
    # TensorCores busy; not implemented (self-test uses N >= 2).

    x = jnp.transpose(x_nchw, (0, 2, 3, 1)).astype(jnp.float32)  # NCHW -> NHWC
    Cin_p = max(8, _round_up(Cin, 8))   # pad tiny channel counts (zeros are inert)
    if Cin_p != Cin:
        x = jnp.pad(x, ((0, 0), (0, 0), (0, 0), (0, Cin_p - Cin)))

    Wpad = _round_up(W + 9, 8)          # 8-wide aligned left halo + >=1 right halo col
    Hc = _pick_hc(H, Wpad, max(Cin_p, Cout))
    Ho, Wo = H // 2, W // 2

    w1p = _pack_conv_weight(w1, Cin_p)  # (9*Cin_p, Cout)
    w2p = _pack_conv_weight(w2, Cout)   # (9*Cout,  Cout)

    kernel = functools.partial(
        _conv_block_in_kernel, H=H, W=W, Wpad=Wpad, Cin=Cin_p, Cout=Cout, Hc=Hc)

    out = pl.pallas_call(
        kernel,
        out_shape=jax.ShapeDtypeStruct((N, Ho, Wo, Cout), jnp.float32),
        grid=(N,),
        in_specs=[
            pl.BlockSpec((1, H, W, Cin_p), lambda b: (b, 0, 0, 0)),
            pl.BlockSpec((9 * Cin_p, Cout), lambda b: (0, 0)),
            pl.BlockSpec((9 * Cout, Cout), lambda b: (0, 0)),
        ],
        out_specs=pl.BlockSpec((1, Ho, Wo, Cout), lambda b: (b, 0, 0, 0)),
        scratch_shapes=[
            pltpu.VMEM((H + 2, Wpad, Cin_p), jnp.float32),
            pltpu.VMEM((H + 2, Wpad, Cout), jnp.float32),
            pltpu.VMEM((Ho, W, Cout), jnp.float32),
        ],
        compiler_params=pltpu.CompilerParams(
            dimension_semantics=("parallel",),          # batch axis -> 2 TCs on v7x
            vmem_limit_bytes=48 * 1024 * 1024),         # < v7x 64 MiB physical VMEM
    )(x, w1p, w2p)

    return jnp.transpose(out, (0, 3, 1, 2))             # NHWC -> NCHW


# ---------------------------------------------------------------------------
# Deterministic synthetic params (xavier_normal_ weights, torch-default biases)
# and a pure-XLA reference (which DOES add the biases and the identity LReLU)
# to validate the fused kernel and the dead-op eliminations.
# ---------------------------------------------------------------------------
def init_conv_params(key, cin, cout):
    kw, kb = jax.random.split(key)
    fan_in, fan_out = cin * 9, cout * 9
    std = math.sqrt(2.0 / (fan_in + fan_out))                   # xavier_normal_
    w = std * jax.random.normal(kw, (cout, cin, 3, 3), jnp.float32)
    bound = 1.0 / math.sqrt(fan_in)                             # torch Conv2d bias init
    b = jax.random.uniform(kb, (cout,), jnp.float32, -bound, bound)
    return w, b


def reference_forward(x_nchw, w1, b1, w2, b2):
    x = jnp.transpose(x_nchw, (0, 2, 3, 1))

    def conv(x, w, b):
        y = lax.conv_general_dilated(
            x, jnp.transpose(w, (2, 3, 1, 0)), window_strides=(1, 1),
            padding="SAME", dimension_numbers=("NHWC", "HWIO", "NHWC"),
            precision=lax.Precision.HIGHEST)
        return y + b.reshape(1, 1, 1, -1)

    def inorm(y):
        m = jnp.mean(y, axis=(1, 2), keepdims=True)
        v = jnp.mean((y - m) ** 2, axis=(1, 2), keepdims=True)
        return (y - m) * lax.rsqrt(v + EPS)

    def lrelu(y):                        # nn.LeakyReLU(True): slope == 1.0
        return jnp.where(y >= 0, y, 1.0 * y)

    y = lrelu(inorm(conv(x, w1, b1)))
    y = lrelu(inorm(conv(y, w2, b2)))
    n, h, w, c = y.shape
    y = jnp.max(y.reshape(n, h // 2, 2, w // 2, 2, c), axis=(2, 4))
    return jnp.transpose(y, (0, 3, 1, 2))


if __name__ == "__main__":
    key = jax.random.PRNGKey(0)
    kx, k1, k2 = jax.random.split(key, 3)

    N, Cin, H, W, Cout = 2, 4, 16, 16, 32
    x = jax.random.normal(kx, (N, Cin, H, W), jnp.float32)
    w1, b1 = init_conv_params(k1, Cin, Cout)
    w2, b2 = init_conv_params(k2, Cout, Cout)

    out = jax.block_until_ready(conv_block_in_forward(x, w1, b1, w2, b2))
    assert out.shape == (N, Cout, H // 2, W // 2), out.shape
    assert bool(jnp.all(jnp.isfinite(out))), "non-finite output"

    ref = jax.block_until_ready(reference_forward(x, w1, b1, w2, b2))
    err = float(jnp.max(jnp.abs(out - ref)))
    assert err < 1e-2, f"mismatch vs reference: max abs err = {err}"
    print("KERNEL_OK")
</pallas_src>

<mosaic_0001>
module attributes {stable_mosaic.version = 11 : i64} {
  func.func @_conv_block_in_kernel(%arg0: i32, %arg1: memref<1x16x16x8xf32, #tpu.memory_space<vmem>>, %arg2: memref<72x32xf32, #tpu.memory_space<vmem>>, %arg3: memref<288x32xf32, #tpu.memory_space<vmem>>, %arg4: memref<1x8x8x32xf32, #tpu.memory_space<vmem>>, %arg5: memref<18x32x8xf32, #tpu.memory_space<vmem>>, %arg6: memref<18x32x32xf32, #tpu.memory_space<vmem>>, %arg7: memref<8x16x32xf32, #tpu.memory_space<vmem>>) attributes {dimension_semantics = [#tpu.dimension_semantics<parallel>], iteration_bounds = array<i64: 2>, scalar_prefetch = 0 : i64, scratch_operands = 3 : i64, tpu.core_type = #tpu.core_type<tc>, window_params = [{transform_indices = @transform_0, window_bounds = array<i64: 1, 16, 16, 8>}, {pipeline_mode = #tpu.pipeline_mode<synchronous>, transform_indices = @transform_1, window_bounds = array<i64: 72, 32>}, {pipeline_mode = #tpu.pipeline_mode<synchronous>, transform_indices = @transform_2, window_bounds = array<i64: 288, 32>}, {transform_indices = @transform_3, window_bounds = array<i64: 1, 8, 8, 32>}]} {
    %cst = arith.constant 0.000000e+00 : f32
    %0 = vector.broadcast %cst : f32 to vector<1x32x8xf32>
    %c0 = arith.constant 0 : index
    %c0_0 = arith.constant 0 : index
    %c0_1 = arith.constant 0 : index
    %1 = vector.load %arg5[%c0, %c0_0, %c0_1] : memref<18x32x8xf32, #tpu.memory_space<vmem>>, vector<1x32x8xf32>
    tpu.vector_store %arg5[%c0, %c0_0, %c0_1], %0 {strides = array<i32>} : memref<18x32x8xf32, #tpu.memory_space<vmem>>, vector<1x32x8xf32>,
    %c17 = arith.constant 17 : index
    %c0_2 = arith.constant 0 : index
    %c0_3 = arith.constant 0 : index
    %2 = vector.load %arg5[%c17, %c0_2, %c0_3] : memref<18x32x8xf32, #tpu.memory_space<vmem>>, vector<1x32x8xf32>
    tpu.vector_store %arg5[%c17, %c0_2, %c0_3], %0 {strides = array<i32>} : memref<18x32x8xf32, #tpu.memory_space<vmem>>, vector<1x32x8xf32>,
    %cst_4 = arith.constant 0.000000e+00 : f32
    %3 = vector.broadcast %cst_4 : f32 to vector<16x8x8xf32>
    %c1 = arith.constant 1 : index
    %c0_5 = arith.constant 0 : index
    %c0_6 = arith.constant 0 : index
    %4 = vector.load %arg5[%c1, %c0_5, %c0_6] : memref<18x32x8xf32, #tpu.memory_space<vmem>>, vector<16x8x8xf32>
    tpu.vector_store %arg5[%c1, %c0_5, %c0_6], %3 {strides = array<i32>} : memref<18x32x8xf32, #tpu.memory_space<vmem>>, vector<16x8x8xf32>,
    %cst_7 = arith.constant 0.000000e+00 : f32
    %5 = vector.broadcast %cst_7 : f32 to vector<16x8x8xf32>
    %c1_8 = arith.constant 1 : index
    %c24 = arith.constant 24 : index
    %c0_9 = arith.constant 0 : index
    %6 = vector.load %arg5[%c1_8, %c24, %c0_9] : memref<18x32x8xf32, #tpu.memory_space<vmem>>, vector<16x8x8xf32>
    tpu.vector_store %arg5[%c1_8, %c24, %c0_9], %5 {strides = array<i32>} : memref<18x32x8xf32, #tpu.memory_space<vmem>>, vector<16x8x8xf32>,
    %cst_10 = arith.constant 0.000000e+00 : f32
    %7 = vector.broadcast %cst_10 : f32 to vector<1x32x32xf32>
    %c0_11 = arith.constant 0 : index
    %c0_12 = arith.constant 0 : index
    %c0_13 = arith.constant 0 : index
    %8 = vector.load %arg6[%c0_11, %c0_12, %c0_13] : memref<18x32x32xf32, #tpu.memory_space<vmem>>, vector<1x32x32xf32>
    tpu.vector_store %arg6[%c0_11, %c0_12, %c0_13], %7 {strides = array<i32>} : memref<18x32x32xf32, #tpu.memory_space<vmem>>, vector<1x32x32xf32>,
    %c17_14 = arith.constant 17 : index
    %c0_15 = arith.constant 0 : index
    %c0_16 = arith.constant 0 : index
    %9 = vector.load %arg6[%c17_14, %c0_15, %c0_16] : memref<18x32x32xf32, #tpu.memory_space<vmem>>, vector<1x32x32xf32>
    tpu.vector_store %arg6[%c17_14, %c0_15, %c0_16], %7 {strides = array<i32>} : memref<18x32x32xf32, #tpu.memory_space<vmem>>, vector<1x32x32xf32>,
    %cst_17 = arith.constant 0.000000e+00 : f32
    %10 = vector.broadcast %cst_17 : f32 to vector<16x8x32xf32>
    %c1_18 = arith.constant 1 : index
    %c0_19 = arith.constant 0 : index
    %c0_20 = arith.constant 0 : index
    %11 = vector.load %arg6[%c1_18, %c0_19, %c0_20] : memref<18x32x32xf32, #tpu.memory_space<vmem>>, vector<16x8x32xf32>
    tpu.vector_store %arg6[%c1_18, %c0_19, %c0_20], %10 {strides = array<i32>} : memref<18x32x32xf32, #tpu.memory_space<vmem>>, vector<16x8x32xf32>,
    %cst_21 = arith.constant 0.000000e+00 : f32
    %12 = vector.broadcast %cst_21 : f32 to vector<16x8x32xf32>
    %c1_22 = arith.constant 1 : index
    %c24_23 = arith.constant 24 : index
    %c0_24 = arith.constant 0 : index
    %13 = vector.load %arg6[%c1_22, %c24_23, %c0_24] : memref<18x32x32xf32, #tpu.memory_space<vmem>>, vector<16x8x32xf32>
    tpu.vector_store %arg6[%c1_22, %c24_23, %c0_24], %12 {strides = array<i32>} : memref<18x32x32xf32, #tpu.memory_space<vmem>>, vector<16x8x32xf32>,
    %c0_25 = arith.constant 0 : index
    %c0_26 = arith.constant 0 : index
    %c0_27 = arith.constant 0 : index
    %c0_28 = arith.constant 0 : index
    %14 = vector.load %arg1[%c0_25, %c0_26, %c0_27, %c0_28] : memref<1x16x16x8xf32, #tpu.memory_space<vmem>>, vector<1x16x16x8xf32>
    %15 = vector.shape_cast %14 : vector<1x16x16x8xf32> to vector<16x16x8xf32>
    %c1_29 = arith.constant 1 : index
    %c8 = arith.constant 8 : index
    %c0_30 = arith.constant 0 : index
    %16 = vector.load %arg5[%c1_29, %c8, %c0_30] : memref<18x32x8xf32, #tpu.memory_space<vmem>>, vector<16x16x8xf32>
    tpu.vector_store %arg5[%c1_29, %c8, %c0_30], %15 {strides = array<i32>} : memref<18x32x8xf32, #tpu.memory_space<vmem>>, vector<16x16x8xf32>,
    %cst_31 = arith.constant 0.000000e+00 : f32
    %17 = vector.broadcast %cst_31 : f32 to vector<1x32xf32>
    %c0_i32 = arith.constant 0 : i32
    %c16_i32 = arith.constant 16 : i32
    %18 = arith.muli %c0_i32, %c16_i32 : i32
    %19 = tpu.assume_multiple %18, 16 : i32
    %c0_i32_32 = arith.constant 0 : i32
    %20 = arith.addi %19, %c0_i32_32 : i32
    %21 = arith.index_cast %20 : i32 to index
    %c0_33 = arith.constant 0 : index
    %c0_34 = arith.constant 0 : index
    %22 = vector.load %arg5[%21, %c0_33, %c0_34] : memref<18x32x8xf32, #tpu.memory_space<vmem>>, vector<16x32x8xf32>
    %23 = vector.shape_cast %22 : vector<16x32x8xf32> to vector<512x8xf32>
    %c1_i32 = arith.constant 1 : i32
    %24 = tpu.dynamic_rotate %23 by %c1_i32 dim 0 : vector<512x8xf32>, i32 -> vector<512x8xf32>
    %c511_i32 = arith.constant 511 : i32
    %25 = tpu.dynamic_rotate %23 by %c511_i32 dim 0 : vector<512x8xf32>, i32 -> vector<512x8xf32>
    %c1_i32_35 = arith.constant 1 : i32
    %26 = arith.addi %19, %c1_i32_35 : i32
    %27 = arith.index_cast %26 : i32 to index
    %c0_36 = arith.constant 0 : index
    %c0_37 = arith.constant 0 : index
    %28 = vector.load %arg5[%27, %c0_36, %c0_37] : memref<18x32x8xf32, #tpu.memory_space<vmem>>, vector<16x32x8xf32>
    %29 = vector.shape_cast %28 : vector<16x32x8xf32> to vector<512x8xf32>
    %c1_i32_38 = arith.constant 1 : i32
    %30 = tpu.dynamic_rotate %29 by %c1_i32_38 dim 0 : vector<512x8xf32>, i32 -> vector<512x8xf32>
    %c511_i32_39 = arith.constant 511 : i32
    %31 = tpu.dynamic_rotate %29 by %c511_i32_39 dim 0 : vector<512x8xf32>, i32 -> vector<512x8xf32>
    %c2_i32 = arith.constant 2 : i32
    %32 = arith.addi %19, %c2_i32 : i32
    %33 = arith.index_cast %32 : i32 to index
    %c0_40 = arith.constant 0 : index
    %c0_41 = arith.constant 0 : index
    %34 = vector.load %arg5[%33, %c0_40, %c0_41] : memref<18x32x8xf32, #tpu.memory_space<vmem>>, vector<16x32x8xf32>
    %35 = vector.shape_cast %34 : vector<16x32x8xf32> to vector<512x8xf32>
    %c1_i32_42 = arith.constant 1 : i32
    %36 = tpu.dynamic_rotate %35 by %c1_i32_42 dim 0 : vector<512x8xf32>, i32 -> vector<512x8xf32>
    %c511_i32_43 = arith.constant 511 : i32
    %37 = tpu.dynamic_rotate %35 by %c511_i32_43 dim 0 : vector<512x8xf32>, i32 -> vector<512x8xf32>
    %38 = tpu.concatenate %24, %23, %25, %30, %29, %31, %36, %35, %37 in 1 : vector<512x8xf32>, vector<512x8xf32>, vector<512x8xf32>, vector<512x8xf32>, vector<512x8xf32>, vector<512x8xf32>, vector<512x8xf32>, vector<512x8xf32>, vector<512x8xf32> -> vector<512x72xf32>
    %c0_44 = arith.constant 0 : index
    %c0_45 = arith.constant 0 : index
    %39 = vector.load %arg2[%c0_44, %c0_45] : memref<72x32xf32, #tpu.memory_space<vmem>>, vector<72x32xf32>
    %cst_46 = arith.constant dense<0.000000e+00> : vector<512x32xf32>
    %40 = tpu.matmul %38, %39, %cst_46 {dimension_numbers = #tpu.dot_dimension_numbers<[1], [0], [0], [1], [0, 0, 1, 1], [], []>} : vector<512x72xf32>, vector<72x32xf32>, vector<512x32xf32> -> vector<512x32xf32>
    %41 = vector.shape_cast %40 : vector<512x32xf32> to vector<16x32x32xf32>
    %42 = vector.extract_strided_slice %41 {offsets = [0, 8, 0], sizes = [16, 16, 32], strides = [1, 1, 1]} : vector<16x32x32xf32> to vector<16x16x32xf32>
    %43 = vector.shape_cast %42 : vector<16x16x32xf32> to vector<256x32xf32>
    %cst_47 = arith.constant dense<0.000000e+00> : vector<32xf32>
    %44 = vector.multi_reduction <add>, %43, %cst_47 [0] : vector<256x32xf32> to vector<32xf32>
    %45 = vector.shape_cast %44 : vector<32xf32> to vector<1x32xf32>
    %46 = arith.addf %17, %45 : vector<1x32xf32>
    %47 = arith.mulf %43, %43 : vector<256x32xf32>
    %cst_48 = arith.constant dense<0.000000e+00> : vector<32xf32>
    %48 = vector.multi_reduction <add>, %47, %cst_48 [0] : vector<256x32xf32> to vector<32xf32>
    %49 = vector.shape_cast %48 : vector<32xf32> to vector<1x32xf32>
    %50 = arith.addf %17, %49 : vector<1x32xf32>
    %c16_i32_49 = arith.constant 16 : i32
    %51 = arith.muli %c0_i32, %c16_i32_49 : i32
    %c1_i32_50 = arith.constant 1 : i32
    %52 = arith.addi %51, %c1_i32_50 : i32
    %53 = arith.index_cast %52 : i32 to index
    %c8_51 = arith.constant 8 : index
    %c0_52 = arith.constant 0 : index
    %54 = vector.load %arg6[%53, %c8_51, %c0_52] : memref<18x32x32xf32, #tpu.memory_space<vmem>>, vector<16x16x32xf32>
    tpu.vector_store %arg6[%53, %c8_51, %c0_52], %42 {strides = array<i32>} : memref<18x32x32xf32, #tpu.memory_space<vmem>>, vector<16x16x32xf32>,
    %c1_i32_53 = arith.constant 1 : i32
    %cst_54 = arith.constant 3.906250e-03 : f32
    %55 = vector.broadcast %cst_54 : f32 to vector<1x32xf32>
    %56 = arith.mulf %46, %55 : vector<1x32xf32>
    %cst_55 = arith.constant 3.906250e-03 : f32
    %57 = vector.broadcast %cst_55 : f32 to vector<1x32xf32>
    %58 = arith.mulf %50, %57 : vector<1x32xf32>
    %59 = arith.mulf %56, %56 : vector<1x32xf32>
    %60 = arith.subf %58, %59 : vector<1x32xf32>
    %cst_56 = arith.constant 9.99999974E-6 : f32
    %61 = vector.broadcast %cst_56 : f32 to vector<1x32xf32>
    %62 = arith.addf %60, %61 : vector<1x32xf32>
    %63 = math.rsqrt %62 : vector<1x32xf32>
    %c1_57 = arith.constant 1 : index
    %c8_58 = arith.constant 8 : index
    %c0_59 = arith.constant 0 : index
    %64 = vector.load %arg6[%c1_57, %c8_58, %c0_59] : memref<18x32x32xf32, #tpu.memory_space<vmem>>, vector<16x16x32xf32>
    %65 = vector.shape_cast %56 : vector<1x32xf32> to vector<1x1x32xf32>
    %66 = vector.broadcast %65 : vector<1x1x32xf32> to vector<16x16x32xf32>
    %67 = arith.subf %64, %66 : vector<16x16x32xf32>
    %68 = vector.shape_cast %63 : vector<1x32xf32> to vector<1x1x32xf32>
    %69 = vector.broadcast %68 : vector<1x1x32xf32> to vector<16x16x32xf32>
    %70 = arith.mulf %67, %69 : vector<16x16x32xf32>
    %c1_60 = arith.constant 1 : index
    %c8_61 = arith.constant 8 : index
    %c0_62 = arith.constant 0 : index
    %71 = vector.load %arg6[%c1_60, %c8_61, %c0_62] : memref<18x32x32xf32, #tpu.memory_space<vmem>>, vector<16x16x32xf32>
    tpu.vector_store %arg6[%c1_60, %c8_61, %c0_62], %70 {strides = array<i32>} : memref<18x32x32xf32, #tpu.memory_space<vmem>>, vector<16x16x32xf32>,
    %cst_63 = arith.constant 0.000000e+00 : f32
    %72 = vector.broadcast %cst_63 : f32 to vector<1x32xf32>
    %c0_i32_64 = arith.constant 0 : i32
    %c16_i32_65 = arith.constant 16 : i32
    %73 = arith.muli %c0_i32_64, %c16_i32_65 : i32
    %74 = tpu.assume_multiple %73, 16 : i32
    %c0_i32_66 = arith.constant 0 : i32
    %75 = arith.addi %74, %c0_i32_66 : i32
    %76 = arith.index_cast %75 : i32 to index
    %c0_67 = arith.constant 0 : index
    %c0_68 = arith.constant 0 : index
    %77 = vector.load %arg6[%76, %c0_67, %c0_68] : memref<18x32x32xf32, #tpu.memory_space<vmem>>, vector<16x32x32xf32>
    %78 = vector.shape_cast %77 : vector<16x32x32xf32> to vector<512x32xf32>
    %c1_i32_69 = arith.constant 1 : i32
    %79 = tpu.dynamic_rotate %78 by %c1_i32_69 dim 0 : vector<512x32xf32>, i32 -> vector<512x32xf32>
    %c511_i32_70 = arith.constant 511 : i32
    %80 = tpu.dynamic_rotate %78 by %c511_i32_70 dim 0 : vector<512x32xf32>, i32 -> vector<512x32xf32>
    %c1_i32_71 = arith.constant 1 : i32
    %81 = arith.addi %74, %c1_i32_71 : i32
    %82 = arith.index_cast %81 : i32 to index
    %c0_72 = arith.constant 0 : index
    %c0_73 = arith.constant 0 : index
    %83 = vector.load %arg6[%82, %c0_72, %c0_73] : memref<18x32x32xf32, #tpu.memory_space<vmem>>, vector<16x32x32xf32>
    %84 = vector.shape_cast %83 : vector<16x32x32xf32> to vector<512x32xf32>
    %c1_i32_74 = arith.constant 1 : i32
    %85 = tpu.dynamic_rotate %84 by %c1_i32_74 dim 0 : vector<512x32xf32>, i32 -> vector<512x32xf32>
    %c511_i32_75 = arith.constant 511 : i32
    %86 = tpu.dynamic_rotate %84 by %c511_i32_75 dim 0 : vector<512x32xf32>, i32 -> vector<512x32xf32>
    %c2_i32_76 = arith.constant 2 : i32
    %87 = arith.addi %74, %c2_i32_76 : i32
    %88 = arith.index_cast %87 : i32 to index
    %c0_77 = arith.constant 0 : index
    %c0_78 = arith.constant 0 : index
    %89 = vector.load %arg6[%88, %c0_77, %c0_78] : memref<18x32x32xf32, #tpu.memory_space<vmem>>, vector<16x32x32xf32>
    %90 = vector.shape_cast %89 : vector<16x32x32xf32> to vector<512x32xf32>
    %c1_i32_79 = arith.constant 1 : i32
    %91 = tpu.dynamic_rotate %90 by %c1_i32_79 dim 0 : vector<512x32xf32>, i32 -> vector<512x32xf32>
    %c511_i32_80 = arith.constant 511 : i32
    %92 = tpu.dynamic_rotate %90 by %c511_i32_80 dim 0 : vector<512x32xf32>, i32 -> vector<512x32xf32>
    %93 = tpu.concatenate %79, %78, %80, %85, %84, %86, %91, %90, %92 in 1 : vector<512x32xf32>, vector<512x32xf32>, vector<512x32xf32>, vector<512x32xf32>, vector<512x32xf32>, vector<512x32xf32>, vector<512x32xf32>, vector<512x32xf32>, vector<512x32xf32> -> vector<512x288xf32>
    %c0_81 = arith.constant 0 : index
    %c0_82 = arith.constant 0 : index
    %94 = vector.load %arg3[%c0_81, %c0_82] : memref<288x32xf32, #tpu.memory_space<vmem>>, vector<288x32xf32>
    %cst_83 = arith.constant dense<0.000000e+00> : vector<512x32xf32>
    %95 = tpu.matmul %93, %94, %cst_83 {dimension_numbers = #tpu.dot_dimension_numbers<[1], [0], [0], [1], [0, 0, 1, 1], [], []>} : vector<512x288xf32>, vector<288x32xf32>, vector<512x32xf32> -> vector<512x32xf32>
    %96 = vector.shape_cast %95 : vector<512x32xf32> to vector<16x32x32xf32>
    %97 = vector.extract_strided_slice %96 {offsets = [0, 8, 0], sizes = [16, 16, 32], strides = [1, 1, 1]} : vector<16x32x32xf32> to vector<16x16x32xf32>
    %98 = vector.shape_cast %97 : vector<16x16x32xf32> to vector<256x32xf32>
    %cst_84 = arith.constant dense<0.000000e+00> : vector<32xf32>
    %99 = vector.multi_reduction <add>, %98, %cst_84 [0] : vector<256x32xf32> to vector<32xf32>
    %100 = vector.shape_cast %99 : vector<32xf32> to vector<1x32xf32>
    %101 = arith.addf %72, %100 : vector<1x32xf32>
    %102 = arith.mulf %98, %98 : vector<256x32xf32>
    %cst_85 = arith.constant dense<0.000000e+00> : vector<32xf32>
    %103 = vector.multi_reduction <add>, %102, %cst_85 [0] : vector<256x32xf32> to vector<32xf32>
    %104 = vector.shape_cast %103 : vector<32xf32> to vector<1x32xf32>
    %105 = arith.addf %72, %104 : vector<1x32xf32>
    %106 = vector.shape_cast %97 : vector<16x16x32xf32> to vector<8x2x16x32xf32>
    %cst_86 = arith.constant dense<0xFF800000> : vector<8x16x32xf32>
    %107 = vector.multi_reduction <maximumf>, %106, %cst_86 [1] : vector<8x2x16x32xf32> to vector<8x16x32xf32>
    %c8_i32 = arith.constant 8 : i32
    %108 = arith.muli %c0_i32_64, %c8_i32 : i32
    %109 = arith.index_cast %108 : i32 to index
    %c0_87 = arith.constant 0 : index
    %c0_88 = arith.constant 0 : index
    %110 = vector.load %arg7[%109, %c0_87, %c0_88] : memref<8x16x32xf32, #tpu.memory_space<vmem>>, vector<8x16x32xf32>
    tpu.vector_store %arg7[%109, %c0_87, %c0_88], %107 {strides = array<i32>} : memref<8x16x32xf32, #tpu.memory_space<vmem>>, vector<8x16x32xf32>,
    %c1_i32_89 = arith.constant 1 : i32
    %cst_90 = arith.constant 3.906250e-03 : f32
    %111 = vector.broadcast %cst_90 : f32 to vector<1x32xf32>
    %112 = arith.mulf %101, %111 : vector<1x32xf32>
    %cst_91 = arith.constant 3.906250e-03 : f32
    %113 = vector.broadcast %cst_91 : f32 to vector<1x32xf32>
    %114 = arith.mulf %105, %113 : vector<1x32xf32>
    %115 = arith.mulf %112, %112 : vector<1x32xf32>
    %116 = arith.subf %114, %115 : vector<1x32xf32>
    %cst_92 = arith.constant 9.99999974E-6 : f32
    %117 = vector.broadcast %cst_92 : f32 to vector<1x32xf32>
    %118 = arith.addf %116, %117 : vector<1x32xf32>
    %119 = math.rsqrt %118 : vector<1x32xf32>
    %c0_93 = arith.constant 0 : index
    %c0_94 = arith.constant 0 : index
    %c0_95 = arith.constant 0 : index
    %120 = vector.load %arg7[%c0_93, %c0_94, %c0_95] : memref<8x16x32xf32, #tpu.memory_space<vmem>>, vector<8x16x32xf32>
    %121 = vector.shape_cast %120 : vector<8x16x32xf32> to vector<8x8x2x32xf32>
    %cst_96 = arith.constant dense<0xFF800000> : vector<8x8x32xf32>
    %122 = vector.multi_reduction <maximumf>, %121, %cst_96 [2] : vector<8x8x2x32xf32> to vector<8x8x32xf32>
    %123 = vector.shape_cast %112 : vector<1x32xf32> to vector<1x1x32xf32>
    %124 = vector.broadcast %123 : vector<1x1x32xf32> to vector<8x8x32xf32>
    %125 = arith.subf %122, %124 : vector<8x8x32xf32>
    %126 = vector.shape_cast %119 : vector<1x32xf32> to vector<1x1x32xf32>
    %127 = vector.broadcast %126 : vector<1x1x32xf32> to vector<8x8x32xf32>
    %128 = arith.mulf %125, %127 : vector<8x8x32xf32>
    %c0_97 = arith.constant 0 : index
    %c0_98 = arith.constant 0 : index
    %c0_99 = arith.constant 0 : index
    %c0_100 = arith.constant 0 : index
    %129 = vector.load %arg4[%c0_97, %c0_98, %c0_99, %c0_100] : memref<1x8x8x32xf32, #tpu.memory_space<vmem>>, vector<1x8x8x32xf32>
    %130 = vector.shape_cast %129 : vector<1x8x8x32xf32> to vector<8x8x32xf32>
    %131 = vector.shape_cast %128 : vector<8x8x32xf32> to vector<1x8x8x32xf32>
    tpu.vector_store %arg4[%c0_97, %c0_98, %c0_99, %c0_100], %131 {strides = array<i32>} : memref<1x8x8x32xf32, #tpu.memory_space<vmem>>, vector<1x8x8x32xf32>,
    return
  }
  func.func @transform_0(%arg0: i32) -> (i32, i32, i32, i32) {
    %c0_i32 = arith.constant 0 : i32
    %c0_i32_0 = arith.constant 0 : i32
    %c0_i32_1 = arith.constant 0 : i32
    %c0_i32_2 = arith.constant 0 : i32
    return %arg0, %c0_i32, %c0_i32_0, %c0_i32_1 : i32, i32, i32, i32
  }
  func.func @transform_1(%arg0: i32) -> (i32, i32) {
    %c0_i32 = arith.constant 0 : i32
    %c0_i32_0 = arith.constant 0 : i32
    %c0_i32_1 = arith.constant 0 : i32
    return %c0_i32, %c0_i32_0 : i32, i32
  }
  func.func @transform_2(%arg0: i32) -> (i32, i32) {
    %c0_i32 = arith.constant 0 : i32
    %c0_i32_0 = arith.constant 0 : i32
    %c0_i32_1 = arith.constant 0 : i32
    return %c0_i32, %c0_i32_0 : i32, i32
  }
  func.func @transform_3(%arg0: i32) -> (i32, i32, i32, i32) {
    %c0_i32 = arith.constant 0 : i32
    %c0_i32_0 = arith.constant 0 : i32
    %c0_i32_1 = arith.constant 0 : i32
    %c0_i32_2 = arith.constant 0 : i32
    return %arg0, %c0_i32, %c0_i32_0, %c0_i32_1 : i32, i32, i32, i32
  }
}

</mosaic_0001>

<llo_original>
// kernel: tpu_custom_call.1
$region0: #{tpu_custom_call.1}
  #allocation0 [shape = 'u32[]', space=smem, size = 0x4, offset = 0x4, fixed_abs, tag = 'smem constant byte address 0x4 - core index']
  #allocation1 [shape = 'u32[144,128]{1,0:T(1,128)}', space=vmem, size = 0x12000, scoped, tag = 'internal scratch']
  #allocation2 [shape = 'f32[18,32,8]{2,1,0:T(8,128)}', space=vmem, size = 0x48000, scoped, tag = 'scratch operand']
  #allocation3 [shape = 'f32[18,32,32]{2,1,0:T(8,128)}', space=vmem, size = 0x48000, scoped, tag = 'scratch operand']
  #allocation4 [shape = 'f32[8,16,32]{2,1,0:T(8,128)}', space=vmem, size = 0x10000, scoped, tag = 'scratch operand']
  %s0 = inlined_call_operand.vmem [shape: f32[2,16,16,8], index: 0, kind: input, shape index: {}]
  %s1 = inlined_call_operand.vmem [shape: f32[72,32], index: 1, kind: input, shape index: {}]
  %s2 = inlined_call_operand.vmem [shape: f32[288,32], index: 2, kind: input, shape index: {}]
  %s3 = inlined_call_operand.hbm [shape: f32[2,8,8,32], index: 3, kind: output, shape index: {}]
  %s4 = sld [smem:[#allocation0]]
  $region45: #{tpu_custom_call.1} parent=0
    _
  %s6 = ssub.s32 1, %s4
  %s7 = scalar_select 0, %s6, %s4
  $region1: #{tpu_custom_call.1} parent=0
    #allocation5 [shape = 'u8[65536]{0}', space=vmem, size = 0x10000, scoped, tag = 'output window, operand 0']
    #allocation6 [shape = 's32[2]{0}', space=sflag, size = 0x8, scoped, tag = 'scoped memory for tpu_custom_call.1']
    %8 = vsyncpa [#allocation6], 0
    %s9 = scalar_lea.sflag [#allocation6], 1
    %10 = vsyncpa %s9, 0
    loop: start=0, step=1, limit=4
    $region2: #{tpu_custom_call.1} parent=1 // loop_pre_header
      _
    $region3: #{tpu_custom_call.1} parent=1 // loop_header
      %s12 = sphi 0, %s16
      %p13 = scmp.ge.s32.totalorder %s12, 4
      %s22 = sphi 0, %s24
      %s25 = sphi 0, %s22
      %s26 = sphi 0, %s25
      %s42 = sphi 0, %s26
      %s46 = sphi 0, %s46
      %s48 = sphi 0, %s46
      %s49 = sphi 0, %s48
      %s63 = sphi 0, %s49
      %s67 = sphi 0, %s67
      %s69 = sphi 0, %s67
      %s70 = sphi 0, %s69
      %s84 = sphi 0, %s70
      %s90 = sphi 0, %s92
      %s93 = sphi 0, %s90
      %s94 = sphi 0, %s93
      %s110 = sphi 0, %s94
    $region4: #{tpu_custom_call.1} parent=1 // loop_header_branch
      %15 = sbr.rel (%p13) target = $region8
    $region5: #{tpu_custom_call.1} parent=1 // loop_body
      %s17 = ssub.s32 %s12, 1
      %s18 = ssub.s32 %s12, 2
      %s19 = sadd.s32 %s12, 1
      %s20 = ssub.s32 %s12, %s19
      %p21 = scmp.eq.s32.totalorder %s20, 0
      %s23 = sadd.s32 %s22, 1
      %s24 = scalar_select %p21, %s22, %s23
      %p27 = pneg %p21
      %p28 = scmp.eq.s32.totalorder %s12, 1
      %p29 = por %p27, %p28
      %p30 = scmp.ne.s32.totalorder %s22, %s25
      %p31 = scmp.eq.s32.totalorder %s12, 0
      %p32 = por %p30, %p31
      %p33 = scmp.ne.s32.totalorder %s22, %s25
      %p34 = scmp.eq.s32.totalorder %s17, 1
      %p35 = por %p33, %p34
      %p36 = scmp.ne.s32.totalorder %s25, %s26
      %p37 = scmp.eq.s32.totalorder %s17, 0
      %p38 = por %p36, %p37
      %p39 = scmp.ne.s32.totalorder %s25, %s26
      %p40 = scmp.eq.s32.totalorder %s18, 1
      %p41 = por %p39, %p40
      %p43 = scmp.ne.s32.totalorder %s26, %s42
      %p44 = scmp.eq.s32.totalorder %s18, 0
      %p45 = por %p43, %p44
      %s47 = sadd.s32 %s46, 1
      %p50 = scmp.eq.s32.totalorder %s12, 1
      %p51 = scmp.ne.s32.totalorder %s46, %s48
      %p52 = scmp.eq.s32.totalorder %s12, 0
      %p53 = por %p51, %p52
      %p54 = scmp.ne.s32.totalorder %s46, %s48
      %p55 = scmp.eq.s32.totalorder %s17, 1
      %p56 = por %p54, %p55
      %p57 = scmp.ne.s32.totalorder %s48, %s49
      %p58 = scmp.eq.s32.totalorder %s17, 0
      %p59 = por %p57, %p58
      %p60 = scmp.ne.s32.totalorder %s48, %s49
      %p61 = scmp.eq.s32.totalorder %s18, 1
      %p62 = por %p60, %p61
      %p64 = scmp.ne.s32.totalorder %s49, %s63
      %p65 = scmp.eq.s32.totalorder %s18, 0
      %p66 = por %p64, %p65
      %s68 = sadd.s32 %s67, 1
      %p71 = scmp.eq.s32.totalorder %s12, 1
      %p72 = scmp.ne.s32.totalorder %s67, %s69
      %p73 = scmp.eq.s32.totalorder %s12, 0
      %p74 = por %p72, %p73
      %p75 = scmp.ne.s32.totalorder %s67, %s69
      %p76 = scmp.eq.s32.totalorder %s17, 1
      %p77 = por %p75, %p76
      %p78 = scmp.ne.s32.totalorder %s69, %s70
      %p79 = scmp.eq.s32.totalorder %s17, 0
      %p80 = por %p78, %p79
      %p81 = scmp.ne.s32.totalorder %s69, %s70
      %p82 = scmp.eq.s32.totalorder %s18, 1
      %p83 = por %p81, %p82
      %p85 = scmp.ne.s32.totalorder %s70, %s84
      %p86 = scmp.eq.s32.totalorder %s18, 0
      %p87 = por %p85, %p86
      %s88 = ssub.s32 %s12, %s19
      %p89 = scmp.eq.s32.totalorder %s88, 0
      %s91 = sadd.s32 %s90, 1
      %s92 = scalar_select %p89, %s90, %s91
      %p95 = pneg %p89
      %p96 = scmp.eq.s32.totalorder %s12, 1
      %p97 = por %p95, %p96
      %p98 = scmp.ne.s32.totalorder %s90, %s93
      %p99 = scmp.eq.s32.totalorder %s12, 0
      %p100 = por %p98, %p99
      %p101 = scmp.ne.s32.totalorder %s90, %s93
      %p102 = scmp.eq.s32.totalorder %s17, 1
      %p103 = por %p101, %p102
      %p104 = scmp.ne.s32.totalorder %s93, %s94
      %p105 = scmp.eq.s32.totalorder %s17, 0
      %p106 = por %p104, %p105
      %p107 = scmp.ne.s32.totalorder %s93, %s94
      %p108 = scmp.eq.s32.totalorder %s18, 1
      %p109 = por %p107, %p108
      %p111 = scmp.ne.s32.totalorder %s94, %s110
      %p112 = scmp.eq.s32.totalorder %s18, 0
      %p113 = por %p111, %p112
      %p114 = scmp.le.s32.totalorder 1, %s12
      %p115 = scmp.lt.s32.totalorder %s12, 3
      %p116 = pnand %p114, %p115
      %p117 = pneg %p116
      // Predicated region
      $region9: #{tpu_custom_call.1} parent=5 // pred_check
        _
      $region10: #{tpu_custom_call.1} parent=5 // pred_check_branch
        %119 = sbr.rel (%p116) target = $region12
      $region11: #{tpu_custom_call.1} parent=5 // pred_region
        %s120 = ssub.s32 %s12, 1
        // Predicated region
        $region13: #{tpu_custom_call.1} parent=11 // pred_check
          %p121 = pneg %p59
        $region14: #{tpu_custom_call.1} parent=11 // pred_check_branch
          %123 = sbr.rel (%p121) target = $region16
        $region15: #{tpu_custom_call.1} parent=11 // pred_region
          _
        $region16: #{tpu_custom_call.1} parent=11 // pred_fallthru
          _
        // Predicated region
        $region17: #{tpu_custom_call.1} parent=11 // pred_check
          %p124 = pneg %p80
        $region18: #{tpu_custom_call.1} parent=11 // pred_check_branch
          %126 = sbr.rel (%p124) target = $region20
        $region19: #{tpu_custom_call.1} parent=11 // pred_region
          _
        $region20: #{tpu_custom_call.1} parent=11 // pred_fallthru
          _
      $region12: #{tpu_custom_call.1} parent=5 // pred_fallthru
        _
      %p127 = scmp.lt.s32.totalorder %s12, 2
      // Predicated region
      $region21: #{tpu_custom_call.1} parent=5 // pred_check
        %p128 = pneg %p127
      $region22: #{tpu_custom_call.1} parent=5 // pred_check_branch
        %130 = sbr.rel (%p128) target = $region24
      $region23: #{tpu_custom_call.1} parent=5 // pred_region
        // Predicated region
        $region25: #{tpu_custom_call.1} parent=23 // pred_check
          %p131 = pneg %p32
        $region26: #{tpu_custom_call.1} parent=23 // pred_check_branch
          %133 = sbr.rel (%p131) target = $region28
        $region27: #{tpu_custom_call.1} parent=23 // pred_region
          %p134 = scmp.lt.s32.totalorder %s12, 1
          %s135 = scalar_select %p134, %s12, 1
          %s136 = smul.addr %s135, 32
          %s137 = smul.addr %s136, 8
          %s138 = scalar_lea.vmem %s0, %s137
        $region28: #{tpu_custom_call.1} parent=23 // pred_fallthru
          _
      $region24: #{tpu_custom_call.1} parent=5 // pred_fallthru
        _
      %p139 = scmp.le.s32.totalorder 1, %s12
      %p140 = scmp.lt.s32.totalorder %s12, 3
      %p141 = pnand %p139, %p140
      %p142 = pneg %p141
      // Predicated region
      $region29: #{tpu_custom_call.1} parent=5 // pred_check
        _
      $region30: #{tpu_custom_call.1} parent=5 // pred_check_branch
        %144 = sbr.rel (%p141) target = $region32
      $region31: #{tpu_custom_call.1} parent=5 // pred_region
        %s145 = ssub.s32 %s12, 1
        %p146 = scmp.lt.s32.totalorder %s17, 1
        %s147 = scalar_select %p146, %s17, 1
        %s148 = smul.addr %s147, 32
        %s149 = smul.addr %s148, 8
        %s150 = scalar_lea.vmem %s0, %s149
        %p151 = pneg %p38
        %p152 = pneg %p35
        %p153 = pneg %p59
        %p154 = pneg %p56
        %p155 = pneg %p80
        %p156 = pneg %p77
        %p157 = pneg %p106
        %p158 = pneg %p103
        %s159 = sand.u32 %s93, 1
        %s160 = scalar_lea.sflag [#allocation6], %s159
        %s161 = sand.u32 %s93, 1
        %s162 = smul.addr %s161, 64
        %s163 = scalar_lea.vmem [#allocation5], %s162
        %p164 = scmp.lt.s32.totalorder %s17, 1
        %s165 = scalar_select %p164, %s17, 1
        %s166 = smul.addr %s165, 32
        %s167 = smul.addr %s166, 8
        %s168 = scalar_lea.vmem %s0, %s167
        %vm169 = vcmask 64512
        %170 = vst.msk [vmem:[#allocation2] sm:$0xff] %vm169, 0.0
        %171 = vst.msk [vmem:[#allocation2 + $0x8] sm:$0xff] %vm169, 0.0
        %172 = vst.msk [vmem:[#allocation2 + $0x10] sm:$0xff] %vm169, 0.0
        %173 = vst.msk [vmem:[#allocation2 + $0x18] sm:$0xff] %vm169, 0.0
        %s174 = scalar_lea.vmem [#allocation2], 544
        %175 = vst.msk [vmem:[%s174] sm:$0xff] %vm169, 0.0
        %176 = vst.msk [vmem:[%s174 + $0x8] sm:$0xff] %vm169, 0.0
        %177 = vst.msk [vmem:[%s174 + $0x10] sm:$0xff] %vm169, 0.0
        %178 = vst.msk [vmem:[%s174 + $0x18] sm:$0xff] %vm169, 0.0
        %s179 = scalar_lea.vmem [#allocation2], 32
        %180 = vst.msk [vmem:[%s179] sm:$0xff] %vm169, 0.0
        %181 = vst.msk [vmem:[%s179 + $0x20] sm:$0xff] %vm169, 0.0
        %182 = vst.msk [vmem:[%s179 + $0x40] sm:$0xff] %vm169, 0.0
        %183 = vst.msk [vmem:[%s179 + $0x60] sm:$0xff] %vm169, 0.0
        %184 = vst.msk [vmem:[%s179 + $0x80] sm:$0xff] %vm169, 0.0
        %185 = vst.msk [vmem:[%s179 + $0xa0] sm:$0xff] %vm169, 0.0
        %186 = vst.msk [vmem:[%s179 + $0xc0] sm:$0xff] %vm169, 0.0
        %187 = vst.msk [vmem:[%s179 + $0xe0] sm:$0xff] %vm169, 0.0
        %188 = vst.msk [vmem:[%s179 + $0x100] sm:$0xff] %vm169, 0.0
        %189 = vst.msk [vmem:[%s179 + $0x120] sm:$0xff] %vm169, 0.0
        %190 = vst.msk [vmem:[%s179 + $0x140] sm:$0xff] %vm169, 0.0
        %191 = vst.msk [vmem:[%s179 + $0x160] sm:$0xff] %vm169, 0.0
        %192 = vst.msk [vmem:[%s179 + $0x180] sm:$0xff] %vm169, 0.0
        %193 = vst.msk [vmem:[%s179 + $0x1a0] sm:$0xff] %vm169, 0.0
        %194 = vst.msk [vmem:[%s179 + $0x1c0] sm:$0xff] %vm169, 0.0
        %195 = vst.msk [vmem:[%s179 + $0x1e0] sm:$0xff] %vm169, 0.0
        %196 = vst.msk [vmem:[%s179 + $0x18] sm:$0xff] %vm169, 0.0
        %197 = vst.msk [vmem:[%s179 + $0x38] sm:$0xff] %vm169, 0.0
        %198 = vst.msk [vmem:[%s179 + $0x58] sm:$0xff] %vm169, 0.0
        %199 = vst.msk [vmem:[%s179 + $0x78] sm:$0xff] %vm169, 0.0
        %200 = vst.msk [vmem:[%s179 + $0x98] sm:$0xff] %vm169, 0.0
        %201 = vst.msk [vmem:[%s179 + $0xb8] sm:$0xff] %vm169, 0.0
        %202 = vst.msk [vmem:[%s179 + $0xd8] sm:$0xff] %vm169, 0.0
        %203 = vst.msk [vmem:[%s179 + $0xf8] sm:$0xff] %vm169, 0.0
        %204 = vst.msk [vmem:[%s179 + $0x118] sm:$0xff] %vm169, 0.0
        %205 = vst.msk [vmem:[%s179 + $0x138] sm:$0xff] %vm169, 0.0
        %206 = vst.msk [vmem:[%s179 + $0x158] sm:$0xff] %vm169, 0.0
        %207 = vst.msk [vmem:[%s179 + $0x178] sm:$0xff] %vm169, 0.0
        %208 = vst.msk [vmem:[%s179 + $0x198] sm:$0xff] %vm169, 0.0
        %209 = vst.msk [vmem:[%s179 + $0x1b8] sm:$0xff] %vm169, 0.0
        %210 = vst.msk [vmem:[%s179 + $0x1d8] sm:$0xff] %vm169, 0.0
        %211 = vst.msk [vmem:[%s179 + $0x1f8] sm:$0xff] %vm169, 0.0
        %vm212 = vcmask 261120
        %213 = vst.msk [vmem:[#allocation3] sm:$0xff] %vm212, 0.0
        %214 = vst.msk [vmem:[#allocation3 + $0x8] sm:$0xff] %vm212, 0.0
        %215 = vst.msk [vmem:[#allocation3 + $0x10] sm:$0xff] %vm212, 0.0
        %216 = vst.msk [vmem:[#allocation3 + $0x18] sm:$0xff] %vm212, 0.0
        %s217 = scalar_lea.vmem [#allocation3], 544
        %218 = vst.msk [vmem:[%s217] sm:$0xff] %vm212, 0.0
        %219 = vst.msk [vmem:[%s217 + $0x8] sm:$0xff] %vm212, 0.0
        %220 = vst.msk [vmem:[%s217 + $0x10] sm:$0xff] %vm212, 0.0
        %221 = vst.msk [vmem:[%s217 + $0x18] sm:$0xff] %vm212, 0.0
        %s222 = scalar_lea.vmem [#allocation3], 32
        %223 = vst.msk [vmem:[%s222] sm:$0xff] %vm212, 0.0
        %224 = vst.msk [vmem:[%s222 + $0x20] sm:$0xff] %vm212, 0.0
        %225 = vst.msk [vmem:[%s222 + $0x40] sm:$0xff] %vm212, 0.0
        %226 = vst.msk [vmem:[%s222 + $0x60] sm:$0xff] %vm212, 0.0
        %227 = vst.msk [vmem:[%s222 + $0x80] sm:$0xff] %vm212, 0.0
        %228 = vst.msk [vmem:[%s222 + $0xa0] sm:$0xff] %vm212, 0.0
        %229 = vst.msk [vmem:[%s222 + $0xc0] sm:$0xff] %vm212, 0.0
        %230 = vst.msk [vmem:[%s222 + $0xe0] sm:$0xff] %vm212, 0.0
        %231 = vst.msk [vmem:[%s222 + $0x100] sm:$0xff] %vm212, 0.0
        %232 = vst.msk [vmem:[%s222 + $0x120] sm:$0xff] %vm212, 0.0
        %233 = vst.msk [vmem:[%s222 + $0x140] sm:$0xff] %vm212, 0.0
        %234 = vst.msk [vmem:[%s222 + $0x160] sm:$0xff] %vm212, 0.0
        %235 = vst.msk [vmem:[%s222 + $0x180] sm:$0xff] %vm212, 0.0
        %236 = vst.msk [vmem:[%s222 + $0x1a0] sm:$0xff] %vm212, 0.0
        %237 = vst.msk [vmem:[%s222 + $0x1c0] sm:$0xff] %vm212, 0.0
        %238 = vst.msk [vmem:[%s222 + $0x1e0] sm:$0xff] %vm212, 0.0
        %239 = vst.msk [vmem:[%s222 + $0x18] sm:$0xff] %vm212, 0.0
        %240 = vst.msk [vmem:[%s222 + $0x38] sm:$0xff] %vm212, 0.0
        %241 = vst.msk [vmem:[%s222 + $0x58] sm:$0xff] %vm212, 0.0
        %242 = vst.msk [vmem:[%s222 + $0x78] sm:$0xff] %vm212, 0.0
        %243 = vst.msk [vmem:[%s222 + $0x98] sm:$0xff] %vm212, 0.0
        %244 = vst.msk [vmem:[%s222 + $0xb8] sm:$0xff] %vm212, 0.0
        %245 = vst.msk [vmem:[%s222 + $0xd8] sm:$0xff] %vm212, 0.0
        %246 = vst.msk [vmem:[%s222 + $0xf8] sm:$0xff] %vm212, 0.0
        %247 = vst.msk [vmem:[%s222 + $0x118] sm:$0xff] %vm212, 0.0
        %248 = vst.msk [vmem:[%s222 + $0x138] sm:$0xff] %vm212, 0.0
        %249 = vst.msk [vmem:[%s222 + $0x158] sm:$0xff] %vm212, 0.0
        %250 = vst.msk [vmem:[%s222 + $0x178] sm:$0xff] %vm212, 0.0
        %251 = vst.msk [vmem:[%s222 + $0x198] sm:$0xff] %vm212, 0.0
        %252 = vst.msk [vmem:[%s222 + $0x1b8] sm:$0xff] %vm212, 0.0
        %253 = vst.msk [vmem:[%s222 + $0x1d8] sm:$0xff] %vm212, 0.0
        %254 = vst.msk [vmem:[%s222 + $0x1f8] sm:$0xff] %vm212, 0.0
        %v255 = vld [vmem:[%s168] sm:$0xff]
        %v256 = vld [vmem:[%s168 + $0x8] sm:$0xff]
        %v257 = vld [vmem:[%s168 + $0x10] sm:$0xff]
        %v258 = vld [vmem:[%s168 + $0x18] sm:$0xff]
        %v259 = vld [vmem:[%s168 + $0x20] sm:$0xff]
        %v260 = vld [vmem:[%s168 + $0x28] sm:$0xff]
        %v261 = vld [vmem:[%s168 + $0x30] sm:$0xff]
        %v262 = vld [vmem:[%s168 + $0x38] sm:$0xff]
        %v263 = vld [vmem:[%s168 + $0x40] sm:$0xff]
        %v264 = vld [vmem:[%s168 + $0x48] sm:$0xff]
        %v265 = vld [vmem:[%s168 + $0x50] sm:$0xff]
        %v266 = vld [vmem:[%s168 + $0x58] sm:$0xff]
        %v267 = vld [vmem:[%s168 + $0x60] sm:$0xff]
        %v268 = vld [vmem:[%s168 + $0x68] sm:$0xff]
        %v269 = vld [vmem:[%s168 + $0x70] sm:$0xff]
        %v270 = vld [vmem:[%s168 + $0x78] sm:$0xff]
        %v271 = vld [vmem:[%s168 + $0x80] sm:$0xff]
        %v272 = vld [vmem:[%s168 + $0x88] sm:$0xff]
        %v273 = vld [vmem:[%s168 + $0x90] sm:$0xff]
        %v274 = vld [vmem:[%s168 + $0x98] sm:$0xff]
        %v275 = vld [vmem:[%s168 + $0xa0] sm:$0xff]
        %v276 = vld [vmem:[%s168 + $0xa8] sm:$0xff]
        %v277 = vld [vmem:[%s168 + $0xb0] sm:$0xff]
        %v278 = vld [vmem:[%s168 + $0xb8] sm:$0xff]
        %v279 = vld [vmem:[%s168 + $0xc0] sm:$0xff]
        %v280 = vld [vmem:[%s168 + $0xc8] sm:$0xff]
        %v281 = vld [vmem:[%s168 + $0xd0] sm:$0xff]
        %v282 = vld [vmem:[%s168 + $0xd8] sm:$0xff]
        %v283 = vld [vmem:[%s168 + $0xe0] sm:$0xff]
        %v284 = vld [vmem:[%s168 + $0xe8] sm:$0xff]
        %v285 = vld [vmem:[%s168 + $0xf0] sm:$0xff]
        %v286 = vld [vmem:[%s168 + $0xf8] sm:$0xff]
        %287 = vst.msk [vmem:[%s179 + $0x8] sm:$0xff] %vm169, %v255
        %288 = vst.msk [vmem:[%s179 + $0x10] sm:$0xff] %vm169, %v256
        %289 = vst.msk [vmem:[%s179 + $0x28] sm:$0xff] %vm169, %v257
        %290 = vst.msk [vmem:[%s179 + $0x30] sm:$0xff] %vm169, %v258
        %291 = vst.msk [vmem:[%s179 + $0x48] sm:$0xff] %vm169, %v259
        %292 = vst.msk [vmem:[%s179 + $0x50] sm:$0xff] %vm169, %v260
        %293 = vst.msk [vmem:[%s179 + $0x68] sm:$0xff] %vm169, %v261
        %294 = vst.msk [vmem:[%s179 + $0x70] sm:$0xff] %vm169, %v262
        %295 = vst.msk [vmem:[%s179 + $0x88] sm:$0xff] %vm169, %v263
        %296 = vst.msk [vmem:[%s179 + $0x90] sm:$0xff] %vm169, %v264
        %297 = vst.msk [vmem:[%s179 + $0xa8] sm:$0xff] %vm169, %v265
        %298 = vst.msk [vmem:[%s179 + $0xb0] sm:$0xff] %vm169, %v266
        %299 = vst.msk [vmem:[%s179 + $0xc8] sm:$0xff] %vm169, %v267
        %300 = vst.msk [vmem:[%s179 + $0xd0] sm:$0xff] %vm169, %v268
        %301 = vst.msk [vmem:[%s179 + $0xe8] sm:$0xff] %vm169, %v269
        %302 = vst.msk [vmem:[%s179 + $0xf0] sm:$0xff] %vm169, %v270
        %303 = vst.msk [vmem:[%s179 + $0x108] sm:$0xff] %vm169, %v271
        %304 = vst.msk [vmem:[%s179 + $0x110] sm:$0xff] %vm169, %v272
        %305 = vst.msk [vmem:[%s179 + $0x128] sm:$0xff] %vm169, %v273
        %306 = vst.msk [vmem:[%s179 + $0x130] sm:$0xff] %vm169, %v274
        %307 = vst.msk [vmem:[%s179 + $0x148] sm:$0xff] %vm169, %v275
        %308 = vst.msk [vmem:[%s179 + $0x150] sm:$0xff] %vm169, %v276
        %309 = vst.msk [vmem:[%s179 + $0x168] sm:$0xff] %vm169, %v277
        %310 = vst.msk [vmem:[%s179 + $0x170] sm:$0xff] %vm169, %v278
        %311 = vst.msk [vmem:[%s179 + $0x188] sm:$0xff] %vm169, %v279
        %312 = vst.msk [vmem:[%s179 + $0x190] sm:$0xff] %vm169, %v280
        %313 = vst.msk [vmem:[%s179 + $0x1a8] sm:$0xff] %vm169, %v281
        %314 = vst.msk [vmem:[%s179 + $0x1b0] sm:$0xff] %vm169, %v282
        %315 = vst.msk [vmem:[%s179 + $0x1c8] sm:$0xff] %vm169, %v283
        %316 = vst.msk [vmem:[%s179 + $0x1d0] sm:$0xff] %vm169, %v284
        %317 = vst.msk [vmem:[%s179 + $0x1e8] sm:$0xff] %vm169, %v285
        %318 = vst.msk [vmem:[%s179 + $0x1f0] sm:$0xff] %vm169, %v286
        %s319 = smul.u32 0, 32
        %s320 = scalar_lea.vmem [#allocation2], %s319
        %v321 = vld [vmem:[%s320] sm:$0xff]
        %v322 = vld [vmem:[%s320 + $0x8] sm:$0xff]
        %v323 = vld [vmem:[%s320 + $0x10] sm:$0xff]
        %v324 = vld [vmem:[%s320 + $0x18] sm:$0xff]
        %v325 = vld [vmem:[%s320 + $0x20] sm:$0xff]
        %v326 = vld [vmem:[%s320 + $0x28] sm:$0xff]
        %v327 = vld [vmem:[%s320 + $0x30] sm:$0xff]
        %v328 = vld [vmem:[%s320 + $0x38] sm:$0xff]
        %v329 = vld [vmem:[%s320 + $0x40] sm:$0xff]
        %v330 = vld [vmem:[%s320 + $0x48] sm:$0xff]
        %v331 = vld [vmem:[%s320 + $0x50] sm:$0xff]
        %v332 = vld [vmem:[%s320 + $0x58] sm:$0xff]
        %v333 = vld [vmem:[%s320 + $0x60] sm:$0xff]
        %v334 = vld [vmem:[%s320 + $0x68] sm:$0xff]
        %v335 = vld [vmem:[%s320 + $0x70] sm:$0xff]
        %v336 = vld [vmem:[%s320 + $0x78] sm:$0xff]
        %v337 = vld [vmem:[%s320 + $0x80] sm:$0xff]
        %v338 = vld [vmem:[%s320 + $0x88] sm:$0xff]
        %v339 = vld [vmem:[%s320 + $0x90] sm:$0xff]
        %v340 = vld [vmem:[%s320 + $0x98] sm:$0xff]
        %v341 = vld [vmem:[%s320 + $0xa0] sm:$0xff]
        %v342 = vld [vmem:[%s320 + $0xa8] sm:$0xff]
        %v343 = vld [vmem:[%s320 + $0xb0] sm:$0xff]
        %v344 = vld [vmem:[%s320 + $0xb8] sm:$0xff]
        %v345 = vld [vmem:[%s320 + $0xc0] sm:$0xff]
        %v346 = vld [vmem:[%s320 + $0xc8] sm:$0xff]
        %v347 = vld [vmem:[%s320 + $0xd0] sm:$0xff]
        %v348 = vld [vmem:[%s320 + $0xd8] sm:$0xff]
        %v349 = vld [vmem:[%s320 + $0xe0] sm:$0xff]
        %v350 = vld [vmem:[%s320 + $0xe8] sm:$0xff]
        %v351 = vld [vmem:[%s320 + $0xf0] sm:$0xff]
        %v352 = vld [vmem:[%s320 + $0xf8] sm:$0xff]
        %v353 = vld [vmem:[%s320 + $0x100] sm:$0xff]
        %v354 = vld [vmem:[%s320 + $0x108] sm:$0xff]
        %v355 = vld [vmem:[%s320 + $0x110] sm:$0xff]
        %v356 = vld [vmem:[%s320 + $0x118] sm:$0xff]
        %v357 = vld [vmem:[%s320 + $0x120] sm:$0xff]
        %v358 = vld [vmem:[%s320 + $0x128] sm:$0xff]
        %v359 = vld [vmem:[%s320 + $0x130] sm:$0xff]
        %v360 = vld [vmem:[%s320 + $0x138] sm:$0xff]
        %v361 = vld [vmem:[%s320 + $0x140] sm:$0xff]
        %v362 = vld [vmem:[%s320 + $0x148] sm:$0xff]
        %v363 = vld [vmem:[%s320 + $0x150] sm:$0xff]
        %v364 = vld [vmem:[%s320 + $0x158] sm:$0xff]
        %v365 = vld [vmem:[%s320 + $0x160] sm:$0xff]
        %v366 = vld [vmem:[%s320 + $0x168] sm:$0xff]
        %v367 = vld [vmem:[%s320 + $0x170] sm:$0xff]
        %v368 = vld [vmem:[%s320 + $0x178] sm:$0xff]
        %v369 = vld [vmem:[%s320 + $0x180] sm:$0xff]
        %v370 = vld [vmem:[%s320 + $0x188] sm:$0xff]
        %v371 = vld [vmem:[%s320 + $0x190] sm:$0xff]
        %v372 = vld [vmem:[%s320 + $0x198] sm:$0xff]
        %v373 = vld [vmem:[%s320 + $0x1a0] sm:$0xff]
        %v374 = vld [vmem:[%s320 + $0x1a8] sm:$0xff]
        %v375 = vld [vmem:[%s320 + $0x1b0] sm:$0xff]
        %v376 = vld [vmem:[%s320 + $0x1b8] sm:$0xff]
        %v377 = vld [vmem:[%s320 + $0x1c0] sm:$0xff]
        %v378 = vld [vmem:[%s320 + $0x1c8] sm:$0xff]
        %v379 = vld [vmem:[%s320 + $0x1d0] sm:$0xff]
        %v380 = vld [vmem:[%s320 + $0x1d8] sm:$0xff]
        %v381 = vld [vmem:[%s320 + $0x1e0] sm:$0xff]
        %v382 = vld [vmem:[%s320 + $0x1e8] sm:$0xff]
        %v383 = vld [vmem:[%s320 + $0x1f0] sm:$0xff]
        %v384 = vld [vmem:[%s320 + $0x1f8] sm:$0xff]
        %v385 = vrot.slane %v321, 7
        %v386 = vrot.slane %v322, 7
        %v387 = vrot.slane %v323, 7
        %v388 = vrot.slane %v324, 7
        %v389 = vrot.slane %v325, 7
        %v390 = vrot.slane %v326, 7
        %v391 = vrot.slane %v327, 7
        %v392 = vrot.slane %v328, 7
        %v393 = vrot.slane %v329, 7
        %v394 = vrot.slane %v330, 7
        %v395 = vrot.slane %v331, 7
        %v396 = vrot.slane %v332, 7
        %v397 = vrot.slane %v333, 7
        %v398 = vrot.slane %v334, 7
        %v399 = vrot.slane %v335, 7
        %v400 = vrot.slane %v336, 7
        %v401 = vrot.slane %v337, 7
        %v402 = vrot.slane %v338, 7
        %v403 = vrot.slane %v339, 7
        %v404 = vrot.slane %v340, 7
        %v405 = vrot.slane %v341, 7
        %v406 = vrot.slane %v342, 7
        %v407 = vrot.slane %v343, 7
        %v408 = vrot.slane %v344, 7
        %v409 = vrot.slane %v345, 7
        %v410 = vrot.slane %v346, 7
        %v411 = vrot.slane %v347, 7
        %v412 = vrot.slane %v348, 7
        %v413 = vrot.slane %v349, 7
        %v414 = vrot.slane %v350, 7
        %v415 = vrot.slane %v351, 7
        %v416 = vrot.slane %v352, 7
        %v417 = vrot.slane %v353, 7
        %v418 = vrot.slane %v354, 7
        %v419 = vrot.slane %v355, 7
        %v420 = vrot.slane %v356, 7
        %v421 = vrot.slane %v357, 7
        %v422 = vrot.slane %v358, 7
        %v423 = vrot.slane %v359, 7
        %v424 = vrot.slane %v360, 7
        %v425 = vrot.slane %v361, 7
        %v426 = vrot.slane %v362, 7
        %v427 = vrot.slane %v363, 7
        %v428 = vrot.slane %v364, 7
        %v429 = vrot.slane %v365, 7
        %v430 = vrot.slane %v366, 7
        %v431 = vrot.slane %v367, 7
        %v432 = vrot.slane %v368, 7
        %v433 = vrot.slane %v369, 7
        %v434 = vrot.slane %v370, 7
        %v435 = vrot.slane %v371, 7
        %v436 = vrot.slane %v372, 7
        %v437 = vrot.slane %v373, 7
        %v438 = vrot.slane %v374, 7
        %v439 = vrot.slane %v375, 7
        %v440 = vrot.slane %v376, 7
        %v441 = vrot.slane %v377, 7
        %v442 = vrot.slane %v378, 7
        %v443 = vrot.slane %v379, 7
        %v444 = vrot.slane %v380, 7
        %v445 = vrot.slane %v381, 7
        %v446 = vrot.slane %v382, 7
        %v447 = vrot.slane %v383, 7
        %v448 = vrot.slane %v384, 7
        %v449 = vlaneseq
        %v450 = vshrl.u32 %v449, 7
        %vm451 = vcmp.lt.s32.totalorder %v450, 1
        %v452 = vsel %vm451, %v447, %v448
        %v453 = vsel %vm451, %v446, %v447
        %v454 = vsel %vm451, %v445, %v446
        %v455 = vsel %vm451, %v444, %v445
        %v456 = vsel %vm451, %v443, %v444
        %v457 = vsel %vm451, %v442, %v443
        %v458 = vsel %vm451, %v441, %v442
        %v459 = vsel %vm451, %v440, %v441
        %v460 = vsel %vm451, %v439, %v440
        %v461 = vsel %vm451, %v438, %v439
        %v462 = vsel %vm451, %v437, %v438
        %v463 = vsel %vm451, %v436, %v437
        %v464 = vsel %vm451, %v435, %v436
        %v465 = vsel %vm451, %v434, %v435
        %v466 = vsel %vm451, %v433, %v434
        %v467 = vsel %vm451, %v432, %v433
        %v468 = vsel %vm451, %v431, %v432
        %v469 = vsel %vm451, %v430, %v431
        %v470 = vsel %vm451, %v429, %v430
        %v471 = vsel %vm451, %v428, %v429
        %v472 = vsel %vm451, %v427, %v428
        %v473 = vsel %vm451, %v426, %v427
        %v474 = vsel %vm451, %v425, %v426
        %v475 = vsel %vm451, %v424, %v425
        %v476 = vsel %vm451, %v423, %v424
        %v477 = vsel %vm451, %v422, %v423
        %v478 = vsel %vm451, %v421, %v422
        %v479 = vsel %vm451, %v420, %v421
        %v480 = vsel %vm451, %v419, %v420
        %v481 = vsel %vm451, %v418, %v419
        %v482 = vsel %vm451, %v417, %v418
        %v483 = vsel %vm451, %v416, %v417
        %v484 = vsel %vm451, %v415, %v416
        %v485 = vsel %vm451, %v414, %v415
        %v486 = vsel %vm451, %v413, %v414
        %v487 = vsel %vm451, %v412, %v413
        %v488 = vsel %vm451, %v411, %v412
        %v489 = vsel %vm451, %v410, %v411
        %v490 = vsel %vm451, %v409, %v410
        %v491 = vsel %vm451, %v408, %v409
        %v492 = vsel %vm451, %v407, %v408
        %v493 = vsel %vm451, %v406, %v407
        %v494 = vsel %vm451, %v405, %v406
        %v495 = vsel %vm451, %v404, %v405
        %v496 = vsel %vm451, %v403, %v404
        %v497 = vsel %vm451, %v402, %v403
        %v498 = vsel %vm451, %v401, %v402
        %v499 = vsel %vm451, %v400, %v401
        %v500 = vsel %vm451, %v399, %v400
        %v501 = vsel %vm451, %v398, %v399
        %v502 = vsel %vm451, %v397, %v398
        %v503 = vsel %vm451, %v396, %v397
        %v504 = vsel %vm451, %v395, %v396
        %v505 = vsel %vm451, %v394, %v395
        %v506 = vsel %vm451, %v393, %v394
        %v507 = vsel %vm451, %v392, %v393
        %v508 = vsel %vm451, %v391, %v392
        %v509 = vsel %vm451, %v390, %v391
        %v510 = vsel %vm451, %v389, %v390
        %v511 = vsel %vm451, %v388, %v389
        %v512 = vsel %vm451, %v387, %v388
        %v513 = vsel %vm451, %v386, %v387
        %v514 = vsel %vm451, %v385, %v386
        %v515 = vsel %vm451, %v448, %v385
        %v516 = vrot.slane %v321, 1
        %v517 = vrot.slane %v322, 1
        %v518 = vrot.slane %v323, 1
        %v519 = vrot.slane %v324, 1
        %v520 = vrot.slane %v325, 1
        %v521 = vrot.slane %v326, 1
        %v522 = vrot.slane %v327, 1
        %v523 = vrot.slane %v328, 1
        %v524 = vrot.slane %v329, 1
        %v525 = vrot.slane %v330, 1
        %v526 = vrot.slane %v331, 1
        %v527 = vrot.slane %v332, 1
        %v528 = vrot.slane %v333, 1
        %v529 = vrot.slane %v334, 1
        %v530 = vrot.slane %v335, 1
        %v531 = vrot.slane %v336, 1
        %v532 = vrot.slane %v337, 1
        %v533 = vrot.slane %v338, 1
        %v534 = vrot.slane %v339, 1
        %v535 = vrot.slane %v340, 1
        %v536 = vrot.slane %v341, 1
        %v537 = vrot.slane %v342, 1
        %v538 = vrot.slane %v343, 1
        %v539 = vrot.slane %v344, 1
        %v540 = vrot.slane %v345, 1
        %v541 = vrot.slane %v346, 1
        %v542 = vrot.slane %v347, 1
        %v543 = vrot.slane %v348, 1
        %v544 = vrot.slane %v349, 1
        %v545 = vrot.slane %v350, 1
        %v546 = vrot.slane %v351, 1
        %v547 = vrot.slane %v352, 1
        %v548 = vrot.slane %v353, 1
        %v549 = vrot.slane %v354, 1
        %v550 = vrot.slane %v355, 1
        %v551 = vrot.slane %v356, 1
        %v552 = vrot.slane %v357, 1
        %v553 = vrot.slane %v358, 1
        %v554 = vrot.slane %v359, 1
        %v555 = vrot.slane %v360, 1
        %v556 = vrot.slane %v361, 1
        %v557 = vrot.slane %v362, 1
        %v558 = vrot.slane %v363, 1
        %v559 = vrot.slane %v364, 1
        %v560 = vrot.slane %v365, 1
        %v561 = vrot.slane %v366, 1
        %v562 = vrot.slane %v367, 1
        %v563 = vrot.slane %v368, 1
        %v564 = vrot.slane %v369, 1
        %v565 = vrot.slane %v370, 1
        %v566 = vrot.slane %v371, 1
        %v567 = vrot.slane %v372, 1
        %v568 = vrot.slane %v373, 1
        %v569 = vrot.slane %v374, 1
        %v570 = vrot.slane %v375, 1
        %v571 = vrot.slane %v376, 1
        %v572 = vrot.slane %v377, 1
        %v573 = vrot.slane %v378, 1
        %v574 = vrot.slane %v379, 1
        %v575 = vrot.slane %v380, 1
        %v576 = vrot.slane %v381, 1
        %v577 = vrot.slane %v382, 1
        %v578 = vrot.slane %v383, 1
        %v579 = vrot.slane %v384, 1
        %vm580 = vcmp.lt.s32.totalorder %v450, 7
        %v581 = vsel %vm580, %v578, %v579
        %v582 = vsel %vm580, %v577, %v578
        %v583 = vsel %vm580, %v576, %v577
        %v584 = vsel %vm580, %v575, %v576
        %v585 = vsel %vm580, %v574, %v575
        %v586 = vsel %vm580, %v573, %v574
        %v587 = vsel %vm580, %v572, %v573
        %v588 = vsel %vm580, %v571, %v572
        %v589 = vsel %vm580, %v570, %v571
        %v590 = vsel %vm580, %v569, %v570
        %v591 = vsel %vm580, %v568, %v569
        %v592 = vsel %vm580, %v567, %v568
        %v593 = vsel %vm580, %v566, %v567
        %v594 = vsel %vm580, %v565, %v566
        %v595 = vsel %vm580, %v564, %v565
        %v596 = vsel %vm580, %v563, %v564
        %v597 = vsel %vm580, %v562, %v563
        %v598 = vsel %vm580, %v561, %v562
        %v599 = vsel %vm580, %v560, %v561
        %v600 = vsel %vm580, %v559, %v560
        %v601 = vsel %vm580, %v558, %v559
        %v602 = vsel %vm580, %v557, %v558
        %v603 = vsel %vm580, %v556, %v557
        %v604 = vsel %vm580, %v555, %v556
        %v605 = vsel %vm580, %v554, %v555
        %v606 = vsel %vm580, %v553, %v554
        %v607 = vsel %vm580, %v552, %v553
        %v608 = vsel %vm580, %v551, %v552
        %v609 = vsel %vm580, %v550, %v551
        %v610 = vsel %vm580, %v549, %v550
        %v611 = vsel %vm580, %v548, %v549
        %v612 = vsel %vm580, %v547, %v548
        %v613 = vsel %vm580, %v546, %v547
        %v614 = vsel %vm580, %v545, %v546
        %v615 = vsel %vm580, %v544, %v545
        %v616 = vsel %vm580, %v543, %v544
        %v617 = vsel %vm580, %v542, %v543
        %v618 = vsel %vm580, %v541, %v542
        %v619 = vsel %vm580, %v540, %v541
        %v620 = vsel %vm580, %v539, %v540
        %v621 = vsel %vm580, %v538, %v539
        %v622 = vsel %vm580, %v537, %v538
        %v623 = vsel %vm580, %v536, %v537
        %v624 = vsel %vm580, %v535, %v536
        %v625 = vsel %vm580, %v534, %v535
        %v626 = vsel %vm580, %v533, %v534
        %v627 = vsel %vm580, %v532, %v533
        %v628 = vsel %vm580, %v531, %v532
        %v629 = vsel %vm580, %v530, %v531
        %v630 = vsel %vm580, %v529, %v530
        %v631 = vsel %vm580, %v528, %v529
        %v632 = vsel %vm580, %v527, %v528
        %v633 = vsel %vm580, %v526, %v527
        %v634 = vsel %vm580, %v525, %v526
        %v635 = vsel %vm580, %v524, %v525
        %v636 = vsel %vm580, %v523, %v524
        %v637 = vsel %vm580, %v522, %v523
        %v638 = vsel %vm580, %v521, %v522
        %v639 = vsel %vm580, %v520, %v521
        %v640 = vsel %vm580, %v519, %v520
        %v641 = vsel %vm580, %v518, %v519
        %v642 = vsel %vm580, %v517, %v518
        %v643 = vsel %vm580, %v516, %v517
        %v644 = vsel %vm580, %v579, %v516
        %s645 = sadd.s32 0, 1
        %s646 = smul.u32 %s645, 32
        %s647 = scalar_lea.vmem [#allocation2], %s646
        %v648 = vld [vmem:[%s647] sm:$0xff]
        %v649 = vld [vmem:[%s647 + $0x8] sm:$0xff]
        %v650 = vld [vmem:[%s647 + $0x10] sm:$0xff]
        %v651 = vld [vmem:[%s647 + $0x18] sm:$0xff]
        %v652 = vld [vmem:[%s647 + $0x20] sm:$0xff]
        %v653 = vld [vmem:[%s647 + $0x28] sm:$0xff]
        %v654 = vld [vmem:[%s647 + $0x30] sm:$0xff]
        %v655 = vld [vmem:[%s647 + $0x38] sm:$0xff]
        %v656 = vld [vmem:[%s647 + $0x40] sm:$0xff]
        %v657 = vld [vmem:[%s647 + $0x48] sm:$0xff]
        %v658 = vld [vmem:[%s647 + $0x50] sm:$0xff]
        %v659 = vld [vmem:[%s647 + $0x58] sm:$0xff]
        %v660 = vld [vmem:[%s647 + $0x60] sm:$0xff]
        %v661 = vld [vmem:[%s647 + $0x68] sm:$0xff]
        %v662 = vld [vmem:[%s647 + $0x70] sm:$0xff]
        %v663 = vld [vmem:[%s647 + $0x78] sm:$0xff]
        %v664 = vld [vmem:[%s647 + $0x80] sm:$0xff]
        %v665 = vld [vmem:[%s647 + $0x88] sm:$0xff]
        %v666 = vld [vmem:[%s647 + $0x90] sm:$0xff]
        %v667 = vld [vmem:[%s647 + $0x98] sm:$0xff]
        %v668 = vld [vmem:[%s647 + $0xa0] sm:$0xff]
        %v669 = vld [vmem:[%s647 + $0xa8] sm:$0xff]
        %v670 = vld [vmem:[%s647 + $0xb0] sm:$0xff]
        %v671 = vld [vmem:[%s647 + $0xb8] sm:$0xff]
        %v672 = vld [vmem:[%s647 + $0xc0] sm:$0xff]
        %v673 = vld [vmem:[%s647 + $0xc8] sm:$0xff]
        %v674 = vld [vmem:[%s647 + $0xd0] sm:$0xff]
        %v675 = vld [vmem:[%s647 + $0xd8] sm:$0xff]
        %v676 = vld [vmem:[%s647 + $0xe0] sm:$0xff]
        %v677 = vld [vmem:[%s647 + $0xe8] sm:$0xff]
        %v678 = vld [vmem:[%s647 + $0xf0] sm:$0xff]
        %v679 = vld [vmem:[%s647 + $0xf8] sm:$0xff]
        %v680 = vld [vmem:[%s647 + $0x100] sm:$0xff]
        %v681 = vld [vmem:[%s647 + $0x108] sm:$0xff]
        %v682 = vld [vmem:[%s647 + $0x110] sm:$0xff]
        %v683 = vld [vmem:[%s647 + $0x118] sm:$0xff]
        %v684 = vld [vmem:[%s647 + $0x120] sm:$0xff]
        %v685 = vld [vmem:[%s647 + $0x128] sm:$0xff]
        %v686 = vld [vmem:[%s647 + $0x130] sm:$0xff]
        %v687 = vld [vmem:[%s647 + $0x138] sm:$0xff]
        %v688 = vld [vmem:[%s647 + $0x140] sm:$0xff]
        %v689 = vld [vmem:[%s647 + $0x148] sm:$0xff]
        %v690 = vld [vmem:[%s647 + $0x150] sm:$0xff]
        %v691 = vld [vmem:[%s647 + $0x158] sm:$0xff]
        %v692 = vld [vmem:[%s647 + $0x160] sm:$0xff]
        %v693 = vld [vmem:[%s647 + $0x168] sm:$0xff]
        %v694 = vld [vmem:[%s647 + $0x170] sm:$0xff]
        %v695 = vld [vmem:[%s647 + $0x178] sm:$0xff]
        %v696 = vld [vmem:[%s647 + $0x180] sm:$0xff]
        %v697 = vld [vmem:[%s647 + $0x188] sm:$0xff]
        %v698 = vld [vmem:[%s647 + $0x190] sm:$0xff]
        %v699 = vld [vmem:[%s647 + $0x198] sm:$0xff]
        %v700 = vld [vmem:[%s647 + $0x1a0] sm:$0xff]
        %v701 = vld [vmem:[%s647 + $0x1a8] sm:$0xff]
        %v702 = vld [vmem:[%s647 + $0x1b0] sm:$0xff]
        %v703 = vld [vmem:[%s647 + $0x1b8] sm:$0xff]
        %v704 = vld [vmem:[%s647 + $0x1c0] sm:$0xff]
        %v705 = vld [vmem:[%s647 + $0x1c8] sm:$0xff]
        %v706 = vld [vmem:[%s647 + $0x1d0] sm:$0xff]
        %v707 = vld [vmem:[%s647 + $0x1d8] sm:$0xff]
        %v708 = vld [vmem:[%s647 + $0x1e0] sm:$0xff]
        %v709 = vld [vmem:[%s647 + $0x1e8] sm:$0xff]
        %v710 = vld [vmem:[%s647 + $0x1f0] sm:$0xff]
        %v711 = vld [vmem:[%s647 + $0x1f8] sm:$0xff]
        %v712 = vrot.slane %v648, 7
        %v713 = vrot.slane %v649, 7
        %v714 = vrot.slane %v650, 7
        %v715 = vrot.slane %v651, 7
        %v716 = vrot.slane %v652, 7
        %v717 = vrot.slane %v653, 7
        %v718 = vrot.slane %v654, 7
        %v719 = vrot.slane %v655, 7
        %v720 = vrot.slane %v656, 7
        %v721 = vrot.slane %v657, 7
        %v722 = vrot.slane %v658, 7
        %v723 = vrot.slane %v659, 7
        %v724 = vrot.slane %v660, 7
        %v725 = vrot.slane %v661, 7
        %v726 = vrot.slane %v662, 7
        %v727 = vrot.slane %v663, 7
        %v728 = vrot.slane %v664, 7
        %v729 = vrot.slane %v665, 7
        %v730 = vrot.slane %v666, 7
        %v731 = vrot.slane %v667, 7
        %v732 = vrot.slane %v668, 7
        %v733 = vrot.slane %v669, 7
        %v734 = vrot.slane %v670, 7
        %v735 = vrot.slane %v671, 7
        %v736 = vrot.slane %v672, 7
        %v737 = vrot.slane %v673, 7
        %v738 = vrot.slane %v674, 7
        %v739 = vrot.slane %v675, 7
        %v740 = vrot.slane %v676, 7
        %v741 = vrot.slane %v677, 7
        %v742 = vrot.slane %v678, 7
        %v743 = vrot.slane %v679, 7
        %v744 = vrot.slane %v680, 7
        %v745 = vrot.slane %v681, 7
        %v746 = vrot.slane %v682, 7
        %v747 = vrot.slane %v683, 7
        %v748 = vrot.slane %v684, 7
        %v749 = vrot.slane %v685, 7
        %v750 = vrot.slane %v686, 7
        %v751 = vrot.slane %v687, 7
        %v752 = vrot.slane %v688, 7
        %v753 = vrot.slane %v689, 7
        %v754 = vrot.slane %v690, 7
        %v755 = vrot.slane %v691, 7
        %v756 = vrot.slane %v692, 7
        %v757 = vrot.slane %v693, 7
        %v758 = vrot.slane %v694, 7
        %v759 = vrot.slane %v695, 7
        %v760 = vrot.slane %v696, 7
        %v761 = vrot.slane %v697, 7
        %v762 = vrot.slane %v698, 7
        %v763 = vrot.slane %v699, 7
        %v764 = vrot.slane %v700, 7
        %v765 = vrot.slane %v701, 7
        %v766 = vrot.slane %v702, 7
        %v767 = vrot.slane %v703, 7
        %v768 = vrot.slane %v704, 7
        %v769 = vrot.slane %v705, 7
        %v770 = vrot.slane %v706, 7
        %v771 = vrot.slane %v707, 7
        %v772 = vrot.slane %v708, 7
        %v773 = vrot.slane %v709, 7
        %v774 = vrot.slane %v710, 7
        %v775 = vrot.slane %v711, 7
        %v776 = vsel %vm451, %v774, %v775
        %v777 = vsel %vm451, %v773, %v774
        %v778 = vsel %vm451, %v772, %v773
        %v779 = vsel %vm451, %v771, %v772
        %v780 = vsel %vm451, %v770, %v771
        %v781 = vsel %vm451, %v769, %v770
        %v782 = vsel %vm451, %v768, %v769
        %v783 = vsel %vm451, %v767, %v768
        %v784 = vsel %vm451, %v766, %v767
        %v785 = vsel %vm451, %v765, %v766
        %v786 = vsel %vm451, %v764, %v765
        %v787 = vsel %vm451, %v763, %v764
        %v788 = vsel %vm451, %v762, %v763
        %v789 = vsel %vm451, %v761, %v762
        %v790 = vsel %vm451, %v760, %v761
        %v791 = vsel %vm451, %v759, %v760
        %v792 = vsel %vm451, %v758, %v759
        %v793 = vsel %vm451, %v757, %v758
        %v794 = vsel %vm451, %v756, %v757
        %v795 = vsel %vm451, %v755, %v756
        %v796 = vsel %vm451, %v754, %v755
        %v797 = vsel %vm451, %v753, %v754
        %v798 = vsel %vm451, %v752, %v753
        %v799 = vsel %vm451, %v751, %v752
        %v800 = vsel %vm451, %v750, %v751
        %v801 = vsel %vm451, %v749, %v750
        %v802 = vsel %vm451, %v748, %v749
        %v803 = vsel %vm451, %v747, %v748
        %v804 = vsel %vm451, %v746, %v747
        %v805 = vsel %vm451, %v745, %v746
        %v806 = vsel %vm451, %v744, %v745
        %v807 = vsel %vm451, %v743, %v744
        %v808 = vsel %vm451, %v742, %v743
        %v809 = vsel %vm451, %v741, %v742
        %v810 = vsel %vm451, %v740, %v741
        %v811 = vsel %vm451, %v739, %v740
        %v812 = vsel %vm451, %v738, %v739
        %v813 = vsel %vm451, %v737, %v738
        %v814 = vsel %vm451, %v736, %v737
        %v815 = vsel %vm451, %v735, %v736
        %v816 = vsel %vm451, %v734, %v735
        %v817 = vsel %vm451, %v733, %v734
        %v818 = vsel %vm451, %v732, %v733
        %v819 = vsel %vm451, %v731, %v732
        %v820 = vsel %vm451, %v730, %v731
        %v821 = vsel %vm451, %v729, %v730
        %v822 = vsel %vm451, %v728, %v729
        %v823 = vsel %vm451, %v727, %v728
        %v824 = vsel %vm451, %v726, %v727
        %v825 = vsel %vm451, %v725, %v726
        %v826 = vsel %vm451, %v724, %v725
        %v827 = vsel %vm451, %v723, %v724
        %v828 = vsel %vm451, %v722, %v723
        %v829 = vsel %vm451, %v721, %v722
        %v830 = vsel %vm451, %v720, %v721
        %v831 = vsel %vm451, %v719, %v720
        %v832 = vsel %vm451, %v718, %v719
        %v833 = vsel %vm451, %v717, %v718
        %v834 = vsel %vm451, %v716, %v717
        %v835 = vsel %vm451, %v715, %v716
        %v836 = vsel %vm451, %v714, %v715
        %v837 = vsel %vm451, %v713, %v714
        %v838 = vsel %vm451, %v712, %v713
        %v839 = vsel %vm451, %v775, %v712
        %v840 = vrot.slane %v648, 1
        %v841 = vrot.slane %v649, 1
        %v842 = vrot.slane %v650, 1
        %v843 = vrot.slane %v651, 1
        %v844 = vrot.slane %v652, 1
        %v845 = vrot.slane %v653, 1
        %v846 = vrot.slane %v654, 1
        %v847 = vrot.slane %v655, 1
        %v848 = vrot.slane %v656, 1
        %v849 = vrot.slane %v657, 1
        %v850 = vrot.slane %v658, 1
        %v851 = vrot.slane %v659, 1
        %v852 = vrot.slane %v660, 1
        %v853 = vrot.slane %v661, 1
        %v854 = vrot.slane %v662, 1
        %v855 = vrot.slane %v663, 1
        %v856 = vrot.slane %v664, 1
        %v857 = vrot.slane %v665, 1
        %v858 = vrot.slane %v666, 1
        %v859 = vrot.slane %v667, 1
        %v860 = vrot.slane %v668, 1
        %v861 = vrot.slane %v669, 1
        %v862 = vrot.slane %v670, 1
        %v863 = vrot.slane %v671, 1
        %v864 = vrot.slane %v672, 1
        %v865 = vrot.slane %v673, 1
        %v866 = vrot.slane %v674, 1
        %v867 = vrot.slane %v675, 1
        %v868 = vrot.slane %v676, 1
        %v869 = vrot.slane %v677, 1
        %v870 = vrot.slane %v678, 1
        %v871 = vrot.slane %v679, 1
        %v872 = vrot.slane %v680, 1
        %v873 = vrot.slane %v681, 1
        %v874 = vrot.slane %v682, 1
        %v875 = vrot.slane %v683, 1
        %v876 = vrot.slane %v684, 1
        %v877 = vrot.slane %v685, 1
        %v878 = vrot.slane %v686, 1
        %v879 = vrot.slane %v687, 1
        %v880 = vrot.slane %v688, 1
        %v881 = vrot.slane %v689, 1
        %v882 = vrot.slane %v690, 1
        %v883 = vrot.slane %v691, 1
        %v884 = vrot.slane %v692, 1
        %v885 = vrot.slane %v693, 1
        %v886 = vrot.slane %v694, 1
        %v887 = vrot.slane %v695, 1
        %v888 = vrot.slane %v696, 1
        %v889 = vrot.slane %v697, 1
        %v890 = vrot.slane %v698, 1
        %v891 = vrot.slane %v699, 1
        %v892 = vrot.slane %v700, 1
        %v893 = vrot.slane %v701, 1
        %v894 = vrot.slane %v702, 1
        %v895 = vrot.slane %v703, 1
        %v896 = vrot.slane %v704, 1
        %v897 = vrot.slane %v705, 1
        %v898 = vrot.slane %v706, 1
        %v899 = vrot.slane %v707, 1
        %v900 = vrot.slane %v708, 1
        %v901 = vrot.slane %v709, 1
        %v902 = vrot.slane %v710, 1
        %v903 = vrot.slane %v711, 1
        %v904 = vsel %vm580, %v902, %v903
        %v905 = vsel %vm580, %v901, %v902
        %v906 = vsel %vm580, %v900, %v901
        %v907 = vsel %vm580, %v899, %v900
        %v908 = vsel %vm580, %v898, %v899
        %v909 = vsel %vm580, %v897, %v898
        %v910 = vsel %vm580, %v896, %v897
        %v911 = vsel %vm580, %v895, %v896
        %v912 = vsel %vm580, %v894, %v895
        %v913 = vsel %vm580, %v893, %v894
        %v914 = vsel %vm580, %v892, %v893
        %v915 = vsel %vm580, %v891, %v892
        %v916 = vsel %vm580, %v890, %v891
        %v917 = vsel %vm580, %v889, %v890
        %v918 = vsel %vm580, %v888, %v889
        %v919 = vsel %vm580, %v887, %v888
        %v920 = vsel %vm580, %v886, %v887
        %v921 = vsel %vm580, %v885, %v886
        %v922 = vsel %vm580, %v884, %v885
        %v923 = vsel %vm580, %v883, %v884
        %v924 = vsel %vm580, %v882, %v883
        %v925 = vsel %vm580, %v881, %v882
        %v926 = vsel %vm580, %v880, %v881
        %v927 = vsel %vm580, %v879, %v880
        %v928 = vsel %vm580, %v878, %v879
        %v929 = vsel %vm580, %v877, %v878
        %v930 = vsel %vm580, %v876, %v877
        %v931 = vsel %vm580, %v875, %v876
        %v932 = vsel %vm580, %v874, %v875
        %v933 = vsel %vm580, %v873, %v874
        %v934 = vsel %vm580, %v872, %v873
        %v935 = vsel %vm580, %v871, %v872
        %v936 = vsel %vm580, %v870, %v871
        %v937 = vsel %vm580, %v869, %v870
        %v938 = vsel %vm580, %v868, %v869
        %v939 = vsel %vm580, %v867, %v868
        %v940 = vsel %vm580, %v866, %v867
        %v941 = vsel %vm580, %v865, %v866
        %v942 = vsel %vm580, %v864, %v865
        %v943 = vsel %vm580, %v863, %v864
        %v944 = vsel %vm580, %v862, %v863
        %v945 = vsel %vm580, %v861, %v862
        %v946 = vsel %vm580, %v860, %v861
        %v947 = vsel %vm580, %v859, %v860
        %v948 = vsel %vm580, %v858, %v859
        %v949 = vsel %vm580, %v857, %v858
        %v950 = vsel %vm580, %v856, %v857
        %v951 = vsel %vm580, %v855, %v856
        %v952 = vsel %vm580, %v854, %v855
        %v953 = vsel %vm580, %v853, %v854
        %v954 = vsel %vm580, %v852, %v853
        %v955 = vsel %vm580, %v851, %v852
        %v956 = vsel %vm580, %v850, %v851
        %v957 = vsel %vm580, %v849, %v850
        %v958 = vsel %vm580, %v848, %v849
        %v959 = vsel %vm580, %v847, %v848
        %v960 = vsel %vm580, %v846, %v847
        %v961 = vsel %vm580, %v845, %v846
        %v962 = vsel %vm580, %v844, %v845
        %v963 = vsel %vm580, %v843, %v844
        %v964 = vsel %vm580, %v842, %v843
        %v965 = vsel %vm580, %v841, %v842
        %v966 = vsel %vm580, %v840, %v841
        %v967 = vsel %vm580, %v903, %v840
        %s968 = sadd.s32 0, 2
        %s969 = smul.u32 %s968, 32
        %s970 = scalar_lea.vmem [#allocation2], %s969
        %v971 = vld [vmem:[%s970] sm:$0xff]
        %v972 = vld [vmem:[%s970 + $0x8] sm:$0xff]
        %v973 = vld [vmem:[%s970 + $0x10] sm:$0xff]
        %v974 = vld [vmem:[%s970 + $0x18] sm:$0xff]
        %v975 = vld [vmem:[%s970 + $0x20] sm:$0xff]
        %v976 = vld [vmem:[%s970 + $0x28] sm:$0xff]
        %v977 = vld [vmem:[%s970 + $0x30] sm:$0xff]
        %v978 = vld [vmem:[%s970 + $0x38] sm:$0xff]
        %v979 = vld [vmem:[%s970 + $0x40] sm:$0xff]
        %v980 = vld [vmem:[%s970 + $0x48] sm:$0xff]
        %v981 = vld [vmem:[%s970 + $0x50] sm:$0xff]
        %v982 = vld [vmem:[%s970 + $0x58] sm:$0xff]
        %v983 = vld [vmem:[%s970 + $0x60] sm:$0xff]
        %v984 = vld [vmem:[%s970 + $0x68] sm:$0xff]
        %v985 = vld [vmem:[%s970 + $0x70] sm:$0xff]
        %v986 = vld [vmem:[%s970 + $0x78] sm:$0xff]
        %v987 = vld [vmem:[%s970 + $0x80] sm:$0xff]
        %v988 = vld [vmem:[%s970 + $0x88] sm:$0xff]
        %v989 = vld [vmem:[%s970 + $0x90] sm:$0xff]
        %v990 = vld [vmem:[%s970 + $0x98] sm:$0xff]
        %v991 = vld [vmem:[%s970 + $0xa0] sm:$0xff]
        %v992 = vld [vmem:[%s970 + $0xa8] sm:$0xff]
        %v993 = vld [vmem:[%s970 + $0xb0] sm:$0xff]
        %v994 = vld [vmem:[%s970 + $0xb8] sm:$0xff]
        %v995 = vld [vmem:[%s970 + $0xc0] sm:$0xff]
        %v996 = vld [vmem:[%s970 + $0xc8] sm:$0xff]
        %v997 = vld [vmem:[%s970 + $0xd0] sm:$0xff]
        %v998 = vld [vmem:[%s970 + $0xd8] sm:$0xff]
        %v999 = vld [vmem:[%s970 + $0xe0] sm:$0xff]
        %v1000 = vld [vmem:[%s970 + $0xe8] sm:$0xff]
        %v1001 = vld [vmem:[%s970 + $0xf0] sm:$0xff]
        %v1002 = vld [vmem:[%s970 + $0xf8] sm:$0xff]
        %v1003 = vld [vmem:[%s970 + $0x100] sm:$0xff]
        %v1004 = vld [vmem:[%s970 + $0x108] sm:$0xff]
        %v1005 = vld [vmem:[%s970 + $0x110] sm:$0xff]
        %v1006 = vld [vmem:[%s970 + $0x118] sm:$0xff]
        %v1007 = vld [vmem:[%s970 + $0x120] sm:$0xff]
        %v1008 = vld [vmem:[%s970 + $0x128] sm:$0xff]
        %v1009 = vld [vmem:[%s970 + $0x130] sm:$0xff]
        %v1010 = vld [vmem:[%s970 + $0x138] sm:$0xff]
        %v1011 = vld [vmem:[%s970 + $0x140] sm:$0xff]
        %v1012 = vld [vmem:[%s970 + $0x148] sm:$0xff]
        %v1013 = vld [vmem:[%s970 + $0x150] sm:$0xff]
        %v1014 = vld [vmem:[%s970 + $0x158] sm:$0xff]
        %v1015 = vld [vmem:[%s970 + $0x160] sm:$0xff]
        %v1016 = vld [vmem:[%s970 + $0x168] sm:$0xff]
        %v1017 = vld [vmem:[%s970 + $0x170] sm:$0xff]
        %v1018 = vld [vmem:[%s970 + $0x178] sm:$0xff]
        %v1019 = vld [vmem:[%s970 + $0x180] sm:$0xff]
        %v1020 = vld [vmem:[%s970 + $0x188] sm:$0xff]
        %v1021 = vld [vmem:[%s970 + $0x190] sm:$0xff]
        %v1022 = vld [vmem:[%s970 + $0x198] sm:$0xff]
        %v1023 = vld [vmem:[%s970 + $0x1a0] sm:$0xff]
        %v1024 = vld [vmem:[%s970 + $0x1a8] sm:$0xff]
        %v1025 = vld [vmem:[%s970 + $0x1b0] sm:$0xff]
        %v1026 = vld [vmem:[%s970 + $0x1b8] sm:$0xff]
        %v1027 = vld [vmem:[%s970 + $0x1c0] sm:$0xff]
        %v1028 = vld [vmem:[%s970 + $0x1c8] sm:$0xff]
        %v1029 = vld [vmem:[%s970 + $0x1d0] sm:$0xff]
        %v1030 = vld [vmem:[%s970 + $0x1d8] sm:$0xff]
        %v1031 = vld [vmem:[%s970 + $0x1e0] sm:$0xff]
        %v1032 = vld [vmem:[%s970 + $0x1e8] sm:$0xff]
        %v1033 = vld [vmem:[%s970 + $0x1f0] sm:$0xff]
        %v1034 = vld [vmem:[%s970 + $0x1f8] sm:$0xff]
        %v1035 = vrot.slane %v971, 7
        %v1036 = vrot.slane %v972, 7
        %v1037 = vrot.slane %v973, 7
        %v1038 = vrot.slane %v974, 7
        %v1039 = vrot.slane %v975, 7
        %v1040 = vrot.slane %v976, 7
        %v1041 = vrot.slane %v977, 7
        %v1042 = vrot.slane %v978, 7
        %v1043 = vrot.slane %v979, 7
        %v1044 = vrot.slane %v980, 7
        %v1045 = vrot.slane %v981, 7
        %v1046 = vrot.slane %v982, 7
        %v1047 = vrot.slane %v983, 7
        %v1048 = vrot.slane %v984, 7
        %v1049 = vrot.slane %v985, 7
        %v1050 = vrot.slane %v986, 7
        %v1051 = vrot.slane %v987, 7
        %v1052 = vrot.slane %v988, 7
        %v1053 = vrot.slane %v989, 7
        %v1054 = vrot.slane %v990, 7
        %v1055 = vrot.slane %v991, 7
        %v1056 = vrot.slane %v992, 7
        %v1057 = vrot.slane %v993, 7
        %v1058 = vrot.slane %v994, 7
        %v1059 = vrot.slane %v995, 7
        %v1060 = vrot.slane %v996, 7
        %v1061 = vrot.slane %v997, 7
        %v1062 = vrot.slane %v998, 7
        %v1063 = vrot.slane %v999, 7
        %v1064 = vrot.slane %v1000, 7
        %v1065 = vrot.slane %v1001, 7
        %v1066 = vrot.slane %v1002, 7
        %v1067 = vrot.slane %v1003, 7
        %v1068 = vrot.slane %v1004, 7
        %v1069 = vrot.slane %v1005, 7
        %v1070 = vrot.slane %v1006, 7
        %v1071 = vrot.slane %v1007, 7
        %v1072 = vrot.slane %v1008, 7
        %v1073 = vrot.slane %v1009, 7
        %v1074 = vrot.slane %v1010, 7
        %v1075 = vrot.slane %v1011, 7
        %v1076 = vrot.slane %v1012, 7
        %v1077 = vrot.slane %v1013, 7
        %v1078 = vrot.slane %v1014, 7
        %v1079 = vrot.slane %v1015, 7
        %v1080 = vrot.slane %v1016, 7
        %v1081 = vrot.slane %v1017, 7
        %v1082 = vrot.slane %v1018, 7
        %v1083 = vrot.slane %v1019, 7
        %v1084 = vrot.slane %v1020, 7
        %v1085 = vrot.slane %v1021, 7
        %v1086 = vrot.slane %v1022, 7
        %v1087 = vrot.slane %v1023, 7
        %v1088 = vrot.slane %v1024, 7
        %v1089 = vrot.slane %v1025, 7
        %v1090 = vrot.slane %v1026, 7
        %v1091 = vrot.slane %v1027, 7
        %v1092 = vrot.slane %v1028, 7
        %v1093 = vrot.slane %v1029, 7
        %v1094 = vrot.slane %v1030, 7
        %v1095 = vrot.slane %v1031, 7
        %v1096 = vrot.slane %v1032, 7
        %v1097 = vrot.slane %v1033, 7
        %v1098 = vrot.slane %v1034, 7
        %v1099 = vsel %vm451, %v1097, %v1098
        %v1100 = vsel %vm451, %v1096, %v1097
        %v1101 = vsel %vm451, %v1095, %v1096
        %v1102 = vsel %vm451, %v1094, %v1095
        %v1103 = vsel %vm451, %v1093, %v1094
        %v1104 = vsel %vm451, %v1092, %v1093
        %v1105 = vsel %vm451, %v1091, %v1092
        %v1106 = vsel %vm451, %v1090, %v1091
        %v1107 = vsel %vm451, %v1089, %v1090
        %v1108 = vsel %vm451, %v1088, %v1089
        %v1109 = vsel %vm451, %v1087, %v1088
        %v1110 = vsel %vm451, %v1086, %v1087
        %v1111 = vsel %vm451, %v1085, %v1086
        %v1112 = vsel %vm451, %v1084, %v1085
        %v1113 = vsel %vm451, %v1083, %v1084
        %v1114 = vsel %vm451, %v1082, %v1083
        %v1115 = vsel %vm451, %v1081, %v1082
        %v1116 = vsel %vm451, %v1080, %v1081
        %v1117 = vsel %vm451, %v1079, %v1080
        %v1118 = vsel %vm451, %v1078, %v1079
        %v1119 = vsel %vm451, %v1077, %v1078
        %v1120 = vsel %vm451, %v1076, %v1077
        %v1121 = vsel %vm451, %v1075, %v1076
        %v1122 = vsel %vm451, %v1074, %v1075
        %v1123 = vsel %vm451, %v1073, %v1074
        %v1124 = vsel %vm451, %v1072, %v1073
        %v1125 = vsel %vm451, %v1071, %v1072
        %v1126 = vsel %vm451, %v1070, %v1071
        %v1127 = vsel %vm451, %v1069, %v1070
        %v1128 = vsel %vm451, %v1068, %v1069
        %v1129 = vsel %vm451, %v1067, %v1068
        %v1130 = vsel %vm451, %v1066, %v1067
        %v1131 = vsel %vm451, %v1065, %v1066
        %v1132 = vsel %vm451, %v1064, %v1065
        %v1133 = vsel %vm451, %v1063, %v1064
        %v1134 = vsel %vm451, %v1062, %v1063
        %v1135 = vsel %vm451, %v1061, %v1062
        %v1136 = vsel %vm451, %v1060, %v1061
        %v1137 = vsel %vm451, %v1059, %v1060
        %v1138 = vsel %vm451, %v1058, %v1059
        %v1139 = vsel %vm451, %v1057, %v1058
        %v1140 = vsel %vm451, %v1056, %v1057
        %v1141 = vsel %vm451, %v1055, %v1056
        %v1142 = vsel %vm451, %v1054, %v1055
        %v1143 = vsel %vm451, %v1053, %v1054
        %v1144 = vsel %vm451, %v1052, %v1053
        %v1145 = vsel %vm451, %v1051, %v1052
        %v1146 = vsel %vm451, %v1050, %v1051
        %v1147 = vsel %vm451, %v1049, %v1050
        %v1148 = vsel %vm451, %v1048, %v1049
        %v1149 = vsel %vm451, %v1047, %v1048
        %v1150 = vsel %vm451, %v1046, %v1047
        %v1151 = vsel %vm451, %v1045, %v1046
        %v1152 = vsel %vm451, %v1044, %v1045
        %v1153 = vsel %vm451, %v1043, %v1044
        %v1154 = vsel %vm451, %v1042, %v1043
        %v1155 = vsel %vm451, %v1041, %v1042
        %v1156 = vsel %vm451, %v1040, %v1041
        %v1157 = vsel %vm451, %v1039, %v1040
        %v1158 = vsel %vm451, %v1038, %v1039
        %v1159 = vsel %vm451, %v1037, %v1038
        %v1160 = vsel %vm451, %v1036, %v1037
        %v1161 = vsel %vm451, %v1035, %v1036
        %v1162 = vsel %vm451, %v1098, %v1035
        %v1163 = vrot.slane %v971, 1
        %v1164 = vrot.slane %v972, 1
        %v1165 = vrot.slane %v973, 1
        %v1166 = vrot.slane %v974, 1
        %v1167 = vrot.slane %v975, 1
        %v1168 = vrot.slane %v976, 1
        %v1169 = vrot.slane %v977, 1
        %v1170 = vrot.slane %v978, 1
        %v1171 = vrot.slane %v979, 1
        %v1172 = vrot.slane %v980, 1
        %v1173 = vrot.slane %v981, 1
        %v1174 = vrot.slane %v982, 1
        %v1175 = vrot.slane %v983, 1
        %v1176 = vrot.slane %v984, 1
        %v1177 = vrot.slane %v985, 1
        %v1178 = vrot.slane %v986, 1
        %v1179 = vrot.slane %v987, 1
        %v1180 = vrot.slane %v988, 1
        %v1181 = vrot.slane %v989, 1
        %v1182 = vrot.slane %v990, 1
        %v1183 = vrot.slane %v991, 1
        %v1184 = vrot.slane %v992, 1
        %v1185 = vrot.slane %v993, 1
        %v1186 = vrot.slane %v994, 1
        %v1187 = vrot.slane %v995, 1
        %v1188 = vrot.slane %v996, 1
        %v1189 = vrot.slane %v997, 1
        %v1190 = vrot.slane %v998, 1
        %v1191 = vrot.slane %v999, 1
        %v1192 = vrot.slane %v1000, 1
        %v1193 = vrot.slane %v1001, 1
        %v1194 = vrot.slane %v1002, 1
        %v1195 = vrot.slane %v1003, 1
        %v1196 = vrot.slane %v1004, 1
        %v1197 = vrot.slane %v1005, 1
        %v1198 = vrot.slane %v1006, 1
        %v1199 = vrot.slane %v1007, 1
        %v1200 = vrot.slane %v1008, 1
        %v1201 = vrot.slane %v1009, 1
        %v1202 = vrot.slane %v1010, 1
        %v1203 = vrot.slane %v1011, 1
        %v1204 = vrot.slane %v1012, 1
        %v1205 = vrot.slane %v1013, 1
        %v1206 = vrot.slane %v1014, 1
        %v1207 = vrot.slane %v1015, 1
        %v1208 = vrot.slane %v1016, 1
        %v1209 = vrot.slane %v1017, 1
        %v1210 = vrot.slane %v1018, 1
        %v1211 = vrot.slane %v1019, 1
        %v1212 = vrot.slane %v1020, 1
        %v1213 = vrot.slane %v1021, 1
        %v1214 = vrot.slane %v1022, 1
        %v1215 = vrot.slane %v1023, 1
        %v1216 = vrot.slane %v1024, 1
        %v1217 = vrot.slane %v1025, 1
        %v1218 = vrot.slane %v1026, 1
        %v1219 = vrot.slane %v1027, 1
        %v1220 = vrot.slane %v1028, 1
        %v1221 = vrot.slane %v1029, 1
        %v1222 = vrot.slane %v1030, 1
        %v1223 = vrot.slane %v1031, 1
        %v1224 = vrot.slane %v1032, 1
        %v1225 = vrot.slane %v1033, 1
        %v1226 = vrot.slane %v1034, 1
        %v1227 = vsel %vm580, %v1225, %v1226
        %v1228 = vsel %vm580, %v1224, %v1225
        %v1229 = vsel %vm580, %v1223, %v1224
        %v1230 = vsel %vm580, %v1222, %v1223
        %v1231 = vsel %vm580, %v1221, %v1222
        %v1232 = vsel %vm580, %v1220, %v1221
        %v1233 = vsel %vm580, %v1219, %v1220
        %v1234 = vsel %vm580, %v1218, %v1219
        %v1235 = vsel %vm580, %v1217, %v1218
        %v1236 = vsel %vm580, %v1216, %v1217
        %v1237 = vsel %vm580, %v1215, %v1216
        %v1238 = vsel %vm580, %v1214, %v1215
        %v1239 = vsel %vm580, %v1213, %v1214
        %v1240 = vsel %vm580, %v1212, %v1213
        %v1241 = vsel %vm580, %v1211, %v1212
        %v1242 = vsel %vm580, %v1210, %v1211
        %v1243 = vsel %vm580, %v1209, %v1210
        %v1244 = vsel %vm580, %v1208, %v1209
        %v1245 = vsel %vm580, %v1207, %v1208
        %v1246 = vsel %vm580, %v1206, %v1207
        %v1247 = vsel %vm580, %v1205, %v1206
        %v1248 = vsel %vm580, %v1204, %v1205
        %v1249 = vsel %vm580, %v1203, %v1204
        %v1250 = vsel %vm580, %v1202, %v1203
        %v1251 = vsel %vm580, %v1201, %v1202
        %v1252 = vsel %vm580, %v1200, %v1201
        %v1253 = vsel %vm580, %v1199, %v1200
        %v1254 = vsel %vm580, %v1198, %v1199
        %v1255 = vsel %vm580, %v1197, %v1198
        %v1256 = vsel %vm580, %v1196, %v1197
        %v1257 = vsel %vm580, %v1195, %v1196
        %v1258 = vsel %vm580, %v1194, %v1195
        %v1259 = vsel %vm580, %v1193, %v1194
        %v1260 = vsel %vm580, %v1192, %v1193
        %v1261 = vsel %vm580, %v1191, %v1192
        %v1262 = vsel %vm580, %v1190, %v1191
        %v1263 = vsel %vm580, %v1189, %v1190
        %v1264 = vsel %vm580, %v1188, %v1189
        %v1265 = vsel %vm580, %v1187, %v1188
        %v1266 = vsel %vm580, %v1186, %v1187
        %v1267 = vsel %vm580, %v1185, %v1186
        %v1268 = vsel %vm580, %v1184, %v1185
        %v1269 = vsel %vm580, %v1183, %v1184
        %v1270 = vsel %vm580, %v1182, %v1183
        %v1271 = vsel %vm580, %v1181, %v1182
        %v1272 = vsel %vm580, %v1180, %v1181
        %v1273 = vsel %vm580, %v1179, %v1180
        %v1274 = vsel %vm580, %v1178, %v1179
        %v1275 = vsel %vm580, %v1177, %v1178
        %v1276 = vsel %vm580, %v1176, %v1177
        %v1277 = vsel %vm580, %v1175, %v1176
        %v1278 = vsel %vm580, %v1174, %v1175
        %v1279 = vsel %vm580, %v1173, %v1174
        %v1280 = vsel %vm580, %v1172, %v1173
        %v1281 = vsel %vm580, %v1171, %v1172
        %v1282 = vsel %vm580, %v1170, %v1171
        %v1283 = vsel %vm580, %v1169, %v1170
        %v1284 = vsel %vm580, %v1168, %v1169
        %v1285 = vsel %vm580, %v1167, %v1168
        %v1286 = vsel %vm580, %v1166, %v1167
        %v1287 = vsel %vm580, %v1165, %v1166
        %v1288 = vsel %vm580, %v1164, %v1165
        %v1289 = vsel %vm580, %v1163, %v1164
        %v1290 = vsel %vm580, %v1226, %v1163
        %1355 = vrot.lane.b32.xlu0 %v321, 8
        %v1356 = vpop.permute.xlu0 %1355
        %1357 = vrot.lane.b32.xlu0 %v322, 8
        %v1358 = vpop.permute.xlu0 %1357
        %1359 = vrot.lane.b32.xlu0 %v323, 8
        %v1360 = vpop.permute.xlu0 %1359
        %1361 = vrot.lane.b32.xlu0 %v324, 8
        %v1362 = vpop.permute.xlu0 %1361
        %1363 = vrot.lane.b32.xlu0 %v325, 8
        %v1364 = vpop.permute.xlu0 %1363
        %1365 = vrot.lane.b32.xlu0 %v326, 8
        %v1366 = vpop.permute.xlu0 %1365
        %1367 = vrot.lane.b32.xlu0 %v327, 8
        %v1368 = vpop.permute.xlu0 %1367
        %1369 = vrot.lane.b32.xlu0 %v328, 8
        %v1370 = vpop.permute.xlu0 %1369
        %1371 = vrot.lane.b32.xlu0 %v329, 8
        %v1372 = vpop.permute.xlu0 %1371
        %1373 = vrot.lane.b32.xlu0 %v330, 8
        %v1374 = vpop.permute.xlu0 %1373
        %1375 = vrot.lane.b32.xlu0 %v331, 8
        %v1376 = vpop.permute.xlu0 %1375
        %1377 = vrot.lane.b32.xlu0 %v332, 8
        %v1378 = vpop.permute.xlu0 %1377
        %1379 = vrot.lane.b32.xlu0 %v333, 8
        %v1380 = vpop.permute.xlu0 %1379
        %1381 = vrot.lane.b32.xlu0 %v334, 8
        %v1382 = vpop.permute.xlu0 %1381
        %1383 = vrot.lane.b32.xlu0 %v335, 8
        %v1384 = vpop.permute.xlu0 %1383
        %1385 = vrot.lane.b32.xlu0 %v336, 8
        %v1386 = vpop.permute.xlu0 %1385
        %1387 = vrot.lane.b32.xlu0 %v337, 8
        %v1388 = vpop.permute.xlu0 %1387
        %1389 = vrot.lane.b32.xlu0 %v338, 8
        %v1390 = vpop.permute.xlu0 %1389
        %1391 = vrot.lane.b32.xlu0 %v339, 8
        %v1392 = vpop.permute.xlu0 %1391
        %1393 = vrot.lane.b32.xlu0 %v340, 8
        %v1394 = vpop.permute.xlu0 %1393
        %1395 = vrot.lane.b32.xlu0 %v341, 8
        %v1396 = vpop.permute.xlu0 %1395
        %1397 = vrot.lane.b32.xlu0 %v342, 8
        %v1398 = vpop.permute.xlu0 %1397
        %1399 = vrot.lane.b32.xlu0 %v343, 8
        %v1400 = vpop.permute.xlu0 %1399
        %1401 = vrot.lane.b32.xlu0 %v344, 8
        %v1402 = vpop.permute.xlu0 %1401
        %1403 = vrot.lane.b32.xlu0 %v345, 8
        %v1404 = vpop.permute.xlu0 %1403
        %1405 = vrot.lane.b32.xlu0 %v346, 8
        %v1406 = vpop.permute.xlu0 %1405
        %1407 = vrot.lane.b32.xlu0 %v347, 8
        %v1408 = vpop.permute.xlu0 %1407
        %1409 = vrot.lane.b32.xlu0 %v348, 8
        %v1410 = vpop.permute.xlu0 %1409
        %1411 = vrot.lane.b32.xlu0 %v349, 8
        %v1412 = vpop.permute.xlu0 %1411
        %1413 = vrot.lane.b32.xlu0 %v350, 8
        %v1414 = vpop.permute.xlu0 %1413
        %1415 = vrot.lane.b32.xlu0 %v351, 8
        %v1416 = vpop.permute.xlu0 %1415
        %1417 = vrot.lane.b32.xlu0 %v352, 8
        %v1418 = vpop.permute.xlu0 %1417
        %1419 = vrot.lane.b32.xlu0 %v353, 8
        %v1420 = vpop.permute.xlu0 %1419
        %1421 = vrot.lane.b32.xlu0 %v354, 8
        %v1422 = vpop.permute.xlu0 %1421
        %1423 = vrot.lane.b32.xlu0 %v355, 8
        %v1424 = vpop.permute.xlu0 %1423
        %1425 = vrot.lane.b32.xlu0 %v356, 8
        %v1426 = vpop.permute.xlu0 %1425
        %1427 = vrot.lane.b32.xlu0 %v357, 8
        %v1428 = vpop.permute.xlu0 %1427
        %1429 = vrot.lane.b32.xlu0 %v358, 8
        %v1430 = vpop.permute.xlu0 %1429
        %1431 = vrot.lane.b32.xlu0 %v359, 8
        %v1432 = vpop.permute.xlu0 %1431
        %1433 = vrot.lane.b32.xlu0 %v360, 8
        %v1434 = vpop.permute.xlu0 %1433
        %1435 = vrot.lane.b32.xlu0 %v361, 8
        %v1436 = vpop.permute.xlu0 %1435
        %1437 = vrot.lane.b32.xlu0 %v362, 8
        %v1438 = vpop.permute.xlu0 %1437
        %1439 = vrot.lane.b32.xlu0 %v363, 8
        %v1440 = vpop.permute.xlu0 %1439
        %1441 = vrot.lane.b32.xlu0 %v364, 8
        %v1442 = vpop.permute.xlu0 %1441
        %1443 = vrot.lane.b32.xlu0 %v365, 8
        %v1444 = vpop.permute.xlu0 %1443
        %1445 = vrot.lane.b32.xlu0 %v366, 8
        %v1446 = vpop.permute.xlu0 %1445
        %1447 = vrot.lane.b32.xlu0 %v367, 8
        %v1448 = vpop.permute.xlu0 %1447
        %1449 = vrot.lane.b32.xlu0 %v368, 8
        %v1450 = vpop.permute.xlu0 %1449
        %1451 = vrot.lane.b32.xlu0 %v369, 8
        %v1452 = vpop.permute.xlu0 %1451
        %1453 = vrot.lane.b32.xlu0 %v370, 8
        %v1454 = vpop.permute.xlu0 %1453
        %1455 = vrot.lane.b32.xlu0 %v371, 8
        %v1456 = vpop.permute.xlu0 %1455
        %1457 = vrot.lane.b32.xlu0 %v372, 8
        %v1458 = vpop.permute.xlu0 %1457
        %1459 = vrot.lane.b32.xlu0 %v373, 8
        %v1460 = vpop.permute.xlu0 %1459
        %1461 = vrot.lane.b32.xlu0 %v374, 8
        %v1462 = vpop.permute.xlu0 %1461
        %1463 = vrot.lane.b32.xlu0 %v375, 8
        %v1464 = vpop.permute.xlu0 %1463
        %1465 = vrot.lane.b32.xlu0 %v376, 8
        %v1466 = vpop.permute.xlu0 %1465
        %1467 = vrot.lane.b32.xlu0 %v377, 8
        %v1468 = vpop.permute.xlu0 %1467
        %1469 = vrot.lane.b32.xlu0 %v378, 8
        %v1470 = vpop.permute.xlu0 %1469
        %1471 = vrot.lane.b32.xlu0 %v379, 8
        %v1472 = vpop.permute.xlu0 %1471
        %1473 = vrot.lane.b32.xlu0 %v380, 8
        %v1474 = vpop.permute.xlu0 %1473
        %1475 = vrot.lane.b32.xlu0 %v381, 8
        %v1476 = vpop.permute.xlu0 %1475
        %1477 = vrot.lane.b32.xlu0 %v382, 8
        %v1478 = vpop.permute.xlu0 %1477
        %1479 = vrot.lane.b32.xlu0 %v383, 8
        %v1480 = vpop.permute.xlu0 %1479
        %1481 = vrot.lane.b32.xlu0 %v384, 8
        %v1482 = vpop.permute.xlu0 %1481
        %1611 = vrot.lane.b32.xlu0 %v643, 16
        %v1612 = vpop.permute.xlu0 %1611
        %1613 = vrot.lane.b32.xlu0 %v642, 16
        %v1614 = vpop.permute.xlu0 %1613
        %1615 = vrot.lane.b32.xlu0 %v641, 16
        %v1616 = vpop.permute.xlu0 %1615
        %1617 = vrot.lane.b32.xlu0 %v640, 16
        %v1618 = vpop.permute.xlu0 %1617
        %1619 = vrot.lane.b32.xlu0 %v639, 16
        %v1620 = vpop.permute.xlu0 %1619
        %1621 = vrot.lane.b32.xlu0 %v638, 16
        %v1622 = vpop.permute.xlu0 %1621
        %1623 = vrot.lane.b32.xlu0 %v637, 16
        %v1624 = vpop.permute.xlu0 %1623
        %1625 = vrot.lane.b32.xlu0 %v636, 16
        %v1626 = vpop.permute.xlu0 %1625
        %1627 = vrot.lane.b32.xlu0 %v635, 16
        %v1628 = vpop.permute.xlu0 %1627
        %1629 = vrot.lane.b32.xlu0 %v634, 16
        %v1630 = vpop.permute.xlu0 %1629
        %1631 = vrot.lane.b32.xlu0 %v633, 16
        %v1632 = vpop.permute.xlu0 %1631
        %1633 = vrot.lane.b32.xlu0 %v632, 16
        %v1634 = vpop.permute.xlu0 %1633
        %1635 = vrot.lane.b32.xlu0 %v631, 16
        %v1636 = vpop.permute.xlu0 %1635
        %1637 = vrot.lane.b32.xlu0 %v630, 16
        %v1638 = vpop.permute.xlu0 %1637
        %1639 = vrot.lane.b32.xlu0 %v629, 16
        %v1640 = vpop.permute.xlu0 %1639
        %1641 = vrot.lane.b32.xlu0 %v628, 16
        %v1642 = vpop.permute.xlu0 %1641
        %1643 = vrot.lane.b32.xlu0 %v627, 16
        %v1644 = vpop.permute.xlu0 %1643
        %1645 = vrot.lane.b32.xlu0 %v626, 16
        %v1646 = vpop.permute.xlu0 %1645
        %1647 = vrot.lane.b32.xlu0 %v625, 16
        %v1648 = vpop.permute.xlu0 %1647
        %1649 = vrot.lane.b32.xlu0 %v624, 16
        %v1650 = vpop.permute.xlu0 %1649
        %1651 = vrot.lane.b32.xlu0 %v623, 16
        %v1652 = vpop.permute.xlu0 %1651
        %1653 = vrot.lane.b32.xlu0 %v622, 16
        %v1654 = vpop.permute.xlu0 %1653
        %1655 = vrot.lane.b32.xlu0 %v621, 16
        %v1656 = vpop.permute.xlu0 %1655
        %1657 = vrot.lane.b32.xlu0 %v620, 16
        %v1658 = vpop.permute.xlu0 %1657
        %1659 = vrot.lane.b32.xlu0 %v619, 16
        %v1660 = vpop.permute.xlu0 %1659
        %1661 = vrot.lane.b32.xlu0 %v618, 16
        %v1662 = vpop.permute.xlu0 %1661
        %1663 = vrot.lane.b32.xlu0 %v617, 16
        %v1664 = vpop.permute.xlu0 %1663
        %1665 = vrot.lane.b32.xlu0 %v616, 16
        %v1666 = vpop.permute.xlu0 %1665
        %1667 = vrot.lane.b32.xlu0 %v615, 16
        %v1668 = vpop.permute.xlu0 %1667
        %1669 = vrot.lane.b32.xlu0 %v614, 16
        %v1670 = vpop.permute.xlu0 %1669
        %1671 = vrot.lane.b32.xlu0 %v613, 16
        %v1672 = vpop.permute.xlu0 %1671
        %1673 = vrot.lane.b32.xlu0 %v612, 16
        %v1674 = vpop.permute.xlu0 %1673
        %1675 = vrot.lane.b32.xlu0 %v611, 16
        %v1676 = vpop.permute.xlu0 %1675
        %1677 = vrot.lane.b32.xlu0 %v610, 16
        %v1678 = vpop.permute.xlu0 %1677
        %1679 = vrot.lane.b32.xlu0 %v609, 16
        %v1680 = vpop.permute.xlu0 %1679
        %1681 = vrot.lane.b32.xlu0 %v608, 16
        %v1682 = vpop.permute.xlu0 %1681
        %1683 = vrot.lane.b32.xlu0 %v607, 16
        %v1684 = vpop.permute.xlu0 %1683
        %1685 = vrot.lane.b32.xlu0 %v606, 16
        %v1686 = vpop.permute.xlu0 %1685
        %1687 = vrot.lane.b32.xlu0 %v605, 16
        %v1688 = vpop.permute.xlu0 %1687
        %1689 = vrot.lane.b32.xlu0 %v604, 16
        %v1690 = vpop.permute.xlu0 %1689
        %1691 = vrot.lane.b32.xlu0 %v603, 16
        %v1692 = vpop.permute.xlu0 %1691
        %1693 = vrot.lane.b32.xlu0 %v602, 16
        %v1694 = vpop.permute.xlu0 %1693
        %1695 = vrot.lane.b32.xlu0 %v601, 16
        %v1696 = vpop.permute.xlu0 %1695
        %1697 = vrot.lane.b32.xlu0 %v600, 16
        %v1698 = vpop.permute.xlu0 %1697
        %1699 = vrot.lane.b32.xlu0 %v599, 16
        %v1700 = vpop.permute.xlu0 %1699
        %1701 = vrot.lane.b32.xlu0 %v598, 16
        %v1702 = vpop.permute.xlu0 %1701
        %1703 = vrot.lane.b32.xlu0 %v597, 16
        %v1704 = vpop.permute.xlu0 %1703
        %1705 = vrot.lane.b32.xlu0 %v596, 16
        %v1706 = vpop.permute.xlu0 %1705
        %1707 = vrot.lane.b32.xlu0 %v595, 16
        %v1708 = vpop.permute.xlu0 %1707
        %1709 = vrot.lane.b32.xlu0 %v594, 16
        %v1710 = vpop.permute.xlu0 %1709
        %1711 = vrot.lane.b32.xlu0 %v593, 16
        %v1712 = vpop.permute.xlu0 %1711
        %1713 = vrot.lane.b32.xlu0 %v592, 16
        %v1714 = vpop.permute.xlu0 %1713
        %1715 = vrot.lane.b32.xlu0 %v591, 16
        %v1716 = vpop.permute.xlu0 %1715
        %1717 = vrot.lane.b32.xlu0 %v590, 16
        %v1718 = vpop.permute.xlu0 %1717
        %1719 = vrot.lane.b32.xlu0 %v589, 16
        %v1720 = vpop.permute.xlu0 %1719
        %1721 = vrot.lane.b32.xlu0 %v588, 16
        %v1722 = vpop.permute.xlu0 %1721
        %1723 = vrot.lane.b32.xlu0 %v587, 16
        %v1724 = vpop.permute.xlu0 %1723
        %1725 = vrot.lane.b32.xlu0 %v586, 16
        %v1726 = vpop.permute.xlu0 %1725
        %1727 = vrot.lane.b32.xlu0 %v585, 16
        %v1728 = vpop.permute.xlu0 %1727
        %1729 = vrot.lane.b32.xlu0 %v584, 16
        %v1730 = vpop.permute.xlu0 %1729
        %1731 = vrot.lane.b32.xlu0 %v583, 16
        %v1732 = vpop.permute.xlu0 %1731
        %1733 = vrot.lane.b32.xlu0 %v582, 16
        %v1734 = vpop.permute.xlu0 %1733
        %1735 = vrot.lane.b32.xlu0 %v581, 16
        %v1736 = vpop.permute.xlu0 %1735
        %1737 = vrot.lane.b32.xlu0 %v644, 16
        %v1738 = vpop.permute.xlu0 %1737
        %1867 = vrot.lane.b32.xlu0 %v839, 24
        %v1868 = vpop.permute.xlu0 %1867
        %1869 = vrot.lane.b32.xlu0 %v838, 24
        %v1870 = vpop.permute.xlu0 %1869
        %1871 = vrot.lane.b32.xlu0 %v837, 24
        %v1872 = vpop.permute.xlu0 %1871
        %1873 = vrot.lane.b32.xlu0 %v836, 24
        %v1874 = vpop.permute.xlu0 %1873
        %1875 = vrot.lane.b32.xlu0 %v835, 24
        %v1876 = vpop.permute.xlu0 %1875
        %1877 = vrot.lane.b32.xlu0 %v834, 24
        %v1878 = vpop.permute.xlu0 %1877
        %1879 = vrot.lane.b32.xlu0 %v833, 24
        %v1880 = vpop.permute.xlu0 %1879
        %1881 = vrot.lane.b32.xlu0 %v832, 24
        %v1882 = vpop.permute.xlu0 %1881
        %1883 = vrot.lane.b32.xlu0 %v831, 24
        %v1884 = vpop.permute.xlu0 %1883
        %1885 = vrot.lane.b32.xlu0 %v830, 24
        %v1886 = vpop.permute.xlu0 %1885
        %1887 = vrot.lane.b32.xlu0 %v829, 24
        %v1888 = vpop.permute.xlu0 %1887
        %1889 = vrot.lane.b32.xlu0 %v828, 24
        %v1890 = vpop.permute.xlu0 %1889
        %1891 = vrot.lane.b32.xlu0 %v827, 24
        %v1892 = vpop.permute.xlu0 %1891
        %1893 = vrot.lane.b32.xlu0 %v826, 24
        %v1894 = vpop.permute.xlu0 %1893
        %1895 = vrot.lane.b32.xlu0 %v825, 24
        %v1896 = vpop.permute.xlu0 %1895
        %1897 = vrot.lane.b32.xlu0 %v824, 24
        %v1898 = vpop.permute.xlu0 %1897
        %1899 = vrot.lane.b32.xlu0 %v823, 24
        %v1900 = vpop.permute.xlu0 %1899
        %1901 = vrot.lane.b32.xlu0 %v822, 24
        %v1902 = vpop.permute.xlu0 %1901
        %1903 = vrot.lane.b32.xlu0 %v821, 24
        %v1904 = vpop.permute.xlu0 %1903
        %1905 = vrot.lane.b32.xlu0 %v820, 24
        %v1906 = vpop.permute.xlu0 %1905
        %1907 = vrot.lane.b32.xlu0 %v819, 24
        %v1908 = vpop.permute.xlu0 %1907
        %1909 = vrot.lane.b32.xlu0 %v818, 24
        %v1910 = vpop.permute.xlu0 %1909
        %1911 = vrot.lane.b32.xlu0 %v817, 24
        %v1912 = vpop.permute.xlu0 %1911
        %1913 = vrot.lane.b32.xlu0 %v816, 24
        %v1914 = vpop.permute.xlu0 %1913
        %1915 = vrot.lane.b32.xlu0 %v815, 24
        %v1916 = vpop.permute.xlu0 %1915
        %1917 = vrot.lane.b32.xlu0 %v814, 24
        %v1918 = vpop.permute.xlu0 %1917
        %1919 = vrot.lane.b32.xlu0 %v813, 24
        %v1920 = vpop.permute.xlu0 %1919
        %1921 = vrot.lane.b32.xlu0 %v812, 24
        %v1922 = vpop.permute.xlu0 %1921
        %1923 = vrot.lane.b32.xlu0 %v811, 24
        %v1924 = vpop.permute.xlu0 %1923
        %1925 = vrot.lane.b32.xlu0 %v810, 24
        %v1926 = vpop.permute.xlu0 %1925
        %1927 = vrot.lane.b32.xlu0 %v809, 24
        %v1928 = vpop.permute.xlu0 %1927
        %1929 = vrot.lane.b32.xlu0 %v808, 24
        %v1930 = vpop.permute.xlu0 %1929
        %1931 = vrot.lane.b32.xlu0 %v807, 24
        %v1932 = vpop.permute.xlu0 %1931
        %1933 = vrot.lane.b32.xlu0 %v806, 24
        %v1934 = vpop.permute.xlu0 %1933
        %1935 = vrot.lane.b32.xlu0 %v805, 24
        %v1936 = vpop.permute.xlu0 %1935
        %1937 = vrot.lane.b32.xlu0 %v804, 24
        %v1938 = vpop.permute.xlu0 %1937
        %1939 = vrot.lane.b32.xlu0 %v803, 24
        %v1940 = vpop.permute.xlu0 %1939
        %1941 = vrot.lane.b32.xlu0 %v802, 24
        %v1942 = vpop.permute.xlu0 %1941
        %1943 = vrot.lane.b32.xlu0 %v801, 24
        %v1944 = vpop.permute.xlu0 %1943
        %1945 = vrot.lane.b32.xlu0 %v800, 24
        %v1946 = vpop.permute.xlu0 %1945
        %1947 = vrot.lane.b32.xlu0 %v799, 24
        %v1948 = vpop.permute.xlu0 %1947
        %1949 = vrot.lane.b32.xlu0 %v798, 24
        %v1950 = vpop.permute.xlu0 %1949
        %1951 = vrot.lane.b32.xlu0 %v797, 24
        %v1952 = vpop.permute.xlu0 %1951
        %1953 = vrot.lane.b32.xlu0 %v796, 24
        %v1954 = vpop.permute.xlu0 %1953
        %1955 = vrot.lane.b32.xlu0 %v795, 24
        %v1956 = vpop.permute.xlu0 %1955
        %1957 = vrot.lane.b32.xlu0 %v794, 24
        %v1958 = vpop.permute.xlu0 %1957
        %1959 = vrot.lane.b32.xlu0 %v793, 24
        %v1960 = vpop.permute.xlu0 %1959
        %1961 = vrot.lane.b32.xlu0 %v792, 24
        %v1962 = vpop.permute.xlu0 %1961
        %1963 = vrot.lane.b32.xlu0 %v791, 24
        %v1964 = vpop.permute.xlu0 %1963
        %1965 = vrot.lane.b32.xlu0 %v790, 24
        %v1966 = vpop.permute.xlu0 %1965
        %1967 = vrot.lane.b32.xlu0 %v789, 24
        %v1968 = vpop.permute.xlu0 %1967
        %1969 = vrot.lane.b32.xlu0 %v788, 24
        %v1970 = vpop.permute.xlu0 %1969
        %1971 = vrot.lane.b32.xlu0 %v787, 24
        %v1972 = vpop.permute.xlu0 %1971
        %1973 = vrot.lane.b32.xlu0 %v786, 24
        %v1974 = vpop.permute.xlu0 %1973
        %1975 = vrot.lane.b32.xlu0 %v785, 24
        %v1976 = vpop.permute.xlu0 %1975
        %1977 = vrot.lane.b32.xlu0 %v784, 24
        %v1978 = vpop.permute.xlu0 %1977
        %1979 = vrot.lane.b32.xlu0 %v783, 24
        %v1980 = vpop.permute.xlu0 %1979
        %1981 = vrot.lane.b32.xlu0 %v782, 24
        %v1982 = vpop.permute.xlu0 %1981
        %1983 = vrot.lane.b32.xlu0 %v781, 24
        %v1984 = vpop.permute.xlu0 %1983
        %1985 = vrot.lane.b32.xlu0 %v780, 24
        %v1986 = vpop.permute.xlu0 %1985
        %1987 = vrot.lane.b32.xlu0 %v779, 24
        %v1988 = vpop.permute.xlu0 %1987
        %1989 = vrot.lane.b32.xlu0 %v778, 24
        %v1990 = vpop.permute.xlu0 %1989
        %1991 = vrot.lane.b32.xlu0 %v777, 24
        %v1992 = vpop.permute.xlu0 %1991
        %1993 = vrot.lane.b32.xlu0 %v776, 24
        %v1994 = vpop.permute.xlu0 %1993
        %2123 = vrot.lane.b32.xlu0 %v648, 32
        %v2124 = vpop.permute.xlu0 %2123
        %2125 = vrot.lane.b32.xlu0 %v649, 32
        %v2126 = vpop.permute.xlu0 %2125
        %2127 = vrot.lane.b32.xlu0 %v650, 32
        %v2128 = vpop.permute.xlu0 %2127
        %2129 = vrot.lane.b32.xlu0 %v651, 32
        %v2130 = vpop.permute.xlu0 %2129
        %2131 = vrot.lane.b32.xlu0 %v652, 32
        %v2132 = vpop.permute.xlu0 %2131
        %2133 = vrot.lane.b32.xlu0 %v653, 32
        %v2134 = vpop.permute.xlu0 %2133
        %2135 = vrot.lane.b32.xlu0 %v654, 32
        %v2136 = vpop.permute.xlu0 %2135
        %2137 = vrot.lane.b32.xlu0 %v655, 32
        %v2138 = vpop.permute.xlu0 %2137
        %2139 = vrot.lane.b32.xlu0 %v656, 32
        %v2140 = vpop.permute.xlu0 %2139
        %2141 = vrot.lane.b32.xlu0 %v657, 32
        %v2142 = vpop.permute.xlu0 %2141
        %2143 = vrot.lane.b32.xlu0 %v658, 32
        %v2144 = vpop.permute.xlu0 %2143
        %2145 = vrot.lane.b32.xlu0 %v659, 32
        %v2146 = vpop.permute.xlu0 %2145
        %2147 = vrot.lane.b32.xlu0 %v660, 32
        %v2148 = vpop.permute.xlu0 %2147
        %2149 = vrot.lane.b32.xlu0 %v661, 32
        %v2150 = vpop.permute.xlu0 %2149
        %2151 = vrot.lane.b32.xlu0 %v662, 32
        %v2152 = vpop.permute.xlu0 %2151
        %2153 = vrot.lane.b32.xlu0 %v663, 32
        %v2154 = vpop.permute.xlu0 %2153
        %2155 = vrot.lane.b32.xlu0 %v664, 32
        %v2156 = vpop.permute.xlu0 %2155
        %2157 = vrot.lane.b32.xlu0 %v665, 32
        %v2158 = vpop.permute.xlu0 %2157
        %2159 = vrot.lane.b32.xlu0 %v666, 32
        %v2160 = vpop.permute.xlu0 %2159
        %2161 = vrot.lane.b32.xlu0 %v667, 32
        %v2162 = vpop.permute.xlu0 %2161
        %2163 = vrot.lane.b32.xlu0 %v668, 32
        %v2164 = vpop.permute.xlu0 %2163
        %2165 = vrot.lane.b32.xlu0 %v669, 32
        %v2166 = vpop.permute.xlu0 %2165
        %2167 = vrot.lane.b32.xlu0 %v670, 32
        %v2168 = vpop.permute.xlu0 %2167
        %2169 = vrot.lane.b32.xlu0 %v671, 32
        %v2170 = vpop.permute.xlu0 %2169
        %2171 = vrot.lane.b32.xlu0 %v672, 32
        %v2172 = vpop.permute.xlu0 %2171
        %2173 = vrot.lane.b32.xlu0 %v673, 32
        %v2174 = vpop.permute.xlu0 %2173
        %2175 = vrot.lane.b32.xlu0 %v674, 32
        %v2176 = vpop.permute.xlu0 %2175
        %2177 = vrot.lane.b32.xlu0 %v675, 32
        %v2178 = vpop.permute.xlu0 %2177
        %2179 = vrot.lane.b32.xlu0 %v676, 32
        %v2180 = vpop.permute.xlu0 %2179
        %2181 = vrot.lane.b32.xlu0 %v677, 32
        %v2182 = vpop.permute.xlu0 %2181
        %2183 = vrot.lane.b32.xlu0 %v678, 32
        %v2184 = vpop.permute.xlu0 %2183
        %2185 = vrot.lane.b32.xlu0 %v679, 32
        %v2186 = vpop.permute.xlu0 %2185
        %2187 = vrot.lane.b32.xlu0 %v680, 32
        %v2188 = vpop.permute.xlu0 %2187
        %2189 = vrot.lane.b32.xlu0 %v681, 32
        %v2190 = vpop.permute.xlu0 %2189
        %2191 = vrot.lane.b32.xlu0 %v682, 32
        %v2192 = vpop.permute.xlu0 %2191
        %2193 = vrot.lane.b32.xlu0 %v683, 32
        %v2194 = vpop.permute.xlu0 %2193
        %2195 = vrot.lane.b32.xlu0 %v684, 32
        %v2196 = vpop.permute.xlu0 %2195
        %2197 = vrot.lane.b32.xlu0 %v685, 32
        %v2198 = vpop.permute.xlu0 %2197
        %2199 = vrot.lane.b32.xlu0 %v686, 32
        %v2200 = vpop.permute.xlu0 %2199
        %2201 = vrot.lane.b32.xlu0 %v687, 32
        %v2202 = vpop.permute.xlu0 %2201
        %2203 = vrot.lane.b32.xlu0 %v688, 32
        %v2204 = vpop.permute.xlu0 %2203
        %2205 = vrot.lane.b32.xlu0 %v689, 32
        %v2206 = vpop.permute.xlu0 %2205
        %2207 = vrot.lane.b32.xlu0 %v690, 32
        %v2208 = vpop.permute.xlu0 %2207
        %2209 = vrot.lane.b32.xlu0 %v691, 32
        %v2210 = vpop.permute.xlu0 %2209
        %2211 = vrot.lane.b32.xlu0 %v692, 32
        %v2212 = vpop.permute.xlu0 %2211
        %2213 = vrot.lane.b32.xlu0 %v693, 32
        %v2214 = vpop.permute.xlu0 %2213
        %2215 = vrot.lane.b32.xlu0 %v694, 32
        %v2216 = vpop.permute.xlu0 %2215
        %2217 = vrot.lane.b32.xlu0 %v695, 32
        %v2218 = vpop.permute.xlu0 %2217
        %2219 = vrot.lane.b32.xlu0 %v696, 32
        %v2220 = vpop.permute.xlu0 %2219
        %2221 = vrot.lane.b32.xlu0 %v697, 32
        %v2222 = vpop.permute.xlu0 %2221
        %2223 = vrot.lane.b32.xlu0 %v698, 32
        %v2224 = vpop.permute.xlu0 %2223
        %2225 = vrot.lane.b32.xlu0 %v699, 32
        %v2226 = vpop.permute.xlu0 %2225
        %2227 = vrot.lane.b32.xlu0 %v700, 32
        %v2228 = vpop.permute.xlu0 %2227
        %2229 = vrot.lane.b32.xlu0 %v701, 32
        %v2230 = vpop.permute.xlu0 %2229
        %2231 = vrot.lane.b32.xlu0 %v702, 32
        %v2232 = vpop.permute.xlu0 %2231
        %2233 = vrot.lane.b32.xlu0 %v703, 32
        %v2234 = vpop.permute.xlu0 %2233
        %2235 = vrot.lane.b32.xlu0 %v704, 32
        %v2236 = vpop.permute.xlu0 %2235
        %2237 = vrot.lane.b32.xlu0 %v705, 32
        %v2238 = vpop.permute.xlu0 %2237
        %2239 = vrot.lane.b32.xlu0 %v706, 32
        %v2240 = vpop.permute.xlu0 %2239
        %2241 = vrot.lane.b32.xlu0 %v707, 32
        %v2242 = vpop.permute.xlu0 %2241
        %2243 = vrot.lane.b32.xlu0 %v708, 32
        %v2244 = vpop.permute.xlu0 %2243
        %2245 = vrot.lane.b32.xlu0 %v709, 32
        %v2246 = vpop.permute.xlu0 %2245
        %2247 = vrot.lane.b32.xlu0 %v710, 32
        %v2248 = vpop.permute.xlu0 %2247
        %2249 = vrot.lane.b32.xlu0 %v711, 32
        %v2250 = vpop.permute.xlu0 %2249
        %2379 = vrot.lane.b32.xlu0 %v966, 40
        %v2380 = vpop.permute.xlu0 %2379
        %2381 = vrot.lane.b32.xlu0 %v965, 40
        %v2382 = vpop.permute.xlu0 %2381
        %2383 = vrot.lane.b32.xlu0 %v964, 40
        %v2384 = vpop.permute.xlu0 %2383
        %2385 = vrot.lane.b32.xlu0 %v963, 40
        %v2386 = vpop.permute.xlu0 %2385
        %2387 = vrot.lane.b32.xlu0 %v962, 40
        %v2388 = vpop.permute.xlu0 %2387
        %2389 = vrot.lane.b32.xlu0 %v961, 40
        %v2390 = vpop.permute.xlu0 %2389
        %2391 = vrot.lane.b32.xlu0 %v960, 40
        %v2392 = vpop.permute.xlu0 %2391
        %2393 = vrot.lane.b32.xlu0 %v959, 40
        %v2394 = vpop.permute.xlu0 %2393
        %2395 = vrot.lane.b32.xlu0 %v958, 40
        %v2396 = vpop.permute.xlu0 %2395
        %2397 = vrot.lane.b32.xlu0 %v957, 40
        %v2398 = vpop.permute.xlu0 %2397
        %2399 = vrot.lane.b32.xlu0 %v956, 40
        %v2400 = vpop.permute.xlu0 %2399
        %2401 = vrot.lane.b32.xlu0 %v955, 40
        %v2402 = vpop.permute.xlu0 %2401
        %2403 = vrot.lane.b32.xlu0 %v954, 40
        %v2404 = vpop.permute.xlu0 %2403
        %2405 = vrot.lane.b32.xlu0 %v953, 40
        %v2406 = vpop.permute.xlu0 %2405
        %2407 = vrot.lane.b32.xlu0 %v952, 40
        %v2408 = vpop.permute.xlu0 %2407
        %2409 = vrot.lane.b32.xlu0 %v951, 40
        %v2410 = vpop.permute.xlu0 %2409
        %2411 = vrot.lane.b32.xlu0 %v950, 40
        %v2412 = vpop.permute.xlu0 %2411
        %2413 = vrot.lane.b32.xlu0 %v949, 40
        %v2414 = vpop.permute.xlu0 %2413
        %2415 = vrot.lane.b32.xlu0 %v948, 40
        %v2416 = vpop.permute.xlu0 %2415
        %2417 = vrot.lane.b32.xlu0 %v947, 40
        %v2418 = vpop.permute.xlu0 %2417
        %2419 = vrot.lane.b32.xlu0 %v946, 40
        %v2420 = vpop.permute.xlu0 %2419
        %2421 = vrot.lane.b32.xlu0 %v945, 40
        %v2422 = vpop.permute.xlu0 %2421
        %2423 = vrot.lane.b32.xlu0 %v944, 40
        %v2424 = vpop.permute.xlu0 %2423
        %2425 = vrot.lane.b32.xlu0 %v943, 40
        %v2426 = vpop.permute.xlu0 %2425
        %2427 = vrot.lane.b32.xlu0 %v942, 40
        %v2428 = vpop.permute.xlu0 %2427
        %2429 = vrot.lane.b32.xlu0 %v941, 40
        %v2430 = vpop.permute.xlu0 %2429
        %2431 = vrot.lane.b32.xlu0 %v940, 40
        %v2432 = vpop.permute.xlu0 %2431
        %2433 = vrot.lane.b32.xlu0 %v939, 40
        %v2434 = vpop.permute.xlu0 %2433
        %2435 = vrot.lane.b32.xlu0 %v938, 40
        %v2436 = vpop.permute.xlu0 %2435
        %2437 = vrot.lane.b32.xlu0 %v937, 40
        %v2438 = vpop.permute.xlu0 %2437
        %2439 = vrot.lane.b32.xlu0 %v936, 40
        %v2440 = vpop.permute.xlu0 %2439
        %2441 = vrot.lane.b32.xlu0 %v935, 40
        %v2442 = vpop.permute.xlu0 %2441
        %2443 = vrot.lane.b32.xlu0 %v934, 40
        %v2444 = vpop.permute.xlu0 %2443
        %2445 = vrot.lane.b32.xlu0 %v933, 40
        %v2446 = vpop.permute.xlu0 %2445
        %2447 = vrot.lane.b32.xlu0 %v932, 40
        %v2448 = vpop.permute.xlu0 %2447
        %2449 = vrot.lane.b32.xlu0 %v931, 40
        %v2450 = vpop.permute.xlu0 %2449
        %2451 = vrot.lane.b32.xlu0 %v930, 40
        %v2452 = vpop.permute.xlu0 %2451
        %2453 = vrot.lane.b32.xlu0 %v929, 40
        %v2454 = vpop.permute.xlu0 %2453
        %2455 = vrot.lane.b32.xlu0 %v928, 40
        %v2456 = vpop.permute.xlu0 %2455
        %2457 = vrot.lane.b32.xlu0 %v927, 40
        %v2458 = vpop.permute.xlu0 %2457
        %2459 = vrot.lane.b32.xlu0 %v926, 40
        %v2460 = vpop.permute.xlu0 %2459
        %2461 = vrot.lane.b32.xlu0 %v925, 40
        %v2462 = vpop.permute.xlu0 %2461
        %2463 = vrot.lane.b32.xlu0 %v924, 40
        %v2464 = vpop.permute.xlu0 %2463
        %2465 = vrot.lane.b32.xlu0 %v923, 40
        %v2466 = vpop.permute.xlu0 %2465
        %2467 = vrot.lane.b32.xlu0 %v922, 40
        %v2468 = vpop.permute.xlu0 %2467
        %2469 = vrot.lane.b32.xlu0 %v921, 40
        %v2470 = vpop.permute.xlu0 %2469
        %2471 = vrot.lane.b32.xlu0 %v920, 40
        %v2472 = vpop.permute.xlu0 %2471
        %2473 = vrot.lane.b32.xlu0 %v919, 40
        %v2474 = vpop.permute.xlu0 %2473
        %2475 = vrot.lane.b32.xlu0 %v918, 40
        %v2476 = vpop.permute.xlu0 %2475
        %2477 = vrot.lane.b32.xlu0 %v917, 40
        %v2478 = vpop.permute.xlu0 %2477
        %2479 = vrot.lane.b32.xlu0 %v916, 40
        %v2480 = vpop.permute.xlu0 %2479
        %2481 = vrot.lane.b32.xlu0 %v915, 40
        %v2482 = vpop.permute.xlu0 %2481
        %2483 = vrot.lane.b32.xlu0 %v914, 40
        %v2484 = vpop.permute.xlu0 %2483
        %2485 = vrot.lane.b32.xlu0 %v913, 40
        %v2486 = vpop.permute.xlu0 %2485
        %2487 = vrot.lane.b32.xlu0 %v912, 40
        %v2488 = vpop.permute.xlu0 %2487
        %2489 = vrot.lane.b32.xlu0 %v911, 40
        %v2490 = vpop.permute.xlu0 %2489
        %2491 = vrot.lane.b32.xlu0 %v910, 40
        %v2492 = vpop.permute.xlu0 %2491
        %2493 = vrot.lane.b32.xlu0 %v909, 40
        %v2494 = vpop.permute.xlu0 %2493
        %2495 = vrot.lane.b32.xlu0 %v908, 40
        %v2496 = vpop.permute.xlu0 %2495
        %2497 = vrot.lane.b32.xlu0 %v907, 40
        %v2498 = vpop.permute.xlu0 %2497
        %2499 = vrot.lane.b32.xlu0 %v906, 40
        %v2500 = vpop.permute.xlu0 %2499
        %2501 = vrot.lane.b32.xlu0 %v905, 40
        %v2502 = vpop.permute.xlu0 %2501
        %2503 = vrot.lane.b32.xlu0 %v904, 40
        %v2504 = vpop.permute.xlu0 %2503
        %2505 = vrot.lane.b32.xlu0 %v967, 40
        %v2506 = vpop.permute.xlu0 %2505
        %2635 = vrot.lane.b32.xlu0 %v1162, 48
        %v2636 = vpop.permute.xlu0 %2635
        %2637 = vrot.lane.b32.xlu0 %v1161, 48
        %v2638 = vpop.permute.xlu0 %2637
        %2639 = vrot.lane.b32.xlu0 %v1160, 48
        %v2640 = vpop.permute.xlu0 %2639
        %2641 = vrot.lane.b32.xlu0 %v1159, 48
        %v2642 = vpop.permute.xlu0 %2641
        %2643 = vrot.lane.b32.xlu0 %v1158, 48
        %v2644 = vpop.permute.xlu0 %2643
        %2645 = vrot.lane.b32.xlu0 %v1157, 48
        %v2646 = vpop.permute.xlu0 %2645
        %2647 = vrot.lane.b32.xlu0 %v1156, 48
        %v2648 = vpop.permute.xlu0 %2647
        %2649 = vrot.lane.b32.xlu0 %v1155, 48
        %v2650 = vpop.permute.xlu0 %2649
        %2651 = vrot.lane.b32.xlu0 %v1154, 48
        %v2652 = vpop.permute.xlu0 %2651
        %2653 = vrot.lane.b32.xlu0 %v1153, 48
        %v2654 = vpop.permute.xlu0 %2653
        %2655 = vrot.lane.b32.xlu0 %v1152, 48
        %v2656 = vpop.permute.xlu0 %2655
        %2657 = vrot.lane.b32.xlu0 %v1151, 48
        %v2658 = vpop.permute.xlu0 %2657
        %2659 = vrot.lane.b32.xlu0 %v1150, 48
        %v2660 = vpop.permute.xlu0 %2659
        %2661 = vrot.lane.b32.xlu0 %v1149, 48
        %v2662 = vpop.permute.xlu0 %2661
        %2663 = vrot.lane.b32.xlu0 %v1148, 48
        %v2664 = vpop.permute.xlu0 %2663
        %2665 = vrot.lane.b32.xlu0 %v1147, 48
        %v2666 = vpop.permute.xlu0 %2665
        %2667 = vrot.lane.b32.xlu0 %v1146, 48
        %v2668 = vpop.permute.xlu0 %2667
        %2669 = vrot.lane.b32.xlu0 %v1145, 48
        %v2670 = vpop.permute.xlu0 %2669
        %2671 = vrot.lane.b32.xlu0 %v1144, 48
        %v2672 = vpop.permute.xlu0 %2671
        %2673 = vrot.lane.b32.xlu0 %v1143, 48
        %v2674 = vpop.permute.xlu0 %2673
        %2675 = vrot.lane.b32.xlu0 %v1142, 48
        %v2676 = vpop.permute.xlu0 %2675
        %2677 = vrot.lane.b32.xlu0 %v1141, 48
        %v2678 = vpop.permute.xlu0 %2677
        %2679 = vrot.lane.b32.xlu0 %v1140, 48
        %v2680 = vpop.permute.xlu0 %2679
        %2681 = vrot.lane.b32.xlu0 %v1139, 48
        %v2682 = vpop.permute.xlu0 %2681
        %2683 = vrot.lane.b32.xlu0 %v1138, 48
        %v2684 = vpop.permute.xlu0 %2683
        %2685 = vrot.lane.b32.xlu0 %v1137, 48
        %v2686 = vpop.permute.xlu0 %2685
        %2687 = vrot.lane.b32.xlu0 %v1136, 48
        %v2688 = vpop.permute.xlu0 %2687
        %2689 = vrot.lane.b32.xlu0 %v1135, 48
        %v2690 = vpop.permute.xlu0 %2689
        %2691 = vrot.lane.b32.xlu0 %v1134, 48
        %v2692 = vpop.permute.xlu0 %2691
        %2693 = vrot.lane.b32.xlu0 %v1133, 48
        %v2694 = vpop.permute.xlu0 %2693
        %2695 = vrot.lane.b32.xlu0 %v1132, 48
        %v2696 = vpop.permute.xlu0 %2695
        %2697 = vrot.lane.b32.xlu0 %v1131, 48
        %v2698 = vpop.permute.xlu0 %2697
        %2699 = vrot.lane.b32.xlu0 %v1130, 48
        %v2700 = vpop.permute.xlu0 %2699
        %2701 = vrot.lane.b32.xlu0 %v1129, 48
        %v2702 = vpop.permute.xlu0 %2701
        %2703 = vrot.lane.b32.xlu0 %v1128, 48
        %v2704 = vpop.permute.xlu0 %2703
        %2705 = vrot.lane.b32.xlu0 %v1127, 48
        %v2706 = vpop.permute.xlu0 %2705
        %2707 = vrot.lane.b32.xlu0 %v1126, 48
        %v2708 = vpop.permute.xlu0 %2707
        %2709 = vrot.lane.b32.xlu0 %v1125, 48
        %v2710 = vpop.permute.xlu0 %2709
        %2711 = vrot.lane.b32.xlu0 %v1124, 48
        %v2712 = vpop.permute.xlu0 %2711
        %2713 = vrot.lane.b32.xlu0 %v1123, 48
        %v2714 = vpop.permute.xlu0 %2713
        %2715 = vrot.lane.b32.xlu0 %v1122, 48
        %v2716 = vpop.permute.xlu0 %2715
        %2717 = vrot.lane.b32.xlu0 %v1121, 48
        %v2718 = vpop.permute.xlu0 %2717
        %2719 = vrot.lane.b32.xlu0 %v1120, 48
        %v2720 = vpop.permute.xlu0 %2719
        %2721 = vrot.lane.b32.xlu0 %v1119, 48
        %v2722 = vpop.permute.xlu0 %2721
        %2723 = vrot.lane.b32.xlu0 %v1118, 48
        %v2724 = vpop.permute.xlu0 %2723
        %2725 = vrot.lane.b32.xlu0 %v1117, 48
        %v2726 = vpop.permute.xlu0 %2725
        %2727 = vrot.lane.b32.xlu0 %v1116, 48
        %v2728 = vpop.permute.xlu0 %2727
        %2729 = vrot.lane.b32.xlu0 %v1115, 48
        %v2730 = vpop.permute.xlu0 %2729
        %2731 = vrot.lane.b32.xlu0 %v1114, 48
        %v2732 = vpop.permute.xlu0 %2731
        %2733 = vrot.lane.b32.xlu0 %v1113, 48
        %v2734 = vpop.permute.xlu0 %2733
        %2735 = vrot.lane.b32.xlu0 %v1112, 48
        %v2736 = vpop.permute.xlu0 %2735
        %2737 = vrot.lane.b32.xlu0 %v1111, 48
        %v2738 = vpop.permute.xlu0 %2737
        %2739 = vrot.lane.b32.xlu0 %v1110, 48
        %v2740 = vpop.permute.xlu0 %2739
        %2741 = vrot.lane.b32.xlu0 %v1109, 48
        %v2742 = vpop.permute.xlu0 %2741
        %2743 = vrot.lane.b32.xlu0 %v1108, 48
        %v2744 = vpop.permute.xlu0 %2743
        %2745 = vrot.lane.b32.xlu0 %v1107, 48
        %v2746 = vpop.permute.xlu0 %2745
        %2747 = vrot.lane.b32.xlu0 %v1106, 48
        %v2748 = vpop.permute.xlu0 %2747
        %2749 = vrot.lane.b32.xlu0 %v1105, 48
        %v2750 = vpop.permute.xlu0 %2749
        %2751 = vrot.lane.b32.xlu0 %v1104, 48
        %v2752 = vpop.permute.xlu0 %2751
        %2753 = vrot.lane.b32.xlu0 %v1103, 48
        %v2754 = vpop.permute.xlu0 %2753
        %2755 = vrot.lane.b32.xlu0 %v1102, 48
        %v2756 = vpop.permute.xlu0 %2755
        %2757 = vrot.lane.b32.xlu0 %v1101, 48
        %v2758 = vpop.permute.xlu0 %2757
        %2759 = vrot.lane.b32.xlu0 %v1100, 48
        %v2760 = vpop.permute.xlu0 %2759
        %2761 = vrot.lane.b32.xlu0 %v1099, 48
        %v2762 = vpop.permute.xlu0 %2761
        %2891 = vrot.lane.b32.xlu0 %v971, 56
        %v2892 = vpop.permute.xlu0 %2891
        %2893 = vrot.lane.b32.xlu0 %v972, 56
        %v2894 = vpop.permute.xlu0 %2893
        %2895 = vrot.lane.b32.xlu0 %v973, 56
        %v2896 = vpop.permute.xlu0 %2895
        %2897 = vrot.lane.b32.xlu0 %v974, 56
        %v2898 = vpop.permute.xlu0 %2897
        %2899 = vrot.lane.b32.xlu0 %v975, 56
        %v2900 = vpop.permute.xlu0 %2899
        %2901 = vrot.lane.b32.xlu0 %v976, 56
        %v2902 = vpop.permute.xlu0 %2901
        %2903 = vrot.lane.b32.xlu0 %v977, 56
        %v2904 = vpop.permute.xlu0 %2903
        %2905 = vrot.lane.b32.xlu0 %v978, 56
        %v2906 = vpop.permute.xlu0 %2905
        %2907 = vrot.lane.b32.xlu0 %v979, 56
        %v2908 = vpop.permute.xlu0 %2907
        %2909 = vrot.lane.b32.xlu0 %v980, 56
        %v2910 = vpop.permute.xlu0 %2909
        %2911 = vrot.lane.b32.xlu0 %v981, 56
        %v2912 = vpop.permute.xlu0 %2911
        %2913 = vrot.lane.b32.xlu0 %v982, 56
        %v2914 = vpop.permute.xlu0 %2913
        %2915 = vrot.lane.b32.xlu0 %v983, 56
        %v2916 = vpop.permute.xlu0 %2915
        %2917 = vrot.lane.b32.xlu0 %v984, 56
        %v2918 = vpop.permute.xlu0 %2917
        %2919 = vrot.lane.b32.xlu0 %v985, 56
        %v2920 = vpop.permute.xlu0 %2919
        %2921 = vrot.lane.b32.xlu0 %v986, 56
        %v2922 = vpop.permute.xlu0 %2921
        %2923 = vrot.lane.b32.xlu0 %v987, 56
        %v2924 = vpop.permute.xlu0 %2923
        %2925 = vrot.lane.b32.xlu0 %v988, 56
        %v2926 = vpop.permute.xlu0 %2925
        %2927 = vrot.lane.b32.xlu0 %v989, 56
        %v2928 = vpop.permute.xlu0 %2927
        %2929 = vrot.lane.b32.xlu0 %v990, 56
        %v2930 = vpop.permute.xlu0 %2929
        %2931 = vrot.lane.b32.xlu0 %v991, 56
        %v2932 = vpop.permute.xlu0 %2931
        %2933 = vrot.lane.b32.xlu0 %v992, 56
        %v2934 = vpop.permute.xlu0 %2933
        %2935 = vrot.lane.b32.xlu0 %v993, 56
        %v2936 = vpop.permute.xlu0 %2935
        %2937 = vrot.lane.b32.xlu0 %v994, 56
        %v2938 = vpop.permute.xlu0 %2937
        %2939 = vrot.lane.b32.xlu0 %v995, 56
        %v2940 = vpop.permute.xlu0 %2939
        %2941 = vrot.lane.b32.xlu0 %v996, 56
        %v2942 = vpop.permute.xlu0 %2941
        %2943 = vrot.lane.b32.xlu0 %v997, 56
        %v2944 = vpop.permute.xlu0 %2943
        %2945 = vrot.lane.b32.xlu0 %v998, 56
        %v2946 = vpop.permute.xlu0 %2945
        %2947 = vrot.lane.b32.xlu0 %v999, 56
        %v2948 = vpop.permute.xlu0 %2947
        %2949 = vrot.lane.b32.xlu0 %v1000, 56
        %v2950 = vpop.permute.xlu0 %2949
        %2951 = vrot.lane.b32.xlu0 %v1001, 56
        %v2952 = vpop.permute.xlu0 %2951
        %2953 = vrot.lane.b32.xlu0 %v1002, 56
        %v2954 = vpop.permute.xlu0 %2953
        %2955 = vrot.lane.b32.xlu0 %v1003, 56
        %v2956 = vpop.permute.xlu0 %2955
        %2957 = vrot.lane.b32.xlu0 %v1004, 56
        %v2958 = vpop.permute.xlu0 %2957
        %2959 = vrot.lane.b32.xlu0 %v1005, 56
        %v2960 = vpop.permute.xlu0 %2959
        %2961 = vrot.lane.b32.xlu0 %v1006, 56
        %v2962 = vpop.permute.xlu0 %2961
        %2963 = vrot.lane.b32.xlu0 %v1007, 56
        %v2964 = vpop.permute.xlu0 %2963
        %2965 = vrot.lane.b32.xlu0 %v1008, 56
        %v2966 = vpop.permute.xlu0 %2965
        %2967 = vrot.lane.b32.xlu0 %v1009, 56
        %v2968 = vpop.permute.xlu0 %2967
        %2969 = vrot.lane.b32.xlu0 %v1010, 56
        %v2970 = vpop.permute.xlu0 %2969
        %2971 = vrot.lane.b32.xlu0 %v1011, 56
        %v2972 = vpop.permute.xlu0 %2971
        %2973 = vrot.lane.b32.xlu0 %v1012, 56
        %v2974 = vpop.permute.xlu0 %2973
        %2975 = vrot.lane.b32.xlu0 %v1013, 56
        %v2976 = vpop.permute.xlu0 %2975
        %2977 = vrot.lane.b32.xlu0 %v1014, 56
        %v2978 = vpop.permute.xlu0 %2977
        %2979 = vrot.lane.b32.xlu0 %v1015, 56
        %v2980 = vpop.permute.xlu0 %2979
        %2981 = vrot.lane.b32.xlu0 %v1016, 56
        %v2982 = vpop.permute.xlu0 %2981
        %2983 = vrot.lane.b32.xlu0 %v1017, 56
        %v2984 = vpop.permute.xlu0 %2983
        %2985 = vrot.lane.b32.xlu0 %v1018, 56
        %v2986 = vpop.permute.xlu0 %2985
        %2987 = vrot.lane.b32.xlu0 %v1019, 56
        %v2988 = vpop.permute.xlu0 %2987
        %2989 = vrot.lane.b32.xlu0 %v1020, 56
        %v2990 = vpop.permute.xlu0 %2989
        %2991 = vrot.lane.b32.xlu0 %v1021, 56
        %v2992 = vpop.permute.xlu0 %2991
        %2993 = vrot.lane.b32.xlu0 %v1022, 56
        %v2994 = vpop.permute.xlu0 %2993
        %2995 = vrot.lane.b32.xlu0 %v1023, 56
        %v2996 = vpop.permute.xlu0 %2995
        %2997 = vrot.lane.b32.xlu0 %v1024, 56
        %v2998 = vpop.permute.xlu0 %2997
        %2999 = vrot.lane.b32.xlu0 %v1025, 56
        %v3000 = vpop.permute.xlu0 %2999
        %3001 = vrot.lane.b32.xlu0 %v1026, 56
        %v3002 = vpop.permute.xlu0 %3001
        %3003 = vrot.lane.b32.xlu0 %v1027, 56
        %v3004 = vpop.permute.xlu0 %3003
        %3005 = vrot.lane.b32.xlu0 %v1028, 56
        %v3006 = vpop.permute.xlu0 %3005
        %3007 = vrot.lane.b32.xlu0 %v1029, 56
        %v3008 = vpop.permute.xlu0 %3007
        %3009 = vrot.lane.b32.xlu0 %v1030, 56
        %v3010 = vpop.permute.xlu0 %3009
        %3011 = vrot.lane.b32.xlu0 %v1031, 56
        %v3012 = vpop.permute.xlu0 %3011
        %3013 = vrot.lane.b32.xlu0 %v1032, 56
        %v3014 = vpop.permute.xlu0 %3013
        %3015 = vrot.lane.b32.xlu0 %v1033, 56
        %v3016 = vpop.permute.xlu0 %3015
        %3017 = vrot.lane.b32.xlu0 %v1034, 56
        %v3018 = vpop.permute.xlu0 %3017
        %3147 = vrot.lane.b32.xlu0 %v1289, 64
        %v3148 = vpop.permute.xlu0 %3147
        %3149 = vrot.lane.b32.xlu0 %v1288, 64
        %v3150 = vpop.permute.xlu0 %3149
        %3151 = vrot.lane.b32.xlu0 %v1287, 64
        %v3152 = vpop.permute.xlu0 %3151
        %3153 = vrot.lane.b32.xlu0 %v1286, 64
        %v3154 = vpop.permute.xlu0 %3153
        %3155 = vrot.lane.b32.xlu0 %v1285, 64
        %v3156 = vpop.permute.xlu0 %3155
        %3157 = vrot.lane.b32.xlu0 %v1284, 64
        %v3158 = vpop.permute.xlu0 %3157
        %3159 = vrot.lane.b32.xlu0 %v1283, 64
        %v3160 = vpop.permute.xlu0 %3159
        %3161 = vrot.lane.b32.xlu0 %v1282, 64
        %v3162 = vpop.permute.xlu0 %3161
        %3163 = vrot.lane.b32.xlu0 %v1281, 64
        %v3164 = vpop.permute.xlu0 %3163
        %3165 = vrot.lane.b32.xlu0 %v1280, 64
        %v3166 = vpop.permute.xlu0 %3165
        %3167 = vrot.lane.b32.xlu0 %v1279, 64
        %v3168 = vpop.permute.xlu0 %3167
        %3169 = vrot.lane.b32.xlu0 %v1278, 64
        %v3170 = vpop.permute.xlu0 %3169
        %3171 = vrot.lane.b32.xlu0 %v1277, 64
        %v3172 = vpop.permute.xlu0 %3171
        %3173 = vrot.lane.b32.xlu0 %v1276, 64
        %v3174 = vpop.permute.xlu0 %3173
        %3175 = vrot.lane.b32.xlu0 %v1275, 64
        %v3176 = vpop.permute.xlu0 %3175
        %3177 = vrot.lane.b32.xlu0 %v1274, 64
        %v3178 = vpop.permute.xlu0 %3177
        %3179 = vrot.lane.b32.xlu0 %v1273, 64
        %v3180 = vpop.permute.xlu0 %3179
        %3181 = vrot.lane.b32.xlu0 %v1272, 64
        %v3182 = vpop.permute.xlu0 %3181
        %3183 = vrot.lane.b32.xlu0 %v1271, 64
        %v3184 = vpop.permute.xlu0 %3183
        %3185 = vrot.lane.b32.xlu0 %v1270, 64
        %v3186 = vpop.permute.xlu0 %3185
        %3187 = vrot.lane.b32.xlu0 %v1269, 64
        %v3188 = vpop.permute.xlu0 %3187
        %3189 = vrot.lane.b32.xlu0 %v1268, 64
        %v3190 = vpop.permute.xlu0 %3189
        %3191 = vrot.lane.b32.xlu0 %v1267, 64
        %v3192 = vpop.permute.xlu0 %3191
        %3193 = vrot.lane.b32.xlu0 %v1266, 64
        %v3194 = vpop.permute.xlu0 %3193
        %3195 = vrot.lane.b32.xlu0 %v1265, 64
        %v3196 = vpop.permute.xlu0 %3195
        %3197 = vrot.lane.b32.xlu0 %v1264, 64
        %v3198 = vpop.permute.xlu0 %3197
        %3199 = vrot.lane.b32.xlu0 %v1263, 64
        %v3200 = vpop.permute.xlu0 %3199
        %3201 = vrot.lane.b32.xlu0 %v1262, 64
        %v3202 = vpop.permute.xlu0 %3201
        %3203 = vrot.lane.b32.xlu0 %v1261, 64
        %v3204 = vpop.permute.xlu0 %3203
        %3205 = vrot.lane.b32.xlu0 %v1260, 64
        %v3206 = vpop.permute.xlu0 %3205
        %3207 = vrot.lane.b32.xlu0 %v1259, 64
        %v3208 = vpop.permute.xlu0 %3207
        %3209 = vrot.lane.b32.xlu0 %v1258, 64
        %v3210 = vpop.permute.xlu0 %3209
        %3211 = vrot.lane.b32.xlu0 %v1257, 64
        %v3212 = vpop.permute.xlu0 %3211
        %3213 = vrot.lane.b32.xlu0 %v1256, 64
        %v3214 = vpop.permute.xlu0 %3213
        %3215 = vrot.lane.b32.xlu0 %v1255, 64
        %v3216 = vpop.permute.xlu0 %3215
        %3217 = vrot.lane.b32.xlu0 %v1254, 64
        %v3218 = vpop.permute.xlu0 %3217
        %3219 = vrot.lane.b32.xlu0 %v1253, 64
        %v3220 = vpop.permute.xlu0 %3219
        %3221 = vrot.lane.b32.xlu0 %v1252, 64
        %v3222 = vpop.permute.xlu0 %3221
        %3223 = vrot.lane.b32.xlu0 %v1251, 64
        %v3224 = vpop.permute.xlu0 %3223
        %3225 = vrot.lane.b32.xlu0 %v1250, 64
        %v3226 = vpop.permute.xlu0 %3225
        %3227 = vrot.lane.b32.xlu0 %v1249, 64
        %v3228 = vpop.permute.xlu0 %3227
        %3229 = vrot.lane.b32.xlu0 %v1248, 64
        %v3230 = vpop.permute.xlu0 %3229
        %3231 = vrot.lane.b32.xlu0 %v1247, 64
        %v3232 = vpop.permute.xlu0 %3231
        %3233 = vrot.lane.b32.xlu0 %v1246, 64
        %v3234 = vpop.permute.xlu0 %3233
        %3235 = vrot.lane.b32.xlu0 %v1245, 64
        %v3236 = vpop.permute.xlu0 %3235
        %3237 = vrot.lane.b32.xlu0 %v1244, 64
        %v3238 = vpop.permute.xlu0 %3237
        %3239 = vrot.lane.b32.xlu0 %v1243, 64
        %v3240 = vpop.permute.xlu0 %3239
        %3241 = vrot.lane.b32.xlu0 %v1242, 64
        %v3242 = vpop.permute.xlu0 %3241
        %3243 = vrot.lane.b32.xlu0 %v1241, 64
        %v3244 = vpop.permute.xlu0 %3243
        %3245 = vrot.lane.b32.xlu0 %v1240, 64
        %v3246 = vpop.permute.xlu0 %3245
        %3247 = vrot.lane.b32.xlu0 %v1239, 64
        %v3248 = vpop.permute.xlu0 %3247
        %3249 = vrot.lane.b32.xlu0 %v1238, 64
        %v3250 = vpop.permute.xlu0 %3249
        %3251 = vrot.lane.b32.xlu0 %v1237, 64
        %v3252 = vpop.permute.xlu0 %3251
        %3253 = vrot.lane.b32.xlu0 %v1236, 64
        %v3254 = vpop.permute.xlu0 %3253
        %3255 = vrot.lane.b32.xlu0 %v1235, 64
        %v3256 = vpop.permute.xlu0 %3255
        %3257 = vrot.lane.b32.xlu0 %v1234, 64
        %v3258 = vpop.permute.xlu0 %3257
        %3259 = vrot.lane.b32.xlu0 %v1233, 64
        %v3260 = vpop.permute.xlu0 %3259
        %3261 = vrot.lane.b32.xlu0 %v1232, 64
        %v3262 = vpop.permute.xlu0 %3261
        %3263 = vrot.lane.b32.xlu0 %v1231, 64
        %v3264 = vpop.permute.xlu0 %3263
        %3265 = vrot.lane.b32.xlu0 %v1230, 64
        %v3266 = vpop.permute.xlu0 %3265
        %3267 = vrot.lane.b32.xlu0 %v1229, 64
        %v3268 = vpop.permute.xlu0 %3267
        %3269 = vrot.lane.b32.xlu0 %v1228, 64
        %v3270 = vpop.permute.xlu0 %3269
        %3271 = vrot.lane.b32.xlu0 %v1227, 64
        %v3272 = vpop.permute.xlu0 %3271
        %3273 = vrot.lane.b32.xlu0 %v1290, 64
        %v3274 = vpop.permute.xlu0 %3273
        %v3339 = vsel %vm169, %v515, %v1356
        %v3340 = vsel %vm169, %v514, %v1358
        %v3341 = vsel %vm169, %v513, %v1360
        %v3342 = vsel %vm169, %v512, %v1362
        %v3343 = vsel %vm169, %v511, %v1364
        %v3344 = vsel %vm169, %v510, %v1366
        %v3345 = vsel %vm169, %v509, %v1368
        %v3346 = vsel %vm169, %v508, %v1370
        %v3347 = vsel %vm169, %v507, %v1372
        %v3348 = vsel %vm169, %v506, %v1374
        %v3349 = vsel %vm169, %v505, %v1376
        %v3350 = vsel %vm169, %v504, %v1378
        %v3351 = vsel %vm169, %v503, %v1380
        %v3352 = vsel %vm169, %v502, %v1382
        %v3353 = vsel %vm169, %v501, %v1384
        %v3354 = vsel %vm169, %v500, %v1386
        %v3355 = vsel %vm169, %v499, %v1388
        %v3356 = vsel %vm169, %v498, %v1390
        %v3357 = vsel %vm169, %v497, %v1392
        %v3358 = vsel %vm169, %v496, %v1394
        %v3359 = vsel %vm169, %v495, %v1396
        %v3360 = vsel %vm169, %v494, %v1398
        %v3361 = vsel %vm169, %v493, %v1400
        %v3362 = vsel %vm169, %v492, %v1402
        %v3363 = vsel %vm169, %v491, %v1404
        %v3364 = vsel %vm169, %v490, %v1406
        %v3365 = vsel %vm169, %v489, %v1408
        %v3366 = vsel %vm169, %v488, %v1410
        %v3367 = vsel %vm169, %v487, %v1412
        %v3368 = vsel %vm169, %v486, %v1414
        %v3369 = vsel %vm169, %v485, %v1416
        %v3370 = vsel %vm169, %v484, %v1418
        %v3371 = vsel %vm169, %v483, %v1420
        %v3372 = vsel %vm169, %v482, %v1422
        %v3373 = vsel %vm169, %v481, %v1424
        %v3374 = vsel %vm169, %v480, %v1426
        %v3375 = vsel %vm169, %v479, %v1428
        %v3376 = vsel %vm169, %v478, %v1430
        %v3377 = vsel %vm169, %v477, %v1432
        %v3378 = vsel %vm169, %v476, %v1434
        %v3379 = vsel %vm169, %v475, %v1436
        %v3380 = vsel %vm169, %v474, %v1438
        %v3381 = vsel %vm169, %v473, %v1440
        %v3382 = vsel %vm169, %v472, %v1442
        %v3383 = vsel %vm169, %v471, %v1444
        %v3384 = vsel %vm169, %v470, %v1446
        %v3385 = vsel %vm169, %v469, %v1448
        %v3386 = vsel %vm169, %v468, %v1450
        %v3387 = vsel %vm169, %v467, %v1452
        %v3388 = vsel %vm169, %v466, %v1454
        %v3389 = vsel %vm169, %v465, %v1456
        %v3390 = vsel %vm169, %v464, %v1458
        %v3391 = vsel %vm169, %v463, %v1460
        %v3392 = vsel %vm169, %v462, %v1462
        %v3393 = vsel %vm169, %v461, %v1464
        %v3394 = vsel %vm169, %v460, %v1466
        %v3395 = vsel %vm169, %v459, %v1468
        %v3396 = vsel %vm169, %v458, %v1470
        %v3397 = vsel %vm169, %v457, %v1472
        %v3398 = vsel %vm169, %v456, %v1474
        %v3399 = vsel %vm169, %v455, %v1476
        %v3400 = vsel %vm169, %v454, %v1478
        %v3401 = vsel %vm169, %v453, %v1480
        %v3402 = vsel %vm169, %v452, %v1482
        %vm3403 = vcmask 130048
        %v3404 = vsel %vm3403, %v3339, %v1612
        %v3405 = vsel %vm3403, %v3340, %v1614
        %v3406 = vsel %vm3403, %v3341, %v1616
        %v3407 = vsel %vm3403, %v3342, %v1618
        %v3408 = vsel %vm3403, %v3343, %v1620
        %v3409 = vsel %vm3403, %v3344, %v1622
        %v3410 = vsel %vm3403, %v3345, %v1624
        %v3411 = vsel %vm3403, %v3346, %v1626
        %v3412 = vsel %vm3403, %v3347, %v1628
        %v3413 = vsel %vm3403, %v3348, %v1630
        %v3414 = vsel %vm3403, %v3349, %v1632
        %v3415 = vsel %vm3403, %v3350, %v1634
        %v3416 = vsel %vm3403, %v3351, %v1636
        %v3417 = vsel %vm3403, %v3352, %v1638
        %v3418 = vsel %vm3403, %v3353, %v1640
        %v3419 = vsel %vm3403, %v3354, %v1642
        %v3420 = vsel %vm3403, %v3355, %v1644
        %v3421 = vsel %vm3403, %v3356, %v1646
        %v3422 = vsel %vm3403, %v3357, %v1648
        %v3423 = vsel %vm3403, %v3358, %v1650
        %v3424 = vsel %vm3403, %v3359, %v1652
        %v3425 = vsel %vm3403, %v3360, %v1654
        %v3426 = vsel %vm3403, %v3361, %v1656
        %v3427 = vsel %vm3403, %v3362, %v1658
        %v3428 = vsel %vm3403, %v3363, %v1660
        %v3429 = vsel %vm3403, %v3364, %v1662
        %v3430 = vsel %vm3403, %v3365, %v1664
        %v3431 = vsel %vm3403, %v3366, %v1666
        %v3432 = vsel %vm3403, %v3367, %v1668
        %v3433 = vsel %vm3403, %v3368, %v1670
        %v3434 = vsel %vm3403, %v3369, %v1672
        %v3435 = vsel %vm3403, %v3370, %v1674
        %v3436 = vsel %vm3403, %v3371, %v1676
        %v3437 = vsel %vm3403, %v3372, %v1678
        %v3438 = vsel %vm3403, %v3373, %v1680
        %v3439 = vsel %vm3403, %v3374, %v1682
        %v3440 = vsel %vm3403, %v3375, %v1684
        %v3441 = vsel %vm3403, %v3376, %v1686
        %v3442 = vsel %vm3403, %v3377, %v1688
        %v3443 = vsel %vm3403, %v3378, %v1690
        %v3444 = vsel %vm3403, %v3379, %v1692
        %v3445 = vsel %vm3403, %v3380, %v1694
        %v3446 = vsel %vm3403, %v3381, %v1696
        %v3447 = vsel %vm3403, %v3382, %v1698
        %v3448 = vsel %vm3403, %v3383, %v1700
        %v3449 = vsel %vm3403, %v3384, %v1702
        %v3450 = vsel %vm3403, %v3385, %v1704
        %v3451 = vsel %vm3403, %v3386, %v1706
        %v3452 = vsel %vm3403, %v3387, %v1708
        %v3453 = vsel %vm3403, %v3388, %v1710
        %v3454 = vsel %vm3403, %v3389, %v1712
        %v3455 = vsel %vm3403, %v3390, %v1714
        %v3456 = vsel %vm3403, %v3391, %v1716
        %v3457 = vsel %vm3403, %v3392, %v1718
        %v3458 = vsel %vm3403, %v3393, %v1720
        %v3459 = vsel %vm3403, %v3394, %v1722
        %v3460 = vsel %vm3403, %v3395, %v1724
        %v3461 = vsel %vm3403, %v3396, %v1726
        %v3462 = vsel %vm3403, %v3397, %v1728
        %v3463 = vsel %vm3403, %v3398, %v1730
        %v3464 = vsel %vm3403, %v3399, %v1732
        %v3465 = vsel %vm3403, %v3400, %v1734
        %v3466 = vsel %vm3403, %v3401, %v1736
        %v3467 = vsel %vm3403, %v3402, %v1738
        %vm3468 = vcmask 195584
        %v3469 = vsel %vm3468, %v3404, %v1868
        %v3470 = vsel %vm3468, %v3405, %v1870
        %v3471 = vsel %vm3468, %v3406, %v1872
        %v3472 = vsel %vm3468, %v3407, %v1874
        %v3473 = vsel %vm3468, %v3408, %v1876
        %v3474 = vsel %vm3468, %v3409, %v1878
        %v3475 = vsel %vm3468, %v3410, %v1880
        %v3476 = vsel %vm3468, %v3411, %v1882
        %v3477 = vsel %vm3468, %v3412, %v1884
        %v3478 = vsel %vm3468, %v3413, %v1886
        %v3479 = vsel %vm3468, %v3414, %v1888
        %v3480 = vsel %vm3468, %v3415, %v1890
        %v3481 = vsel %vm3468, %v3416, %v1892
        %v3482 = vsel %vm3468, %v3417, %v1894
        %v3483 = vsel %vm3468, %v3418, %v1896
        %v3484 = vsel %vm3468, %v3419, %v1898
        %v3485 = vsel %vm3468, %v3420, %v1900
        %v3486 = vsel %vm3468, %v3421, %v1902
        %v3487 = vsel %vm3468, %v3422, %v1904
        %v3488 = vsel %vm3468, %v3423, %v1906
        %v3489 = vsel %vm3468, %v3424, %v1908
        %v3490 = vsel %vm3468, %v3425, %v1910
        %v3491 = vsel %vm3468, %v3426, %v1912
        %v3492 = vsel %vm3468, %v3427, %v1914
        %v3493 = vsel %vm3468, %v3428, %v1916
        %v3494 = vsel %vm3468, %v3429, %v1918
        %v3495 = vsel %vm3468, %v3430, %v1920
        %v3496 = vsel %vm3468, %v3431, %v1922
        %v3497 = vsel %vm3468, %v3432, %v1924
        %v3498 = vsel %vm3468, %v3433, %v1926
        %v3499 = vsel %vm3468, %v3434, %v1928
        %v3500 = vsel %vm3468, %v3435, %v1930
        %v3501 = vsel %vm3468, %v3436, %v1932
        %v3502 = vsel %vm3468, %v3437, %v1934
        %v3503 = vsel %vm3468, %v3438, %v1936
        %v3504 = vsel %vm3468, %v3439, %v1938
        %v3505 = vsel %vm3468, %v3440, %v1940
        %v3506 = vsel %vm3468, %v3441, %v1942
        %v3507 = vsel %vm3468, %v3442, %v1944
        %v3508 = vsel %vm3468, %v3443, %v1946
        %v3509 = vsel %vm3468, %v3444, %v1948
        %v3510 = vsel %vm3468, %v3445, %v1950
        %v3511 = vsel %vm3468, %v3446, %v1952
        %v3512 = vsel %vm3468, %v3447, %v1954
        %v3513 = vsel %vm3468, %v3448, %v1956
        %v3514 = vsel %vm3468, %v3449, %v1958
        %v3515 = vsel %vm3468, %v3450, %v1960
        %v3516 = vsel %vm3468, %v3451, %v1962
        %v3517 = vsel %vm3468, %v3452, %v1964
        %v3518 = vsel %vm3468, %v3453, %v1966
        %v3519 = vsel %vm3468, %v3454, %v1968
        %v3520 = vsel %vm3468, %v3455, %v1970
        %v3521 = vsel %vm3468, %v3456, %v1972
        %v3522 = vsel %vm3468, %v3457, %v1974
        %v3523 = vsel %vm3468, %v3458, %v1976
        %v3524 = vsel %vm3468, %v3459, %v1978
        %v3525 = vsel %vm3468, %v3460, %v1980
        %v3526 = vsel %vm3468, %v3461, %v1982
        %v3527 = vsel %vm3468, %v3462, %v1984
        %v3528 = vsel %vm3468, %v3463, %v1986
        %v3529 = vsel %vm3468, %v3464, %v1988
        %v3530 = vsel %vm3468, %v3465, %v1990
        %v3531 = vsel %vm3468, %v3466, %v1992
        %v3532 = vsel %vm3468, %v3467, %v1994
        %v3533 = vsel %vm212, %v3469, %v2124
        %v3534 = vsel %vm212, %v3470, %v2126
        %v3535 = vsel %vm212, %v3471, %v2128
        %v3536 = vsel %vm212, %v3472, %v2130
        %v3537 = vsel %vm212, %v3473, %v2132
        %v3538 = vsel %vm212, %v3474, %v2134
        %v3539 = vsel %vm212, %v3475, %v2136
        %v3540 = vsel %vm212, %v3476, %v2138
        %v3541 = vsel %vm212, %v3477, %v2140
        %v3542 = vsel %vm212, %v3478, %v2142
        %v3543 = vsel %vm212, %v3479, %v2144
        %v3544 = vsel %vm212, %v3480, %v2146
        %v3545 = vsel %vm212, %v3481, %v2148
        %v3546 = vsel %vm212, %v3482, %v2150
        %v3547 = vsel %vm212, %v3483, %v2152
        %v3548 = vsel %vm212, %v3484, %v2154
        %v3549 = vsel %vm212, %v3485, %v2156
        %v3550 = vsel %vm212, %v3486, %v2158
        %v3551 = vsel %vm212, %v3487, %v2160
        %v3552 = vsel %vm212, %v3488, %v2162
        %v3553 = vsel %vm212, %v3489, %v2164
        %v3554 = vsel %vm212, %v3490, %v2166
        %v3555 = vsel %vm212, %v3491, %v2168
        %v3556 = vsel %vm212, %v3492, %v2170
        %v3557 = vsel %vm212, %v3493, %v2172
        %v3558 = vsel %vm212, %v3494, %v2174
        %v3559 = vsel %vm212, %v3495, %v2176
        %v3560 = vsel %vm212, %v3496, %v2178
        %v3561 = vsel %vm212, %v3497, %v2180
        %v3562 = vsel %vm212, %v3498, %v2182
        %v3563 = vsel %vm212, %v3499, %v2184
        %v3564 = vsel %vm212, %v3500, %v2186
        %v3565 = vsel %vm212, %v3501, %v2188
        %v3566 = vsel %vm212, %v3502, %v2190
        %v3567 = vsel %vm212, %v3503, %v2192
        %v3568 = vsel %vm212, %v3504, %v2194
        %v3569 = vsel %vm212, %v3505, %v2196
        %v3570 = vsel %vm212, %v3506, %v2198
        %v3571 = vsel %vm212, %v3507, %v2200
        %v3572 = vsel %vm212, %v3508, %v2202
        %v3573 = vsel %vm212, %v3509, %v2204
        %v3574 = vsel %vm212, %v3510, %v2206
        %v3575 = vsel %vm212, %v3511, %v2208
        %v3576 = vsel %vm212, %v3512, %v2210
        %v3577 = vsel %vm212, %v3513, %v2212
        %v3578 = vsel %vm212, %v3514, %v2214
        %v3579 = vsel %vm212, %v3515, %v2216
        %v3580 = vsel %vm212, %v3516, %v2218
        %v3581 = vsel %vm212, %v3517, %v2220
        %v3582 = vsel %vm212, %v3518, %v2222
        %v3583 = vsel %vm212, %v3519, %v2224
        %v3584 = vsel %vm212, %v3520, %v2226
        %v3585 = vsel %vm212, %v3521, %v2228
        %v3586 = vsel %vm212, %v3522, %v2230
        %v3587 = vsel %vm212, %v3523, %v2232
        %v3588 = vsel %vm212, %v3524, %v2234
        %v3589 = vsel %vm212, %v3525, %v2236
        %v3590 = vsel %vm212, %v3526, %v2238
        %v3591 = vsel %vm212, %v3527, %v2240
        %v3592 = vsel %vm212, %v3528, %v2242
        %v3593 = vsel %vm212, %v3529, %v2244
        %v3594 = vsel %vm212, %v3530, %v2246
        %v3595 = vsel %vm212, %v3531, %v2248
        %v3596 = vsel %vm212, %v3532, %v2250
        %vm3597 = vcmask 326656
        %v3598 = vsel %vm3597, %v3533, %v2380
        %v3599 = vsel %vm3597, %v3534, %v2382
        %v3600 = vsel %vm3597, %v3535, %v2384
        %v3601 = vsel %vm3597, %v3536, %v2386
        %v3602 = vsel %vm3597, %v3537, %v2388
        %v3603 = vsel %vm3597, %v3538, %v2390
        %v3604 = vsel %vm3597, %v3539, %v2392
        %v3605 = vsel %vm3597, %v3540, %v2394
        %v3606 = vsel %vm3597, %v3541, %v2396
        %v3607 = vsel %vm3597, %v3542, %v2398
        %v3608 = vsel %vm3597, %v3543, %v2400
        %v3609 = vsel %vm3597, %v3544, %v2402
        %v3610 = vsel %vm3597, %v3545, %v2404
        %v3611 = vsel %vm3597, %v3546, %v2406
        %v3612 = vsel %vm3597, %v3547, %v2408
        %v3613 = vsel %vm3597, %v3548, %v2410
        %v3614 = vsel %vm3597, %v3549, %v2412
        %v3615 = vsel %vm3597, %v3550, %v2414
        %v3616 = vsel %vm3597, %v3551, %v2416
        %v3617 = vsel %vm3597, %v3552, %v2418
        %v3618 = vsel %vm3597, %v3553, %v2420
        %v3619 = vsel %vm3597, %v3554, %v2422
        %v3620 = vsel %vm3597, %v3555, %v2424
        %v3621 = vsel %vm3597, %v3556, %v2426
        %v3622 = vsel %vm3597, %v3557, %v2428
        %v3623 = vsel %vm3597, %v3558, %v2430
        %v3624 = vsel %vm3597, %v3559, %v2432
        %v3625 = vsel %vm3597, %v3560, %v2434
        %v3626 = vsel %vm3597, %v3561, %v2436
        %v3627 = vsel %vm3597, %v3562, %v2438
        %v3628 = vsel %vm3597, %v3563, %v2440
        %v3629 = vsel %vm3597, %v3564, %v2442
        %v3630 = vsel %vm3597, %v3565, %v2444
        %v3631 = vsel %vm3597, %v3566, %v2446
        %v3632 = vsel %vm3597, %v3567, %v2448
        %v3633 = vsel %vm3597, %v3568, %v2450
        %v3634 = vsel %vm3597, %v3569, %v2452
        %v3635 = vsel %vm3597, %v3570, %v2454
        %v3636 = vsel %vm3597, %v3571, %v2456
        %v3637 = vsel %vm3597, %v3572, %v2458
        %v3638 = vsel %vm3597, %v3573, %v2460
        %v3639 = vsel %vm3597, %v3574, %v2462
        %v3640 = vsel %vm3597, %v3575, %v2464
        %v3641 = vsel %vm3597, %v3576, %v2466
        %v3642 = vsel %vm3597, %v3577, %v2468
        %v3643 = vsel %vm3597, %v3578, %v2470
        %v3644 = vsel %vm3597, %v3579, %v2472
        %v3645 = vsel %vm3597, %v3580, %v2474
        %v3646 = vsel %vm3597, %v3581, %v2476
        %v3647 = vsel %vm3597, %v3582, %v2478
        %v3648 = vsel %vm3597, %v3583, %v2480
        %v3649 = vsel %vm3597, %v3584, %v2482
        %v3650 = vsel %vm3597, %v3585, %v2484
        %v3651 = vsel %vm3597, %v3586, %v2486
        %v3652 = vsel %vm3597, %v3587, %v2488
        %v3653 = vsel %vm3597, %v3588, %v2490
        %v3654 = vsel %vm3597, %v3589, %v2492
        %v3655 = vsel %vm3597, %v3590, %v2494
        %v3656 = vsel %vm3597, %v3591, %v2496
        %v3657 = vsel %vm3597, %v3592, %v2498
        %v3658 = vsel %vm3597, %v3593, %v2500
        %v3659 = vsel %vm3597, %v3594, %v2502
        %v3660 = vsel %vm3597, %v3595, %v2504
        %v3661 = vsel %vm3597, %v3596, %v2506
        %vm3662 = vcmask 392192
        %v3663 = vsel %vm3662, %v3598, %v2636
        %v3664 = vsel %vm3662, %v3599, %v2638
        %v3665 = vsel %vm3662, %v3600, %v2640
        %v3666 = vsel %vm3662, %v3601, %v2642
        %v3667 = vsel %vm3662, %v3602, %v2644
        %v3668 = vsel %vm3662, %v3603, %v2646
        %v3669 = vsel %vm3662, %v3604, %v2648
        %v3670 = vsel %vm3662, %v3605, %v2650
        %v3671 = vsel %vm3662, %v3606, %v2652
        %v3672 = vsel %vm3662, %v3607, %v2654
        %v3673 = vsel %vm3662, %v3608, %v2656
        %v3674 = vsel %vm3662, %v3609, %v2658
        %v3675 = vsel %vm3662, %v3610, %v2660
        %v3676 = vsel %vm3662, %v3611, %v2662
        %v3677 = vsel %vm3662, %v3612, %v2664
        %v3678 = vsel %vm3662, %v3613, %v2666
        %v3679 = vsel %vm3662, %v3614, %v2668
        %v3680 = vsel %vm3662, %v3615, %v2670
        %v3681 = vsel %vm3662, %v3616, %v2672
        %v3682 = vsel %vm3662, %v3617, %v2674
        %v3683 = vsel %vm3662, %v3618, %v2676
        %v3684 = vsel %vm3662, %v3619, %v2678
        %v3685 = vsel %vm3662, %v3620, %v2680
        %v3686 = vsel %vm3662, %v3621, %v2682
        %v3687 = vsel %vm3662, %v3622, %v2684
        %v3688 = vsel %vm3662, %v3623, %v2686
        %v3689 = vsel %vm3662, %v3624, %v2688
        %v3690 = vsel %vm3662, %v3625, %v2690
        %v3691 = vsel %vm3662, %v3626, %v2692
        %v3692 = vsel %vm3662, %v3627, %v2694
        %v3693 = vsel %vm3662, %v3628, %v2696
        %v3694 = vsel %vm3662, %v3629, %v2698
        %v3695 = vsel %vm3662, %v3630, %v2700
        %v3696 = vsel %vm3662, %v3631, %v2702
        %v3697 = vsel %vm3662, %v3632, %v2704
        %v3698 = vsel %vm3662, %v3633, %v2706
        %v3699 = vsel %vm3662, %v3634, %v2708
        %v3700 = vsel %vm3662, %v3635, %v2710
        %v3701 = vsel %vm3662, %v3636, %v2712
        %v3702 = vsel %vm3662, %v3637, %v2714
        %v3703 = vsel %vm3662, %v3638, %v2716
        %v3704 = vsel %vm3662, %v3639, %v2718
        %v3705 = vsel %vm3662, %v3640, %v2720
        %v3706 = vsel %vm3662, %v3641, %v2722
        %v3707 = vsel %vm3662, %v3642, %v2724
        %v3708 = vsel %vm3662, %v3643, %v2726
        %v3709 = vsel %vm3662, %v3644, %v2728
        %v3710 = vsel %vm3662, %v3645, %v2730
        %v3711 = vsel %vm3662, %v3646, %v2732
        %v3712 = vsel %vm3662, %v3647, %v2734
        %v3713 = vsel %vm3662, %v3648, %v2736
        %v3714 = vsel %vm3662, %v3649, %v2738
        %v3715 = vsel %vm3662, %v3650, %v2740
        %v3716 = vsel %vm3662, %v3651, %v2742
        %v3717 = vsel %vm3662, %v3652, %v2744
        %v3718 = vsel %vm3662, %v3653, %v2746
        %v3719 = vsel %vm3662, %v3654, %v2748
        %v3720 = vsel %vm3662, %v3655, %v2750
        %v3721 = vsel %vm3662, %v3656, %v2752
        %v3722 = vsel %vm3662, %v3657, %v2754
        %v3723 = vsel %vm3662, %v3658, %v2756
        %v3724 = vsel %vm3662, %v3659, %v2758
        %v3725 = vsel %vm3662, %v3660, %v2760
        %v3726 = vsel %vm3662, %v3661, %v2762
        %vm3727 = vcmask 457728
        %v3728 = vsel %vm3727, %v3663, %v2892
        %v3729 = vsel %vm3727, %v3664, %v2894
        %v3730 = vsel %vm3727, %v3665, %v2896
        %v3731 = vsel %vm3727, %v3666, %v2898
        %v3732 = vsel %vm3727, %v3667, %v2900
        %v3733 = vsel %vm3727, %v3668, %v2902
        %v3734 = vsel %vm3727, %v3669, %v2904
        %v3735 = vsel %vm3727, %v3670, %v2906
        %v3736 = vsel %vm3727, %v3671, %v2908
        %v3737 = vsel %vm3727, %v3672, %v2910
        %v3738 = vsel %vm3727, %v3673, %v2912
        %v3739 = vsel %vm3727, %v3674, %v2914
        %v3740 = vsel %vm3727, %v3675, %v2916
        %v3741 = vsel %vm3727, %v3676, %v2918
        %v3742 = vsel %vm3727, %v3677, %v2920
        %v3743 = vsel %vm3727, %v3678, %v2922
        %v3744 = vsel %vm3727, %v3679, %v2924
        %v3745 = vsel %vm3727, %v3680, %v2926
        %v3746 = vsel %vm3727, %v3681, %v2928
        %v3747 = vsel %vm3727, %v3682, %v2930
        %v3748 = vsel %vm3727, %v3683, %v2932
        %v3749 = vsel %vm3727, %v3684, %v2934
        %v3750 = vsel %vm3727, %v3685, %v2936
        %v3751 = vsel %vm3727, %v3686, %v2938
        %v3752 = vsel %vm3727, %v3687, %v2940
        %v3753 = vsel %vm3727, %v3688, %v2942
        %v3754 = vsel %vm3727, %v3689, %v2944
        %v3755 = vsel %vm3727, %v3690, %v2946
        %v3756 = vsel %vm3727, %v3691, %v2948
        %v3757 = vsel %vm3727, %v3692, %v2950
        %v3758 = vsel %vm3727, %v3693, %v2952
        %v3759 = vsel %vm3727, %v3694, %v2954
        %v3760 = vsel %vm3727, %v3695, %v2956
        %v3761 = vsel %vm3727, %v3696, %v2958
        %v3762 = vsel %vm3727, %v3697, %v2960
        %v3763 = vsel %vm3727, %v3698, %v2962
        %v3764 = vsel %vm3727, %v3699, %v2964
        %v3765 = vsel %vm3727, %v3700, %v2966
        %v3766 = vsel %vm3727, %v3701, %v2968
        %v3767 = vsel %vm3727, %v3702, %v2970
        %v3768 = vsel %vm3727, %v3703, %v2972
        %v3769 = vsel %vm3727, %v3704, %v2974
        %v3770 = vsel %vm3727, %v3705, %v2976
        %v3771 = vsel %vm3727, %v3706, %v2978
        %v3772 = vsel %vm3727, %v3707, %v2980
        %v3773 = vsel %vm3727, %v3708, %v2982
        %v3774 = vsel %vm3727, %v3709, %v2984
        %v3775 = vsel %vm3727, %v3710, %v2986
        %v3776 = vsel %vm3727, %v3711, %v2988
        %v3777 = vsel %vm3727, %v3712, %v2990
        %v3778 = vsel %vm3727, %v3713, %v2992
        %v3779 = vsel %vm3727, %v3714, %v2994
        %v3780 = vsel %vm3727, %v3715, %v2996
        %v3781 = vsel %vm3727, %v3716, %v2998
        %v3782 = vsel %vm3727, %v3717, %v3000
        %v3783 = vsel %vm3727, %v3718, %v3002
        %v3784 = vsel %vm3727, %v3719, %v3004
        %v3785 = vsel %vm3727, %v3720, %v3006
        %v3786 = vsel %vm3727, %v3721, %v3008
        %v3787 = vsel %vm3727, %v3722, %v3010
        %v3788 = vsel %vm3727, %v3723, %v3012
        %v3789 = vsel %vm3727, %v3724, %v3014
        %v3790 = vsel %vm3727, %v3725, %v3016
        %v3791 = vsel %vm3727, %v3726, %v3018
        %vm3792 = vcmask 523264
        %v3793 = vsel %vm3792, %v3728, %v3148
        %v3794 = vsel %vm3792, %v3729, %v3150
        %v3795 = vsel %vm3792, %v3730, %v3152
        %v3796 = vsel %vm3792, %v3731, %v3154
        %v3797 = vsel %vm3792, %v3732, %v3156
        %v3798 = vsel %vm3792, %v3733, %v3158
        %v3799 = vsel %vm3792, %v3734, %v3160
        %v3800 = vsel %vm3792, %v3735, %v3162
        %v3801 = vsel %vm3792, %v3736, %v3164
        %v3802 = vsel %vm3792, %v3737, %v3166
        %v3803 = vsel %vm3792, %v3738, %v3168
        %v3804 = vsel %vm3792, %v3739, %v3170
        %v3805 = vsel %vm3792, %v3740, %v3172
        %v3806 = vsel %vm3792, %v3741, %v3174
        %v3807 = vsel %vm3792, %v3742, %v3176
        %v3808 = vsel %vm3792, %v3743, %v3178
        %v3809 = vsel %vm3792, %v3744, %v3180
        %v3810 = vsel %vm3792, %v3745, %v3182
        %v3811 = vsel %vm3792, %v3746, %v3184
        %v3812 = vsel %vm3792, %v3747, %v3186
        %v3813 = vsel %vm3792, %v3748, %v3188
        %v3814 = vsel %vm3792, %v3749, %v3190
        %v3815 = vsel %vm3792, %v3750, %v3192
        %v3816 = vsel %vm3792, %v3751, %v3194
        %v3817 = vsel %vm3792, %v3752, %v3196
        %v3818 = vsel %vm3792, %v3753, %v3198
        %v3819 = vsel %vm3792, %v3754, %v3200
        %v3820 = vsel %vm3792, %v3755, %v3202
        %v3821 = vsel %vm3792, %v3756, %v3204
        %v3822 = vsel %vm3792, %v3757, %v3206
        %v3823 = vsel %vm3792, %v3758, %v3208
        %v3824 = vsel %vm3792, %v3759, %v3210
        %v3825 = vsel %vm3792, %v3760, %v3212
        %v3826 = vsel %vm3792, %v3761, %v3214
        %v3827 = vsel %vm3792, %v3762, %v3216
        %v3828 = vsel %vm3792, %v3763, %v3218
        %v3829 = vsel %vm3792, %v3764, %v3220
        %v3830 = vsel %vm3792, %v3765, %v3222
        %v3831 = vsel %vm3792, %v3766, %v3224
        %v3832 = vsel %vm3792, %v3767, %v3226
        %v3833 = vsel %vm3792, %v3768, %v3228
        %v3834 = vsel %vm3792, %v3769, %v3230
        %v3835 = vsel %vm3792, %v3770, %v3232
        %v3836 = vsel %vm3792, %v3771, %v3234
        %v3837 = vsel %vm3792, %v3772, %v3236
        %v3838 = vsel %vm3792, %v3773, %v3238
        %v3839 = vsel %vm3792, %v3774, %v3240
        %v3840 = vsel %vm3792, %v3775, %v3242
        %v3841 = vsel %vm3792, %v3776, %v3244
        %v3842 = vsel %vm3792, %v3777, %v3246
        %v3843 = vsel %vm3792, %v3778, %v3248
        %v3844 = vsel %vm3792, %v3779, %v3250
        %v3845 = vsel %vm3792, %v3780, %v3252
        %v3846 = vsel %vm3792, %v3781, %v3254
        %v3847 = vsel %vm3792, %v3782, %v3256
        %v3848 = vsel %vm3792, %v3783, %v3258
        %v3849 = vsel %vm3792, %v3784, %v3260
        %v3850 = vsel %vm3792, %v3785, %v3262
        %v3851 = vsel %vm3792, %v3786, %v3264
        %v3852 = vsel %vm3792, %v3787, %v3266
        %v3853 = vsel %vm3792, %v3788, %v3268
        %v3854 = vsel %vm3792, %v3789, %v3270
        %v3855 = vsel %vm3792, %v3790, %v3272
        %v3856 = vsel %vm3792, %v3791, %v3274
        %v3857 = vld [vmem:[%s1] sm:$0xff]
        %v3858 = vld [vmem:[%s1 + $0x8] sm:$0xff]
        %v3859 = vld [vmem:[%s1 + $0x10] sm:$0xff]
        %v3860 = vld [vmem:[%s1 + $0x18] sm:$0xff]
        %v3861 = vld [vmem:[%s1 + $0x20] sm:$0xff]
        %v3862 = vld [vmem:[%s1 + $0x28] sm:$0xff]
        %v3863 = vld [vmem:[%s1 + $0x30] sm:$0xff]
        %v3864 = vld [vmem:[%s1 + $0x38] sm:$0xff]
        %v3865 = vld [vmem:[%s1 + $0x40] sm:$0xff]
        %vm3866 = vcmask 588800
        %v3868 = vsel %vm3866, %v3793, 0
        %v3871 = vsel %vm3866, %v3794, 0
        %v3874 = vsel %vm3866, %v3795, 0
        %v3877 = vsel %vm3866, %v3796, 0
        %v3880 = vsel %vm3866, %v3797, 0
        %v3883 = vsel %vm3866, %v3798, 0
        %v3886 = vsel %vm3866, %v3799, 0
        %v3889 = vsel %vm3866, %v3800, 0
        %v3892 = vsel %vm3866, %v3801, 0
        %v3895 = vsel %vm3866, %v3802, 0
        %v3898 = vsel %vm3866, %v3803, 0
        %v3901 = vsel %vm3866, %v3804, 0
        %v3904 = vsel %vm3866, %v3805, 0
        %v3907 = vsel %vm3866, %v3806, 0
        %v3910 = vsel %vm3866, %v3807, 0
        %v3913 = vsel %vm3866, %v3808, 0
        %v3916 = vsel %vm3866, %v3809, 0
        %v3919 = vsel %vm3866, %v3810, 0
        %v3922 = vsel %vm3866, %v3811, 0
        %v3925 = vsel %vm3866, %v3812, 0
        %v3928 = vsel %vm3866, %v3813, 0
        %v3931 = vsel %vm3866, %v3814, 0
        %v3934 = vsel %vm3866, %v3815, 0
        %v3937 = vsel %vm3866, %v3816, 0
        %v3940 = vsel %vm3866, %v3817, 0
        %v3943 = vsel %vm3866, %v3818, 0
        %v3946 = vsel %vm3866, %v3819, 0
        %v3949 = vsel %vm3866, %v3820, 0
        %v3952 = vsel %vm3866, %v3821, 0
        %v3955 = vsel %vm3866, %v3822, 0
        %v3958 = vsel %vm3866, %v3823, 0
        %v3961 = vsel %vm3866, %v3824, 0
        %v3964 = vsel %vm3866, %v3825, 0
        %v3967 = vsel %vm3866, %v3826, 0
        %v3970 = vsel %vm3866, %v3827, 0
        %v3973 = vsel %vm3866, %v3828, 0
        %v3976 = vsel %vm3866, %v3829, 0
        %v3979 = vsel %vm3866, %v3830, 0
        %v3982 = vsel %vm3866, %v3831, 0
        %v3985 = vsel %vm3866, %v3832, 0
        %v3988 = vsel %vm3866, %v3833, 0
        %v3991 = vsel %vm3866, %v3834, 0
        %v3994 = vsel %vm3866, %v3835, 0
        %v3997 = vsel %vm3866, %v3836, 0
        %v4000 = vsel %vm3866, %v3837, 0
        %v4003 = vsel %vm3866, %v3838, 0
        %v4006 = vsel %vm3866, %v3839, 0
        %v4009 = vsel %vm3866, %v3840, 0
        %v4012 = vsel %vm3866, %v3841, 0
        %v4015 = vsel %vm3866, %v3842, 0
        %v4018 = vsel %vm3866, %v3843, 0
        %v4021 = vsel %vm3866, %v3844, 0
        %v4024 = vsel %vm3866, %v3845, 0
        %v4027 = vsel %vm3866, %v3846, 0
        %v4030 = vsel %vm3866, %v3847, 0
        %v4033 = vsel %vm3866, %v3848, 0
        %v4036 = vsel %vm3866, %v3849, 0
        %v4039 = vsel %vm3866, %v3850, 0
        %v4042 = vsel %vm3866, %v3851, 0
        %v4045 = vsel %vm3866, %v3852, 0
        %v4048 = vsel %vm3866, %v3853, 0
        %v4051 = vsel %vm3866, %v3854, 0
        %v4054 = vsel %vm3866, %v3855, 0
        %v4057 = vsel %vm3866, %v3856, 0
        %4059 = vmatprep.subr.mxu0 0.0
        %4060 = vmatpush1.msra.mxu0 0.0
        %4061 = vmatprep.subr.mxu0 0.0
        %4062 = vmatpush1.msra.mxu0 0.0
        %4063 = vmatprep.subr.mxu0 0.0
        %4064 = vmatpush1.msra.mxu0 0.0
        %4065 = vmatprep.subr.mxu0 0.0
        %4066 = vmatpush1.msra.mxu0 0.0
        %4067 = vmatprep.subr.mxu0 0.0
        %4068 = vmatpush1.msra.mxu0 0.0
        %4069 = vmatprep.subr.mxu0 0.0
        %4070 = vmatpush1.msra.mxu0 0.0
        %4071 = vmatprep.subr.mxu0 0.0
        %4072 = vmatpush1.msra.mxu0 0.0
        %4073 = vmatprep.subr.mxu0 0.0
        %4074 = vmatpush1.msra.mxu0 %v3865
        %4075 = vmatprep.subr.mxu0 0.0
        %4076 = vmatpush1.msra.mxu0 %v3864
        %4077 = vmatprep.subr.mxu0 0.0
        %4078 = vmatpush1.msra.mxu0 %v3863
        %4079 = vmatprep.subr.mxu0 0.0
        %4080 = vmatpush1.msra.mxu0 %v3862
        %4081 = vmatprep.subr.mxu0 0.0
        %4082 = vmatpush1.msra.mxu0 %v3861
        %4083 = vmatprep.subr.mxu0 0.0
        %4084 = vmatpush1.msra.mxu0 %v3860
        %4085 = vmatprep.subr.mxu0 0.0
        %4086 = vmatpush1.msra.mxu0 %v3859
        %4087 = vmatprep.subr.mxu0 0.0
        %4088 = vmatpush1.msra.mxu0 %v3858
        %4089 = vmatprep.subr.mxu0 0.0
        %4090 = vmatpush1.msra.mxu0 %v3857
        %4091 = vmatprep.subr.mxu0 0.0
        %4092 = vmatpush2.msra.mxu0 0.0
        %4093 = vmatprep.subr.mxu0 0.0
        %4094 = vmatpush2.msra.mxu0 0.0
        %4095 = vmatprep.subr.mxu0 0.0
        %4096 = vmatpush2.msra.mxu0 0.0
        %4097 = vmatprep.subr.mxu0 0.0
        %4098 = vmatpush2.msra.mxu0 0.0
        %4099 = vmatprep.subr.mxu0 0.0
        %4100 = vmatpush2.msra.mxu0 0.0
        %4101 = vmatprep.subr.mxu0 0.0
        %4102 = vmatpush2.msra.mxu0 0.0
        %4103 = vmatprep.subr.mxu0 0.0
        %4104 = vmatpush2.msra.mxu0 0.0
        %4105 = vmatprep.subr.mxu0 0.0
        %4106 = vmatpush2.msra.mxu0 0.0
        %4107 = vmatprep.subr.mxu0 0.0
        %4108 = vmatpush2.msra.mxu0 0.0
        %4109 = vmatprep.subr.mxu0 0.0
        %4110 = vmatpush2.msra.mxu0 0.0
        %4111 = vmatprep.subr.mxu0 0.0
        %4112 = vmatpush2.msra.mxu0 0.0
        %4113 = vmatprep.subr.mxu0 0.0
        %4114 = vmatpush2.msra.mxu0 0.0
        %4115 = vmatprep.subr.mxu0 0.0
        %4116 = vmatpush2.msra.mxu0 0.0
        %4117 = vmatprep.subr.mxu0 0.0
        %4118 = vmatpush2.msra.mxu0 0.0
        %4119 = vmatprep.subr.mxu0 0.0
        %4120 = vmatpush2.msra.mxu0 0.0
        %4121 = vmatprep.subr.mxu0 0.0
        %4122 = vmatpush2.msra.mxu0 0.0
        %4123 = vmatprep.mubr.f32.mxu0 0.0
        %4124 = vmatmul.mubr.f32.gmra.mxu0 %v3868
        %v4125 = vpop.f32.mrf.mxu0
        %v4126 = vpop.f32.mrf.mxu0
        %4127 = vmatprep.mubr.f32.mxu0 0.0
        %4128 = vmatmul.mubr.f32.gmra.mxu0 %v3871
        %v4129 = vpop.f32.mrf.mxu0
        %v4130 = vadd.f32 0.0, %v4129
        %v4131 = vpop.f32.mrf.mxu0
        %4132 = vmatprep.mubr.f32.mxu0 0.0
        %4133 = vmatmul.mubr.f32.gmra.mxu0 %v3874
        %v4134 = vpop.f32.mrf.mxu0
        %v4135 = vadd.f32 0.0, %v4134
        %v4136 = vpop.f32.mrf.mxu0
        %4137 = vmatprep.mubr.f32.mxu0 0.0
        %4138 = vmatmul.mubr.f32.gmra.mxu0 %v3877
        %v4139 = vpop.f32.mrf.mxu0
        %v4140 = vpop.f32.mrf.mxu0
        %4141 = vmatprep.mubr.f32.mxu0 0.0
        %4142 = vmatmul.mubr.f32.gmra.mxu0 %v3880
        %v4143 = vpop.f32.mrf.mxu0
        %v4144 = vpop.f32.mrf.mxu0
        %4145 = vmatprep.mubr.f32.mxu0 0.0
        %4146 = vmatmul.mubr.f32.gmra.mxu0 %v3883
        %v4147 = vpop.f32.mrf.mxu0
        %v4148 = vadd.f32 0.0, %v4147
        %v4149 = vpop.f32.mrf.mxu0
        %4150 = vmatprep.mubr.f32.mxu0 0.0
        %4151 = vmatmul.mubr.f32.gmra.mxu0 %v3886
        %v4152 = vpop.f32.mrf.mxu0
        %v4153 = vadd.f32 0.0, %v4152
        %v4154 = vpop.f32.mrf.mxu0
        %4155 = vmatprep.mubr.f32.mxu0 0.0
        %4156 = vmatmul.mubr.f32.gmra.mxu0 %v3889
        %v4157 = vpop.f32.mrf.mxu0
        %v4158 = vpop.f32.mrf.mxu0
        %4159 = vmatprep.mubr.f32.mxu0 0.0
        %4160 = vmatmul.mubr.f32.gmra.mxu0 %v3892
        %v4161 = vpop.f32.mrf.mxu0
        %v4162 = vpop.f32.mrf.mxu0
        %4163 = vmatprep.mubr.f32.mxu0 0.0
        %4164 = vmatmul.mubr.f32.gmra.mxu0 %v3895
        %v4165 = vpop.f32.mrf.mxu0
        %v4166 = vadd.f32 0.0, %v4165
        %v4167 = vpop.f32.mrf.mxu0
        %4168 = vmatprep.mubr.f32.mxu0 0.0
        %4169 = vmatmul.mubr.f32.gmra.mxu0 %v3898
        %v4170 = vpop.f32.mrf.mxu0
        %v4171 = vadd.f32 0.0, %v4170
        %v4172 = vpop.f32.mrf.mxu0
        %4173 = vmatprep.mubr.f32.mxu0 0.0
        %4174 = vmatmul.mubr.f32.gmra.mxu0 %v3901
        %v4175 = vpop.f32.mrf.mxu0
        %v4176 = vpop.f32.mrf.mxu0
        %4177 = vmatprep.mubr.f32.mxu0 0.0
        %4178 = vmatmul.mubr.f32.gmra.mxu0 %v3904
        %v4179 = vpop.f32.mrf.mxu0
        %v4180 = vpop.f32.mrf.mxu0
        %4181 = vmatprep.mubr.f32.mxu0 0.0
        %4182 = vmatmul.mubr.f32.gmra.mxu0 %v3907
        %v4183 = vpop.f32.mrf.mxu0
        %v4184 = vadd.f32 0.0, %v4183
        %v4185 = vpop.f32.mrf.mxu0
        %4186 = vmatprep.mubr.f32.mxu0 0.0
        %4187 = vmatmul.mubr.f32.gmra.mxu0 %v3910
        %v4188 = vpop.f32.mrf.mxu0
        %v4189 = vadd.f32 0.0, %v4188
        %v4190 = vpop.f32.mrf.mxu0
        %4191 = vmatprep.mubr.f32.mxu0 0.0
        %4192 = vmatmul.mubr.f32.gmra.mxu0 %v3913
        %v4193 = vpop.f32.mrf.mxu0
        %v4194 = vpop.f32.mrf.mxu0
        %4195 = vmatprep.mubr.f32.mxu0 0.0
        %4196 = vmatmul.mubr.f32.gmra.mxu0 %v3916
        %v4197 = vpop.f32.mrf.mxu0
        %v4198 = vpop.f32.mrf.mxu0
        %4199 = vmatprep.mubr.f32.mxu0 0.0
        %4200 = vmatmul.mubr.f32.gmra.mxu0 %v3919
        %v4201 = vpop.f32.mrf.mxu0
        %v4202 = vadd.f32 0.0, %v4201
        %v4203 = vpop.f32.mrf.mxu0
        %4204 = vmatprep.mubr.f32.mxu0 0.0
        %4205 = vmatmul.mubr.f32.gmra.mxu0 %v3922
        %v4206 = vpop.f32.mrf.mxu0
        %v4207 = vadd.f32 0.0, %v4206
        %v4208 = vpop.f32.mrf.mxu0
        %4209 = vmatprep.mubr.f32.mxu0 0.0
        %4210 = vmatmul.mubr.f32.gmra.mxu0 %v3925
        %v4211 = vpop.f32.mrf.mxu0
        %v4212 = vpop.f32.mrf.mxu0
        %4213 = vmatprep.mubr.f32.mxu0 0.0
        %4214 = vmatmul.mubr.f32.gmra.mxu0 %v3928
        %v4215 = vpop.f32.mrf.mxu0
        %v4216 = vpop.f32.mrf.mxu0
        %4217 = vmatprep.mubr.f32.mxu0 0.0
        %4218 = vmatmul.mubr.f32.gmra.mxu0 %v3931
        %v4219 = vpop.f32.mrf.mxu0
        %v4220 = vadd.f32 0.0, %v4219
        %v4221 = vpop.f32.mrf.mxu0
        %4222 = vmatprep.mubr.f32.mxu0 0.0
        %4223 = vmatmul.mubr.f32.gmra.mxu0 %v3934
        %v4224 = vpop.f32.mrf.mxu0
        %v4225 = vadd.f32 0.0, %v4224
        %v4226 = vpop.f32.mrf.mxu0
        %4227 = vmatprep.mubr.f32.mxu0 0.0
        %4228 = vmatmul.mubr.f32.gmra.mxu0 %v3937
        %v4229 = vpop.f32.mrf.mxu0
        %v4230 = vpop.f32.mrf.mxu0
        %4231 = vmatprep.mubr.f32.mxu0 0.0
        %4232 = vmatmul.mubr.f32.gmra.mxu0 %v3940
        %v4233 = vpop.f32.mrf.mxu0
        %v4234 = vpop.f32.mrf.mxu0
        %4235 = vmatprep.mubr.f32.mxu0 0.0
        %4236 = vmatmul.mubr.f32.gmra.mxu0 %v3943
        %v4237 = vpop.f32.mrf.mxu0
        %v4238 = vadd.f32 0.0, %v4237
        %v4239 = vpop.f32.mrf.mxu0
        %4240 = vmatprep.mubr.f32.mxu0 0.0
        %4241 = vmatmul.mubr.f32.gmra.mxu0 %v3946
        %v4242 = vpop.f32.mrf.mxu0
        %v4243 = vadd.f32 0.0, %v4242
        %v4244 = vpop.f32.mrf.mxu0
        %4245 = vmatprep.mubr.f32.mxu0 0.0
        %4246 = vmatmul.mubr.f32.gmra.mxu0 %v3949
        %v4247 = vpop.f32.mrf.mxu0
        %v4248 = vpop.f32.mrf.mxu0
        %4249 = vmatprep.mubr.f32.mxu0 0.0
        %4250 = vmatmul.mubr.f32.gmra.mxu0 %v3952
        %v4251 = vpop.f32.mrf.mxu0
        %v4252 = vpop.f32.mrf.mxu0
        %4253 = vmatprep.mubr.f32.mxu0 0.0
        %4254 = vmatmul.mubr.f32.gmra.mxu0 %v3955
        %v4255 = vpop.f32.mrf.mxu0
        %v4256 = vadd.f32 0.0, %v4255
        %v4257 = vpop.f32.mrf.mxu0
        %4258 = vmatprep.mubr.f32.mxu0 0.0
        %4259 = vmatmul.mubr.f32.gmra.mxu0 %v3958
        %v4260 = vpop.f32.mrf.mxu0
        %v4261 = vadd.f32 0.0, %v4260
        %v4262 = vpop.f32.mrf.mxu0
        %4263 = vmatprep.mubr.f32.mxu0 0.0
        %4264 = vmatmul.mubr.f32.gmra.mxu0 %v3961
        %v4265 = vpop.f32.mrf.mxu0
        %v4266 = vpop.f32.mrf.mxu0
        %4267 = vmatprep.mubr.f32.mxu0 0.0
        %4268 = vmatmul.mubr.f32.gmra.mxu0 %v3964
        %v4269 = vpop.f32.mrf.mxu0
        %v4270 = vpop.f32.mrf.mxu0
        %4271 = vmatprep.mubr.f32.mxu0 0.0
        %4272 = vmatmul.mubr.f32.gmra.mxu0 %v3967
        %v4273 = vpop.f32.mrf.mxu0
        %v4274 = vadd.f32 0.0, %v4273
        %v4275 = vpop.f32.mrf.mxu0
        %4276 = vmatprep.mubr.f32.mxu0 0.0
        %4277 = vmatmul.mubr.f32.gmra.mxu0 %v3970
        %v4278 = vpop.f32.mrf.mxu0
        %v4279 = vadd.f32 0.0, %v4278
        %v4280 = vpop.f32.mrf.mxu0
        %4281 = vmatprep.mubr.f32.mxu0 0.0
        %4282 = vmatmul.mubr.f32.gmra.mxu0 %v3973
        %v4283 = vpop.f32.mrf.mxu0
        %v4284 = vpop.f32.mrf.mxu0
        %4285 = vmatprep.mubr.f32.mxu0 0.0
        %4286 = vmatmul.mubr.f32.gmra.mxu0 %v3976
        %v4287 = vpop.f32.mrf.mxu0
        %v4288 = vpop.f32.mrf.mxu0
        %4289 = vmatprep.mubr.f32.mxu0 0.0
        %4290 = vmatmul.mubr.f32.gmra.mxu0 %v3979
        %v4291 = vpop.f32.mrf.mxu0
        %v4292 = vadd.f32 0.0, %v4291
        %v4293 = vpop.f32.mrf.mxu0
        %4294 = vmatprep.mubr.f32.mxu0 0.0
        %4295 = vmatmul.mubr.f32.gmra.mxu0 %v3982
        %v4296 = vpop.f32.mrf.mxu0
        %v4297 = vadd.f32 0.0, %v4296
        %v4298 = vpop.f32.mrf.mxu0
        %4299 = vmatprep.mubr.f32.mxu0 0.0
        %4300 = vmatmul.mubr.f32.gmra.mxu0 %v3985
        %v4301 = vpop.f32.mrf.mxu0
        %v4302 = vpop.f32.mrf.mxu0
        %4303 = vmatprep.mubr.f32.mxu0 0.0
        %4304 = vmatmul.mubr.f32.gmra.mxu0 %v3988
        %v4305 = vpop.f32.mrf.mxu0
        %v4306 = vpop.f32.mrf.mxu0
        %4307 = vmatprep.mubr.f32.mxu0 0.0
        %4308 = vmatmul.mubr.f32.gmra.mxu0 %v3991
        %v4309 = vpop.f32.mrf.mxu0
        %v4310 = vadd.f32 0.0, %v4309
        %v4311 = vpop.f32.mrf.mxu0
        %4312 = vmatprep.mubr.f32.mxu0 0.0
        %4313 = vmatmul.mubr.f32.gmra.mxu0 %v3994
        %v4314 = vpop.f32.mrf.mxu0
        %v4315 = vadd.f32 0.0, %v4314
        %v4316 = vpop.f32.mrf.mxu0
        %4317 = vmatprep.mubr.f32.mxu0 0.0
        %4318 = vmatmul.mubr.f32.gmra.mxu0 %v3997
        %v4319 = vpop.f32.mrf.mxu0
        %v4320 = vpop.f32.mrf.mxu0
        %4321 = vmatprep.mubr.f32.mxu0 0.0
        %4322 = vmatmul.mubr.f32.gmra.mxu0 %v4000
        %v4323 = vpop.f32.mrf.mxu0
        %v4324 = vpop.f32.mrf.mxu0
        %4325 = vmatprep.mubr.f32.mxu0 0.0
        %4326 = vmatmul.mubr.f32.gmra.mxu0 %v4003
        %v4327 = vpop.f32.mrf.mxu0
        %v4328 = vadd.f32 0.0, %v4327
        %v4329 = vpop.f32.mrf.mxu0
        %4330 = vmatprep.mubr.f32.mxu0 0.0
        %4331 = vmatmul.mubr.f32.gmra.mxu0 %v4006
        %v4332 = vpop.f32.mrf.mxu0
        %v4333 = vadd.f32 0.0, %v4332
        %v4334 = vpop.f32.mrf.mxu0
        %4335 = vmatprep.mubr.f32.mxu0 0.0
        %4336 = vmatmul.mubr.f32.gmra.mxu0 %v4009
        %v4337 = vpop.f32.mrf.mxu0
        %v4338 = vpop.f32.mrf.mxu0
        %4339 = vmatprep.mubr.f32.mxu0 0.0
        %4340 = vmatmul.mubr.f32.gmra.mxu0 %v4012
        %v4341 = vpop.f32.mrf.mxu0
        %v4342 = vpop.f32.mrf.mxu0
        %4343 = vmatprep.mubr.f32.mxu0 0.0
        %4344 = vmatmul.mubr.f32.gmra.mxu0 %v4015
        %v4345 = vpop.f32.mrf.mxu0
        %v4346 = vadd.f32 0.0, %v4345
        %v4347 = vpop.f32.mrf.mxu0
        %4348 = vmatprep.mubr.f32.mxu0 0.0
        %4349 = vmatmul.mubr.f32.gmra.mxu0 %v4018
        %v4350 = vpop.f32.mrf.mxu0
        %v4351 = vadd.f32 0.0, %v4350
        %v4352 = vpop.f32.mrf.mxu0
        %4353 = vmatprep.mubr.f32.mxu0 0.0
        %4354 = vmatmul.mubr.f32.gmra.mxu0 %v4021
        %v4355 = vpop.f32.mrf.mxu0
        %v4356 = vpop.f32.mrf.mxu0
        %4357 = vmatprep.mubr.f32.mxu0 0.0
        %4358 = vmatmul.mubr.f32.gmra.mxu0 %v4024
        %v4359 = vpop.f32.mrf.mxu0
        %v4360 = vpop.f32.mrf.mxu0
        %4361 = vmatprep.mubr.f32.mxu0 0.0
        %4362 = vmatmul.mubr.f32.gmra.mxu0 %v4027
        %v4363 = vpop.f32.mrf.mxu0
        %v4364 = vadd.f32 0.0, %v4363
        %v4365 = vpop.f32.mrf.mxu0
        %4366 = vmatprep.mubr.f32.mxu0 0.0
        %4367 = vmatmul.mubr.f32.gmra.mxu0 %v4030
        %v4368 = vpop.f32.mrf.mxu0
        %v4369 = vadd.f32 0.0, %v4368
        %v4370 = vpop.f32.mrf.mxu0
        %4371 = vmatprep.mubr.f32.mxu0 0.0
        %4372 = vmatmul.mubr.f32.gmra.mxu0 %v4033
        %v4373 = vpop.f32.mrf.mxu0
        %v4374 = vpop.f32.mrf.mxu0
        %4375 = vmatprep.mubr.f32.mxu0 0.0
        %4376 = vmatmul.mubr.f32.gmra.mxu0 %v4036
        %v4377 = vpop.f32.mrf.mxu0
        %v4378 = vpop.f32.mrf.mxu0
        %4379 = vmatprep.mubr.f32.mxu0 0.0
        %4380 = vmatmul.mubr.f32.gmra.mxu0 %v4039
        %v4381 = vpop.f32.mrf.mxu0
        %v4382 = vadd.f32 0.0, %v4381
        %v4383 = vpop.f32.mrf.mxu0
        %4384 = vmatprep.mubr.f32.mxu0 0.0
        %4385 = vmatmul.mubr.f32.gmra.mxu0 %v4042
        %v4386 = vpop.f32.mrf.mxu0
        %v4387 = vadd.f32 0.0, %v4386
        %v4388 = vpop.f32.mrf.mxu0
        %4389 = vmatprep.mubr.f32.mxu0 0.0
        %4390 = vmatmul.mubr.f32.gmra.mxu0 %v4045
        %v4391 = vpop.f32.mrf.mxu0
        %v4392 = vpop.f32.mrf.mxu0
        %4393 = vmatprep.mubr.f32.mxu0 0.0
        %4394 = vmatmul.mubr.f32.gmra.mxu0 %v4048
        %v4395 = vpop.f32.mrf.mxu0
        %v4396 = vpop.f32.mrf.mxu0
        %4397 = vmatprep.mubr.f32.mxu0 0.0
        %4398 = vmatmul.mubr.f32.gmra.mxu0 %v4051
        %v4399 = vpop.f32.mrf.mxu0
        %v4400 = vadd.f32 0.0, %v4399
        %v4401 = vpop.f32.mrf.mxu0
        %4402 = vmatprep.mubr.f32.mxu0 0.0
        %4403 = vmatmul.mubr.f32.gmra.mxu0 %v4054
        %v4404 = vpop.f32.mrf.mxu0
        %v4405 = vadd.f32 0.0, %v4404
        %v4406 = vpop.f32.mrf.mxu0
        %4407 = vmatprep.mubr.f32.mxu0 0.0
        %4408 = vmatmul.mubr.f32.gmra.mxu0 %v4057
        %v4409 = vpop.f32.mrf.mxu0
        %v4410 = vpop.f32.mrf.mxu0
        %4411 = vdwg.mxu0
        %v4412 = vsel %vm212, %v4130, 0.0
        %v4413 = vsel %vm212, %v4135, 0.0
        %v4414 = vadd.f32 %v4412, %v4413
        %v4415 = vsel %vm212, %v4148, 0.0
        %v4416 = vadd.f32 %v4414, %v4415
        %v4417 = vsel %vm212, %v4153, 0.0
        %v4418 = vadd.f32 %v4416, %v4417
        %v4419 = vsel %vm212, %v4166, 0.0
        %v4420 = vadd.f32 %v4418, %v4419
        %v4421 = vsel %vm212, %v4171, 0.0
        %v4422 = vadd.f32 %v4420, %v4421
        %v4423 = vsel %vm212, %v4184, 0.0
        %v4424 = vadd.f32 %v4422, %v4423
        %v4425 = vsel %vm212, %v4189, 0.0
        %v4426 = vadd.f32 %v4424, %v4425
        %v4427 = vsel %vm212, %v4202, 0.0
        %v4428 = vadd.f32 %v4426, %v4427
        %v4429 = vsel %vm212, %v4207, 0.0
        %v4430 = vadd.f32 %v4428, %v4429
        %v4431 = vsel %vm212, %v4220, 0.0
        %v4432 = vadd.f32 %v4430, %v4431
        %v4433 = vsel %vm212, %v4225, 0.0
        %v4434 = vadd.f32 %v4432, %v4433
        %v4435 = vsel %vm212, %v4238, 0.0
        %v4436 = vadd.f32 %v4434, %v4435
        %v4437 = vsel %vm212, %v4243, 0.0
        %v4438 = vadd.f32 %v4436, %v4437
        %v4439 = vsel %vm212, %v4256, 0.0
        %v4440 = vadd.f32 %v4438, %v4439
        %v4441 = vsel %vm212, %v4261, 0.0
        %v4442 = vadd.f32 %v4440, %v4441
        %v4443 = vsel %vm212, %v4274, 0.0
        %v4444 = vadd.f32 %v4442, %v4443
        %v4445 = vsel %vm212, %v4279, 0.0
        %v4446 = vadd.f32 %v4444, %v4445
        %v4447 = vsel %vm212, %v4292, 0.0
        %v4448 = vadd.f32 %v4446, %v4447
        %v4449 = vsel %vm212, %v4297, 0.0
        %v4450 = vadd.f32 %v4448, %v4449
        %v4451 = vsel %vm212, %v4310, 0.0
        %v4452 = vadd.f32 %v4450, %v4451
        %v4453 = vsel %vm212, %v4315, 0.0
        %v4454 = vadd.f32 %v4452, %v4453
        %v4455 = vsel %vm212, %v4328, 0.0
        %v4456 = vadd.f32 %v4454, %v4455
        %v4457 = vsel %vm212, %v4333, 0.0
        %v4458 = vadd.f32 %v4456, %v4457
        %v4459 = vsel %vm212, %v4346, 0.0
        %v4460 = vadd.f32 %v4458, %v4459
        %v4461 = vsel %vm212, %v4351, 0.0
        %v4462 = vadd.f32 %v4460, %v4461
        %v4463 = vsel %vm212, %v4364, 0.0
        %v4464 = vadd.f32 %v4462, %v4463
        %v4465 = vsel %vm212, %v4369, 0.0
        %v4466 = vadd.f32 %v4464, %v4465
        %v4467 = vsel %vm212, %v4382, 0.0
        %v4468 = vadd.f32 %v4466, %v4467
        %v4469 = vsel %vm212, %v4387, 0.0
        %v4470 = vadd.f32 %v4468, %v4469
        %v4471 = vsel %vm212, %v4400, 0.0
        %v4472 = vadd.f32 %v4470, %v4471
        %v4473 = vsel %vm212, %v4405, 0.0
        %v4474 = vadd.f32 %v4472, %v4473
        %v4475 = vrot.slane %v4474, 4
        %v4476 = vadd.f32 %v4474, %v4475
        %v4477 = vrot.slane %v4476, 2
        %v4478 = vadd.f32 %v4476, %v4477
        %v4479 = vrot.slane %v4478, 1
        %v4480 = vadd.f32 %v4478, %v4479
        %v4481 = vadd.f32 %v4480, 0.0
        %v4482 = vmul.f32 %v4130, %v4130
        %v4483 = vmul.f32 %v4135, %v4135
        %v4484 = vmul.f32 %v4148, %v4148
        %v4485 = vmul.f32 %v4153, %v4153
        %v4486 = vmul.f32 %v4166, %v4166
        %v4487 = vmul.f32 %v4171, %v4171
        %v4488 = vmul.f32 %v4184, %v4184
        %v4489 = vmul.f32 %v4189, %v4189
        %v4490 = vmul.f32 %v4202, %v4202
        %v4491 = vmul.f32 %v4207, %v4207
        %v4492 = vmul.f32 %v4220, %v4220
        %v4493 = vmul.f32 %v4225, %v4225
        %v4494 = vmul.f32 %v4238, %v4238
        %v4495 = vmul.f32 %v4243, %v4243
        %v4496 = vmul.f32 %v4256, %v4256
        %v4497 = vmul.f32 %v4261, %v4261
        %v4498 = vmul.f32 %v4274, %v4274
        %v4499 = vmul.f32 %v4279, %v4279
        %v4500 = vmul.f32 %v4292, %v4292
        %v4501 = vmul.f32 %v4297, %v4297
        %v4502 = vmul.f32 %v4310, %v4310
        %v4503 = vmul.f32 %v4315, %v4315
        %v4504 = vmul.f32 %v4328, %v4328
        %v4505 = vmul.f32 %v4333, %v4333
        %v4506 = vmul.f32 %v4346, %v4346
        %v4507 = vmul.f32 %v4351, %v4351
        %v4508 = vmul.f32 %v4364, %v4364
        %v4509 = vmul.f32 %v4369, %v4369
        %v4510 = vmul.f32 %v4382, %v4382
        %v4511 = vmul.f32 %v4387, %v4387
        %v4512 = vmul.f32 %v4400, %v4400
        %v4513 = vmul.f32 %v4405, %v4405
        %v4514 = vsel %vm212, %v4482, 0.0
        %v4515 = vsel %vm212, %v4483, 0.0
        %v4516 = vadd.f32 %v4514, %v4515
        %v4517 = vsel %vm212, %v4484, 0.0
        %v4518 = vadd.f32 %v4516, %v4517
        %v4519 = vsel %vm212, %v4485, 0.0
        %v4520 = vadd.f32 %v4518, %v4519
        %v4521 = vsel %vm212, %v4486, 0.0
        %v4522 = vadd.f32 %v4520, %v4521
        %v4523 = vsel %vm212, %v4487, 0.0
        %v4524 = vadd.f32 %v4522, %v4523
        %v4525 = vsel %vm212, %v4488, 0.0
        %v4526 = vadd.f32 %v4524, %v4525
        %v4527 = vsel %vm212, %v4489, 0.0
        %v4528 = vadd.f32 %v4526, %v4527
        %v4529 = vsel %vm212, %v4490, 0.0
        %v4530 = vadd.f32 %v4528, %v4529
        %v4531 = vsel %vm212, %v4491, 0.0
        %v4532 = vadd.f32 %v4530, %v4531
        %v4533 = vsel %vm212, %v4492, 0.0
        %v4534 = vadd.f32 %v4532, %v4533
        %v4535 = vsel %vm212, %v4493, 0.0
        %v4536 = vadd.f32 %v4534, %v4535
        %v4537 = vsel %vm212, %v4494, 0.0
        %v4538 = vadd.f32 %v4536, %v4537
        %v4539 = vsel %vm212, %v4495, 0.0
        %v4540 = vadd.f32 %v4538, %v4539
        %v4541 = vsel %vm212, %v4496, 0.0
        %v4542 = vadd.f32 %v4540, %v4541
        %v4543 = vsel %vm212, %v4497, 0.0
        %v4544 = vadd.f32 %v4542, %v4543
        %v4545 = vsel %vm212, %v4498, 0.0
        %v4546 = vadd.f32 %v4544, %v4545
        %v4547 = vsel %vm212, %v4499, 0.0
        %v4548 = vadd.f32 %v4546, %v4547
        %v4549 = vsel %vm212, %v4500, 0.0
        %v4550 = vadd.f32 %v4548, %v4549
        %v4551 = vsel %vm212, %v4501, 0.0
        %v4552 = vadd.f32 %v4550, %v4551
        %v4553 = vsel %vm212, %v4502, 0.0
        %v4554 = vadd.f32 %v4552, %v4553
        %v4555 = vsel %vm212, %v4503, 0.0
        %v4556 = vadd.f32 %v4554, %v4555
        %v4557 = vsel %vm212, %v4504, 0.0
        %v4558 = vadd.f32 %v4556, %v4557
        %v4559 = vsel %vm212, %v4505, 0.0
        %v4560 = vadd.f32 %v4558, %v4559
        %v4561 = vsel %vm212, %v4506, 0.0
        %v4562 = vadd.f32 %v4560, %v4561
        %v4563 = vsel %vm212, %v4507, 0.0
        %v4564 = vadd.f32 %v4562, %v4563
        %v4565 = vsel %vm212, %v4508, 0.0
        %v4566 = vadd.f32 %v4564, %v4565
        %v4567 = vsel %vm212, %v4509, 0.0
        %v4568 = vadd.f32 %v4566, %v4567
        %v4569 = vsel %vm212, %v4510, 0.0
        %v4570 = vadd.f32 %v4568, %v4569
        %v4571 = vsel %vm212, %v4511, 0.0
        %v4572 = vadd.f32 %v4570, %v4571
        %v4573 = vsel %vm212, %v4512, 0.0
        %v4574 = vadd.f32 %v4572, %v4573
        %v4575 = vsel %vm212, %v4513, 0.0
        %v4576 = vadd.f32 %v4574, %v4575
        %v4577 = vrot.slane %v4576, 4
        %v4578 = vadd.f32 %v4576, %v4577
        %v4579 = vrot.slane %v4578, 2
        %v4580 = vadd.f32 %v4578, %v4579
        %v4581 = vrot.slane %v4580, 1
        %v4582 = vadd.f32 %v4580, %v4581
        %v4583 = vadd.f32 %v4582, 0.0
        %4584 = vst.msk [vmem:[%s222 + $0x8] sm:$0xff] %vm212, %v4130
        %4585 = vst.msk [vmem:[%s222 + $0x10] sm:$0xff] %vm212, %v4135
        %4586 = vst.msk [vmem:[%s222 + $0x28] sm:$0xff] %vm212, %v4148
        %4587 = vst.msk [vmem:[%s222 + $0x30] sm:$0xff] %vm212, %v4153
        %4588 = vst.msk [vmem:[%s222 + $0x48] sm:$0xff] %vm212, %v4166
        %4589 = vst.msk [vmem:[%s222 + $0x50] sm:$0xff] %vm212, %v4171
        %4590 = vst.msk [vmem:[%s222 + $0x68] sm:$0xff] %vm212, %v4184
        %4591 = vst.msk [vmem:[%s222 + $0x70] sm:$0xff] %vm212, %v4189
        %4592 = vst.msk [vmem:[%s222 + $0x88] sm:$0xff] %vm212, %v4202
        %4593 = vst.msk [vmem:[%s222 + $0x90] sm:$0xff] %vm212, %v4207
        %4594 = vst.msk [vmem:[%s222 + $0xa8] sm:$0xff] %vm212, %v4220
        %4595 = vst.msk [vmem:[%s222 + $0xb0] sm:$0xff] %vm212, %v4225
        %4596 = vst.msk [vmem:[%s222 + $0xc8] sm:$0xff] %vm212, %v4238
        %4597 = vst.msk [vmem:[%s222 + $0xd0] sm:$0xff] %vm212, %v4243
        %4598 = vst.msk [vmem:[%s222 + $0xe8] sm:$0xff] %vm212, %v4256
        %4599 = vst.msk [vmem:[%s222 + $0xf0] sm:$0xff] %vm212, %v4261
        %4600 = vst.msk [vmem:[%s222 + $0x108] sm:$0xff] %vm212, %v4274
        %4601 = vst.msk [vmem:[%s222 + $0x110] sm:$0xff] %vm212, %v4279
        %4602 = vst.msk [vmem:[%s222 + $0x128] sm:$0xff] %vm212, %v4292
        %4603 = vst.msk [vmem:[%s222 + $0x130] sm:$0xff] %vm212, %v4297
        %4604 = vst.msk [vmem:[%s222 + $0x148] sm:$0xff] %vm212, %v4310
        %4605 = vst.msk [vmem:[%s222 + $0x150] sm:$0xff] %vm212, %v4315
        %4606 = vst.msk [vmem:[%s222 + $0x168] sm:$0xff] %vm212, %v4328
        %4607 = vst.msk [vmem:[%s222 + $0x170] sm:$0xff] %vm212, %v4333
        %4608 = vst.msk [vmem:[%s222 + $0x188] sm:$0xff] %vm212, %v4346
        %4609 = vst.msk [vmem:[%s222 + $0x190] sm:$0xff] %vm212, %v4351
        %4610 = vst.msk [vmem:[%s222 + $0x1a8] sm:$0xff] %vm212, %v4364
        %4611 = vst.msk [vmem:[%s222 + $0x1b0] sm:$0xff] %vm212, %v4369
        %4612 = vst.msk [vmem:[%s222 + $0x1c8] sm:$0xff] %vm212, %v4382
        %4613 = vst.msk [vmem:[%s222 + $0x1d0] sm:$0xff] %vm212, %v4387
        %4614 = vst.msk [vmem:[%s222 + $0x1e8] sm:$0xff] %vm212, %v4400
        %4615 = vst.msk [vmem:[%s222 + $0x1f0] sm:$0xff] %vm212, %v4405
        %v4616 = vmul.f32 %v4481, 0.00390625
        %v4617 = vmul.f32 %v4583, 0.00390625
        %v4618 = vmul.f32 %v4616, %v4616
        %v4619 = vsub.f32 %v4617, %v4618
        %v4620 = vadd.f32 %v4619, 1e-05
        %v4621 = vrsqrt.pop %v4620
        %v4622 = vld [vmem:[%s222 + $0x8] sm:$0xff]
        %v4623 = vld [vmem:[%s222 + $0x10] sm:$0xff]
        %v4624 = vld [vmem:[%s222 + $0x28] sm:$0xff]
        %v4625 = vld [vmem:[%s222 + $0x30] sm:$0xff]
        %v4626 = vld [vmem:[%s222 + $0x48] sm:$0xff]
        %v4627 = vld [vmem:[%s222 + $0x50] sm:$0xff]
        %v4628 = vld [vmem:[%s222 + $0x68] sm:$0xff]
        %v4629 = vld [vmem:[%s222 + $0x70] sm:$0xff]
        %v4630 = vld [vmem:[%s222 + $0x88] sm:$0xff]
        %v4631 = vld [vmem:[%s222 + $0x90] sm:$0xff]
        %v4632 = vld [vmem:[%s222 + $0xa8] sm:$0xff]
        %v4633 = vld [vmem:[%s222 + $0xb0] sm:$0xff]
        %v4634 = vld [vmem:[%s222 + $0xc8] sm:$0xff]
        %v4635 = vld [vmem:[%s222 + $0xd0] sm:$0xff]
        %v4636 = vld [vmem:[%s222 + $0xe8] sm:$0xff]
        %v4637 = vld [vmem:[%s222 + $0xf0] sm:$0xff]
        %v4638 = vld [vmem:[%s222 + $0x108] sm:$0xff]
        %v4639 = vld [vmem:[%s222 + $0x110] sm:$0xff]
        %v4640 = vld [vmem:[%s222 + $0x128] sm:$0xff]
        %v4641 = vld [vmem:[%s222 + $0x130] sm:$0xff]
        %v4642 = vld [vmem:[%s222 + $0x148] sm:$0xff]
        %v4643 = vld [vmem:[%s222 + $0x150] sm:$0xff]
        %v4644 = vld [vmem:[%s222 + $0x168] sm:$0xff]
        %v4645 = vld [vmem:[%s222 + $0x170] sm:$0xff]
        %v4646 = vld [vmem:[%s222 + $0x188] sm:$0xff]
        %v4647 = vld [vmem:[%s222 + $0x190] sm:$0xff]
        %v4648 = vld [vmem:[%s222 + $0x1a8] sm:$0xff]
        %v4649 = vld [vmem:[%s222 + $0x1b0] sm:$0xff]
        %v4650 = vld [vmem:[%s222 + $0x1c8] sm:$0xff]
        %v4651 = vld [vmem:[%s222 + $0x1d0] sm:$0xff]
        %v4652 = vld [vmem:[%s222 + $0x1e8] sm:$0xff]
        %v4653 = vld [vmem:[%s222 + $0x1f0] sm:$0xff]
        %v4654 = vsub.f32 %v4622, %v4616
        %v4655 = vsub.f32 %v4623, %v4616
        %v4656 = vsub.f32 %v4624, %v4616
        %v4657 = vsub.f32 %v4625, %v4616
        %v4658 = vsub.f32 %v4626, %v4616
        %v4659 = vsub.f32 %v4627, %v4616
        %v4660 = vsub.f32 %v4628, %v4616
        %v4661 = vsub.f32 %v4629, %v4616
        %v4662 = vsub.f32 %v4630, %v4616
        %v4663 = vsub.f32 %v4631, %v4616
        %v4664 = vsub.f32 %v4632, %v4616
        %v4665 = vsub.f32 %v4633, %v4616
        %v4666 = vsub.f32 %v4634, %v4616
        %v4667 = vsub.f32 %v4635, %v4616
        %v4668 = vsub.f32 %v4636, %v4616
        %v4669 = vsub.f32 %v4637, %v4616
        %v4670 = vsub.f32 %v4638, %v4616
        %v4671 = vsub.f32 %v4639, %v4616
        %v4672 = vsub.f32 %v4640, %v4616
        %v4673 = vsub.f32 %v4641, %v4616
        %v4674 = vsub.f32 %v4642, %v4616
        %v4675 = vsub.f32 %v4643, %v4616
        %v4676 = vsub.f32 %v4644, %v4616
        %v4677 = vsub.f32 %v4645, %v4616
        %v4678 = vsub.f32 %v4646, %v4616
        %v4679 = vsub.f32 %v4647, %v4616
        %v4680 = vsub.f32 %v4648, %v4616
        %v4681 = vsub.f32 %v4649, %v4616
        %v4682 = vsub.f32 %v4650, %v4616
        %v4683 = vsub.f32 %v4651, %v4616
        %v4684 = vsub.f32 %v4652, %v4616
        %v4685 = vsub.f32 %v4653, %v4616
        %v4686 = vmul.f32 %v4654, %v4621
        %v4687 = vmul.f32 %v4655, %v4621
        %v4688 = vmul.f32 %v4656, %v4621
        %v4689 = vmul.f32 %v4657, %v4621
        %v4690 = vmul.f32 %v4658, %v4621
        %v4691 = vmul.f32 %v4659, %v4621
        %v4692 = vmul.f32 %v4660, %v4621
        %v4693 = vmul.f32 %v4661, %v4621
        %v4694 = vmul.f32 %v4662, %v4621
        %v4695 = vmul.f32 %v4663, %v4621
        %v4696 = vmul.f32 %v4664, %v4621
        %v4697 = vmul.f32 %v4665, %v4621
        %v4698 = vmul.f32 %v4666, %v4621
        %v4699 = vmul.f32 %v4667, %v4621
        %v4700 = vmul.f32 %v4668, %v4621
        %v4701 = vmul.f32 %v4669, %v4621
        %v4702 = vmul.f32 %v4670, %v4621
        %v4703 = vmul.f32 %v4671, %v4621
        %v4704 = vmul.f32 %v4672, %v4621
        %v4705 = vmul.f32 %v4673, %v4621
        %v4706 = vmul.f32 %v4674, %v4621
        %v4707 = vmul.f32 %v4675, %v4621
        %v4708 = vmul.f32 %v4676, %v4621
        %v4709 = vmul.f32 %v4677, %v4621
        %v4710 = vmul.f32 %v4678, %v4621
        %v4711 = vmul.f32 %v4679, %v4621
        %v4712 = vmul.f32 %v4680, %v4621
        %v4713 = vmul.f32 %v4681, %v4621
        %v4714 = vmul.f32 %v4682, %v4621
        %v4715 = vmul.f32 %v4683, %v4621
        %v4716 = vmul.f32 %v4684, %v4621
        %v4717 = vmul.f32 %v4685, %v4621
        %4718 = vst.msk [vmem:[%s222 + $0x8] sm:$0xff] %vm212, %v4686
        %4719 = vst.msk [vmem:[%s222 + $0x10] sm:$0xff] %vm212, %v4687
        %4720 = vst.msk [vmem:[%s222 + $0x28] sm:$0xff] %vm212, %v4688
        %4721 = vst.msk [vmem:[%s222 + $0x30] sm:$0xff] %vm212, %v4689
        %4722 = vst.msk [vmem:[%s222 + $0x48] sm:$0xff] %vm212, %v4690
        %4723 = vst.msk [vmem:[%s222 + $0x50] sm:$0xff] %vm212, %v4691
        %4724 = vst.msk [vmem:[%s222 + $0x68] sm:$0xff] %vm212, %v4692
        %4725 = vst.msk [vmem:[%s222 + $0x70] sm:$0xff] %vm212, %v4693
        %4726 = vst.msk [vmem:[%s222 + $0x88] sm:$0xff] %vm212, %v4694
        %4727 = vst.msk [vmem:[%s222 + $0x90] sm:$0xff] %vm212, %v4695
        %4728 = vst.msk [vmem:[%s222 + $0xa8] sm:$0xff] %vm212, %v4696
        %4729 = vst.msk [vmem:[%s222 + $0xb0] sm:$0xff] %vm212, %v4697
        %4730 = vst.msk [vmem:[%s222 + $0xc8] sm:$0xff] %vm212, %v4698
        %4731 = vst.msk [vmem:[%s222 + $0xd0] sm:$0xff] %vm212, %v4699
        %4732 = vst.msk [vmem:[%s222 + $0xe8] sm:$0xff] %vm212, %v4700
        %4733 = vst.msk [vmem:[%s222 + $0xf0] sm:$0xff] %vm212, %v4701
        %4734 = vst.msk [vmem:[%s222 + $0x108] sm:$0xff] %vm212, %v4702
        %4735 = vst.msk [vmem:[%s222 + $0x110] sm:$0xff] %vm212, %v4703
        %4736 = vst.msk [vmem:[%s222 + $0x128] sm:$0xff] %vm212, %v4704
        %4737 = vst.msk [vmem:[%s222 + $0x130] sm:$0xff] %vm212, %v4705
        %4738 = vst.msk [vmem:[%s222 + $0x148] sm:$0xff] %vm212, %v4706
        %4739 = vst.msk [vmem:[%s222 + $0x150] sm:$0xff] %vm212, %v4707
        %4740 = vst.msk [vmem:[%s222 + $0x168] sm:$0xff] %vm212, %v4708
        %4741 = vst.msk [vmem:[%s222 + $0x170] sm:$0xff] %vm212, %v4709
        %4742 = vst.msk [vmem:[%s222 + $0x188] sm:$0xff] %vm212, %v4710
        %4743 = vst.msk [vmem:[%s222 + $0x190] sm:$0xff] %vm212, %v4711
        %4744 = vst.msk [vmem:[%s222 + $0x1a8] sm:$0xff] %vm212, %v4712
        %4745 = vst.msk [vmem:[%s222 + $0x1b0] sm:$0xff] %vm212, %v4713
        %4746 = vst.msk [vmem:[%s222 + $0x1c8] sm:$0xff] %vm212, %v4714
        %4747 = vst.msk [vmem:[%s222 + $0x1d0] sm:$0xff] %vm212, %v4715
        %4748 = vst.msk [vmem:[%s222 + $0x1e8] sm:$0xff] %vm212, %v4716
        %4749 = vst.msk [vmem:[%s222 + $0x1f0] sm:$0xff] %vm212, %v4717
        %s4750 = scalar_lea.vmem [#allocation3], %s319
        %v4751 = vld [vmem:[%s4750] sm:$0xff]
        %v4752 = vld [vmem:[%s4750 + $0x8] sm:$0xff]
        %v4753 = vld [vmem:[%s4750 + $0x10] sm:$0xff]
        %v4754 = vld [vmem:[%s4750 + $0x18] sm:$0xff]
        %v4755 = vld [vmem:[%s4750 + $0x20] sm:$0xff]
        %v4756 = vld [vmem:[%s4750 + $0x28] sm:$0xff]
        %v4757 = vld [vmem:[%s4750 + $0x30] sm:$0xff]
        %v4758 = vld [vmem:[%s4750 + $0x38] sm:$0xff]
        %v4759 = vld [vmem:[%s4750 + $0x40] sm:$0xff]
        %v4760 = vld [vmem:[%s4750 + $0x48] sm:$0xff]
        %v4761 = vld [vmem:[%s4750 + $0x50] sm:$0xff]
        %v4762 = vld [vmem:[%s4750 + $0x58] sm:$0xff]
        %v4763 = vld [vmem:[%s4750 + $0x60] sm:$0xff]
        %v4764 = vld [vmem:[%s4750 + $0x68] sm:$0xff]
        %v4765 = vld [vmem:[%s4750 + $0x70] sm:$0xff]
        %v4766 = vld [vmem:[%s4750 + $0x78] sm:$0xff]
        %v4767 = vld [vmem:[%s4750 + $0x80] sm:$0xff]
        %v4768 = vld [vmem:[%s4750 + $0x88] sm:$0xff]
        %v4769 = vld [vmem:[%s4750 + $0x90] sm:$0xff]
        %v4770 = vld [vmem:[%s4750 + $0x98] sm:$0xff]
        %v4771 = vld [vmem:[%s4750 + $0xa0] sm:$0xff]
        %v4772 = vld [vmem:[%s4750 + $0xa8] sm:$0xff]
        %v4773 = vld [vmem:[%s4750 + $0xb0] sm:$0xff]
        %v4774 = vld [vmem:[%s4750 + $0xb8] sm:$0xff]
        %v4775 = vld [vmem:[%s4750 + $0xc0] sm:$0xff]
        %v4776 = vld [vmem:[%s4750 + $0xc8] sm:$0xff]
        %v4777 = vld [vmem:[%s4750 + $0xd0] sm:$0xff]
        %v4778 = vld [vmem:[%s4750 + $0xd8] sm:$0xff]
        %v4779 = vld [vmem:[%s4750 + $0xe0] sm:$0xff]
        %v4780 = vld [vmem:[%s4750 + $0xe8] sm:$0xff]
        %v4781 = vld [vmem:[%s4750 + $0xf0] sm:$0xff]
        %v4782 = vld [vmem:[%s4750 + $0xf8] sm:$0xff]
        %v4783 = vld [vmem:[%s4750 + $0x100] sm:$0xff]
        %v4784 = vld [vmem:[%s4750 + $0x108] sm:$0xff]
        %v4785 = vld [vmem:[%s4750 + $0x110] sm:$0xff]
        %v4786 = vld [vmem:[%s4750 + $0x118] sm:$0xff]
        %v4787 = vld [vmem:[%s4750 + $0x120] sm:$0xff]
        %v4788 = vld [vmem:[%s4750 + $0x128] sm:$0xff]
        %v4789 = vld [vmem:[%s4750 + $0x130] sm:$0xff]
        %v4790 = vld [vmem:[%s4750 + $0x138] sm:$0xff]
        %v4791 = vld [vmem:[%s4750 + $0x140] sm:$0xff]
        %v4792 = vld [vmem:[%s4750 + $0x148] sm:$0xff]
        %v4793 = vld [vmem:[%s4750 + $0x150] sm:$0xff]
        %v4794 = vld [vmem:[%s4750 + $0x158] sm:$0xff]
        %v4795 = vld [vmem:[%s4750 + $0x160] sm:$0xff]
        %v4796 = vld [vmem:[%s4750 + $0x168] sm:$0xff]
        %v4797 = vld [vmem:[%s4750 + $0x170] sm:$0xff]
        %v4798 = vld [vmem:[%s4750 + $0x178] sm:$0xff]
        %v4799 = vld [vmem:[%s4750 + $0x180] sm:$0xff]
        %v4800 = vld [vmem:[%s4750 + $0x188] sm:$0xff]
        %v4801 = vld [vmem:[%s4750 + $0x190] sm:$0xff]
        %v4802 = vld [vmem:[%s4750 + $0x198] sm:$0xff]
        %v4803 = vld [vmem:[%s4750 + $0x1a0] sm:$0xff]
        %v4804 = vld [vmem:[%s4750 + $0x1a8] sm:$0xff]
        %v4805 = vld [vmem:[%s4750 + $0x1b0] sm:$0xff]
        %v4806 = vld [vmem:[%s4750 + $0x1b8] sm:$0xff]
        %v4807 = vld [vmem:[%s4750 + $0x1c0] sm:$0xff]
        %v4808 = vld [vmem:[%s4750 + $0x1c8] sm:$0xff]
        %v4809 = vld [vmem:[%s4750 + $0x1d0] sm:$0xff]
        %v4810 = vld [vmem:[%s4750 + $0x1d8] sm:$0xff]
        %v4811 = vld [vmem:[%s4750 + $0x1e0] sm:$0xff]
        %v4812 = vld [vmem:[%s4750 + $0x1e8] sm:$0xff]
        %v4813 = vld [vmem:[%s4750 + $0x1f0] sm:$0xff]
        %v4814 = vld [vmem:[%s4750 + $0x1f8] sm:$0xff]
        %v4815 = vrot.slane %v4751, 7
        %v4816 = vrot.slane %v4752, 7
        %v4817 = vrot.slane %v4753, 7
        %v4818 = vrot.slane %v4754, 7
        %v4819 = vrot.slane %v4755, 7
        %v4820 = vrot.slane %v4756, 7
        %v4821 = vrot.slane %v4757, 7
        %v4822 = vrot.slane %v4758, 7
        %v4823 = vrot.slane %v4759, 7
        %v4824 = vrot.slane %v4760, 7
        %v4825 = vrot.slane %v4761, 7
        %v4826 = vrot.slane %v4762, 7
        %v4827 = vrot.slane %v4763, 7
        %v4828 = vrot.slane %v4764, 7
        %v4829 = vrot.slane %v4765, 7
        %v4830 = vrot.slane %v4766, 7
        %v4831 = vrot.slane %v4767, 7
        %v4832 = vrot.slane %v4768, 7
        %v4833 = vrot.slane %v4769, 7
        %v4834 = vrot.slane %v4770, 7
        %v4835 = vrot.slane %v4771, 7
        %v4836 = vrot.slane %v4772, 7
        %v4837 = vrot.slane %v4773, 7
        %v4838 = vrot.slane %v4774, 7
        %v4839 = vrot.slane %v4775, 7
        %v4840 = vrot.slane %v4776, 7
        %v4841 = vrot.slane %v4777, 7
        %v4842 = vrot.slane %v4778, 7
        %v4843 = vrot.slane %v4779, 7
        %v4844 = vrot.slane %v4780, 7
        %v4845 = vrot.slane %v4781, 7
        %v4846 = vrot.slane %v4782, 7
        %v4847 = vrot.slane %v4783, 7
        %v4848 = vrot.slane %v4784, 7
        %v4849 = vrot.slane %v4785, 7
        %v4850 = vrot.slane %v4786, 7
        %v4851 = vrot.slane %v4787, 7
        %v4852 = vrot.slane %v4788, 7
        %v4853 = vrot.slane %v4789, 7
        %v4854 = vrot.slane %v4790, 7
        %v4855 = vrot.slane %v4791, 7
        %v4856 = vrot.slane %v4792, 7
        %v4857 = vrot.slane %v4793, 7
        %v4858 = vrot.slane %v4794, 7
        %v4859 = vrot.slane %v4795, 7
        %v4860 = vrot.slane %v4796, 7
        %v4861 = vrot.slane %v4797, 7
        %v4862 = vrot.slane %v4798, 7
        %v4863 = vrot.slane %v4799, 7
        %v4864 = vrot.slane %v4800, 7
        %v4865 = vrot.slane %v4801, 7
        %v4866 = vrot.slane %v4802, 7
        %v4867 = vrot.slane %v4803, 7
        %v4868 = vrot.slane %v4804, 7
        %v4869 = vrot.slane %v4805, 7
        %v4870 = vrot.slane %v4806, 7
        %v4871 = vrot.slane %v4807, 7
        %v4872 = vrot.slane %v4808, 7
        %v4873 = vrot.slane %v4809, 7
        %v4874 = vrot.slane %v4810, 7
        %v4875 = vrot.slane %v4811, 7
        %v4876 = vrot.slane %v4812, 7
        %v4877 = vrot.slane %v4813, 7
        %v4878 = vrot.slane %v4814, 7
        %v4879 = vsel %vm451, %v4877, %v4878
        %v4880 = vsel %vm451, %v4876, %v4877
        %v4881 = vsel %vm451, %v4875, %v4876
        %v4882 = vsel %vm451, %v4874, %v4875
        %v4883 = vsel %vm451, %v4873, %v4874
        %v4884 = vsel %vm451, %v4872, %v4873
        %v4885 = vsel %vm451, %v4871, %v4872
        %v4886 = vsel %vm451, %v4870, %v4871
        %v4887 = vsel %vm451, %v4869, %v4870
        %v4888 = vsel %vm451, %v4868, %v4869
        %v4889 = vsel %vm451, %v4867, %v4868
        %v4890 = vsel %vm451, %v4866, %v4867
        %v4891 = vsel %vm451, %v4865, %v4866
        %v4892 = vsel %vm451, %v4864, %v4865
        %v4893 = vsel %vm451, %v4863, %v4864
        %v4894 = vsel %vm451, %v4862, %v4863
        %v4895 = vsel %vm451, %v4861, %v4862
        %v4896 = vsel %vm451, %v4860, %v4861
        %v4897 = vsel %vm451, %v4859, %v4860
        %v4898 = vsel %vm451, %v4858, %v4859
        %v4899 = vsel %vm451, %v4857, %v4858
        %v4900 = vsel %vm451, %v4856, %v4857
        %v4901 = vsel %vm451, %v4855, %v4856
        %v4902 = vsel %vm451, %v4854, %v4855
        %v4903 = vsel %vm451, %v4853, %v4854
        %v4904 = vsel %vm451, %v4852, %v4853
        %v4905 = vsel %vm451, %v4851, %v4852
        %v4906 = vsel %vm451, %v4850, %v4851
        %v4907 = vsel %vm451, %v4849, %v4850
        %v4908 = vsel %vm451, %v4848, %v4849
        %v4909 = vsel %vm451, %v4847, %v4848
        %v4910 = vsel %vm451, %v4846, %v4847
        %v4911 = vsel %vm451, %v4845, %v4846
        %v4912 = vsel %vm451, %v4844, %v4845
        %v4913 = vsel %vm451, %v4843, %v4844
        %v4914 = vsel %vm451, %v4842, %v4843
        %v4915 = vsel %vm451, %v4841, %v4842
        %v4916 = vsel %vm451, %v4840, %v4841
        %v4917 = vsel %vm451, %v4839, %v4840
        %v4918 = vsel %vm451, %v4838, %v4839
        %v4919 = vsel %vm451, %v4837, %v4838
        %v4920 = vsel %vm451, %v4836, %v4837
        %v4921 = vsel %vm451, %v4835, %v4836
        %v4922 = vsel %vm451, %v4834, %v4835
        %v4923 = vsel %vm451, %v4833, %v4834
        %v4924 = vsel %vm451, %v4832, %v4833
        %v4925 = vsel %vm451, %v4831, %v4832
        %v4926 = vsel %vm451, %v4830, %v4831
        %v4927 = vsel %vm451, %v4829, %v4830
        %v4928 = vsel %vm451, %v4828, %v4829
        %v4929 = vsel %vm451, %v4827, %v4828
        %v4930 = vsel %vm451, %v4826, %v4827
        %v4931 = vsel %vm451, %v4825, %v4826
        %v4932 = vsel %vm451, %v4824, %v4825
        %v4933 = vsel %vm451, %v4823, %v4824
        %v4934 = vsel %vm451, %v4822, %v4823
        %v4935 = vsel %vm451, %v4821, %v4822
        %v4936 = vsel %vm451, %v4820, %v4821
        %v4937 = vsel %vm451, %v4819, %v4820
        %v4938 = vsel %vm451, %v4818, %v4819
        %v4939 = vsel %vm451, %v4817, %v4818
        %v4940 = vsel %vm451, %v4816, %v4817
        %v4941 = vsel %vm451, %v4815, %v4816
        %v4942 = vsel %vm451, %v4878, %v4815
        %v4943 = vrot.slane %v4751, 1
        %v4944 = vrot.slane %v4752, 1
        %v4945 = vrot.slane %v4753, 1
        %v4946 = vrot.slane %v4754, 1
        %v4947 = vrot.slane %v4755, 1
        %v4948 = vrot.slane %v4756, 1
        %v4949 = vrot.slane %v4757, 1
        %v4950 = vrot.slane %v4758, 1
        %v4951 = vrot.slane %v4759, 1
        %v4952 = vrot.slane %v4760, 1
        %v4953 = vrot.slane %v4761, 1
        %v4954 = vrot.slane %v4762, 1
        %v4955 = vrot.slane %v4763, 1
        %v4956 = vrot.slane %v4764, 1
        %v4957 = vrot.slane %v4765, 1
        %v4958 = vrot.slane %v4766, 1
        %v4959 = vrot.slane %v4767, 1
        %v4960 = vrot.slane %v4768, 1
        %v4961 = vrot.slane %v4769, 1
        %v4962 = vrot.slane %v4770, 1
        %v4963 = vrot.slane %v4771, 1
        %v4964 = vrot.slane %v4772, 1
        %v4965 = vrot.slane %v4773, 1
        %v4966 = vrot.slane %v4774, 1
        %v4967 = vrot.slane %v4775, 1
        %v4968 = vrot.slane %v4776, 1
        %v4969 = vrot.slane %v4777, 1
        %v4970 = vrot.slane %v4778, 1
        %v4971 = vrot.slane %v4779, 1
        %v4972 = vrot.slane %v4780, 1
        %v4973 = vrot.slane %v4781, 1
        %v4974 = vrot.slane %v4782, 1
        %v4975 = vrot.slane %v4783, 1
        %v4976 = vrot.slane %v4784, 1
        %v4977 = vrot.slane %v4785, 1
        %v4978 = vrot.slane %v4786, 1
        %v4979 = vrot.slane %v4787, 1
        %v4980 = vrot.slane %v4788, 1
        %v4981 = vrot.slane %v4789, 1
        %v4982 = vrot.slane %v4790, 1
        %v4983 = vrot.slane %v4791, 1
        %v4984 = vrot.slane %v4792, 1
        %v4985 = vrot.slane %v4793, 1
        %v4986 = vrot.slane %v4794, 1
        %v4987 = vrot.slane %v4795, 1
        %v4988 = vrot.slane %v4796, 1
        %v4989 = vrot.slane %v4797, 1
        %v4990 = vrot.slane %v4798, 1
        %v4991 = vrot.slane %v4799, 1
        %v4992 = vrot.slane %v4800, 1
        %v4993 = vrot.slane %v4801, 1
        %v4994 = vrot.slane %v4802, 1
        %v4995 = vrot.slane %v4803, 1
        %v4996 = vrot.slane %v4804, 1
        %v4997 = vrot.slane %v4805, 1
        %v4998 = vrot.slane %v4806, 1
        %v4999 = vrot.slane %v4807, 1
        %v5000 = vrot.slane %v4808, 1
        %v5001 = vrot.slane %v4809, 1
        %v5002 = vrot.slane %v4810, 1
        %v5003 = vrot.slane %v4811, 1
        %v5004 = vrot.slane %v4812, 1
        %v5005 = vrot.slane %v4813, 1
        %v5006 = vrot.slane %v4814, 1
        %v5007 = vsel %vm580, %v5005, %v5006
        %v5008 = vsel %vm580, %v5004, %v5005
        %v5009 = vsel %vm580, %v5003, %v5004
        %v5010 = vsel %vm580, %v5002, %v5003
        %v5011 = vsel %vm580, %v5001, %v5002
        %v5012 = vsel %vm580, %v5000, %v5001
        %v5013 = vsel %vm580, %v4999, %v5000
        %v5014 = vsel %vm580, %v4998, %v4999
        %v5015 = vsel %vm580, %v4997, %v4998
        %v5016 = vsel %vm580, %v4996, %v4997
        %v5017 = vsel %vm580, %v4995, %v4996
        %v5018 = vsel %vm580, %v4994, %v4995
        %v5019 = vsel %vm580, %v4993, %v4994
        %v5020 = vsel %vm580, %v4992, %v4993
        %v5021 = vsel %vm580, %v4991, %v4992
        %v5022 = vsel %vm580, %v4990, %v4991
        %v5023 = vsel %vm580, %v4989, %v4990
        %v5024 = vsel %vm580, %v4988, %v4989
        %v5025 = vsel %vm580, %v4987, %v4988
        %v5026 = vsel %vm580, %v4986, %v4987
        %v5027 = vsel %vm580, %v4985, %v4986
        %v5028 = vsel %vm580, %v4984, %v4985
        %v5029 = vsel %vm580, %v4983, %v4984
        %v5030 = vsel %vm580, %v4982, %v4983
        %v5031 = vsel %vm580, %v4981, %v4982
        %v5032 = vsel %vm580, %v4980, %v4981
        %v5033 = vsel %vm580, %v4979, %v4980
        %v5034 = vsel %vm580, %v4978, %v4979
        %v5035 = vsel %vm580, %v4977, %v4978
        %v5036 = vsel %vm580, %v4976, %v4977
        %v5037 = vsel %vm580, %v4975, %v4976
        %v5038 = vsel %vm580, %v4974, %v4975
        %v5039 = vsel %vm580, %v4973, %v4974
        %v5040 = vsel %vm580, %v4972, %v4973
        %v5041 = vsel %vm580, %v4971, %v4972
        %v5042 = vsel %vm580, %v4970, %v4971
        %v5043 = vsel %vm580, %v4969, %v4970
        %v5044 = vsel %vm580, %v4968, %v4969
        %v5045 = vsel %vm580, %v4967, %v4968
        %v5046 = vsel %vm580, %v4966, %v4967
        %v5047 = vsel %vm580, %v4965, %v4966
        %v5048 = vsel %vm580, %v4964, %v4965
        %v5049 = vsel %vm580, %v4963, %v4964
        %v5050 = vsel %vm580, %v4962, %v4963
        %v5051 = vsel %vm580, %v4961, %v4962
        %v5052 = vsel %vm580, %v4960, %v4961
        %v5053 = vsel %vm580, %v4959, %v4960
        %v5054 = vsel %vm580, %v4958, %v4959
        %v5055 = vsel %vm580, %v4957, %v4958
        %v5056 = vsel %vm580, %v4956, %v4957
        %v5057 = vsel %vm580, %v4955, %v4956
        %v5058 = vsel %vm580, %v4954, %v4955
        %v5059 = vsel %vm580, %v4953, %v4954
        %v5060 = vsel %vm580, %v4952, %v4953
        %v5061 = vsel %vm580, %v4951, %v4952
        %v5062 = vsel %vm580, %v4950, %v4951
        %v5063 = vsel %vm580, %v4949, %v4950
        %v5064 = vsel %vm580, %v4948, %v4949
        %v5065 = vsel %vm580, %v4947, %v4948
        %v5066 = vsel %vm580, %v4946, %v4947
        %v5067 = vsel %vm580, %v4945, %v4946
        %v5068 = vsel %vm580, %v4944, %v4945
        %v5069 = vsel %vm580, %v4943, %v4944
        %v5070 = vsel %vm580, %v5006, %v4943
        %s5071 = scalar_lea.vmem [#allocation3], %s646
        %v5072 = vld [vmem:[%s5071] sm:$0xff]
        %v5073 = vld [vmem:[%s5071 + $0x8] sm:$0xff]
        %v5074 = vld [vmem:[%s5071 + $0x10] sm:$0xff]
        %v5075 = vld [vmem:[%s5071 + $0x18] sm:$0xff]
        %v5076 = vld [vmem:[%s5071 + $0x20] sm:$0xff]
        %v5077 = vld [vmem:[%s5071 + $0x28] sm:$0xff]
        %v5078 = vld [vmem:[%s5071 + $0x30] sm:$0xff]
        %v5079 = vld [vmem:[%s5071 + $0x38] sm:$0xff]
        %v5080 = vld [vmem:[%s5071 + $0x40] sm:$0xff]
        %v5081 = vld [vmem:[%s5071 + $0x48] sm:$0xff]
        %v5082 = vld [vmem:[%s5071 + $0x50] sm:$0xff]
        %v5083 = vld [vmem:[%s5071 + $0x58] sm:$0xff]
        %v5084 = vld [vmem:[%s5071 + $0x60] sm:$0xff]
        %v5085 = vld [vmem:[%s5071 + $0x68] sm:$0xff]
        %v5086 = vld [vmem:[%s5071 + $0x70] sm:$0xff]
        %v5087 = vld [vmem:[%s5071 + $0x78] sm:$0xff]
        %v5088 = vld [vmem:[%s5071 + $0x80] sm:$0xff]
        %v5089 = vld [vmem:[%s5071 + $0x88] sm:$0xff]
        %v5090 = vld [vmem:[%s5071 + $0x90] sm:$0xff]
        %v5091 = vld [vmem:[%s5071 + $0x98] sm:$0xff]
        %v5092 = vld [vmem:[%s5071 + $0xa0] sm:$0xff]
        %v5093 = vld [vmem:[%s5071 + $0xa8] sm:$0xff]
        %v5094 = vld [vmem:[%s5071 + $0xb0] sm:$0xff]
        %v5095 = vld [vmem:[%s5071 + $0xb8] sm:$0xff]
        %v5096 = vld [vmem:[%s5071 + $0xc0] sm:$0xff]
        %v5097 = vld [vmem:[%s5071 + $0xc8] sm:$0xff]
        %v5098 = vld [vmem:[%s5071 + $0xd0] sm:$0xff]
        %v5099 = vld [vmem:[%s5071 + $0xd8] sm:$0xff]
        %v5100 = vld [vmem:[%s5071 + $0xe0] sm:$0xff]
        %v5101 = vld [vmem:[%s5071 + $0xe8] sm:$0xff]
        %v5102 = vld [vmem:[%s5071 + $0xf0] sm:$0xff]
        %v5103 = vld [vmem:[%s5071 + $0xf8] sm:$0xff]
        %v5104 = vld [vmem:[%s5071 + $0x100] sm:$0xff]
        %v5105 = vld [vmem:[%s5071 + $0x108] sm:$0xff]
        %v5106 = vld [vmem:[%s5071 + $0x110] sm:$0xff]
        %v5107 = vld [vmem:[%s5071 + $0x118] sm:$0xff]
        %v5108 = vld [vmem:[%s5071 + $0x120] sm:$0xff]
        %v5109 = vld [vmem:[%s5071 + $0x128] sm:$0xff]
        %v5110 = vld [vmem:[%s5071 + $0x130] sm:$0xff]
        %v5111 = vld [vmem:[%s5071 + $0x138] sm:$0xff]
        %v5112 = vld [vmem:[%s5071 + $0x140] sm:$0xff]
        %v5113 = vld [vmem:[%s5071 + $0x148] sm:$0xff]
        %v5114 = vld [vmem:[%s5071 + $0x150] sm:$0xff]
        %v5115 = vld [vmem:[%s5071 + $0x158] sm:$0xff]
        %v5116 = vld [vmem:[%s5071 + $0x160] sm:$0xff]
        %v5117 = vld [vmem:[%s5071 + $0x168] sm:$0xff]
        %v5118 = vld [vmem:[%s5071 + $0x170] sm:$0xff]
        %v5119 = vld [vmem:[%s5071 + $0x178] sm:$0xff]
        %v5120 = vld [vmem:[%s5071 + $0x180] sm:$0xff]
        %v5121 = vld [vmem:[%s5071 + $0x188] sm:$0xff]
        %v5122 = vld [vmem:[%s5071 + $0x190] sm:$0xff]
        %v5123 = vld [vmem:[%s5071 + $0x198] sm:$0xff]
        %v5124 = vld [vmem:[%s5071 + $0x1a0] sm:$0xff]
        %v5125 = vld [vmem:[%s5071 + $0x1a8] sm:$0xff]
        %v5126 = vld [vmem:[%s5071 + $0x1b0] sm:$0xff]
        %v5127 = vld [vmem:[%s5071 + $0x1b8] sm:$0xff]
        %v5128 = vld [vmem:[%s5071 + $0x1c0] sm:$0xff]
        %v5129 = vld [vmem:[%s5071 + $0x1c8] sm:$0xff]
        %v5130 = vld [vmem:[%s5071 + $0x1d0] sm:$0xff]
        %v5131 = vld [vmem:[%s5071 + $0x1d8] sm:$0xff]
        %v5132 = vld [vmem:[%s5071 + $0x1e0] sm:$0xff]
        %v5133 = vld [vmem:[%s5071 + $0x1e8] sm:$0xff]
        %v5134 = vld [vmem:[%s5071 + $0x1f0] sm:$0xff]
        %v5135 = vld [vmem:[%s5071 + $0x1f8] sm:$0xff]
        %v5136 = vrot.slane %v5072, 7
        %v5137 = vrot.slane %v5073, 7
        %v5138 = vrot.slane %v5074, 7
        %v5139 = vrot.slane %v5075, 7
        %v5140 = vrot.slane %v5076, 7
        %v5141 = vrot.slane %v5077, 7
        %v5142 = vrot.slane %v5078, 7
        %v5143 = vrot.slane %v5079, 7
        %v5144 = vrot.slane %v5080, 7
        %v5145 = vrot.slane %v5081, 7
        %v5146 = vrot.slane %v5082, 7
        %v5147 = vrot.slane %v5083, 7
        %v5148 = vrot.slane %v5084, 7
        %v5149 = vrot.slane %v5085, 7
        %v5150 = vrot.slane %v5086, 7
        %v5151 = vrot.slane %v5087, 7
        %v5152 = vrot.slane %v5088, 7
        %v5153 = vrot.slane %v5089, 7
        %v5154 = vrot.slane %v5090, 7
        %v5155 = vrot.slane %v5091, 7
        %v5156 = vrot.slane %v5092, 7
        %v5157 = vrot.slane %v5093, 7
        %v5158 = vrot.slane %v5094, 7
        %v5159 = vrot.slane %v5095, 7
        %v5160 = vrot.slane %v5096, 7
        %v5161 = vrot.slane %v5097, 7
        %v5162 = vrot.slane %v5098, 7
        %v5163 = vrot.slane %v5099, 7
        %v5164 = vrot.slane %v5100, 7
        %v5165 = vrot.slane %v5101, 7
        %v5166 = vrot.slane %v5102, 7
        %v5167 = vrot.slane %v5103, 7
        %v5168 = vrot.slane %v5104, 7
        %v5169 = vrot.slane %v5105, 7
        %v5170 = vrot.slane %v5106, 7
        %v5171 = vrot.slane %v5107, 7
        %v5172 = vrot.slane %v5108, 7
        %v5173 = vrot.slane %v5109, 7
        %v5174 = vrot.slane %v5110, 7
        %v5175 = vrot.slane %v5111, 7
        %v5176 = vrot.slane %v5112, 7
        %v5177 = vrot.slane %v5113, 7
        %v5178 = vrot.slane %v5114, 7
        %v5179 = vrot.slane %v5115, 7
        %v5180 = vrot.slane %v5116, 7
        %v5181 = vrot.slane %v5117, 7
        %v5182 = vrot.slane %v5118, 7
        %v5183 = vrot.slane %v5119, 7
        %v5184 = vrot.slane %v5120, 7
        %v5185 = vrot.slane %v5121, 7
        %v5186 = vrot.slane %v5122, 7
        %v5187 = vrot.slane %v5123, 7
        %v5188 = vrot.slane %v5124, 7
        %v5189 = vrot.slane %v5125, 7
        %v5190 = vrot.slane %v5126, 7
        %v5191 = vrot.slane %v5127, 7
        %v5192 = vrot.slane %v5128, 7
        %v5193 = vrot.slane %v5129, 7
        %v5194 = vrot.slane %v5130, 7
        %v5195 = vrot.slane %v5131, 7
        %v5196 = vrot.slane %v5132, 7
        %v5197 = vrot.slane %v5133, 7
        %v5198 = vrot.slane %v5134, 7
        %v5199 = vrot.slane %v5135, 7
        %v5200 = vsel %vm451, %v5198, %v5199
        %v5201 = vsel %vm451, %v5197, %v5198
        %v5202 = vsel %vm451, %v5196, %v5197
        %v5203 = vsel %vm451, %v5195, %v5196
        %v5204 = vsel %vm451, %v5194, %v5195
        %v5205 = vsel %vm451, %v5193, %v5194
        %v5206 = vsel %vm451, %v5192, %v5193
        %v5207 = vsel %vm451, %v5191, %v5192
        %v5208 = vsel %vm451, %v5190, %v5191
        %v5209 = vsel %vm451, %v5189, %v5190
        %v5210 = vsel %vm451, %v5188, %v5189
        %v5211 = vsel %vm451, %v5187, %v5188
        %v5212 = vsel %vm451, %v5186, %v5187
        %v5213 = vsel %vm451, %v5185, %v5186
        %v5214 = vsel %vm451, %v5184, %v5185
        %v5215 = vsel %vm451, %v5183, %v5184
        %v5216 = vsel %vm451, %v5182, %v5183
        %v5217 = vsel %vm451, %v5181, %v5182
        %v5218 = vsel %vm451, %v5180, %v5181
        %v5219 = vsel %vm451, %v5179, %v5180
        %v5220 = vsel %vm451, %v5178, %v5179
        %v5221 = vsel %vm451, %v5177, %v5178
        %v5222 = vsel %vm451, %v5176, %v5177
        %v5223 = vsel %vm451, %v5175, %v5176
        %v5224 = vsel %vm451, %v5174, %v5175
        %v5225 = vsel %vm451, %v5173, %v5174
        %v5226 = vsel %vm451, %v5172, %v5173
        %v5227 = vsel %vm451, %v5171, %v5172
        %v5228 = vsel %vm451, %v5170, %v5171
        %v5229 = vsel %vm451, %v5169, %v5170
        %v5230 = vsel %vm451, %v5168, %v5169
        %v5231 = vsel %vm451, %v5167, %v5168
        %v5232 = vsel %vm451, %v5166, %v5167
        %v5233 = vsel %vm451, %v5165, %v5166
        %v5234 = vsel %vm451, %v5164, %v5165
        %v5235 = vsel %vm451, %v5163, %v5164
        %v5236 = vsel %vm451, %v5162, %v5163
        %v5237 = vsel %vm451, %v5161, %v5162
        %v5238 = vsel %vm451, %v5160, %v5161
        %v5239 = vsel %vm451, %v5159, %v5160
        %v5240 = vsel %vm451, %v5158, %v5159
        %v5241 = vsel %vm451, %v5157, %v5158
        %v5242 = vsel %vm451, %v5156, %v5157
        %v5243 = vsel %vm451, %v5155, %v5156
        %v5244 = vsel %vm451, %v5154, %v5155
        %v5245 = vsel %vm451, %v5153, %v5154
        %v5246 = vsel %vm451, %v5152, %v5153
        %v5247 = vsel %vm451, %v5151, %v5152
        %v5248 = vsel %vm451, %v5150, %v5151
        %v5249 = vsel %vm451, %v5149, %v5150
        %v5250 = vsel %vm451, %v5148, %v5149
        %v5251 = vsel %vm451, %v5147, %v5148
        %v5252 = vsel %vm451, %v5146, %v5147
        %v5253 = vsel %vm451, %v5145, %v5146
        %v5254 = vsel %vm451, %v5144, %v5145
        %v5255 = vsel %vm451, %v5143, %v5144
        %v5256 = vsel %vm451, %v5142, %v5143
        %v5257 = vsel %vm451, %v5141, %v5142
        %v5258 = vsel %vm451, %v5140, %v5141
        %v5259 = vsel %vm451, %v5139, %v5140
        %v5260 = vsel %vm451, %v5138, %v5139
        %v5261 = vsel %vm451, %v5137, %v5138
        %v5262 = vsel %vm451, %v5136, %v5137
        %v5263 = vsel %vm451, %v5199, %v5136
        %v5264 = vrot.slane %v5072, 1
        %v5265 = vrot.slane %v5073, 1
        %v5266 = vrot.slane %v5074, 1
        %v5267 = vrot.slane %v5075, 1
        %v5268 = vrot.slane %v5076, 1
        %v5269 = vrot.slane %v5077, 1
        %v5270 = vrot.slane %v5078, 1
        %v5271 = vrot.slane %v5079, 1
        %v5272 = vrot.slane %v5080, 1
        %v5273 = vrot.slane %v5081, 1
        %v5274 = vrot.slane %v5082, 1
        %v5275 = vrot.slane %v5083, 1
        %v5276 = vrot.slane %v5084, 1
        %v5277 = vrot.slane %v5085, 1
        %v5278 = vrot.slane %v5086, 1
        %v5279 = vrot.slane %v5087, 1
        %v5280 = vrot.slane %v5088, 1
        %v5281 = vrot.slane %v5089, 1
        %v5282 = vrot.slane %v5090, 1
        %v5283 = vrot.slane %v5091, 1
        %v5284 = vrot.slane %v5092, 1
        %v5285 = vrot.slane %v5093, 1
        %v5286 = vrot.slane %v5094, 1
        %v5287 = vrot.slane %v5095, 1
        %v5288 = vrot.slane %v5096, 1
        %v5289 = vrot.slane %v5097, 1
        %v5290 = vrot.slane %v5098, 1
        %v5291 = vrot.slane %v5099, 1
        %v5292 = vrot.slane %v5100, 1
        %v5293 = vrot.slane %v5101, 1
        %v5294 = vrot.slane %v5102, 1
        %v5295 = vrot.slane %v5103, 1
        %v5296 = vrot.slane %v5104, 1
        %v5297 = vrot.slane %v5105, 1
        %v5298 = vrot.slane %v5106, 1
        %v5299 = vrot.slane %v5107, 1
        %v5300 = vrot.slane %v5108, 1
        %v5301 = vrot.slane %v5109, 1
        %v5302 = vrot.slane %v5110, 1
        %v5303 = vrot.slane %v5111, 1
        %v5304 = vrot.slane %v5112, 1
        %v5305 = vrot.slane %v5113, 1
        %v5306 = vrot.slane %v5114, 1
        %v5307 = vrot.slane %v5115, 1
        %v5308 = vrot.slane %v5116, 1
        %v5309 = vrot.slane %v5117, 1
        %v5310 = vrot.slane %v5118, 1
        %v5311 = vrot.slane %v5119, 1
        %v5312 = vrot.slane %v5120, 1
        %v5313 = vrot.slane %v5121, 1
        %v5314 = vrot.slane %v5122, 1
        %v5315 = vrot.slane %v5123, 1
        %v5316 = vrot.slane %v5124, 1
        %v5317 = vrot.slane %v5125, 1
        %v5318 = vrot.slane %v5126, 1
        %v5319 = vrot.slane %v5127, 1
        %v5320 = vrot.slane %v5128, 1
        %v5321 = vrot.slane %v5129, 1
        %v5322 = vrot.slane %v5130, 1
        %v5323 = vrot.slane %v5131, 1
        %v5324 = vrot.slane %v5132, 1
        %v5325 = vrot.slane %v5133, 1
        %v5326 = vrot.slane %v5134, 1
        %v5327 = vrot.slane %v5135, 1
        %v5328 = vsel %vm580, %v5326, %v5327
        %v5329 = vsel %vm580, %v5325, %v5326
        %v5330 = vsel %vm580, %v5324, %v5325
        %v5331 = vsel %vm580, %v5323, %v5324
        %v5332 = vsel %vm580, %v5322, %v5323
        %v5333 = vsel %vm580, %v5321, %v5322
        %v5334 = vsel %vm580, %v5320, %v5321
        %v5335 = vsel %vm580, %v5319, %v5320
        %v5336 = vsel %vm580, %v5318, %v5319
        %v5337 = vsel %vm580, %v5317, %v5318
        %v5338 = vsel %vm580, %v5316, %v5317
        %v5339 = vsel %vm580, %v5315, %v5316
        %v5340 = vsel %vm580, %v5314, %v5315
        %v5341 = vsel %vm580, %v5313, %v5314
        %v5342 = vsel %vm580, %v5312, %v5313
        %v5343 = vsel %vm580, %v5311, %v5312
        %v5344 = vsel %vm580, %v5310, %v5311
        %v5345 = vsel %vm580, %v5309, %v5310
        %v5346 = vsel %vm580, %v5308, %v5309
        %v5347 = vsel %vm580, %v5307, %v5308
        %v5348 = vsel %vm580, %v5306, %v5307
        %v5349 = vsel %vm580, %v5305, %v5306
        %v5350 = vsel %vm580, %v5304, %v5305
        %v5351 = vsel %vm580, %v5303, %v5304
        %v5352 = vsel %vm580, %v5302, %v5303
        %v5353 = vsel %vm580, %v5301, %v5302
        %v5354 = vsel %vm580, %v5300, %v5301
        %v5355 = vsel %vm580, %v5299, %v5300
        %v5356 = vsel %vm580, %v5298, %v5299
        %v5357 = vsel %vm580, %v5297, %v5298
        %v5358 = vsel %vm580, %v5296, %v5297
        %v5359 = vsel %vm580, %v5295, %v5296
        %v5360 = vsel %vm580, %v5294, %v5295
        %v5361 = vsel %vm580, %v5293, %v5294
        %v5362 = vsel %vm580, %v5292, %v5293
        %v5363 = vsel %vm580, %v5291, %v5292
        %v5364 = vsel %vm580, %v5290, %v5291
        %v5365 = vsel %vm580, %v5289, %v5290
        %v5366 = vsel %vm580, %v5288, %v5289
        %v5367 = vsel %vm580, %v5287, %v5288
        %v5368 = vsel %vm580, %v5286, %v5287
        %v5369 = vsel %vm580, %v5285, %v5286
        %v5370 = vsel %vm580, %v5284, %v5285
        %v5371 = vsel %vm580, %v5283, %v5284
        %v5372 = vsel %vm580, %v5282, %v5283
        %v5373 = vsel %vm580, %v5281, %v5282
        %v5374 = vsel %vm580, %v5280, %v5281
        %v5375 = vsel %vm580, %v5279, %v5280
        %v5376 = vsel %vm580, %v5278, %v5279
        %v5377 = vsel %vm580, %v5277, %v5278
        %v5378 = vsel %vm580, %v5276, %v5277
        %v5379 = vsel %vm580, %v5275, %v5276
        %v5380 = vsel %vm580, %v5274, %v5275
        %v5381 = vsel %vm580, %v5273, %v5274
        %v5382 = vsel %vm580, %v5272, %v5273
        %v5383 = vsel %vm580, %v5271, %v5272
        %v5384 = vsel %vm580, %v5270, %v5271
        %v5385 = vsel %vm580, %v5269, %v5270
        %v5386 = vsel %vm580, %v5268, %v5269
        %v5387 = vsel %vm580, %v5267, %v5268
        %v5388 = vsel %vm580, %v5266, %v5267
        %v5389 = vsel %vm580, %v5265, %v5266
        %v5390 = vsel %vm580, %v5264, %v5265
        %v5391 = vsel %vm580, %v5327, %v5264
        %s5392 = scalar_lea.vmem [#allocation3], %s969
        %v5393 = vld [vmem:[%s5392] sm:$0xff]
        %v5394 = vld [vmem:[%s5392 + $0x8] sm:$0xff]
        %v5395 = vld [vmem:[%s5392 + $0x10] sm:$0xff]
        %v5396 = vld [vmem:[%s5392 + $0x18] sm:$0xff]
        %v5397 = vld [vmem:[%s5392 + $0x20] sm:$0xff]
        %v5398 = vld [vmem:[%s5392 + $0x28] sm:$0xff]
        %v5399 = vld [vmem:[%s5392 + $0x30] sm:$0xff]
        %v5400 = vld [vmem:[%s5392 + $0x38] sm:$0xff]
        %v5401 = vld [vmem:[%s5392 + $0x40] sm:$0xff]
        %v5402 = vld [vmem:[%s5392 + $0x48] sm:$0xff]
        %v5403 = vld [vmem:[%s5392 + $0x50] sm:$0xff]
        %v5404 = vld [vmem:[%s5392 + $0x58] sm:$0xff]
        %v5405 = vld [vmem:[%s5392 + $0x60] sm:$0xff]
        %v5406 = vld [vmem:[%s5392 + $0x68] sm:$0xff]
        %v5407 = vld [vmem:[%s5392 + $0x70] sm:$0xff]
        %v5408 = vld [vmem:[%s5392 + $0x78] sm:$0xff]
        %v5409 = vld [vmem:[%s5392 + $0x80] sm:$0xff]
        %v5410 = vld [vmem:[%s5392 + $0x88] sm:$0xff]
        %v5411 = vld [vmem:[%s5392 + $0x90] sm:$0xff]
        %v5412 = vld [vmem:[%s5392 + $0x98] sm:$0xff]
        %v5413 = vld [vmem:[%s5392 + $0xa0] sm:$0xff]
        %v5414 = vld [vmem:[%s5392 + $0xa8] sm:$0xff]
        %v5415 = vld [vmem:[%s5392 + $0xb0] sm:$0xff]
        %v5416 = vld [vmem:[%s5392 + $0xb8] sm:$0xff]
        %v5417 = vld [vmem:[%s5392 + $0xc0] sm:$0xff]
        %v5418 = vld [vmem:[%s5392 + $0xc8] sm:$0xff]
        %v5419 = vld [vmem:[%s5392 + $0xd0] sm:$0xff]
        %v5420 = vld [vmem:[%s5392 + $0xd8] sm:$0xff]
        %v5421 = vld [vmem:[%s5392 + $0xe0] sm:$0xff]
        %v5422 = vld [vmem:[%s5392 + $0xe8] sm:$0xff]
        %v5423 = vld [vmem:[%s5392 + $0xf0] sm:$0xff]
        %v5424 = vld [vmem:[%s5392 + $0xf8] sm:$0xff]
        %v5425 = vld [vmem:[%s5392 + $0x100] sm:$0xff]
        %v5426 = vld [vmem:[%s5392 + $0x108] sm:$0xff]
        %v5427 = vld [vmem:[%s5392 + $0x110] sm:$0xff]
        %v5428 = vld [vmem:[%s5392 + $0x118] sm:$0xff]
        %v5429 = vld [vmem:[%s5392 + $0x120] sm:$0xff]
        %v5430 = vld [vmem:[%s5392 + $0x128] sm:$0xff]
        %v5431 = vld [vmem:[%s5392 + $0x130] sm:$0xff]
        %v5432 = vld [vmem:[%s5392 + $0x138] sm:$0xff]
        %v5433 = vld [vmem:[%s5392 + $0x140] sm:$0xff]
        %v5434 = vld [vmem:[%s5392 + $0x148] sm:$0xff]
        %v5435 = vld [vmem:[%s5392 + $0x150] sm:$0xff]
        %v5436 = vld [vmem:[%s5392 + $0x158] sm:$0xff]
        %v5437 = vld [vmem:[%s5392 + $0x160] sm:$0xff]
        %v5438 = vld [vmem:[%s5392 + $0x168] sm:$0xff]
        %v5439 = vld [vmem:[%s5392 + $0x170] sm:$0xff]
        %v5440 = vld [vmem:[%s5392 + $0x178] sm:$0xff]
        %v5441 = vld [vmem:[%s5392 + $0x180] sm:$0xff]
        %v5442 = vld [vmem:[%s5392 + $0x188] sm:$0xff]
        %v5443 = vld [vmem:[%s5392 + $0x190] sm:$0xff]
        %v5444 = vld [vmem:[%s5392 + $0x198] sm:$0xff]
        %v5445 = vld [vmem:[%s5392 + $0x1a0] sm:$0xff]
        %v5446 = vld [vmem:[%s5392 + $0x1a8] sm:$0xff]
        %v5447 = vld [vmem:[%s5392 + $0x1b0] sm:$0xff]
        %v5448 = vld [vmem:[%s5392 + $0x1b8] sm:$0xff]
        %v5449 = vld [vmem:[%s5392 + $0x1c0] sm:$0xff]
        %v5450 = vld [vmem:[%s5392 + $0x1c8] sm:$0xff]
        %v5451 = vld [vmem:[%s5392 + $0x1d0] sm:$0xff]
        %v5452 = vld [vmem:[%s5392 + $0x1d8] sm:$0xff]
        %v5453 = vld [vmem:[%s5392 + $0x1e0] sm:$0xff]
        %v5454 = vld [vmem:[%s5392 + $0x1e8] sm:$0xff]
        %v5455 = vld [vmem:[%s5392 + $0x1f0] sm:$0xff]
        %v5456 = vld [vmem:[%s5392 + $0x1f8] sm:$0xff]
        %v5457 = vrot.slane %v5393, 7
        %v5458 = vrot.slane %v5394, 7
        %v5459 = vrot.slane %v5395, 7
        %v5460 = vrot.slane %v5396, 7
        %v5461 = vrot.slane %v5397, 7
        %v5462 = vrot.slane %v5398, 7
        %v5463 = vrot.slane %v5399, 7
        %v5464 = vrot.slane %v5400, 7
        %v5465 = vrot.slane %v5401, 7
        %v5466 = vrot.slane %v5402, 7
        %v5467 = vrot.slane %v5403, 7
        %v5468 = vrot.slane %v5404, 7
        %v5469 = vrot.slane %v5405, 7
        %v5470 = vrot.slane %v5406, 7
        %v5471 = vrot.slane %v5407, 7
        %v5472 = vrot.slane %v5408, 7
        %v5473 = vrot.slane %v5409, 7
        %v5474 = vrot.slane %v5410, 7
        %v5475 = vrot.slane %v5411, 7
        %v5476 = vrot.slane %v5412, 7
        %v5477 = vrot.slane %v5413, 7
        %v5478 = vrot.slane %v5414, 7
        %v5479 = vrot.slane %v5415, 7
        %v5480 = vrot.slane %v5416, 7
        %v5481 = vrot.slane %v5417, 7
        %v5482 = vrot.slane %v5418, 7
        %v5483 = vrot.slane %v5419, 7
        %v5484 = vrot.slane %v5420, 7
        %v5485 = vrot.slane %v5421, 7
        %v5486 = vrot.slane %v5422, 7
        %v5487 = vrot.slane %v5423, 7
        %v5488 = vrot.slane %v5424, 7
        %v5489 = vrot.slane %v5425, 7
        %v5490 = vrot.slane %v5426, 7
        %v5491 = vrot.slane %v5427, 7
        %v5492 = vrot.slane %v5428, 7
        %v5493 = vrot.slane %v5429, 7
        %v5494 = vrot.slane %v5430, 7
        %v5495 = vrot.slane %v5431, 7
        %v5496 = vrot.slane %v5432, 7
        %v5497 = vrot.slane %v5433, 7
        %v5498 = vrot.slane %v5434, 7
        %v5499 = vrot.slane %v5435, 7
        %v5500 = vrot.slane %v5436, 7
        %v5501 = vrot.slane %v5437, 7
        %v5502 = vrot.slane %v5438, 7
        %v5503 = vrot.slane %v5439, 7
        %v5504 = vrot.slane %v5440, 7
        %v5505 = vrot.slane %v5441, 7
        %v5506 = vrot.slane %v5442, 7
        %v5507 = vrot.slane %v5443, 7
        %v5508 = vrot.slane %v5444, 7
        %v5509 = vrot.slane %v5445, 7
        %v5510 = vrot.slane %v5446, 7
        %v5511 = vrot.slane %v5447, 7
        %v5512 = vrot.slane %v5448, 7
        %v5513 = vrot.slane %v5449, 7
        %v5514 = vrot.slane %v5450, 7
        %v5515 = vrot.slane %v5451, 7
        %v5516 = vrot.slane %v5452, 7
        %v5517 = vrot.slane %v5453, 7
        %v5518 = vrot.slane %v5454, 7
        %v5519 = vrot.slane %v5455, 7
        %v5520 = vrot.slane %v5456, 7
        %v5521 = vsel %vm451, %v5519, %v5520
        %v5522 = vsel %vm451, %v5518, %v5519
        %v5523 = vsel %vm451, %v5517, %v5518
        %v5524 = vsel %vm451, %v5516, %v5517
        %v5525 = vsel %vm451, %v5515, %v5516
        %v5526 = vsel %vm451, %v5514, %v5515
        %v5527 = vsel %vm451, %v5513, %v5514
        %v5528 = vsel %vm451, %v5512, %v5513
        %v5529 = vsel %vm451, %v5511, %v5512
        %v5530 = vsel %vm451, %v5510, %v5511
        %v5531 = vsel %vm451, %v5509, %v5510
        %v5532 = vsel %vm451, %v5508, %v5509
        %v5533 = vsel %vm451, %v5507, %v5508
        %v5534 = vsel %vm451, %v5506, %v5507
        %v5535 = vsel %vm451, %v5505, %v5506
        %v5536 = vsel %vm451, %v5504, %v5505
        %v5537 = vsel %vm451, %v5503, %v5504
        %v5538 = vsel %vm451, %v5502, %v5503
        %v5539 = vsel %vm451, %v5501, %v5502
        %v5540 = vsel %vm451, %v5500, %v5501
        %v5541 = vsel %vm451, %v5499, %v5500
        %v5542 = vsel %vm451, %v5498, %v5499
        %v5543 = vsel %vm451, %v5497, %v5498
        %v5544 = vsel %vm451, %v5496, %v5497
        %v5545 = vsel %vm451, %v5495, %v5496
        %v5546 = vsel %vm451, %v5494, %v5495
        %v5547 = vsel %vm451, %v5493, %v5494
        %v5548 = vsel %vm451, %v5492, %v5493
        %v5549 = vsel %vm451, %v5491, %v5492
        %v5550 = vsel %vm451, %v5490, %v5491
        %v5551 = vsel %vm451, %v5489, %v5490
        %v5552 = vsel %vm451, %v5488, %v5489
        %v5553 = vsel %vm451, %v5487, %v5488
        %v5554 = vsel %vm451, %v5486, %v5487
        %v5555 = vsel %vm451, %v5485, %v5486
        %v5556 = vsel %vm451, %v5484, %v5485
        %v5557 = vsel %vm451, %v5483, %v5484
        %v5558 = vsel %vm451, %v5482, %v5483
        %v5559 = vsel %vm451, %v5481, %v5482
        %v5560 = vsel %vm451, %v5480, %v5481
        %v5561 = vsel %vm451, %v5479, %v5480
        %v5562 = vsel %vm451, %v5478, %v5479
        %v5563 = vsel %vm451, %v5477, %v5478
        %v5564 = vsel %vm451, %v5476, %v5477
        %v5565 = vsel %vm451, %v5475, %v5476
        %v5566 = vsel %vm451, %v5474, %v5475
        %v5567 = vsel %vm451, %v5473, %v5474
        %v5568 = vsel %vm451, %v5472, %v5473
        %v5569 = vsel %vm451, %v5471, %v5472
        %v5570 = vsel %vm451, %v5470, %v5471
        %v5571 = vsel %vm451, %v5469, %v5470
        %v5572 = vsel %vm451, %v5468, %v5469
        %v5573 = vsel %vm451, %v5467, %v5468
        %v5574 = vsel %vm451, %v5466, %v5467
        %v5575 = vsel %vm451, %v5465, %v5466
        %v5576 = vsel %vm451, %v5464, %v5465
        %v5577 = vsel %vm451, %v5463, %v5464
        %v5578 = vsel %vm451, %v5462, %v5463
        %v5579 = vsel %vm451, %v5461, %v5462
        %v5580 = vsel %vm451, %v5460, %v5461
        %v5581 = vsel %vm451, %v5459, %v5460
        %v5582 = vsel %vm451, %v5458, %v5459
        %v5583 = vsel %vm451, %v5457, %v5458
        %v5584 = vsel %vm451, %v5520, %v5457
        %v5585 = vrot.slane %v5393, 1
        %v5586 = vrot.slane %v5394, 1
        %v5587 = vrot.slane %v5395, 1
        %v5588 = vrot.slane %v5396, 1
        %v5589 = vrot.slane %v5397, 1
        %v5590 = vrot.slane %v5398, 1
        %v5591 = vrot.slane %v5399, 1
        %v5592 = vrot.slane %v5400, 1
        %v5593 = vrot.slane %v5401, 1
        %v5594 = vrot.slane %v5402, 1
        %v5595 = vrot.slane %v5403, 1
        %v5596 = vrot.slane %v5404, 1
        %v5597 = vrot.slane %v5405, 1
        %v5598 = vrot.slane %v5406, 1
        %v5599 = vrot.slane %v5407, 1
        %v5600 = vrot.slane %v5408, 1
        %v5601 = vrot.slane %v5409, 1
        %v5602 = vrot.slane %v5410, 1
        %v5603 = vrot.slane %v5411, 1
        %v5604 = vrot.slane %v5412, 1
        %v5605 = vrot.slane %v5413, 1
        %v5606 = vrot.slane %v5414, 1
        %v5607 = vrot.slane %v5415, 1
        %v5608 = vrot.slane %v5416, 1
        %v5609 = vrot.slane %v5417, 1
        %v5610 = vrot.slane %v5418, 1
        %v5611 = vrot.slane %v5419, 1
        %v5612 = vrot.slane %v5420, 1
        %v5613 = vrot.slane %v5421, 1
        %v5614 = vrot.slane %v5422, 1
        %v5615 = vrot.slane %v5423, 1
        %v5616 = vrot.slane %v5424, 1
        %v5617 = vrot.slane %v5425, 1
        %v5618 = vrot.slane %v5426, 1
        %v5619 = vrot.slane %v5427, 1
        %v5620 = vrot.slane %v5428, 1
        %v5621 = vrot.slane %v5429, 1
        %v5622 = vrot.slane %v5430, 1
        %v5623 = vrot.slane %v5431, 1
        %v5624 = vrot.slane %v5432, 1
        %v5625 = vrot.slane %v5433, 1
        %v5626 = vrot.slane %v5434, 1
        %v5627 = vrot.slane %v5435, 1
        %v5628 = vrot.slane %v5436, 1
        %v5629 = vrot.slane %v5437, 1
        %v5630 = vrot.slane %v5438, 1
        %v5631 = vrot.slane %v5439, 1
        %v5632 = vrot.slane %v5440, 1
        %v5633 = vrot.slane %v5441, 1
        %v5634 = vrot.slane %v5442, 1
        %v5635 = vrot.slane %v5443, 1
        %v5636 = vrot.slane %v5444, 1
        %v5637 = vrot.slane %v5445, 1
        %v5638 = vrot.slane %v5446, 1
        %v5639 = vrot.slane %v5447, 1
        %v5640 = vrot.slane %v5448, 1
        %v5641 = vrot.slane %v5449, 1
        %v5642 = vrot.slane %v5450, 1
        %v5643 = vrot.slane %v5451, 1
        %v5644 = vrot.slane %v5452, 1
        %v5645 = vrot.slane %v5453, 1
        %v5646 = vrot.slane %v5454, 1
        %v5647 = vrot.slane %v5455, 1
        %v5648 = vrot.slane %v5456, 1
        %v5649 = vsel %vm580, %v5647, %v5648
        %v5650 = vsel %vm580, %v5646, %v5647
        %v5651 = vsel %vm580, %v5645, %v5646
        %v5652 = vsel %vm580, %v5644, %v5645
        %v5653 = vsel %vm580, %v5643, %v5644
        %v5654 = vsel %vm580, %v5642, %v5643
        %v5655 = vsel %vm580, %v5641, %v5642
        %v5656 = vsel %vm580, %v5640, %v5641
        %v5657 = vsel %vm580, %v5639, %v5640
        %v5658 = vsel %vm580, %v5638, %v5639
        %v5659 = vsel %vm580, %v5637, %v5638
        %v5660 = vsel %vm580, %v5636, %v5637
        %v5661 = vsel %vm580, %v5635, %v5636
        %v5662 = vsel %vm580, %v5634, %v5635
        %v5663 = vsel %vm580, %v5633, %v5634
        %v5664 = vsel %vm580, %v5632, %v5633
        %v5665 = vsel %vm580, %v5631, %v5632
        %v5666 = vsel %vm580, %v5630, %v5631
        %v5667 = vsel %vm580, %v5629, %v5630
        %v5668 = vsel %vm580, %v5628, %v5629
        %v5669 = vsel %vm580, %v5627, %v5628
        %v5670 = vsel %vm580, %v5626, %v5627
        %v5671 = vsel %vm580, %v5625, %v5626
        %v5672 = vsel %vm580, %v5624, %v5625
        %v5673 = vsel %vm580, %v5623, %v5624
        %v5674 = vsel %vm580, %v5622, %v5623
        %v5675 = vsel %vm580, %v5621, %v5622
        %v5676 = vsel %vm580, %v5620, %v5621
        %v5677 = vsel %vm580, %v5619, %v5620
        %v5678 = vsel %vm580, %v5618, %v5619
        %v5679 = vsel %vm580, %v5617, %v5618
        %v5680 = vsel %vm580, %v5616, %v5617
        %v5681 = vsel %vm580, %v5615, %v5616
        %v5682 = vsel %vm580, %v5614, %v5615
        %v5683 = vsel %vm580, %v5613, %v5614
        %v5684 = vsel %vm580, %v5612, %v5613
        %v5685 = vsel %vm580, %v5611, %v5612
        %v5686 = vsel %vm580, %v5610, %v5611
        %v5687 = vsel %vm580, %v5609, %v5610
        %v5688 = vsel %vm580, %v5608, %v5609
        %v5689 = vsel %vm580, %v5607, %v5608
        %v5690 = vsel %vm580, %v5606, %v5607
        %v5691 = vsel %vm580, %v5605, %v5606
        %v5692 = vsel %vm580, %v5604, %v5605
        %v5693 = vsel %vm580, %v5603, %v5604
        %v5694 = vsel %vm580, %v5602, %v5603
        %v5695 = vsel %vm580, %v5601, %v5602
        %v5696 = vsel %vm580, %v5600, %v5601
        %v5697 = vsel %vm580, %v5599, %v5600
        %v5698 = vsel %vm580, %v5598, %v5599
        %v5699 = vsel %vm580, %v5597, %v5598
        %v5700 = vsel %vm580, %v5596, %v5597
        %v5701 = vsel %vm580, %v5595, %v5596
        %v5702 = vsel %vm580, %v5594, %v5595
        %v5703 = vsel %vm580, %v5593, %v5594
        %v5704 = vsel %vm580, %v5592, %v5593
        %v5705 = vsel %vm580, %v5591, %v5592
        %v5706 = vsel %vm580, %v5590, %v5591
        %v5707 = vsel %vm580, %v5589, %v5590
        %v5708 = vsel %vm580, %v5588, %v5589
        %v5709 = vsel %vm580, %v5587, %v5588
        %v5710 = vsel %vm580, %v5586, %v5587
        %v5711 = vsel %vm580, %v5585, %v5586
        %v5712 = vsel %vm580, %v5648, %v5585
        %5777 = vrot.lane.b32.xlu0 %v4751, 32
        %v5778 = vpop.permute.xlu0 %5777
        %5779 = vrot.lane.b32.xlu0 %v4752, 32
        %v5780 = vpop.permute.xlu0 %5779
        %5781 = vrot.lane.b32.xlu0 %v4753, 32
        %v5782 = vpop.permute.xlu0 %5781
        %5783 = vrot.lane.b32.xlu0 %v4754, 32
        %v5784 = vpop.permute.xlu0 %5783
        %5785 = vrot.lane.b32.xlu0 %v4755, 32
        %v5786 = vpop.permute.xlu0 %5785
        %5787 = vrot.lane.b32.xlu0 %v4756, 32
        %v5788 = vpop.permute.xlu0 %5787
        %5789 = vrot.lane.b32.xlu0 %v4757, 32
        %v5790 = vpop.permute.xlu0 %5789
        %5791 = vrot.lane.b32.xlu0 %v4758, 32
        %v5792 = vpop.permute.xlu0 %5791
        %5793 = vrot.lane.b32.xlu0 %v4759, 32
        %v5794 = vpop.permute.xlu0 %5793
        %5795 = vrot.lane.b32.xlu0 %v4760, 32
        %v5796 = vpop.permute.xlu0 %5795
        %5797 = vrot.lane.b32.xlu0 %v4761, 32
        %v5798 = vpop.permute.xlu0 %5797
        %5799 = vrot.lane.b32.xlu0 %v4762, 32
        %v5800 = vpop.permute.xlu0 %5799
        %5801 = vrot.lane.b32.xlu0 %v4763, 32
        %v5802 = vpop.permute.xlu0 %5801
        %5803 = vrot.lane.b32.xlu0 %v4764, 32
        %v5804 = vpop.permute.xlu0 %5803
        %5805 = vrot.lane.b32.xlu0 %v4765, 32
        %v5806 = vpop.permute.xlu0 %5805
        %5807 = vrot.lane.b32.xlu0 %v4766, 32
        %v5808 = vpop.permute.xlu0 %5807
        %5809 = vrot.lane.b32.xlu0 %v4767, 32
        %v5810 = vpop.permute.xlu0 %5809
        %5811 = vrot.lane.b32.xlu0 %v4768, 32
        %v5812 = vpop.permute.xlu0 %5811
        %5813 = vrot.lane.b32.xlu0 %v4769, 32
        %v5814 = vpop.permute.xlu0 %5813
        %5815 = vrot.lane.b32.xlu0 %v4770, 32
        %v5816 = vpop.permute.xlu0 %5815
        %5817 = vrot.lane.b32.xlu0 %v4771, 32
        %v5818 = vpop.permute.xlu0 %5817
        %5819 = vrot.lane.b32.xlu0 %v4772, 32
        %v5820 = vpop.permute.xlu0 %5819
        %5821 = vrot.lane.b32.xlu0 %v4773, 32
        %v5822 = vpop.permute.xlu0 %5821
        %5823 = vrot.lane.b32.xlu0 %v4774, 32
        %v5824 = vpop.permute.xlu0 %5823
        %5825 = vrot.lane.b32.xlu0 %v4775, 32
        %v5826 = vpop.permute.xlu0 %5825
        %5827 = vrot.lane.b32.xlu0 %v4776, 32
        %v5828 = vpop.permute.xlu0 %5827
        %5829 = vrot.lane.b32.xlu0 %v4777, 32
        %v5830 = vpop.permute.xlu0 %5829
        %5831 = vrot.lane.b32.xlu0 %v4778, 32
        %v5832 = vpop.permute.xlu0 %5831
        %5833 = vrot.lane.b32.xlu0 %v4779, 32
        %v5834 = vpop.permute.xlu0 %5833
        %5835 = vrot.lane.b32.xlu0 %v4780, 32
        %v5836 = vpop.permute.xlu0 %5835
        %5837 = vrot.lane.b32.xlu0 %v4781, 32
        %v5838 = vpop.permute.xlu0 %5837
        %5839 = vrot.lane.b32.xlu0 %v4782, 32
        %v5840 = vpop.permute.xlu0 %5839
        %5841 = vrot.lane.b32.xlu0 %v4783, 32
        %v5842 = vpop.permute.xlu0 %5841
        %5843 = vrot.lane.b32.xlu0 %v4784, 32
        %v5844 = vpop.permute.xlu0 %5843
        %5845 = vrot.lane.b32.xlu0 %v4785, 32
        %v5846 = vpop.permute.xlu0 %5845
        %5847 = vrot.lane.b32.xlu0 %v4786, 32
        %v5848 = vpop.permute.xlu0 %5847
        %5849 = vrot.lane.b32.xlu0 %v4787, 32
        %v5850 = vpop.permute.xlu0 %5849
        %5851 = vrot.lane.b32.xlu0 %v4788, 32
        %v5852 = vpop.permute.xlu0 %5851
        %5853 = vrot.lane.b32.xlu0 %v4789, 32
        %v5854 = vpop.permute.xlu0 %5853
        %5855 = vrot.lane.b32.xlu0 %v4790, 32
        %v5856 = vpop.permute.xlu0 %5855
        %5857 = vrot.lane.b32.xlu0 %v4791, 32
        %v5858 = vpop.permute.xlu0 %5857
        %5859 = vrot.lane.b32.xlu0 %v4792, 32
        %v5860 = vpop.permute.xlu0 %5859
        %5861 = vrot.lane.b32.xlu0 %v4793, 32
        %v5862 = vpop.permute.xlu0 %5861
        %5863 = vrot.lane.b32.xlu0 %v4794, 32
        %v5864 = vpop.permute.xlu0 %5863
        %5865 = vrot.lane.b32.xlu0 %v4795, 32
        %v5866 = vpop.permute.xlu0 %5865
        %5867 = vrot.lane.b32.xlu0 %v4796, 32
        %v5868 = vpop.permute.xlu0 %5867
        %5869 = vrot.lane.b32.xlu0 %v4797, 32
        %v5870 = vpop.permute.xlu0 %5869
        %5871 = vrot.lane.b32.xlu0 %v4798, 32
        %v5872 = vpop.permute.xlu0 %5871
        %5873 = vrot.lane.b32.xlu0 %v4799, 32
        %v5874 = vpop.permute.xlu0 %5873
        %5875 = vrot.lane.b32.xlu0 %v4800, 32
        %v5876 = vpop.permute.xlu0 %5875
        %5877 = vrot.lane.b32.xlu0 %v4801, 32
        %v5878 = vpop.permute.xlu0 %5877
        %5879 = vrot.lane.b32.xlu0 %v4802, 32
        %v5880 = vpop.permute.xlu0 %5879
        %5881 = vrot.lane.b32.xlu0 %v4803, 32
        %v5882 = vpop.permute.xlu0 %5881
        %5883 = vrot.lane.b32.xlu0 %v4804, 32
        %v5884 = vpop.permute.xlu0 %5883
        %5885 = vrot.lane.b32.xlu0 %v4805, 32
        %v5886 = vpop.permute.xlu0 %5885
        %5887 = vrot.lane.b32.xlu0 %v4806, 32
        %v5888 = vpop.permute.xlu0 %5887
        %5889 = vrot.lane.b32.xlu0 %v4807, 32
        %v5890 = vpop.permute.xlu0 %5889
        %5891 = vrot.lane.b32.xlu0 %v4808, 32
        %v5892 = vpop.permute.xlu0 %5891
        %5893 = vrot.lane.b32.xlu0 %v4809, 32
        %v5894 = vpop.permute.xlu0 %5893
        %5895 = vrot.lane.b32.xlu0 %v4810, 32
        %v5896 = vpop.permute.xlu0 %5895
        %5897 = vrot.lane.b32.xlu0 %v4811, 32
        %v5898 = vpop.permute.xlu0 %5897
        %5899 = vrot.lane.b32.xlu0 %v4812, 32
        %v5900 = vpop.permute.xlu0 %5899
        %5901 = vrot.lane.b32.xlu0 %v4813, 32
        %v5902 = vpop.permute.xlu0 %5901
        %5903 = vrot.lane.b32.xlu0 %v4814, 32
        %v5904 = vpop.permute.xlu0 %5903
        %6033 = vrot.lane.b32.xlu0 %v5069, 64
        %v6034 = vpop.permute.xlu0 %6033
        %6035 = vrot.lane.b32.xlu0 %v5068, 64
        %v6036 = vpop.permute.xlu0 %6035
        %6037 = vrot.lane.b32.xlu0 %v5067, 64
        %v6038 = vpop.permute.xlu0 %6037
        %6039 = vrot.lane.b32.xlu0 %v5066, 64
        %v6040 = vpop.permute.xlu0 %6039
        %6041 = vrot.lane.b32.xlu0 %v5065, 64
        %v6042 = vpop.permute.xlu0 %6041
        %6043 = vrot.lane.b32.xlu0 %v5064, 64
        %v6044 = vpop.permute.xlu0 %6043
        %6045 = vrot.lane.b32.xlu0 %v5063, 64
        %v6046 = vpop.permute.xlu0 %6045
        %6047 = vrot.lane.b32.xlu0 %v5062, 64
        %v6048 = vpop.permute.xlu0 %6047
        %6049 = vrot.lane.b32.xlu0 %v5061, 64
        %v6050 = vpop.permute.xlu0 %6049
        %6051 = vrot.lane.b32.xlu0 %v5060, 64
        %v6052 = vpop.permute.xlu0 %6051
        %6053 = vrot.lane.b32.xlu0 %v5059, 64
        %v6054 = vpop.permute.xlu0 %6053
        %6055 = vrot.lane.b32.xlu0 %v5058, 64
        %v6056 = vpop.permute.xlu0 %6055
        %6057 = vrot.lane.b32.xlu0 %v5057, 64
        %v6058 = vpop.permute.xlu0 %6057
        %6059 = vrot.lane.b32.xlu0 %v5056, 64
        %v6060 = vpop.permute.xlu0 %6059
        %6061 = vrot.lane.b32.xlu0 %v5055, 64
        %v6062 = vpop.permute.xlu0 %6061
        %6063 = vrot.lane.b32.xlu0 %v5054, 64
        %v6064 = vpop.permute.xlu0 %6063
        %6065 = vrot.lane.b32.xlu0 %v5053, 64
        %v6066 = vpop.permute.xlu0 %6065
        %6067 = vrot.lane.b32.xlu0 %v5052, 64
        %v6068 = vpop.permute.xlu0 %6067
        %6069 = vrot.lane.b32.xlu0 %v5051, 64
        %v6070 = vpop.permute.xlu0 %6069
        %6071 = vrot.lane.b32.xlu0 %v5050, 64
        %v6072 = vpop.permute.xlu0 %6071
        %6073 = vrot.lane.b32.xlu0 %v5049, 64
        %v6074 = vpop.permute.xlu0 %6073
        %6075 = vrot.lane.b32.xlu0 %v5048, 64
        %v6076 = vpop.permute.xlu0 %6075
        %6077 = vrot.lane.b32.xlu0 %v5047, 64
        %v6078 = vpop.permute.xlu0 %6077
        %6079 = vrot.lane.b32.xlu0 %v5046, 64
        %v6080 = vpop.permute.xlu0 %6079
        %6081 = vrot.lane.b32.xlu0 %v5045, 64
        %v6082 = vpop.permute.xlu0 %6081
        %6083 = vrot.lane.b32.xlu0 %v5044, 64
        %v6084 = vpop.permute.xlu0 %6083
        %6085 = vrot.lane.b32.xlu0 %v5043, 64
        %v6086 = vpop.permute.xlu0 %6085
        %6087 = vrot.lane.b32.xlu0 %v5042, 64
        %v6088 = vpop.permute.xlu0 %6087
        %6089 = vrot.lane.b32.xlu0 %v5041, 64
        %v6090 = vpop.permute.xlu0 %6089
        %6091 = vrot.lane.b32.xlu0 %v5040, 64
        %v6092 = vpop.permute.xlu0 %6091
        %6093 = vrot.lane.b32.xlu0 %v5039, 64
        %v6094 = vpop.permute.xlu0 %6093
        %6095 = vrot.lane.b32.xlu0 %v5038, 64
        %v6096 = vpop.permute.xlu0 %6095
        %6097 = vrot.lane.b32.xlu0 %v5037, 64
        %v6098 = vpop.permute.xlu0 %6097
        %6099 = vrot.lane.b32.xlu0 %v5036, 64
        %v6100 = vpop.permute.xlu0 %6099
        %6101 = vrot.lane.b32.xlu0 %v5035, 64
        %v6102 = vpop.permute.xlu0 %6101
        %6103 = vrot.lane.b32.xlu0 %v5034, 64
        %v6104 = vpop.permute.xlu0 %6103
        %6105 = vrot.lane.b32.xlu0 %v5033, 64
        %v6106 = vpop.permute.xlu0 %6105
        %6107 = vrot.lane.b32.xlu0 %v5032, 64
        %v6108 = vpop.permute.xlu0 %6107
        %6109 = vrot.lane.b32.xlu0 %v5031, 64
        %v6110 = vpop.permute.xlu0 %6109
        %6111 = vrot.lane.b32.xlu0 %v5030, 64
        %v6112 = vpop.permute.xlu0 %6111
        %6113 = vrot.lane.b32.xlu0 %v5029, 64
        %v6114 = vpop.permute.xlu0 %6113
        %6115 = vrot.lane.b32.xlu0 %v5028, 64
        %v6116 = vpop.permute.xlu0 %6115
        %6117 = vrot.lane.b32.xlu0 %v5027, 64
        %v6118 = vpop.permute.xlu0 %6117
        %6119 = vrot.lane.b32.xlu0 %v5026, 64
        %v6120 = vpop.permute.xlu0 %6119
        %6121 = vrot.lane.b32.xlu0 %v5025, 64
        %v6122 = vpop.permute.xlu0 %6121
        %6123 = vrot.lane.b32.xlu0 %v5024, 64
        %v6124 = vpop.permute.xlu0 %6123
        %6125 = vrot.lane.b32.xlu0 %v5023, 64
        %v6126 = vpop.permute.xlu0 %6125
        %6127 = vrot.lane.b32.xlu0 %v5022, 64
        %v6128 = vpop.permute.xlu0 %6127
        %6129 = vrot.lane.b32.xlu0 %v5021, 64
        %v6130 = vpop.permute.xlu0 %6129
        %6131 = vrot.lane.b32.xlu0 %v5020, 64
        %v6132 = vpop.permute.xlu0 %6131
        %6133 = vrot.lane.b32.xlu0 %v5019, 64
        %v6134 = vpop.permute.xlu0 %6133
        %6135 = vrot.lane.b32.xlu0 %v5018, 64
        %v6136 = vpop.permute.xlu0 %6135
        %6137 = vrot.lane.b32.xlu0 %v5017, 64
        %v6138 = vpop.permute.xlu0 %6137
        %6139 = vrot.lane.b32.xlu0 %v5016, 64
        %v6140 = vpop.permute.xlu0 %6139
        %6141 = vrot.lane.b32.xlu0 %v5015, 64
        %v6142 = vpop.permute.xlu0 %6141
        %6143 = vrot.lane.b32.xlu0 %v5014, 64
        %v6144 = vpop.permute.xlu0 %6143
        %6145 = vrot.lane.b32.xlu0 %v5013, 64
        %v6146 = vpop.permute.xlu0 %6145
        %6147 = vrot.lane.b32.xlu0 %v5012, 64
        %v6148 = vpop.permute.xlu0 %6147
        %6149 = vrot.lane.b32.xlu0 %v5011, 64
        %v6150 = vpop.permute.xlu0 %6149
        %6151 = vrot.lane.b32.xlu0 %v5010, 64
        %v6152 = vpop.permute.xlu0 %6151
        %6153 = vrot.lane.b32.xlu0 %v5009, 64
        %v6154 = vpop.permute.xlu0 %6153
        %6155 = vrot.lane.b32.xlu0 %v5008, 64
        %v6156 = vpop.permute.xlu0 %6155
        %6157 = vrot.lane.b32.xlu0 %v5007, 64
        %v6158 = vpop.permute.xlu0 %6157
        %6159 = vrot.lane.b32.xlu0 %v5070, 64
        %v6160 = vpop.permute.xlu0 %6159
        %6289 = vrot.lane.b32.xlu0 %v5263, 96
        %v6290 = vpop.permute.xlu0 %6289
        %6291 = vrot.lane.b32.xlu0 %v5262, 96
        %v6292 = vpop.permute.xlu0 %6291
        %6293 = vrot.lane.b32.xlu0 %v5261, 96
        %v6294 = vpop.permute.xlu0 %6293
        %6295 = vrot.lane.b32.xlu0 %v5260, 96
        %v6296 = vpop.permute.xlu0 %6295
        %6297 = vrot.lane.b32.xlu0 %v5259, 96
        %v6298 = vpop.permute.xlu0 %6297
        %6299 = vrot.lane.b32.xlu0 %v5258, 96
        %v6300 = vpop.permute.xlu0 %6299
        %6301 = vrot.lane.b32.xlu0 %v5257, 96
        %v6302 = vpop.permute.xlu0 %6301
        %6303 = vrot.lane.b32.xlu0 %v5256, 96
        %v6304 = vpop.permute.xlu0 %6303
        %6305 = vrot.lane.b32.xlu0 %v5255, 96
        %v6306 = vpop.permute.xlu0 %6305
        %6307 = vrot.lane.b32.xlu0 %v5254, 96
        %v6308 = vpop.permute.xlu0 %6307
        %6309 = vrot.lane.b32.xlu0 %v5253, 96
        %v6310 = vpop.permute.xlu0 %6309
        %6311 = vrot.lane.b32.xlu0 %v5252, 96
        %v6312 = vpop.permute.xlu0 %6311
        %6313 = vrot.lane.b32.xlu0 %v5251, 96
        %v6314 = vpop.permute.xlu0 %6313
        %6315 = vrot.lane.b32.xlu0 %v5250, 96
        %v6316 = vpop.permute.xlu0 %6315
        %6317 = vrot.lane.b32.xlu0 %v5249, 96
        %v6318 = vpop.permute.xlu0 %6317
        %6319 = vrot.lane.b32.xlu0 %v5248, 96
        %v6320 = vpop.permute.xlu0 %6319
        %6321 = vrot.lane.b32.xlu0 %v5247, 96
        %v6322 = vpop.permute.xlu0 %6321
        %6323 = vrot.lane.b32.xlu0 %v5246, 96
        %v6324 = vpop.permute.xlu0 %6323
        %6325 = vrot.lane.b32.xlu0 %v5245, 96
        %v6326 = vpop.permute.xlu0 %6325
        %6327 = vrot.lane.b32.xlu0 %v5244, 96
        %v6328 = vpop.permute.xlu0 %6327
        %6329 = vrot.lane.b32.xlu0 %v5243, 96
        %v6330 = vpop.permute.xlu0 %6329
        %6331 = vrot.lane.b32.xlu0 %v5242, 96
        %v6332 = vpop.permute.xlu0 %6331
        %6333 = vrot.lane.b32.xlu0 %v5241, 96
        %v6334 = vpop.permute.xlu0 %6333
        %6335 = vrot.lane.b32.xlu0 %v5240, 96
        %v6336 = vpop.permute.xlu0 %6335
        %6337 = vrot.lane.b32.xlu0 %v5239, 96
        %v6338 = vpop.permute.xlu0 %6337
        %6339 = vrot.lane.b32.xlu0 %v5238, 96
        %v6340 = vpop.permute.xlu0 %6339
        %6341 = vrot.lane.b32.xlu0 %v5237, 96
        %v6342 = vpop.permute.xlu0 %6341
        %6343 = vrot.lane.b32.xlu0 %v5236, 96
        %v6344 = vpop.permute.xlu0 %6343
        %6345 = vrot.lane.b32.xlu0 %v5235, 96
        %v6346 = vpop.permute.xlu0 %6345
        %6347 = vrot.lane.b32.xlu0 %v5234, 96
        %v6348 = vpop.permute.xlu0 %6347
        %6349 = vrot.lane.b32.xlu0 %v5233, 96
        %v6350 = vpop.permute.xlu0 %6349
        %6351 = vrot.lane.b32.xlu0 %v5232, 96
        %v6352 = vpop.permute.xlu0 %6351
        %6353 = vrot.lane.b32.xlu0 %v5231, 96
        %v6354 = vpop.permute.xlu0 %6353
        %6355 = vrot.lane.b32.xlu0 %v5230, 96
        %v6356 = vpop.permute.xlu0 %6355
        %6357 = vrot.lane.b32.xlu0 %v5229, 96
        %v6358 = vpop.permute.xlu0 %6357
        %6359 = vrot.lane.b32.xlu0 %v5228, 96
        %v6360 = vpop.permute.xlu0 %6359
        %6361 = vrot.lane.b32.xlu0 %v5227, 96
        %v6362 = vpop.permute.xlu0 %6361
        %6363 = vrot.lane.b32.xlu0 %v5226, 96
        %v6364 = vpop.permute.xlu0 %6363
        %6365 = vrot.lane.b32.xlu0 %v5225, 96
        %v6366 = vpop.permute.xlu0 %6365
        %6367 = vrot.lane.b32.xlu0 %v5224, 96
        %v6368 = vpop.permute.xlu0 %6367
        %6369 = vrot.lane.b32.xlu0 %v5223, 96
        %v6370 = vpop.permute.xlu0 %6369
        %6371 = vrot.lane.b32.xlu0 %v5222, 96
        %v6372 = vpop.permute.xlu0 %6371
        %6373 = vrot.lane.b32.xlu0 %v5221, 96
        %v6374 = vpop.permute.xlu0 %6373
        %6375 = vrot.lane.b32.xlu0 %v5220, 96
        %v6376 = vpop.permute.xlu0 %6375
        %6377 = vrot.lane.b32.xlu0 %v5219, 96
        %v6378 = vpop.permute.xlu0 %6377
        %6379 = vrot.lane.b32.xlu0 %v5218, 96
        %v6380 = vpop.permute.xlu0 %6379
        %6381 = vrot.lane.b32.xlu0 %v5217, 96
        %v6382 = vpop.permute.xlu0 %6381
        %6383 = vrot.lane.b32.xlu0 %v5216, 96
        %v6384 = vpop.permute.xlu0 %6383
        %6385 = vrot.lane.b32.xlu0 %v5215, 96
        %v6386 = vpop.permute.xlu0 %6385
        %6387 = vrot.lane.b32.xlu0 %v5214, 96
        %v6388 = vpop.permute.xlu0 %6387
        %6389 = vrot.lane.b32.xlu0 %v5213, 96
        %v6390 = vpop.permute.xlu0 %6389
        %6391 = vrot.lane.b32.xlu0 %v5212, 96
        %v6392 = vpop.permute.xlu0 %6391
        %6393 = vrot.lane.b32.xlu0 %v5211, 96
        %v6394 = vpop.permute.xlu0 %6393
        %6395 = vrot.lane.b32.xlu0 %v5210, 96
        %v6396 = vpop.permute.xlu0 %6395
        %6397 = vrot.lane.b32.xlu0 %v5209, 96
        %v6398 = vpop.permute.xlu0 %6397
        %6399 = vrot.lane.b32.xlu0 %v5208, 96
        %v6400 = vpop.permute.xlu0 %6399
        %6401 = vrot.lane.b32.xlu0 %v5207, 96
        %v6402 = vpop.permute.xlu0 %6401
        %6403 = vrot.lane.b32.xlu0 %v5206, 96
        %v6404 = vpop.permute.xlu0 %6403
        %6405 = vrot.lane.b32.xlu0 %v5205, 96
        %v6406 = vpop.permute.xlu0 %6405
        %6407 = vrot.lane.b32.xlu0 %v5204, 96
        %v6408 = vpop.permute.xlu0 %6407
        %6409 = vrot.lane.b32.xlu0 %v5203, 96
        %v6410 = vpop.permute.xlu0 %6409
        %6411 = vrot.lane.b32.xlu0 %v5202, 96
        %v6412 = vpop.permute.xlu0 %6411
        %6413 = vrot.lane.b32.xlu0 %v5201, 96
        %v6414 = vpop.permute.xlu0 %6413
        %6415 = vrot.lane.b32.xlu0 %v5200, 96
        %v6416 = vpop.permute.xlu0 %6415
        %6545 = vrot.lane.b32.xlu0 %v5390, 32
        %v6546 = vpop.permute.xlu0 %6545
        %6547 = vrot.lane.b32.xlu0 %v5389, 32
        %v6548 = vpop.permute.xlu0 %6547
        %6549 = vrot.lane.b32.xlu0 %v5388, 32
        %v6550 = vpop.permute.xlu0 %6549
        %6551 = vrot.lane.b32.xlu0 %v5387, 32
        %v6552 = vpop.permute.xlu0 %6551
        %6553 = vrot.lane.b32.xlu0 %v5386, 32
        %v6554 = vpop.permute.xlu0 %6553
        %6555 = vrot.lane.b32.xlu0 %v5385, 32
        %v6556 = vpop.permute.xlu0 %6555
        %6557 = vrot.lane.b32.xlu0 %v5384, 32
        %v6558 = vpop.permute.xlu0 %6557
        %6559 = vrot.lane.b32.xlu0 %v5383, 32
        %v6560 = vpop.permute.xlu0 %6559
        %6561 = vrot.lane.b32.xlu0 %v5382, 32
        %v6562 = vpop.permute.xlu0 %6561
        %6563 = vrot.lane.b32.xlu0 %v5381, 32
        %v6564 = vpop.permute.xlu0 %6563
        %6565 = vrot.lane.b32.xlu0 %v5380, 32
        %v6566 = vpop.permute.xlu0 %6565
        %6567 = vrot.lane.b32.xlu0 %v5379, 32
        %v6568 = vpop.permute.xlu0 %6567
        %6569 = vrot.lane.b32.xlu0 %v5378, 32
        %v6570 = vpop.permute.xlu0 %6569
        %6571 = vrot.lane.b32.xlu0 %v5377, 32
        %v6572 = vpop.permute.xlu0 %6571
        %6573 = vrot.lane.b32.xlu0 %v5376, 32
        %v6574 = vpop.permute.xlu0 %6573
        %6575 = vrot.lane.b32.xlu0 %v5375, 32
        %v6576 = vpop.permute.xlu0 %6575
        %6577 = vrot.lane.b32.xlu0 %v5374, 32
        %v6578 = vpop.permute.xlu0 %6577
        %6579 = vrot.lane.b32.xlu0 %v5373, 32
        %v6580 = vpop.permute.xlu0 %6579
        %6581 = vrot.lane.b32.xlu0 %v5372, 32
        %v6582 = vpop.permute.xlu0 %6581
        %6583 = vrot.lane.b32.xlu0 %v5371, 32
        %v6584 = vpop.permute.xlu0 %6583
        %6585 = vrot.lane.b32.xlu0 %v5370, 32
        %v6586 = vpop.permute.xlu0 %6585
        %6587 = vrot.lane.b32.xlu0 %v5369, 32
        %v6588 = vpop.permute.xlu0 %6587
        %6589 = vrot.lane.b32.xlu0 %v5368, 32
        %v6590 = vpop.permute.xlu0 %6589
        %6591 = vrot.lane.b32.xlu0 %v5367, 32
        %v6592 = vpop.permute.xlu0 %6591
        %6593 = vrot.lane.b32.xlu0 %v5366, 32
        %v6594 = vpop.permute.xlu0 %6593
        %6595 = vrot.lane.b32.xlu0 %v5365, 32
        %v6596 = vpop.permute.xlu0 %6595
        %6597 = vrot.lane.b32.xlu0 %v5364, 32
        %v6598 = vpop.permute.xlu0 %6597
        %6599 = vrot.lane.b32.xlu0 %v5363, 32
        %v6600 = vpop.permute.xlu0 %6599
        %6601 = vrot.lane.b32.xlu0 %v5362, 32
        %v6602 = vpop.permute.xlu0 %6601
        %6603 = vrot.lane.b32.xlu0 %v5361, 32
        %v6604 = vpop.permute.xlu0 %6603
        %6605 = vrot.lane.b32.xlu0 %v5360, 32
        %v6606 = vpop.permute.xlu0 %6605
        %6607 = vrot.lane.b32.xlu0 %v5359, 32
        %v6608 = vpop.permute.xlu0 %6607
        %6609 = vrot.lane.b32.xlu0 %v5358, 32
        %v6610 = vpop.permute.xlu0 %6609
        %6611 = vrot.lane.b32.xlu0 %v5357, 32
        %v6612 = vpop.permute.xlu0 %6611
        %6613 = vrot.lane.b32.xlu0 %v5356, 32
        %v6614 = vpop.permute.xlu0 %6613
        %6615 = vrot.lane.b32.xlu0 %v5355, 32
        %v6616 = vpop.permute.xlu0 %6615
        %6617 = vrot.lane.b32.xlu0 %v5354, 32
        %v6618 = vpop.permute.xlu0 %6617
        %6619 = vrot.lane.b32.xlu0 %v5353, 32
        %v6620 = vpop.permute.xlu0 %6619
        %6621 = vrot.lane.b32.xlu0 %v5352, 32
        %v6622 = vpop.permute.xlu0 %6621
        %6623 = vrot.lane.b32.xlu0 %v5351, 32
        %v6624 = vpop.permute.xlu0 %6623
        %6625 = vrot.lane.b32.xlu0 %v5350, 32
        %v6626 = vpop.permute.xlu0 %6625
        %6627 = vrot.lane.b32.xlu0 %v5349, 32
        %v6628 = vpop.permute.xlu0 %6627
        %6629 = vrot.lane.b32.xlu0 %v5348, 32
        %v6630 = vpop.permute.xlu0 %6629
        %6631 = vrot.lane.b32.xlu0 %v5347, 32
        %v6632 = vpop.permute.xlu0 %6631
        %6633 = vrot.lane.b32.xlu0 %v5346, 32
        %v6634 = vpop.permute.xlu0 %6633
        %6635 = vrot.lane.b32.xlu0 %v5345, 32
        %v6636 = vpop.permute.xlu0 %6635
        %6637 = vrot.lane.b32.xlu0 %v5344, 32
        %v6638 = vpop.permute.xlu0 %6637
        %6639 = vrot.lane.b32.xlu0 %v5343, 32
        %v6640 = vpop.permute.xlu0 %6639
        %6641 = vrot.lane.b32.xlu0 %v5342, 32
        %v6642 = vpop.permute.xlu0 %6641
        %6643 = vrot.lane.b32.xlu0 %v5341, 32
        %v6644 = vpop.permute.xlu0 %6643
        %6645 = vrot.lane.b32.xlu0 %v5340, 32
        %v6646 = vpop.permute.xlu0 %6645
        %6647 = vrot.lane.b32.xlu0 %v5339, 32
        %v6648 = vpop.permute.xlu0 %6647
        %6649 = vrot.lane.b32.xlu0 %v5338, 32
        %v6650 = vpop.permute.xlu0 %6649
        %6651 = vrot.lane.b32.xlu0 %v5337, 32
        %v6652 = vpop.permute.xlu0 %6651
        %6653 = vrot.lane.b32.xlu0 %v5336, 32
        %v6654 = vpop.permute.xlu0 %6653
        %6655 = vrot.lane.b32.xlu0 %v5335, 32
        %v6656 = vpop.permute.xlu0 %6655
        %6657 = vrot.lane.b32.xlu0 %v5334, 32
        %v6658 = vpop.permute.xlu0 %6657
        %6659 = vrot.lane.b32.xlu0 %v5333, 32
        %v6660 = vpop.permute.xlu0 %6659
        %6661 = vrot.lane.b32.xlu0 %v5332, 32
        %v6662 = vpop.permute.xlu0 %6661
        %6663 = vrot.lane.b32.xlu0 %v5331, 32
        %v6664 = vpop.permute.xlu0 %6663
        %6665 = vrot.lane.b32.xlu0 %v5330, 32
        %v6666 = vpop.permute.xlu0 %6665
        %6667 = vrot.lane.b32.xlu0 %v5329, 32
        %v6668 = vpop.permute.xlu0 %6667
        %6669 = vrot.lane.b32.xlu0 %v5328, 32
        %v6670 = vpop.permute.xlu0 %6669
        %6671 = vrot.lane.b32.xlu0 %v5391, 32
        %v6672 = vpop.permute.xlu0 %6671
        %6801 = vrot.lane.b32.xlu0 %v5584, 64
        %v6802 = vpop.permute.xlu0 %6801
        %6803 = vrot.lane.b32.xlu0 %v5583, 64
        %v6804 = vpop.permute.xlu0 %6803
        %6805 = vrot.lane.b32.xlu0 %v5582, 64
        %v6806 = vpop.permute.xlu0 %6805
        %6807 = vrot.lane.b32.xlu0 %v5581, 64
        %v6808 = vpop.permute.xlu0 %6807
        %6809 = vrot.lane.b32.xlu0 %v5580, 64
        %v6810 = vpop.permute.xlu0 %6809
        %6811 = vrot.lane.b32.xlu0 %v5579, 64
        %v6812 = vpop.permute.xlu0 %6811
        %6813 = vrot.lane.b32.xlu0 %v5578, 64
        %v6814 = vpop.permute.xlu0 %6813
        %6815 = vrot.lane.b32.xlu0 %v5577, 64
        %v6816 = vpop.permute.xlu0 %6815
        %6817 = vrot.lane.b32.xlu0 %v5576, 64
        %v6818 = vpop.permute.xlu0 %6817
        %6819 = vrot.lane.b32.xlu0 %v5575, 64
        %v6820 = vpop.permute.xlu0 %6819
        %6821 = vrot.lane.b32.xlu0 %v5574, 64
        %v6822 = vpop.permute.xlu0 %6821
        %6823 = vrot.lane.b32.xlu0 %v5573, 64
        %v6824 = vpop.permute.xlu0 %6823
        %6825 = vrot.lane.b32.xlu0 %v5572, 64
        %v6826 = vpop.permute.xlu0 %6825
        %6827 = vrot.lane.b32.xlu0 %v5571, 64
        %v6828 = vpop.permute.xlu0 %6827
        %6829 = vrot.lane.b32.xlu0 %v5570, 64
        %v6830 = vpop.permute.xlu0 %6829
        %6831 = vrot.lane.b32.xlu0 %v5569, 64
        %v6832 = vpop.permute.xlu0 %6831
        %6833 = vrot.lane.b32.xlu0 %v5568, 64
        %v6834 = vpop.permute.xlu0 %6833
        %6835 = vrot.lane.b32.xlu0 %v5567, 64
        %v6836 = vpop.permute.xlu0 %6835
        %6837 = vrot.lane.b32.xlu0 %v5566, 64
        %v6838 = vpop.permute.xlu0 %6837
        %6839 = vrot.lane.b32.xlu0 %v5565, 64
        %v6840 = vpop.permute.xlu0 %6839
        %6841 = vrot.lane.b32.xlu0 %v5564, 64
        %v6842 = vpop.permute.xlu0 %6841
        %6843 = vrot.lane.b32.xlu0 %v5563, 64
        %v6844 = vpop.permute.xlu0 %6843
        %6845 = vrot.lane.b32.xlu0 %v5562, 64
        %v6846 = vpop.permute.xlu0 %6845
        %6847 = vrot.lane.b32.xlu0 %v5561, 64
        %v6848 = vpop.permute.xlu0 %6847
        %6849 = vrot.lane.b32.xlu0 %v5560, 64
        %v6850 = vpop.permute.xlu0 %6849
        %6851 = vrot.lane.b32.xlu0 %v5559, 64
        %v6852 = vpop.permute.xlu0 %6851
        %6853 = vrot.lane.b32.xlu0 %v5558, 64
        %v6854 = vpop.permute.xlu0 %6853
        %6855 = vrot.lane.b32.xlu0 %v5557, 64
        %v6856 = vpop.permute.xlu0 %6855
        %6857 = vrot.lane.b32.xlu0 %v5556, 64
        %v6858 = vpop.permute.xlu0 %6857
        %6859 = vrot.lane.b32.xlu0 %v5555, 64
        %v6860 = vpop.permute.xlu0 %6859
        %6861 = vrot.lane.b32.xlu0 %v5554, 64
        %v6862 = vpop.permute.xlu0 %6861
        %6863 = vrot.lane.b32.xlu0 %v5553, 64
        %v6864 = vpop.permute.xlu0 %6863
        %6865 = vrot.lane.b32.xlu0 %v5552, 64
        %v6866 = vpop.permute.xlu0 %6865
        %6867 = vrot.lane.b32.xlu0 %v5551, 64
        %v6868 = vpop.permute.xlu0 %6867
        %6869 = vrot.lane.b32.xlu0 %v5550, 64
        %v6870 = vpop.permute.xlu0 %6869
        %6871 = vrot.lane.b32.xlu0 %v5549, 64
        %v6872 = vpop.permute.xlu0 %6871
        %6873 = vrot.lane.b32.xlu0 %v5548, 64
        %v6874 = vpop.permute.xlu0 %6873
        %6875 = vrot.lane.b32.xlu0 %v5547, 64
        %v6876 = vpop.permute.xlu0 %6875
        %6877 = vrot.lane.b32.xlu0 %v5546, 64
        %v6878 = vpop.permute.xlu0 %6877
        %6879 = vrot.lane.b32.xlu0 %v5545, 64
        %v6880 = vpop.permute.xlu0 %6879
        %6881 = vrot.lane.b32.xlu0 %v5544, 64
        %v6882 = vpop.permute.xlu0 %6881
        %6883 = vrot.lane.b32.xlu0 %v5543, 64
        %v6884 = vpop.permute.xlu0 %6883
        %6885 = vrot.lane.b32.xlu0 %v5542, 64
        %v6886 = vpop.permute.xlu0 %6885
        %6887 = vrot.lane.b32.xlu0 %v5541, 64
        %v6888 = vpop.permute.xlu0 %6887
        %6889 = vrot.lane.b32.xlu0 %v5540, 64
        %v6890 = vpop.permute.xlu0 %6889
        %6891 = vrot.lane.b32.xlu0 %v5539, 64
        %v6892 = vpop.permute.xlu0 %6891
        %6893 = vrot.lane.b32.xlu0 %v5538, 64
        %v6894 = vpop.permute.xlu0 %6893
        %6895 = vrot.lane.b32.xlu0 %v5537, 64
        %v6896 = vpop.permute.xlu0 %6895
        %6897 = vrot.lane.b32.xlu0 %v5536, 64
        %v6898 = vpop.permute.xlu0 %6897
        %6899 = vrot.lane.b32.xlu0 %v5535, 64
        %v6900 = vpop.permute.xlu0 %6899
        %6901 = vrot.lane.b32.xlu0 %v5534, 64
        %v6902 = vpop.permute.xlu0 %6901
        %6903 = vrot.lane.b32.xlu0 %v5533, 64
        %v6904 = vpop.permute.xlu0 %6903
        %6905 = vrot.lane.b32.xlu0 %v5532, 64
        %v6906 = vpop.permute.xlu0 %6905
        %6907 = vrot.lane.b32.xlu0 %v5531, 64
        %v6908 = vpop.permute.xlu0 %6907
        %6909 = vrot.lane.b32.xlu0 %v5530, 64
        %v6910 = vpop.permute.xlu0 %6909
        %6911 = vrot.lane.b32.xlu0 %v5529, 64
        %v6912 = vpop.permute.xlu0 %6911
        %6913 = vrot.lane.b32.xlu0 %v5528, 64
        %v6914 = vpop.permute.xlu0 %6913
        %6915 = vrot.lane.b32.xlu0 %v5527, 64
        %v6916 = vpop.permute.xlu0 %6915
        %6917 = vrot.lane.b32.xlu0 %v5526, 64
        %v6918 = vpop.permute.xlu0 %6917
        %6919 = vrot.lane.b32.xlu0 %v5525, 64
        %v6920 = vpop.permute.xlu0 %6919
        %6921 = vrot.lane.b32.xlu0 %v5524, 64
        %v6922 = vpop.permute.xlu0 %6921
        %6923 = vrot.lane.b32.xlu0 %v5523, 64
        %v6924 = vpop.permute.xlu0 %6923
        %6925 = vrot.lane.b32.xlu0 %v5522, 64
        %v6926 = vpop.permute.xlu0 %6925
        %6927 = vrot.lane.b32.xlu0 %v5521, 64
        %v6928 = vpop.permute.xlu0 %6927
        %7057 = vrot.lane.b32.xlu0 %v5393, 96
        %v7058 = vpop.permute.xlu0 %7057
        %7059 = vrot.lane.b32.xlu0 %v5394, 96
        %v7060 = vpop.permute.xlu0 %7059
        %7061 = vrot.lane.b32.xlu0 %v5395, 96
        %v7062 = vpop.permute.xlu0 %7061
        %7063 = vrot.lane.b32.xlu0 %v5396, 96
        %v7064 = vpop.permute.xlu0 %7063
        %7065 = vrot.lane.b32.xlu0 %v5397, 96
        %v7066 = vpop.permute.xlu0 %7065
        %7067 = vrot.lane.b32.xlu0 %v5398, 96
        %v7068 = vpop.permute.xlu0 %7067
        %7069 = vrot.lane.b32.xlu0 %v5399, 96
        %v7070 = vpop.permute.xlu0 %7069
        %7071 = vrot.lane.b32.xlu0 %v5400, 96
        %v7072 = vpop.permute.xlu0 %7071
        %7073 = vrot.lane.b32.xlu0 %v5401, 96
        %v7074 = vpop.permute.xlu0 %7073
        %7075 = vrot.lane.b32.xlu0 %v5402, 96
        %v7076 = vpop.permute.xlu0 %7075
        %7077 = vrot.lane.b32.xlu0 %v5403, 96
        %v7078 = vpop.permute.xlu0 %7077
        %7079 = vrot.lane.b32.xlu0 %v5404, 96
        %v7080 = vpop.permute.xlu0 %7079
        %7081 = vrot.lane.b32.xlu0 %v5405, 96
        %v7082 = vpop.permute.xlu0 %7081
        %7083 = vrot.lane.b32.xlu0 %v5406, 96
        %v7084 = vpop.permute.xlu0 %7083
        %7085 = vrot.lane.b32.xlu0 %v5407, 96
        %v7086 = vpop.permute.xlu0 %7085
        %7087 = vrot.lane.b32.xlu0 %v5408, 96
        %v7088 = vpop.permute.xlu0 %7087
        %7089 = vrot.lane.b32.xlu0 %v5409, 96
        %v7090 = vpop.permute.xlu0 %7089
        %7091 = vrot.lane.b32.xlu0 %v5410, 96
        %v7092 = vpop.permute.xlu0 %7091
        %7093 = vrot.lane.b32.xlu0 %v5411, 96
        %v7094 = vpop.permute.xlu0 %7093
        %7095 = vrot.lane.b32.xlu0 %v5412, 96
        %v7096 = vpop.permute.xlu0 %7095
        %7097 = vrot.lane.b32.xlu0 %v5413, 96
        %v7098 = vpop.permute.xlu0 %7097
        %7099 = vrot.lane.b32.xlu0 %v5414, 96
        %v7100 = vpop.permute.xlu0 %7099
        %7101 = vrot.lane.b32.xlu0 %v5415, 96
        %v7102 = vpop.permute.xlu0 %7101
        %7103 = vrot.lane.b32.xlu0 %v5416, 96
        %v7104 = vpop.permute.xlu0 %7103
        %7105 = vrot.lane.b32.xlu0 %v5417, 96
        %v7106 = vpop.permute.xlu0 %7105
        %7107 = vrot.lane.b32.xlu0 %v5418, 96
        %v7108 = vpop.permute.xlu0 %7107
        %7109 = vrot.lane.b32.xlu0 %v5419, 96
        %v7110 = vpop.permute.xlu0 %7109
        %7111 = vrot.lane.b32.xlu0 %v5420, 96
        %v7112 = vpop.permute.xlu0 %7111
        %7113 = vrot.lane.b32.xlu0 %v5421, 96
        %v7114 = vpop.permute.xlu0 %7113
        %7115 = vrot.lane.b32.xlu0 %v5422, 96
        %v7116 = vpop.permute.xlu0 %7115
        %7117 = vrot.lane.b32.xlu0 %v5423, 96
        %v7118 = vpop.permute.xlu0 %7117
        %7119 = vrot.lane.b32.xlu0 %v5424, 96
        %v7120 = vpop.permute.xlu0 %7119
        %7121 = vrot.lane.b32.xlu0 %v5425, 96
        %v7122 = vpop.permute.xlu0 %7121
        %7123 = vrot.lane.b32.xlu0 %v5426, 96
        %v7124 = vpop.permute.xlu0 %7123
        %7125 = vrot.lane.b32.xlu0 %v5427, 96
        %v7126 = vpop.permute.xlu0 %7125
        %7127 = vrot.lane.b32.xlu0 %v5428, 96
        %v7128 = vpop.permute.xlu0 %7127
        %7129 = vrot.lane.b32.xlu0 %v5429, 96
        %v7130 = vpop.permute.xlu0 %7129
        %7131 = vrot.lane.b32.xlu0 %v5430, 96
        %v7132 = vpop.permute.xlu0 %7131
        %7133 = vrot.lane.b32.xlu0 %v5431, 96
        %v7134 = vpop.permute.xlu0 %7133
        %7135 = vrot.lane.b32.xlu0 %v5432, 96
        %v7136 = vpop.permute.xlu0 %7135
        %7137 = vrot.lane.b32.xlu0 %v5433, 96
        %v7138 = vpop.permute.xlu0 %7137
        %7139 = vrot.lane.b32.xlu0 %v5434, 96
        %v7140 = vpop.permute.xlu0 %7139
        %7141 = vrot.lane.b32.xlu0 %v5435, 96
        %v7142 = vpop.permute.xlu0 %7141
        %7143 = vrot.lane.b32.xlu0 %v5436, 96
        %v7144 = vpop.permute.xlu0 %7143
        %7145 = vrot.lane.b32.xlu0 %v5437, 96
        %v7146 = vpop.permute.xlu0 %7145
        %7147 = vrot.lane.b32.xlu0 %v5438, 96
        %v7148 = vpop.permute.xlu0 %7147
        %7149 = vrot.lane.b32.xlu0 %v5439, 96
        %v7150 = vpop.permute.xlu0 %7149
        %7151 = vrot.lane.b32.xlu0 %v5440, 96
        %v7152 = vpop.permute.xlu0 %7151
        %7153 = vrot.lane.b32.xlu0 %v5441, 96
        %v7154 = vpop.permute.xlu0 %7153
        %7155 = vrot.lane.b32.xlu0 %v5442, 96
        %v7156 = vpop.permute.xlu0 %7155
        %7157 = vrot.lane.b32.xlu0 %v5443, 96
        %v7158 = vpop.permute.xlu0 %7157
        %7159 = vrot.lane.b32.xlu0 %v5444, 96
        %v7160 = vpop.permute.xlu0 %7159
        %7161 = vrot.lane.b32.xlu0 %v5445, 96
        %v7162 = vpop.permute.xlu0 %7161
        %7163 = vrot.lane.b32.xlu0 %v5446, 96
        %v7164 = vpop.permute.xlu0 %7163
        %7165 = vrot.lane.b32.xlu0 %v5447, 96
        %v7166 = vpop.permute.xlu0 %7165
        %7167 = vrot.lane.b32.xlu0 %v5448, 96
        %v7168 = vpop.permute.xlu0 %7167
        %7169 = vrot.lane.b32.xlu0 %v5449, 96
        %v7170 = vpop.permute.xlu0 %7169
        %7171 = vrot.lane.b32.xlu0 %v5450, 96
        %v7172 = vpop.permute.xlu0 %7171
        %7173 = vrot.lane.b32.xlu0 %v5451, 96
        %v7174 = vpop.permute.xlu0 %7173
        %7175 = vrot.lane.b32.xlu0 %v5452, 96
        %v7176 = vpop.permute.xlu0 %7175
        %7177 = vrot.lane.b32.xlu0 %v5453, 96
        %v7178 = vpop.permute.xlu0 %7177
        %7179 = vrot.lane.b32.xlu0 %v5454, 96
        %v7180 = vpop.permute.xlu0 %7179
        %7181 = vrot.lane.b32.xlu0 %v5455, 96
        %v7182 = vpop.permute.xlu0 %7181
        %7183 = vrot.lane.b32.xlu0 %v5456, 96
        %v7184 = vpop.permute.xlu0 %7183
        %v7249 = vsel %vm212, %v4942, %v5778
        %v7250 = vsel %vm212, %v4941, %v5780
        %v7251 = vsel %vm212, %v4940, %v5782
        %v7252 = vsel %vm212, %v4939, %v5784
        %v7253 = vsel %vm212, %v4938, %v5786
        %v7254 = vsel %vm212, %v4937, %v5788
        %v7255 = vsel %vm212, %v4936, %v5790
        %v7256 = vsel %vm212, %v4935, %v5792
        %v7257 = vsel %vm212, %v4934, %v5794
        %v7258 = vsel %vm212, %v4933, %v5796
        %v7259 = vsel %vm212, %v4932, %v5798
        %v7260 = vsel %vm212, %v4931, %v5800
        %v7261 = vsel %vm212, %v4930, %v5802
        %v7262 = vsel %vm212, %v4929, %v5804
        %v7263 = vsel %vm212, %v4928, %v5806
        %v7264 = vsel %vm212, %v4927, %v5808
        %v7265 = vsel %vm212, %v4926, %v5810
        %v7266 = vsel %vm212, %v4925, %v5812
        %v7267 = vsel %vm212, %v4924, %v5814
        %v7268 = vsel %vm212, %v4923, %v5816
        %v7269 = vsel %vm212, %v4922, %v5818
        %v7270 = vsel %vm212, %v4921, %v5820
        %v7271 = vsel %vm212, %v4920, %v5822
        %v7272 = vsel %vm212, %v4919, %v5824
        %v7273 = vsel %vm212, %v4918, %v5826
        %v7274 = vsel %vm212, %v4917, %v5828
        %v7275 = vsel %vm212, %v4916, %v5830
        %v7276 = vsel %vm212, %v4915, %v5832
        %v7277 = vsel %vm212, %v4914, %v5834
        %v7278 = vsel %vm212, %v4913, %v5836
        %v7279 = vsel %vm212, %v4912, %v5838
        %v7280 = vsel %vm212, %v4911, %v5840
        %v7281 = vsel %vm212, %v4910, %v5842
        %v7282 = vsel %vm212, %v4909, %v5844
        %v7283 = vsel %vm212, %v4908, %v5846
        %v7284 = vsel %vm212, %v4907, %v5848
        %v7285 = vsel %vm212, %v4906, %v5850
        %v7286 = vsel %vm212, %v4905, %v5852
        %v7287 = vsel %vm212, %v4904, %v5854
        %v7288 = vsel %vm212, %v4903, %v5856
        %v7289 = vsel %vm212, %v4902, %v5858
        %v7290 = vsel %vm212, %v4901, %v5860
        %v7291 = vsel %vm212, %v4900, %v5862
        %v7292 = vsel %vm212, %v4899, %v5864
        %v7293 = vsel %vm212, %v4898, %v5866
        %v7294 = vsel %vm212, %v4897, %v5868
        %v7295 = vsel %vm212, %v4896, %v5870
        %v7296 = vsel %vm212, %v4895, %v5872
        %v7297 = vsel %vm212, %v4894, %v5874
        %v7298 = vsel %vm212, %v4893, %v5876
        %v7299 = vsel %vm212, %v4892, %v5878
        %v7300 = vsel %vm212, %v4891, %v5880
        %v7301 = vsel %vm212, %v4890, %v5882
        %v7302 = vsel %vm212, %v4889, %v5884
        %v7303 = vsel %vm212, %v4888, %v5886
        %v7304 = vsel %vm212, %v4887, %v5888
        %v7305 = vsel %vm212, %v4886, %v5890
        %v7306 = vsel %vm212, %v4885, %v5892
        %v7307 = vsel %vm212, %v4884, %v5894
        %v7308 = vsel %vm212, %v4883, %v5896
        %v7309 = vsel %vm212, %v4882, %v5898
        %v7310 = vsel %vm212, %v4881, %v5900
        %v7311 = vsel %vm212, %v4880, %v5902
        %v7312 = vsel %vm212, %v4879, %v5904
        %v7313 = vsel %vm3792, %v7249, %v6034
        %v7314 = vsel %vm3792, %v7250, %v6036
        %v7315 = vsel %vm3792, %v7251, %v6038
        %v7316 = vsel %vm3792, %v7252, %v6040
        %v7317 = vsel %vm3792, %v7253, %v6042
        %v7318 = vsel %vm3792, %v7254, %v6044
        %v7319 = vsel %vm3792, %v7255, %v6046
        %v7320 = vsel %vm3792, %v7256, %v6048
        %v7321 = vsel %vm3792, %v7257, %v6050
        %v7322 = vsel %vm3792, %v7258, %v6052
        %v7323 = vsel %vm3792, %v7259, %v6054
        %v7324 = vsel %vm3792, %v7260, %v6056
        %v7325 = vsel %vm3792, %v7261, %v6058
        %v7326 = vsel %vm3792, %v7262, %v6060
        %v7327 = vsel %vm3792, %v7263, %v6062
        %v7328 = vsel %vm3792, %v7264, %v6064
        %v7329 = vsel %vm3792, %v7265, %v6066
        %v7330 = vsel %vm3792, %v7266, %v6068
        %v7331 = vsel %vm3792, %v7267, %v6070
        %v7332 = vsel %vm3792, %v7268, %v6072
        %v7333 = vsel %vm3792, %v7269, %v6074
        %v7334 = vsel %vm3792, %v7270, %v6076
        %v7335 = vsel %vm3792, %v7271, %v6078
        %v7336 = vsel %vm3792, %v7272, %v6080
        %v7337 = vsel %vm3792, %v7273, %v6082
        %v7338 = vsel %vm3792, %v7274, %v6084
        %v7339 = vsel %vm3792, %v7275, %v6086
        %v7340 = vsel %vm3792, %v7276, %v6088
        %v7341 = vsel %vm3792, %v7277, %v6090
        %v7342 = vsel %vm3792, %v7278, %v6092
        %v7343 = vsel %vm3792, %v7279, %v6094
        %v7344 = vsel %vm3792, %v7280, %v6096
        %v7345 = vsel %vm3792, %v7281, %v6098
        %v7346 = vsel %vm3792, %v7282, %v6100
        %v7347 = vsel %vm3792, %v7283, %v6102
        %v7348 = vsel %vm3792, %v7284, %v6104
        %v7349 = vsel %vm3792, %v7285, %v6106
        %v7350 = vsel %vm3792, %v7286, %v6108
        %v7351 = vsel %vm3792, %v7287, %v6110
        %v7352 = vsel %vm3792, %v7288, %v6112
        %v7353 = vsel %vm3792, %v7289, %v6114
        %v7354 = vsel %vm3792, %v7290, %v6116
        %v7355 = vsel %vm3792, %v7291, %v6118
        %v7356 = vsel %vm3792, %v7292, %v6120
        %v7357 = vsel %vm3792, %v7293, %v6122
        %v7358 = vsel %vm3792, %v7294, %v6124
        %v7359 = vsel %vm3792, %v7295, %v6126
        %v7360 = vsel %vm3792, %v7296, %v6128
        %v7361 = vsel %vm3792, %v7297, %v6130
        %v7362 = vsel %vm3792, %v7298, %v6132
        %v7363 = vsel %vm3792, %v7299, %v6134
        %v7364 = vsel %vm3792, %v7300, %v6136
        %v7365 = vsel %vm3792, %v7301, %v6138
        %v7366 = vsel %vm3792, %v7302, %v6140
        %v7367 = vsel %vm3792, %v7303, %v6142
        %v7368 = vsel %vm3792, %v7304, %v6144
        %v7369 = vsel %vm3792, %v7305, %v6146
        %v7370 = vsel %vm3792, %v7306, %v6148
        %v7371 = vsel %vm3792, %v7307, %v6150
        %v7372 = vsel %vm3792, %v7308, %v6152
        %v7373 = vsel %vm3792, %v7309, %v6154
        %v7374 = vsel %vm3792, %v7310, %v6156
        %v7375 = vsel %vm3792, %v7311, %v6158
        %v7376 = vsel %vm3792, %v7312, %v6160
        %vm7377 = vcmask 785408
        %v7378 = vsel %vm7377, %v7313, %v6290
        %v7379 = vsel %vm7377, %v7314, %v6292
        %v7380 = vsel %vm7377, %v7315, %v6294
        %v7381 = vsel %vm7377, %v7316, %v6296
        %v7382 = vsel %vm7377, %v7317, %v6298
        %v7383 = vsel %vm7377, %v7318, %v6300
        %v7384 = vsel %vm7377, %v7319, %v6302
        %v7385 = vsel %vm7377, %v7320, %v6304
        %v7386 = vsel %vm7377, %v7321, %v6306
        %v7387 = vsel %vm7377, %v7322, %v6308
        %v7388 = vsel %vm7377, %v7323, %v6310
        %v7389 = vsel %vm7377, %v7324, %v6312
        %v7390 = vsel %vm7377, %v7325, %v6314
        %v7391 = vsel %vm7377, %v7326, %v6316
        %v7392 = vsel %vm7377, %v7327, %v6318
        %v7393 = vsel %vm7377, %v7328, %v6320
        %v7394 = vsel %vm7377, %v7329, %v6322
        %v7395 = vsel %vm7377, %v7330, %v6324
        %v7396 = vsel %vm7377, %v7331, %v6326
        %v7397 = vsel %vm7377, %v7332, %v6328
        %v7398 = vsel %vm7377, %v7333, %v6330
        %v7399 = vsel %vm7377, %v7334, %v6332
        %v7400 = vsel %vm7377, %v7335, %v6334
        %v7401 = vsel %vm7377, %v7336, %v6336
        %v7402 = vsel %vm7377, %v7337, %v6338
        %v7403 = vsel %vm7377, %v7338, %v6340
        %v7404 = vsel %vm7377, %v7339, %v6342
        %v7405 = vsel %vm7377, %v7340, %v6344
        %v7406 = vsel %vm7377, %v7341, %v6346
        %v7407 = vsel %vm7377, %v7342, %v6348
        %v7408 = vsel %vm7377, %v7343, %v6350
        %v7409 = vsel %vm7377, %v7344, %v6352
        %v7410 = vsel %vm7377, %v7345, %v6354
        %v7411 = vsel %vm7377, %v7346, %v6356
        %v7412 = vsel %vm7377, %v7347, %v6358
        %v7413 = vsel %vm7377, %v7348, %v6360
        %v7414 = vsel %vm7377, %v7349, %v6362
        %v7415 = vsel %vm7377, %v7350, %v6364
        %v7416 = vsel %vm7377, %v7351, %v6366
        %v7417 = vsel %vm7377, %v7352, %v6368
        %v7418 = vsel %vm7377, %v7353, %v6370
        %v7419 = vsel %vm7377, %v7354, %v6372
        %v7420 = vsel %vm7377, %v7355, %v6374
        %v7421 = vsel %vm7377, %v7356, %v6376
        %v7422 = vsel %vm7377, %v7357, %v6378
        %v7423 = vsel %vm7377, %v7358, %v6380
        %v7424 = vsel %vm7377, %v7359, %v6382
        %v7425 = vsel %vm7377, %v7360, %v6384
        %v7426 = vsel %vm7377, %v7361, %v6386
        %v7427 = vsel %vm7377, %v7362, %v6388
        %v7428 = vsel %vm7377, %v7363, %v6390
        %v7429 = vsel %vm7377, %v7364, %v6392
        %v7430 = vsel %vm7377, %v7365, %v6394
        %v7431 = vsel %vm7377, %v7366, %v6396
        %v7432 = vsel %vm7377, %v7367, %v6398
        %v7433 = vsel %vm7377, %v7368, %v6400
        %v7434 = vsel %vm7377, %v7369, %v6402
        %v7435 = vsel %vm7377, %v7370, %v6404
        %v7436 = vsel %vm7377, %v7371, %v6406
        %v7437 = vsel %vm7377, %v7372, %v6408
        %v7438 = vsel %vm7377, %v7373, %v6410
        %v7439 = vsel %vm7377, %v7374, %v6412
        %v7440 = vsel %vm7377, %v7375, %v6414
        %v7441 = vsel %vm7377, %v7376, %v6416
        %v7442 = vsel %vm212, %v5072, %v6546
        %v7443 = vsel %vm212, %v5073, %v6548
        %v7444 = vsel %vm212, %v5074, %v6550
        %v7445 = vsel %vm212, %v5075, %v6552
        %v7446 = vsel %vm212, %v5076, %v6554
        %v7447 = vsel %vm212, %v5077, %v6556
        %v7448 = vsel %vm212, %v5078, %v6558
        %v7449 = vsel %vm212, %v5079, %v6560
        %v7450 = vsel %vm212, %v5080, %v6562
        %v7451 = vsel %vm212, %v5081, %v6564
        %v7452 = vsel %vm212, %v5082, %v6566
        %v7453 = vsel %vm212, %v5083, %v6568
        %v7454 = vsel %vm212, %v5084, %v6570
        %v7455 = vsel %vm212, %v5085, %v6572
        %v7456 = vsel %vm212, %v5086, %v6574
        %v7457 = vsel %vm212, %v5087, %v6576
        %v7458 = vsel %vm212, %v5088, %v6578
        %v7459 = vsel %vm212, %v5089, %v6580
        %v7460 = vsel %vm212, %v5090, %v6582
        %v7461 = vsel %vm212, %v5091, %v6584
        %v7462 = vsel %vm212, %v5092, %v6586
        %v7463 = vsel %vm212, %v5093, %v6588
        %v7464 = vsel %vm212, %v5094, %v6590
        %v7465 = vsel %vm212, %v5095, %v6592
        %v7466 = vsel %vm212, %v5096, %v6594
        %v7467 = vsel %vm212, %v5097, %v6596
        %v7468 = vsel %vm212, %v5098, %v6598
        %v7469 = vsel %vm212, %v5099, %v6600
        %v7470 = vsel %vm212, %v5100, %v6602
        %v7471 = vsel %vm212, %v5101, %v6604
        %v7472 = vsel %vm212, %v5102, %v6606
        %v7473 = vsel %vm212, %v5103, %v6608
        %v7474 = vsel %vm212, %v5104, %v6610
        %v7475 = vsel %vm212, %v5105, %v6612
        %v7476 = vsel %vm212, %v5106, %v6614
        %v7477 = vsel %vm212, %v5107, %v6616
        %v7478 = vsel %vm212, %v5108, %v6618
        %v7479 = vsel %vm212, %v5109, %v6620
        %v7480 = vsel %vm212, %v5110, %v6622
        %v7481 = vsel %vm212, %v5111, %v6624
        %v7482 = vsel %vm212, %v5112, %v6626
        %v7483 = vsel %vm212, %v5113, %v6628
        %v7484 = vsel %vm212, %v5114, %v6630
        %v7485 = vsel %vm212, %v5115, %v6632
        %v7486 = vsel %vm212, %v5116, %v6634
        %v7487 = vsel %vm212, %v5117, %v6636
        %v7488 = vsel %vm212, %v5118, %v6638
        %v7489 = vsel %vm212, %v5119, %v6640
        %v7490 = vsel %vm212, %v5120, %v6642
        %v7491 = vsel %vm212, %v5121, %v6644
        %v7492 = vsel %vm212, %v5122, %v6646
        %v7493 = vsel %vm212, %v5123, %v6648
        %v7494 = vsel %vm212, %v5124, %v6650
        %v7495 = vsel %vm212, %v5125, %v6652
        %v7496 = vsel %vm212, %v5126, %v6654
        %v7497 = vsel %vm212, %v5127, %v6656
        %v7498 = vsel %vm212, %v5128, %v6658
        %v7499 = vsel %vm212, %v5129, %v6660
        %v7500 = vsel %vm212, %v5130, %v6662
        %v7501 = vsel %vm212, %v5131, %v6664
        %v7502 = vsel %vm212, %v5132, %v6666
        %v7503 = vsel %vm212, %v5133, %v6668
        %v7504 = vsel %vm212, %v5134, %v6670
        %v7505 = vsel %vm212, %v5135, %v6672
        %v7506 = vsel %vm3792, %v7442, %v6802
        %v7507 = vsel %vm3792, %v7443, %v6804
        %v7508 = vsel %vm3792, %v7444, %v6806
        %v7509 = vsel %vm3792, %v7445, %v6808
        %v7510 = vsel %vm3792, %v7446, %v6810
        %v7511 = vsel %vm3792, %v7447, %v6812
        %v7512 = vsel %vm3792, %v7448, %v6814
        %v7513 = vsel %vm3792, %v7449, %v6816
        %v7514 = vsel %vm3792, %v7450, %v6818
        %v7515 = vsel %vm3792, %v7451, %v6820
        %v7516 = vsel %vm3792, %v7452, %v6822
        %v7517 = vsel %vm3792, %v7453, %v6824
        %v7518 = vsel %vm3792, %v7454, %v6826
        %v7519 = vsel %vm3792, %v7455, %v6828
        %v7520 = vsel %vm3792, %v7456, %v6830
        %v7521 = vsel %vm3792, %v7457, %v6832
        %v7522 = vsel %vm3792, %v7458, %v6834
        %v7523 = vsel %vm3792, %v7459, %v6836
        %v7524 = vsel %vm3792, %v7460, %v6838
        %v7525 = vsel %vm3792, %v7461, %v6840
        %v7526 = vsel %vm3792, %v7462, %v6842
        %v7527 = vsel %vm3792, %v7463, %v6844
        %v7528 = vsel %vm3792, %v7464, %v6846
        %v7529 = vsel %vm3792, %v7465, %v6848
        %v7530 = vsel %vm3792, %v7466, %v6850
        %v7531 = vsel %vm3792, %v7467, %v6852
        %v7532 = vsel %vm3792, %v7468, %v6854
        %v7533 = vsel %vm3792, %v7469, %v6856
        %v7534 = vsel %vm3792, %v7470, %v6858
        %v7535 = vsel %vm3792, %v7471, %v6860
        %v7536 = vsel %vm3792, %v7472, %v6862
        %v7537 = vsel %vm3792, %v7473, %v6864
        %v7538 = vsel %vm3792, %v7474, %v6866
        %v7539 = vsel %vm3792, %v7475, %v6868
        %v7540 = vsel %vm3792, %v7476, %v6870
        %v7541 = vsel %vm3792, %v7477, %v6872
        %v7542 = vsel %vm3792, %v7478, %v6874
        %v7543 = vsel %vm3792, %v7479, %v6876
        %v7544 = vsel %vm3792, %v7480, %v6878
        %v7545 = vsel %vm3792, %v7481, %v6880
        %v7546 = vsel %vm3792, %v7482, %v6882
        %v7547 = vsel %vm3792, %v7483, %v6884
        %v7548 = vsel %vm3792, %v7484, %v6886
        %v7549 = vsel %vm3792, %v7485, %v6888
        %v7550 = vsel %vm3792, %v7486, %v6890
        %v7551 = vsel %vm3792, %v7487, %v6892
        %v7552 = vsel %vm3792, %v7488, %v6894
        %v7553 = vsel %vm3792, %v7489, %v6896
        %v7554 = vsel %vm3792, %v7490, %v6898
        %v7555 = vsel %vm3792, %v7491, %v6900
        %v7556 = vsel %vm3792, %v7492, %v6902
        %v7557 = vsel %vm3792, %v7493, %v6904
        %v7558 = vsel %vm3792, %v7494, %v6906
        %v7559 = vsel %vm3792, %v7495, %v6908
        %v7560 = vsel %vm3792, %v7496, %v6910
        %v7561 = vsel %vm3792, %v7497, %v6912
        %v7562 = vsel %vm3792, %v7498, %v6914
        %v7563 = vsel %vm3792, %v7499, %v6916
        %v7564 = vsel %vm3792, %v7500, %v6918
        %v7565 = vsel %vm3792, %v7501, %v6920
        %v7566 = vsel %vm3792, %v7502, %v6922
        %v7567 = vsel %vm3792, %v7503, %v6924
        %v7568 = vsel %vm3792, %v7504, %v6926
        %v7569 = vsel %vm3792, %v7505, %v6928
        %v7570 = vsel %vm7377, %v7506, %v7058
        %v7571 = vsel %vm7377, %v7507, %v7060
        %v7572 = vsel %vm7377, %v7508, %v7062
        %v7573 = vsel %vm7377, %v7509, %v7064
        %v7574 = vsel %vm7377, %v7510, %v7066
        %v7575 = vsel %vm7377, %v7511, %v7068
        %v7576 = vsel %vm7377, %v7512, %v7070
        %v7577 = vsel %vm7377, %v7513, %v7072
        %v7578 = vsel %vm7377, %v7514, %v7074
        %v7579 = vsel %vm7377, %v7515, %v7076
        %v7580 = vsel %vm7377, %v7516, %v7078
        %v7581 = vsel %vm7377, %v7517, %v7080
        %v7582 = vsel %vm7377, %v7518, %v7082
        %v7583 = vsel %vm7377, %v7519, %v7084
        %v7584 = vsel %vm7377, %v7520, %v7086
        %v7585 = vsel %vm7377, %v7521, %v7088
        %v7586 = vsel %vm7377, %v7522, %v7090
        %v7587 = vsel %vm7377, %v7523, %v7092
        %v7588 = vsel %vm7377, %v7524, %v7094
        %v7589 = vsel %vm7377, %v7525, %v7096
        %v7590 = vsel %vm7377, %v7526, %v7098
        %v7591 = vsel %vm7377, %v7527, %v7100
        %v7592 = vsel %vm7377, %v7528, %v7102
        %v7593 = vsel %vm7377, %v7529, %v7104
        %v7594 = vsel %vm7377, %v7530, %v7106
        %v7595 = vsel %vm7377, %v7531, %v7108
        %v7596 = vsel %vm7377, %v7532, %v7110
        %v7597 = vsel %vm7377, %v7533, %v7112
        %v7598 = vsel %vm7377, %v7534, %v7114
        %v7599 = vsel %vm7377, %v7535, %v7116
        %v7600 = vsel %vm7377, %v7536, %v7118
        %v7601 = vsel %vm7377, %v7537, %v7120
        %v7602 = vsel %vm7377, %v7538, %v7122
        %v7603 = vsel %vm7377, %v7539, %v7124
        %v7604 = vsel %vm7377, %v7540, %v7126
        %v7605 = vsel %vm7377, %v7541, %v7128
        %v7606 = vsel %vm7377, %v7542, %v7130
        %v7607 = vsel %vm7377, %v7543, %v7132
        %v7608 = vsel %vm7377, %v7544, %v7134
        %v7609 = vsel %vm7377, %v7545, %v7136
        %v7610 = vsel %vm7377, %v7546, %v7138
        %v7611 = vsel %vm7377, %v7547, %v7140
        %v7612 = vsel %vm7377, %v7548, %v7142
        %v7613 = vsel %vm7377, %v7549, %v7144
        %v7614 = vsel %vm7377, %v7550, %v7146
        %v7615 = vsel %vm7377, %v7551, %v7148
        %v7616 = vsel %vm7377, %v7552, %v7150
        %v7617 = vsel %vm7377, %v7553, %v7152
        %v7618 = vsel %vm7377, %v7554, %v7154
        %v7619 = vsel %vm7377, %v7555, %v7156
        %v7620 = vsel %vm7377, %v7556, %v7158
        %v7621 = vsel %vm7377, %v7557, %v7160
        %v7622 = vsel %vm7377, %v7558, %v7162
        %v7623 = vsel %vm7377, %v7559, %v7164
        %v7624 = vsel %vm7377, %v7560, %v7166
        %v7625 = vsel %vm7377, %v7561, %v7168
        %v7626 = vsel %vm7377, %v7562, %v7170
        %v7627 = vsel %vm7377, %v7563, %v7172
        %v7628 = vsel %vm7377, %v7564, %v7174
        %v7629 = vsel %vm7377, %v7565, %v7176
        %v7630 = vsel %vm7377, %v7566, %v7178
        %v7631 = vsel %vm7377, %v7567, %v7180
        %v7632 = vsel %vm7377, %v7568, %v7182
        %v7633 = vsel %vm7377, %v7569, %v7184
        %v7634 = vld [vmem:[%s2] sm:$0xff]
        %v7635 = vld [vmem:[%s2 + $0x8] sm:$0xff]
        %v7636 = vld [vmem:[%s2 + $0x10] sm:$0xff]
        %v7637 = vld [vmem:[%s2 + $0x18] sm:$0xff]
        %v7638 = vld [vmem:[%s2 + $0x20] sm:$0xff]
        %v7639 = vld [vmem:[%s2 + $0x28] sm:$0xff]
        %v7640 = vld [vmem:[%s2 + $0x30] sm:$0xff]
        %v7641 = vld [vmem:[%s2 + $0x38] sm:$0xff]
        %v7642 = vld [vmem:[%s2 + $0x40] sm:$0xff]
        %v7643 = vld [vmem:[%s2 + $0x48] sm:$0xff]
        %v7644 = vld [vmem:[%s2 + $0x50] sm:$0xff]
        %v7645 = vld [vmem:[%s2 + $0x58] sm:$0xff]
        %v7646 = vld [vmem:[%s2 + $0x60] sm:$0xff]
        %v7647 = vld [vmem:[%s2 + $0x68] sm:$0xff]
        %v7648 = vld [vmem:[%s2 + $0x70] sm:$0xff]
        %v7649 = vld [vmem:[%s2 + $0x78] sm:$0xff]
        %v7650 = vld [vmem:[%s2 + $0x80] sm:$0xff]
        %v7651 = vld [vmem:[%s2 + $0x88] sm:$0xff]
        %v7652 = vld [vmem:[%s2 + $0x90] sm:$0xff]
        %v7653 = vld [vmem:[%s2 + $0x98] sm:$0xff]
        %v7654 = vld [vmem:[%s2 + $0xa0] sm:$0xff]
        %v7655 = vld [vmem:[%s2 + $0xa8] sm:$0xff]
        %v7656 = vld [vmem:[%s2 + $0xb0] sm:$0xff]
        %v7657 = vld [vmem:[%s2 + $0xb8] sm:$0xff]
        %v7658 = vld [vmem:[%s2 + $0xc0] sm:$0xff]
        %v7659 = vld [vmem:[%s2 + $0xc8] sm:$0xff]
        %v7660 = vld [vmem:[%s2 + $0xd0] sm:$0xff]
        %v7661 = vld [vmem:[%s2 + $0xd8] sm:$0xff]
        %v7662 = vld [vmem:[%s2 + $0xe0] sm:$0xff]
        %v7663 = vld [vmem:[%s2 + $0xe8] sm:$0xff]
        %v7664 = vld [vmem:[%s2 + $0xf0] sm:$0xff]
        %v7665 = vld [vmem:[%s2 + $0xf8] sm:$0xff]
        %v7666 = vld [vmem:[%s2 + $0x100] sm:$0xff]
        %v7667 = vld [vmem:[%s2 + $0x108] sm:$0xff]
        %v7668 = vld [vmem:[%s2 + $0x110] sm:$0xff]
        %v7669 = vld [vmem:[%s2 + $0x118] sm:$0xff]
        %v7671 = vsel %vm212, %v5711, 0
        %v7674 = vsel %vm212, %v5710, 0
        %v7677 = vsel %vm212, %v5709, 0
        %v7680 = vsel %vm212, %v5708, 0
        %v7683 = vsel %vm212, %v5707, 0
        %v7686 = vsel %vm212, %v5706, 0
        %v7689 = vsel %vm212, %v5705, 0
        %v7692 = vsel %vm212, %v5704, 0
        %v7695 = vsel %vm212, %v5703, 0
        %v7698 = vsel %vm212, %v5702, 0
        %v7701 = vsel %vm212, %v5701, 0
        %v7704 = vsel %vm212, %v5700, 0
        %v7707 = vsel %vm212, %v5699, 0
        %v7710 = vsel %vm212, %v5698, 0
        %v7713 = vsel %vm212, %v5697, 0
        %v7716 = vsel %vm212, %v5696, 0
        %v7719 = vsel %vm212, %v5695, 0
        %v7722 = vsel %vm212, %v5694, 0
        %v7725 = vsel %vm212, %v5693, 0
        %v7728 = vsel %vm212, %v5692, 0
        %v7731 = vsel %vm212, %v5691, 0
        %v7734 = vsel %vm212, %v5690, 0
        %v7737 = vsel %vm212, %v5689, 0
        %v7740 = vsel %vm212, %v5688, 0
        %v7743 = vsel %vm212, %v5687, 0
        %v7746 = vsel %vm212, %v5686, 0
        %v7749 = vsel %vm212, %v5685, 0
        %v7752 = vsel %vm212, %v5684, 0
        %v7755 = vsel %vm212, %v5683, 0
        %v7758 = vsel %vm212, %v5682, 0
        %v7761 = vsel %vm212, %v5681, 0
        %v7764 = vsel %vm212, %v5680, 0
        %v7767 = vsel %vm212, %v5679, 0
        %v7770 = vsel %vm212, %v5678, 0
        %v7773 = vsel %vm212, %v5677, 0
        %v7776 = vsel %vm212, %v5676, 0
        %v7779 = vsel %vm212, %v5675, 0
        %v7782 = vsel %vm212, %v5674, 0
        %v7785 = vsel %vm212, %v5673, 0
        %v7788 = vsel %vm212, %v5672, 0
        %v7791 = vsel %vm212, %v5671, 0
        %v7794 = vsel %vm212, %v5670, 0
        %v7797 = vsel %vm212, %v5669, 0
        %v7800 = vsel %vm212, %v5668, 0
        %v7803 = vsel %vm212, %v5667, 0
        %v7806 = vsel %vm212, %v5666, 0
        %v7809 = vsel %vm212, %v5665, 0
        %v7812 = vsel %vm212, %v5664, 0
        %v7815 = vsel %vm212, %v5663, 0
        %v7818 = vsel %vm212, %v5662, 0
        %v7821 = vsel %vm212, %v5661, 0
        %v7824 = vsel %vm212, %v5660, 0
        %v7827 = vsel %vm212, %v5659, 0
        %v7830 = vsel %vm212, %v5658, 0
        %v7833 = vsel %vm212, %v5657, 0
        %v7836 = vsel %vm212, %v5656, 0
        %v7839 = vsel %vm212, %v5655, 0
        %v7842 = vsel %vm212, %v5654, 0
        %v7845 = vsel %vm212, %v5653, 0
        %v7848 = vsel %vm212, %v5652, 0
        %v7851 = vsel %vm212, %v5651, 0
        %v7854 = vsel %vm212, %v5650, 0
        %v7857 = vsel %vm212, %v5649, 0
        %v7860 = vsel %vm212, %v5712, 0
        %7862 = vmatprep.subr.mxu0 0.0
        %7863 = vmatpush1.msra.mxu0 %v7649
        %7864 = vmatprep.subr.mxu0 0.0
        %7865 = vmatpush1.msra.mxu0 %v7648
        %7866 = vmatprep.subr.mxu0 0.0
        %7867 = vmatpush1.msra.mxu0 %v7647
        %7868 = vmatprep.subr.mxu0 0.0
        %7869 = vmatpush1.msra.mxu0 %v7646
        %7870 = vmatprep.subr.mxu0 0.0
        %7871 = vmatpush1.msra.mxu0 %v7645
        %7872 = vmatprep.subr.mxu0 0.0
        %7873 = vmatpush1.msra.mxu0 %v7644
        %7874 = vmatprep.subr.mxu0 0.0
        %7875 = vmatpush1.msra.mxu0 %v7643
        %7876 = vmatprep.subr.mxu0 0.0
        %7877 = vmatpush1.msra.mxu0 %v7642
        %7878 = vmatprep.subr.mxu0 0.0
        %7879 = vmatpush1.msra.mxu0 %v7641
        %7880 = vmatprep.subr.mxu0 0.0
        %7881 = vmatpush1.msra.mxu0 %v7640
        %7882 = vmatprep.subr.mxu0 0.0
        %7883 = vmatpush1.msra.mxu0 %v7639
        %7884 = vmatprep.subr.mxu0 0.0
        %7885 = vmatpush1.msra.mxu0 %v7638
        %7886 = vmatprep.subr.mxu0 0.0
        %7887 = vmatpush1.msra.mxu0 %v7637
        %7888 = vmatprep.subr.mxu0 0.0
        %7889 = vmatpush1.msra.mxu0 %v7636
        %7890 = vmatprep.subr.mxu0 0.0
        %7891 = vmatpush1.msra.mxu0 %v7635
        %7892 = vmatprep.subr.mxu0 0.0
        %7893 = vmatpush1.msra.mxu0 %v7634
        %7894 = vmatprep.subr.mxu0 0.0
        %7895 = vmatpush2.msra.mxu0 %v7665
        %7896 = vmatprep.subr.mxu0 0.0
        %7897 = vmatpush2.msra.mxu0 %v7664
        %7898 = vmatprep.subr.mxu0 0.0
        %7899 = vmatpush2.msra.mxu0 %v7663
        %7900 = vmatprep.subr.mxu0 0.0
        %7901 = vmatpush2.msra.mxu0 %v7662
        %7902 = vmatprep.subr.mxu0 0.0
        %7903 = vmatpush2.msra.mxu0 %v7661
        %7904 = vmatprep.subr.mxu0 0.0
        %7905 = vmatpush2.msra.mxu0 %v7660
        %7906 = vmatprep.subr.mxu0 0.0
        %7907 = vmatpush2.msra.mxu0 %v7659
        %7908 = vmatprep.subr.mxu0 0.0
        %7909 = vmatpush2.msra.mxu0 %v7658
        %7910 = vmatprep.subr.mxu0 0.0
        %7911 = vmatpush2.msra.mxu0 %v7657
        %7912 = vmatprep.subr.mxu0 0.0
        %7913 = vmatpush2.msra.mxu0 %v7656
        %7914 = vmatprep.subr.mxu0 0.0
        %7915 = vmatpush2.msra.mxu0 %v7655
        %7916 = vmatprep.subr.mxu0 0.0
        %7917 = vmatpush2.msra.mxu0 %v7654
        %7918 = vmatprep.subr.mxu0 0.0
        %7919 = vmatpush2.msra.mxu0 %v7653
        %7920 = vmatprep.subr.mxu0 0.0
        %7921 = vmatpush2.msra.mxu0 %v7652
        %7922 = vmatprep.subr.mxu0 0.0
        %7923 = vmatpush2.msra.mxu0 %v7651
        %7924 = vmatprep.subr.mxu0 0.0
        %7925 = vmatpush2.msra.mxu0 %v7650
        %7926 = vmatprep.mubr.f32.mxu0 %v7570
        %7927 = vmatmul.mubr.f32.gmra.mxu0 %v7378
        %v7928 = vpop.f32.mrf.mxu0
        %v7929 = vpop.f32.mrf.mxu0
        %7930 = vmatprep.mubr.f32.mxu0 %v7571
        %7931 = vmatmul.mubr.f32.gmra.mxu0 %v7379
        %v7932 = vpop.f32.mrf.mxu0
        %v7933 = vadd.f32 0.0, %v7932
        %v7934 = vpop.f32.mrf.mxu0
        %7935 = vmatprep.mubr.f32.mxu0 %v7572
        %7936 = vmatmul.mubr.f32.gmra.mxu0 %v7380
        %v7937 = vpop.f32.mrf.mxu0
        %v7938 = vadd.f32 0.0, %v7937
        %v7939 = vpop.f32.mrf.mxu0
        %7940 = vmatprep.mubr.f32.mxu0 %v7573
        %7941 = vmatmul.mubr.f32.gmra.mxu0 %v7381
        %v7942 = vpop.f32.mrf.mxu0
        %v7943 = vpop.f32.mrf.mxu0
        %7944 = vmatprep.mubr.f32.mxu0 %v7574
        %7945 = vmatmul.mubr.f32.gmra.mxu0 %v7382
        %v7946 = vpop.f32.mrf.mxu0
        %v7947 = vpop.f32.mrf.mxu0
        %7948 = vmatprep.mubr.f32.mxu0 %v7575
        %7949 = vmatmul.mubr.f32.gmra.mxu0 %v7383
        %v7950 = vpop.f32.mrf.mxu0
        %v7951 = vadd.f32 0.0, %v7950
        %v7952 = vpop.f32.mrf.mxu0
        %7953 = vmatprep.mubr.f32.mxu0 %v7576
        %7954 = vmatmul.mubr.f32.gmra.mxu0 %v7384
        %v7955 = vpop.f32.mrf.mxu0
        %v7956 = vadd.f32 0.0, %v7955
        %v7957 = vpop.f32.mrf.mxu0
        %7958 = vmatprep.mubr.f32.mxu0 %v7577
        %7959 = vmatmul.mubr.f32.gmra.mxu0 %v7385
        %v7960 = vpop.f32.mrf.mxu0
        %v7961 = vpop.f32.mrf.mxu0
        %7962 = vmatprep.mubr.f32.mxu0 %v7578
        %7963 = vmatmul.mubr.f32.gmra.mxu0 %v7386
        %v7964 = vpop.f32.mrf.mxu0
        %v7965 = vpop.f32.mrf.mxu0
        %7966 = vmatprep.mubr.f32.mxu0 %v7579
        %7967 = vmatmul.mubr.f32.gmra.mxu0 %v7387
        %v7968 = vpop.f32.mrf.mxu0
        %v7969 = vadd.f32 0.0, %v7968
        %v7970 = vpop.f32.mrf.mxu0
        %7971 = vmatprep.mubr.f32.mxu0 %v7580
        %7972 = vmatmul.mubr.f32.gmra.mxu0 %v7388
        %v7973 = vpop.f32.mrf.mxu0
        %v7974 = vadd.f32 0.0, %v7973
        %v7975 = vpop.f32.mrf.mxu0
        %7976 = vmatprep.mubr.f32.mxu0 %v7581
        %7977 = vmatmul.mubr.f32.gmra.mxu0 %v7389
        %v7978 = vpop.f32.mrf.mxu0
        %v7979 = vpop.f32.mrf.mxu0
        %7980 = vmatprep.mubr.f32.mxu0 %v7582
        %7981 = vmatmul.mubr.f32.gmra.mxu0 %v7390
        %v7982 = vpop.f32.mrf.mxu0
        %v7983 = vpop.f32.mrf.mxu0
        %7984 = vmatprep.mubr.f32.mxu0 %v7583
        %7985 = vmatmul.mubr.f32.gmra.mxu0 %v7391
        %v7986 = vpop.f32.mrf.mxu0
        %v7987 = vadd.f32 0.0, %v7986
        %v7988 = vpop.f32.mrf.mxu0
        %7989 = vmatprep.mubr.f32.mxu0 %v7584
        %7990 = vmatmul.mubr.f32.gmra.mxu0 %v7392
        %v7991 = vpop.f32.mrf.mxu0
        %v7992 = vadd.f32 0.0, %v7991
        %v7993 = vpop.f32.mrf.mxu0
        %7994 = vmatprep.mubr.f32.mxu0 %v7585
        %7995 = vmatmul.mubr.f32.gmra.mxu0 %v7393
        %v7996 = vpop.f32.mrf.mxu0
        %v7997 = vpop.f32.mrf.mxu0
        %7998 = vmatprep.mubr.f32.mxu0 %v7586
        %7999 = vmatmul.mubr.f32.gmra.mxu0 %v7394
        %v8000 = vpop.f32.mrf.mxu0
        %v8001 = vpop.f32.mrf.mxu0
        %8002 = vmatprep.mubr.f32.mxu0 %v7587
        %8003 = vmatmul.mubr.f32.gmra.mxu0 %v7395
        %v8004 = vpop.f32.mrf.mxu0
        %v8005 = vadd.f32 0.0, %v8004
        %v8006 = vpop.f32.mrf.mxu0
        %8007 = vmatprep.mubr.f32.mxu0 %v7588
        %8008 = vmatmul.mubr.f32.gmra.mxu0 %v7396
        %v8009 = vpop.f32.mrf.mxu0
        %v8010 = vadd.f32 0.0, %v8009
        %v8011 = vpop.f32.mrf.mxu0
        %8012 = vmatprep.mubr.f32.mxu0 %v7589
        %8013 = vmatmul.mubr.f32.gmra.mxu0 %v7397
        %v8014 = vpop.f32.mrf.mxu0
        %v8015 = vpop.f32.mrf.mxu0
        %8016 = vmatprep.mubr.f32.mxu0 %v7590
        %8017 = vmatmul.mubr.f32.gmra.mxu0 %v7398
        %v8018 = vpop.f32.mrf.mxu0
        %v8019 = vpop.f32.mrf.mxu0
        %8020 = vmatprep.mubr.f32.mxu0 %v7591
        %8021 = vmatmul.mubr.f32.gmra.mxu0 %v7399
        %v8022 = vpop.f32.mrf.mxu0
        %v8023 = vadd.f32 0.0, %v8022
        %v8024 = vpop.f32.mrf.mxu0
        %8025 = vmatprep.mubr.f32.mxu0 %v7592
        %8026 = vmatmul.mubr.f32.gmra.mxu0 %v7400
        %v8027 = vpop.f32.mrf.mxu0
        %v8028 = vadd.f32 0.0, %v8027
        %v8029 = vpop.f32.mrf.mxu0
        %8030 = vmatprep.mubr.f32.mxu0 %v7593
        %8031 = vmatmul.mubr.f32.gmra.mxu0 %v7401
        %v8032 = vpop.f32.mrf.mxu0
        %v8033 = vpop.f32.mrf.mxu0
        %8034 = vmatprep.mubr.f32.mxu0 %v7594
        %8035 = vmatmul.mubr.f32.gmra.mxu0 %v7402
        %v8036 = vpop.f32.mrf.mxu0
        %v8037 = vpop.f32.mrf.mxu0
        %8038 = vmatprep.mubr.f32.mxu0 %v7595
        %8039 = vmatmul.mubr.f32.gmra.mxu0 %v7403
        %v8040 = vpop.f32.mrf.mxu0
        %v8041 = vadd.f32 0.0, %v8040
        %v8042 = vpop.f32.mrf.mxu0
        %8043 = vmatprep.mubr.f32.mxu0 %v7596
        %8044 = vmatmul.mubr.f32.gmra.mxu0 %v7404
        %v8045 = vpop.f32.mrf.mxu0
        %v8046 = vadd.f32 0.0, %v8045
        %v8047 = vpop.f32.mrf.mxu0
        %8048 = vmatprep.mubr.f32.mxu0 %v7597
        %8049 = vmatmul.mubr.f32.gmra.mxu0 %v7405
        %v8050 = vpop.f32.mrf.mxu0
        %v8051 = vpop.f32.mrf.mxu0
        %8052 = vmatprep.mubr.f32.mxu0 %v7598
        %8053 = vmatmul.mubr.f32.gmra.mxu0 %v7406
        %v8054 = vpop.f32.mrf.mxu0
        %v8055 = vpop.f32.mrf.mxu0
        %8056 = vmatprep.mubr.f32.mxu0 %v7599
        %8057 = vmatmul.mubr.f32.gmra.mxu0 %v7407
        %v8058 = vpop.f32.mrf.mxu0
        %v8059 = vadd.f32 0.0, %v8058
        %v8060 = vpop.f32.mrf.mxu0
        %8061 = vmatprep.mubr.f32.mxu0 %v7600
        %8062 = vmatmul.mubr.f32.gmra.mxu0 %v7408
        %v8063 = vpop.f32.mrf.mxu0
        %v8064 = vadd.f32 0.0, %v8063
        %v8065 = vpop.f32.mrf.mxu0
        %8066 = vmatprep.mubr.f32.mxu0 %v7601
        %8067 = vmatmul.mubr.f32.gmra.mxu0 %v7409
        %v8068 = vpop.f32.mrf.mxu0
        %v8069 = vpop.f32.mrf.mxu0
        %8070 = vmatprep.mubr.f32.mxu0 %v7602
        %8071 = vmatmul.mubr.f32.gmra.mxu0 %v7410
        %v8072 = vpop.f32.mrf.mxu0
        %v8073 = vpop.f32.mrf.mxu0
        %8074 = vmatprep.mubr.f32.mxu0 %v7603
        %8075 = vmatmul.mubr.f32.gmra.mxu0 %v7411
        %v8076 = vpop.f32.mrf.mxu0
        %v8077 = vadd.f32 0.0, %v8076
        %v8078 = vpop.f32.mrf.mxu0
        %8079 = vmatprep.mubr.f32.mxu0 %v7604
        %8080 = vmatmul.mubr.f32.gmra.mxu0 %v7412
        %v8081 = vpop.f32.mrf.mxu0
        %v8082 = vadd.f32 0.0, %v8081
        %v8083 = vpop.f32.mrf.mxu0
        %8084 = vmatprep.mubr.f32.mxu0 %v7605
        %8085 = vmatmul.mubr.f32.gmra.mxu0 %v7413
        %v8086 = vpop.f32.mrf.mxu0
        %v8087 = vpop.f32.mrf.mxu0
        %8088 = vmatprep.mubr.f32.mxu0 %v7606
        %8089 = vmatmul.mubr.f32.gmra.mxu0 %v7414
        %v8090 = vpop.f32.mrf.mxu0
        %v8091 = vpop.f32.mrf.mxu0
        %8092 = vmatprep.mubr.f32.mxu0 %v7607
        %8093 = vmatmul.mubr.f32.gmra.mxu0 %v7415
        %v8094 = vpop.f32.mrf.mxu0
        %v8095 = vadd.f32 0.0, %v8094
        %v8096 = vpop.f32.mrf.mxu0
        %8097 = vmatprep.mubr.f32.mxu0 %v7608
        %8098 = vmatmul.mubr.f32.gmra.mxu0 %v7416
        %v8099 = vpop.f32.mrf.mxu0
        %v8100 = vadd.f32 0.0, %v8099
        %v8101 = vpop.f32.mrf.mxu0
        %8102 = vmatprep.mubr.f32.mxu0 %v7609
        %8103 = vmatmul.mubr.f32.gmra.mxu0 %v7417
        %v8104 = vpop.f32.mrf.mxu0
        %v8105 = vpop.f32.mrf.mxu0
        %8106 = vmatprep.mubr.f32.mxu0 %v7610
        %8107 = vmatmul.mubr.f32.gmra.mxu0 %v7418
        %v8108 = vpop.f32.mrf.mxu0
        %v8109 = vpop.f32.mrf.mxu0
        %8110 = vmatprep.mubr.f32.mxu0 %v7611
        %8111 = vmatmul.mubr.f32.gmra.mxu0 %v7419
        %v8112 = vpop.f32.mrf.mxu0
        %v8113 = vadd.f32 0.0, %v8112
        %v8114 = vpop.f32.mrf.mxu0
        %8115 = vmatprep.mubr.f32.mxu0 %v7612
        %8116 = vmatmul.mubr.f32.gmra.mxu0 %v7420
        %v8117 = vpop.f32.mrf.mxu0
        %v8118 = vadd.f32 0.0, %v8117
        %v8119 = vpop.f32.mrf.mxu0
        %8120 = vmatprep.mubr.f32.mxu0 %v7613
        %8121 = vmatmul.mubr.f32.gmra.mxu0 %v7421
        %v8122 = vpop.f32.mrf.mxu0
        %v8123 = vpop.f32.mrf.mxu0
        %8124 = vmatprep.mubr.f32.mxu0 %v7614
        %8125 = vmatmul.mubr.f32.gmra.mxu0 %v7422
        %v8126 = vpop.f32.mrf.mxu0
        %v8127 = vpop.f32.mrf.mxu0
        %8128 = vmatprep.mubr.f32.mxu0 %v7615
        %8129 = vmatmul.mubr.f32.gmra.mxu0 %v7423
        %v8130 = vpop.f32.mrf.mxu0
        %v8131 = vadd.f32 0.0, %v8130
        %v8132 = vpop.f32.mrf.mxu0
        %8133 = vmatprep.mubr.f32.mxu0 %v7616
        %8134 = vmatmul.mubr.f32.gmra.mxu0 %v7424
        %v8135 = vpop.f32.mrf.mxu0
        %v8136 = vadd.f32 0.0, %v8135
        %v8137 = vpop.f32.mrf.mxu0
        %8138 = vmatprep.mubr.f32.mxu0 %v7617
        %8139 = vmatmul.mubr.f32.gmra.mxu0 %v7425
        %v8140 = vpop.f32.mrf.mxu0
        %v8141 = vpop.f32.mrf.mxu0
        %8142 = vmatprep.mubr.f32.mxu0 %v7618
        %8143 = vmatmul.mubr.f32.gmra.mxu0 %v7426
        %v8144 = vpop.f32.mrf.mxu0
        %v8145 = vpop.f32.mrf.mxu0
        %8146 = vmatprep.mubr.f32.mxu0 %v7619
        %8147 = vmatmul.mubr.f32.gmra.mxu0 %v7427
        %v8148 = vpop.f32.mrf.mxu0
        %v8149 = vadd.f32 0.0, %v8148
        %v8150 = vpop.f32.mrf.mxu0
        %8151 = vmatprep.mubr.f32.mxu0 %v7620
        %8152 = vmatmul.mubr.f32.gmra.mxu0 %v7428
        %v8153 = vpop.f32.mrf.mxu0
        %v8154 = vadd.f32 0.0, %v8153
        %v8155 = vpop.f32.mrf.mxu0
        %8156 = vmatprep.mubr.f32.mxu0 %v7621
        %8157 = vmatmul.mubr.f32.gmra.mxu0 %v7429
        %v8158 = vpop.f32.mrf.mxu0
        %v8159 = vpop.f32.mrf.mxu0
        %8160 = vmatprep.mubr.f32.mxu0 %v7622
        %8161 = vmatmul.mubr.f32.gmra.mxu0 %v7430
        %v8162 = vpop.f32.mrf.mxu0
        %v8163 = vpop.f32.mrf.mxu0
        %8164 = vmatprep.mubr.f32.mxu0 %v7623
        %8165 = vmatmul.mubr.f32.gmra.mxu0 %v7431
        %v8166 = vpop.f32.mrf.mxu0
        %v8167 = vadd.f32 0.0, %v8166
        %v8168 = vpop.f32.mrf.mxu0
        %8169 = vmatprep.mubr.f32.mxu0 %v7624
        %8170 = vmatmul.mubr.f32.gmra.mxu0 %v7432
        %v8171 = vpop.f32.mrf.mxu0
        %v8172 = vadd.f32 0.0, %v8171
        %v8173 = vpop.f32.mrf.mxu0
        %8174 = vmatprep.mubr.f32.mxu0 %v7625
        %8175 = vmatmul.mubr.f32.gmra.mxu0 %v7433
        %v8176 = vpop.f32.mrf.mxu0
        %v8177 = vpop.f32.mrf.mxu0
        %8178 = vmatprep.mubr.f32.mxu0 %v7626
        %8179 = vmatmul.mubr.f32.gmra.mxu0 %v7434
        %v8180 = vpop.f32.mrf.mxu0
        %v8181 = vpop.f32.mrf.mxu0
        %8182 = vmatprep.mubr.f32.mxu0 %v7627
        %8183 = vmatmul.mubr.f32.gmra.mxu0 %v7435
        %v8184 = vpop.f32.mrf.mxu0
        %v8185 = vadd.f32 0.0, %v8184
        %v8186 = vpop.f32.mrf.mxu0
        %8187 = vmatprep.mubr.f32.mxu0 %v7628
        %8188 = vmatmul.mubr.f32.gmra.mxu0 %v7436
        %v8189 = vpop.f32.mrf.mxu0
        %v8190 = vadd.f32 0.0, %v8189
        %v8191 = vpop.f32.mrf.mxu0
        %8192 = vmatprep.mubr.f32.mxu0 %v7629
        %8193 = vmatmul.mubr.f32.gmra.mxu0 %v7437
        %v8194 = vpop.f32.mrf.mxu0
        %v8195 = vpop.f32.mrf.mxu0
        %8196 = vmatprep.mubr.f32.mxu0 %v7630
        %8197 = vmatmul.mubr.f32.gmra.mxu0 %v7438
        %v8198 = vpop.f32.mrf.mxu0
        %v8199 = vpop.f32.mrf.mxu0
        %8200 = vmatprep.mubr.f32.mxu0 %v7631
        %8201 = vmatmul.mubr.f32.gmra.mxu0 %v7439
        %v8202 = vpop.f32.mrf.mxu0
        %v8203 = vadd.f32 0.0, %v8202
        %v8204 = vpop.f32.mrf.mxu0
        %8205 = vmatprep.mubr.f32.mxu0 %v7632
        %8206 = vmatmul.mubr.f32.gmra.mxu0 %v7440
        %v8207 = vpop.f32.mrf.mxu0
        %v8208 = vadd.f32 0.0, %v8207
        %v8209 = vpop.f32.mrf.mxu0
        %8210 = vmatprep.mubr.f32.mxu0 %v7633
        %8211 = vmatmul.mubr.f32.gmra.mxu0 %v7441
        %v8212 = vpop.f32.mrf.mxu0
        %v8213 = vpop.f32.mrf.mxu0
        %8214 = vdwg.mxu0
        %8215 = vmatprep.subr.mxu0 0.0
        %8216 = vmatpush1.msra.mxu0 0.0
        %8217 = vmatprep.subr.mxu0 0.0
        %8218 = vmatpush1.msra.mxu0 0.0
        %8219 = vmatprep.subr.mxu0 0.0
        %8220 = vmatpush1.msra.mxu0 0.0
        %8221 = vmatprep.subr.mxu0 0.0
        %8222 = vmatpush1.msra.mxu0 0.0
        %8223 = vmatprep.subr.mxu0 0.0
        %8224 = vmatpush1.msra.mxu0 0.0
        %8225 = vmatprep.subr.mxu0 0.0
        %8226 = vmatpush1.msra.mxu0 0.0
        %8227 = vmatprep.subr.mxu0 0.0
        %8228 = vmatpush1.msra.mxu0 0.0
        %8229 = vmatprep.subr.mxu0 0.0
        %8230 = vmatpush1.msra.mxu0 0.0
        %8231 = vmatprep.subr.mxu0 0.0
        %8232 = vmatpush1.msra.mxu0 0.0
        %8233 = vmatprep.subr.mxu0 0.0
        %8234 = vmatpush1.msra.mxu0 0.0
        %8235 = vmatprep.subr.mxu0 0.0
        %8236 = vmatpush1.msra.mxu0 0.0
        %8237 = vmatprep.subr.mxu0 0.0
        %8238 = vmatpush1.msra.mxu0 0.0
        %8239 = vmatprep.subr.mxu0 0.0
        %8240 = vmatpush1.msra.mxu0 %v7669
        %8241 = vmatprep.subr.mxu0 0.0
        %8242 = vmatpush1.msra.mxu0 %v7668
        %8243 = vmatprep.subr.mxu0 0.0
        %8244 = vmatpush1.msra.mxu0 %v7667
        %8245 = vmatprep.subr.mxu0 0.0
        %8246 = vmatpush1.msra.mxu0 %v7666
        %8247 = vmatprep.subr.mxu0 0.0
        %8248 = vmatpush2.msra.mxu0 0.0
        %8249 = vmatprep.subr.mxu0 0.0
        %8250 = vmatpush2.msra.mxu0 0.0
        %8251 = vmatprep.subr.mxu0 0.0
        %8252 = vmatpush2.msra.mxu0 0.0
        %8253 = vmatprep.subr.mxu0 0.0
        %8254 = vmatpush2.msra.mxu0 0.0
        %8255 = vmatprep.subr.mxu0 0.0
        %8256 = vmatpush2.msra.mxu0 0.0
        %8257 = vmatprep.subr.mxu0 0.0
        %8258 = vmatpush2.msra.mxu0 0.0
        %8259 = vmatprep.subr.mxu0 0.0
        %8260 = vmatpush2.msra.mxu0 0.0
        %8261 = vmatprep.subr.mxu0 0.0
        %8262 = vmatpush2.msra.mxu0 0.0
        %8263 = vmatprep.subr.mxu0 0.0
        %8264 = vmatpush2.msra.mxu0 0.0
        %8265 = vmatprep.subr.mxu0 0.0
        %8266 = vmatpush2.msra.mxu0 0.0
        %8267 = vmatprep.subr.mxu0 0.0
        %8268 = vmatpush2.msra.mxu0 0.0
        %8269 = vmatprep.subr.mxu0 0.0
        %8270 = vmatpush2.msra.mxu0 0.0
        %8271 = vmatprep.subr.mxu0 0.0
        %8272 = vmatpush2.msra.mxu0 0.0
        %8273 = vmatprep.subr.mxu0 0.0
        %8274 = vmatpush2.msra.mxu0 0.0
        %8275 = vmatprep.subr.mxu0 0.0
        %8276 = vmatpush2.msra.mxu0 0.0
        %8277 = vmatprep.subr.mxu0 0.0
        %8278 = vmatpush2.msra.mxu0 0.0
        %8279 = vmatprep.mubr.f32.mxu0 0.0
        %8280 = vmatmul.mubr.f32.gmra.mxu0 %v7671
        %v8281 = vpop.f32.mrf.mxu0
        %v8282 = vpop.f32.mrf.mxu0
        %8283 = vmatprep.mubr.f32.mxu0 0.0
        %8284 = vmatmul.mubr.f32.gmra.mxu0 %v7674
        %v8285 = vpop.f32.mrf.mxu0
        %v8286 = vadd.f32 %v7933, %v8285
        %v8287 = vpop.f32.mrf.mxu0
        %8288 = vmatprep.mubr.f32.mxu0 0.0
        %8289 = vmatmul.mubr.f32.gmra.mxu0 %v7677
        %v8290 = vpop.f32.mrf.mxu0
        %v8291 = vadd.f32 %v7938, %v8290
        %v8292 = vpop.f32.mrf.mxu0
        %8293 = vmatprep.mubr.f32.mxu0 0.0
        %8294 = vmatmul.mubr.f32.gmra.mxu0 %v7680
        %v8295 = vpop.f32.mrf.mxu0
        %v8296 = vpop.f32.mrf.mxu0
        %8297 = vmatprep.mubr.f32.mxu0 0.0
        %8298 = vmatmul.mubr.f32.gmra.mxu0 %v7683
        %v8299 = vpop.f32.mrf.mxu0
        %v8300 = vpop.f32.mrf.mxu0
        %8301 = vmatprep.mubr.f32.mxu0 0.0
        %8302 = vmatmul.mubr.f32.gmra.mxu0 %v7686
        %v8303 = vpop.f32.mrf.mxu0
        %v8304 = vadd.f32 %v7951, %v8303
        %v8305 = vpop.f32.mrf.mxu0
        %8306 = vmatprep.mubr.f32.mxu0 0.0
        %8307 = vmatmul.mubr.f32.gmra.mxu0 %v7689
        %v8308 = vpop.f32.mrf.mxu0
        %v8309 = vadd.f32 %v7956, %v8308
        %v8310 = vpop.f32.mrf.mxu0
        %8311 = vmatprep.mubr.f32.mxu0 0.0
        %8312 = vmatmul.mubr.f32.gmra.mxu0 %v7692
        %v8313 = vpop.f32.mrf.mxu0
        %v8314 = vpop.f32.mrf.mxu0
        %8315 = vmatprep.mubr.f32.mxu0 0.0
        %8316 = vmatmul.mubr.f32.gmra.mxu0 %v7695
        %v8317 = vpop.f32.mrf.mxu0
        %v8318 = vpop.f32.mrf.mxu0
        %8319 = vmatprep.mubr.f32.mxu0 0.0
        %8320 = vmatmul.mubr.f32.gmra.mxu0 %v7698
        %v8321 = vpop.f32.mrf.mxu0
        %v8322 = vadd.f32 %v7969, %v8321
        %v8323 = vpop.f32.mrf.mxu0
        %8324 = vmatprep.mubr.f32.mxu0 0.0
        %8325 = vmatmul.mubr.f32.gmra.mxu0 %v7701
        %v8326 = vpop.f32.mrf.mxu0
        %v8327 = vadd.f32 %v7974, %v8326
        %v8328 = vpop.f32.mrf.mxu0
        %8329 = vmatprep.mubr.f32.mxu0 0.0
        %8330 = vmatmul.mubr.f32.gmra.mxu0 %v7704
        %v8331 = vpop.f32.mrf.mxu0
        %v8332 = vpop.f32.mrf.mxu0
        %8333 = vmatprep.mubr.f32.mxu0 0.0
        %8334 = vmatmul.mubr.f32.gmra.mxu0 %v7707
        %v8335 = vpop.f32.mrf.mxu0
        %v8336 = vpop.f32.mrf.mxu0
        %8337 = vmatprep.mubr.f32.mxu0 0.0
        %8338 = vmatmul.mubr.f32.gmra.mxu0 %v7710
        %v8339 = vpop.f32.mrf.mxu0
        %v8340 = vadd.f32 %v7987, %v8339
        %v8341 = vpop.f32.mrf.mxu0
        %8342 = vmatprep.mubr.f32.mxu0 0.0
        %8343 = vmatmul.mubr.f32.gmra.mxu0 %v7713
        %v8344 = vpop.f32.mrf.mxu0
        %v8345 = vadd.f32 %v7992, %v8344
        %v8346 = vpop.f32.mrf.mxu0
        %8347 = vmatprep.mubr.f32.mxu0 0.0
        %8348 = vmatmul.mubr.f32.gmra.mxu0 %v7716
        %v8349 = vpop.f32.mrf.mxu0
        %v8350 = vpop.f32.mrf.mxu0
        %8351 = vmatprep.mubr.f32.mxu0 0.0
        %8352 = vmatmul.mubr.f32.gmra.mxu0 %v7719
        %v8353 = vpop.f32.mrf.mxu0
        %v8354 = vpop.f32.mrf.mxu0
        %8355 = vmatprep.mubr.f32.mxu0 0.0
        %8356 = vmatmul.mubr.f32.gmra.mxu0 %v7722
        %v8357 = vpop.f32.mrf.mxu0
        %v8358 = vadd.f32 %v8005, %v8357
        %v8359 = vpop.f32.mrf.mxu0
        %8360 = vmatprep.mubr.f32.mxu0 0.0
        %8361 = vmatmul.mubr.f32.gmra.mxu0 %v7725
        %v8362 = vpop.f32.mrf.mxu0
        %v8363 = vadd.f32 %v8010, %v8362
        %v8364 = vpop.f32.mrf.mxu0
        %8365 = vmatprep.mubr.f32.mxu0 0.0
        %8366 = vmatmul.mubr.f32.gmra.mxu0 %v7728
        %v8367 = vpop.f32.mrf.mxu0
        %v8368 = vpop.f32.mrf.mxu0
        %8369 = vmatprep.mubr.f32.mxu0 0.0
        %8370 = vmatmul.mubr.f32.gmra.mxu0 %v7731
        %v8371 = vpop.f32.mrf.mxu0
        %v8372 = vpop.f32.mrf.mxu0
        %8373 = vmatprep.mubr.f32.mxu0 0.0
        %8374 = vmatmul.mubr.f32.gmra.mxu0 %v7734
        %v8375 = vpop.f32.mrf.mxu0
        %v8376 = vadd.f32 %v8023, %v8375
        %v8377 = vpop.f32.mrf.mxu0
        %8378 = vmatprep.mubr.f32.mxu0 0.0
        %8379 = vmatmul.mubr.f32.gmra.mxu0 %v7737
        %v8380 = vpop.f32.mrf.mxu0
        %v8381 = vadd.f32 %v8028, %v8380
        %v8382 = vpop.f32.mrf.mxu0
        %8383 = vmatprep.mubr.f32.mxu0 0.0
        %8384 = vmatmul.mubr.f32.gmra.mxu0 %v7740
        %v8385 = vpop.f32.mrf.mxu0
        %v8386 = vpop.f32.mrf.mxu0
        %8387 = vmatprep.mubr.f32.mxu0 0.0
        %8388 = vmatmul.mubr.f32.gmra.mxu0 %v7743
        %v8389 = vpop.f32.mrf.mxu0
        %v8390 = vpop.f32.mrf.mxu0
        %8391 = vmatprep.mubr.f32.mxu0 0.0
        %8392 = vmatmul.mubr.f32.gmra.mxu0 %v7746
        %v8393 = vpop.f32.mrf.mxu0
        %v8394 = vadd.f32 %v8041, %v8393
        %v8395 = vpop.f32.mrf.mxu0
        %8396 = vmatprep.mubr.f32.mxu0 0.0
        %8397 = vmatmul.mubr.f32.gmra.mxu0 %v7749
        %v8398 = vpop.f32.mrf.mxu0
        %v8399 = vadd.f32 %v8046, %v8398
        %v8400 = vpop.f32.mrf.mxu0
        %8401 = vmatprep.mubr.f32.mxu0 0.0
        %8402 = vmatmul.mubr.f32.gmra.mxu0 %v7752
        %v8403 = vpop.f32.mrf.mxu0
        %v8404 = vpop.f32.mrf.mxu0
        %8405 = vmatprep.mubr.f32.mxu0 0.0
        %8406 = vmatmul.mubr.f32.gmra.mxu0 %v7755
        %v8407 = vpop.f32.mrf.mxu0
        %v8408 = vpop.f32.mrf.mxu0
        %8409 = vmatprep.mubr.f32.mxu0 0.0
        %8410 = vmatmul.mubr.f32.gmra.mxu0 %v7758
        %v8411 = vpop.f32.mrf.mxu0
        %v8412 = vadd.f32 %v8059, %v8411
        %v8413 = vpop.f32.mrf.mxu0
        %8414 = vmatprep.mubr.f32.mxu0 0.0
        %8415 = vmatmul.mubr.f32.gmra.mxu0 %v7761
        %v8416 = vpop.f32.mrf.mxu0
        %v8417 = vadd.f32 %v8064, %v8416
        %v8418 = vpop.f32.mrf.mxu0
        %8419 = vmatprep.mubr.f32.mxu0 0.0
        %8420 = vmatmul.mubr.f32.gmra.mxu0 %v7764
        %v8421 = vpop.f32.mrf.mxu0
        %v8422 = vpop.f32.mrf.mxu0
        %8423 = vmatprep.mubr.f32.mxu0 0.0
        %8424 = vmatmul.mubr.f32.gmra.mxu0 %v7767
        %v8425 = vpop.f32.mrf.mxu0
        %v8426 = vpop.f32.mrf.mxu0
        %8427 = vmatprep.mubr.f32.mxu0 0.0
        %8428 = vmatmul.mubr.f32.gmra.mxu0 %v7770
        %v8429 = vpop.f32.mrf.mxu0
        %v8430 = vadd.f32 %v8077, %v8429
        %v8431 = vpop.f32.mrf.mxu0
        %8432 = vmatprep.mubr.f32.mxu0 0.0
        %8433 = vmatmul.mubr.f32.gmra.mxu0 %v7773
        %v8434 = vpop.f32.mrf.mxu0
        %v8435 = vadd.f32 %v8082, %v8434
        %v8436 = vpop.f32.mrf.mxu0
        %8437 = vmatprep.mubr.f32.mxu0 0.0
        %8438 = vmatmul.mubr.f32.gmra.mxu0 %v7776
        %v8439 = vpop.f32.mrf.mxu0
        %v8440 = vpop.f32.mrf.mxu0
        %8441 = vmatprep.mubr.f32.mxu0 0.0
        %8442 = vmatmul.mubr.f32.gmra.mxu0 %v7779
        %v8443 = vpop.f32.mrf.mxu0
        %v8444 = vpop.f32.mrf.mxu0
        %8445 = vmatprep.mubr.f32.mxu0 0.0
        %8446 = vmatmul.mubr.f32.gmra.mxu0 %v7782
        %v8447 = vpop.f32.mrf.mxu0
        %v8448 = vadd.f32 %v8095, %v8447
        %v8449 = vpop.f32.mrf.mxu0
        %8450 = vmatprep.mubr.f32.mxu0 0.0
        %8451 = vmatmul.mubr.f32.gmra.mxu0 %v7785
        %v8452 = vpop.f32.mrf.mxu0
        %v8453 = vadd.f32 %v8100, %v8452
        %v8454 = vpop.f32.mrf.mxu0
        %8455 = vmatprep.mubr.f32.mxu0 0.0
        %8456 = vmatmul.mubr.f32.gmra.mxu0 %v7788
        %v8457 = vpop.f32.mrf.mxu0
        %v8458 = vpop.f32.mrf.mxu0
        %8459 = vmatprep.mubr.f32.mxu0 0.0
        %8460 = vmatmul.mubr.f32.gmra.mxu0 %v7791
        %v8461 = vpop.f32.mrf.mxu0
        %v8462 = vpop.f32.mrf.mxu0
        %8463 = vmatprep.mubr.f32.mxu0 0.0
        %8464 = vmatmul.mubr.f32.gmra.mxu0 %v7794
        %v8465 = vpop.f32.mrf.mxu0
        %v8466 = vadd.f32 %v8113, %v8465
        %v8467 = vpop.f32.mrf.mxu0
        %8468 = vmatprep.mubr.f32.mxu0 0.0
        %8469 = vmatmul.mubr.f32.gmra.mxu0 %v7797
        %v8470 = vpop.f32.mrf.mxu0
        %v8471 = vadd.f32 %v8118, %v8470
        %v8472 = vpop.f32.mrf.mxu0
        %8473 = vmatprep.mubr.f32.mxu0 0.0
        %8474 = vmatmul.mubr.f32.gmra.mxu0 %v7800
        %v8475 = vpop.f32.mrf.mxu0
        %v8476 = vpop.f32.mrf.mxu0
        %8477 = vmatprep.mubr.f32.mxu0 0.0
        %8478 = vmatmul.mubr.f32.gmra.mxu0 %v7803
        %v8479 = vpop.f32.mrf.mxu0
        %v8480 = vpop.f32.mrf.mxu0
        %8481 = vmatprep.mubr.f32.mxu0 0.0
        %8482 = vmatmul.mubr.f32.gmra.mxu0 %v7806
        %v8483 = vpop.f32.mrf.mxu0
        %v8484 = vadd.f32 %v8131, %v8483
        %v8485 = vpop.f32.mrf.mxu0
        %8486 = vmatprep.mubr.f32.mxu0 0.0
        %8487 = vmatmul.mubr.f32.gmra.mxu0 %v7809
        %v8488 = vpop.f32.mrf.mxu0
        %v8489 = vadd.f32 %v8136, %v8488
        %v8490 = vpop.f32.mrf.mxu0
        %8491 = vmatprep.mubr.f32.mxu0 0.0
        %8492 = vmatmul.mubr.f32.gmra.mxu0 %v7812
        %v8493 = vpop.f32.mrf.mxu0
        %v8494 = vpop.f32.mrf.mxu0
        %8495 = vmatprep.mubr.f32.mxu0 0.0
        %8496 = vmatmul.mubr.f32.gmra.mxu0 %v7815
        %v8497 = vpop.f32.mrf.mxu0
        %v8498 = vpop.f32.mrf.mxu0
        %8499 = vmatprep.mubr.f32.mxu0 0.0
        %8500 = vmatmul.mubr.f32.gmra.mxu0 %v7818
        %v8501 = vpop.f32.mrf.mxu0
        %v8502 = vadd.f32 %v8149, %v8501
        %v8503 = vpop.f32.mrf.mxu0
        %8504 = vmatprep.mubr.f32.mxu0 0.0
        %8505 = vmatmul.mubr.f32.gmra.mxu0 %v7821
        %v8506 = vpop.f32.mrf.mxu0
        %v8507 = vadd.f32 %v8154, %v8506
        %v8508 = vpop.f32.mrf.mxu0
        %8509 = vmatprep.mubr.f32.mxu0 0.0
        %8510 = vmatmul.mubr.f32.gmra.mxu0 %v7824
        %v8511 = vpop.f32.mrf.mxu0
        %v8512 = vpop.f32.mrf.mxu0
        %8513 = vmatprep.mubr.f32.mxu0 0.0
        %8514 = vmatmul.mubr.f32.gmra.mxu0 %v7827
        %v8515 = vpop.f32.mrf.mxu0
        %v8516 = vpop.f32.mrf.mxu0
        %8517 = vmatprep.mubr.f32.mxu0 0.0
        %8518 = vmatmul.mubr.f32.gmra.mxu0 %v7830
        %v8519 = vpop.f32.mrf.mxu0
        %v8520 = vadd.f32 %v8167, %v8519
        %v8521 = vpop.f32.mrf.mxu0
        %8522 = vmatprep.mubr.f32.mxu0 0.0
        %8523 = vmatmul.mubr.f32.gmra.mxu0 %v7833
        %v8524 = vpop.f32.mrf.mxu0
        %v8525 = vadd.f32 %v8172, %v8524
        %v8526 = vpop.f32.mrf.mxu0
        %8527 = vmatprep.mubr.f32.mxu0 0.0
        %8528 = vmatmul.mubr.f32.gmra.mxu0 %v7836
        %v8529 = vpop.f32.mrf.mxu0
        %v8530 = vpop.f32.mrf.mxu0
        %8531 = vmatprep.mubr.f32.mxu0 0.0
        %8532 = vmatmul.mubr.f32.gmra.mxu0 %v7839
        %v8533 = vpop.f32.mrf.mxu0
        %v8534 = vpop.f32.mrf.mxu0
        %8535 = vmatprep.mubr.f32.mxu0 0.0
        %8536 = vmatmul.mubr.f32.gmra.mxu0 %v7842
        %v8537 = vpop.f32.mrf.mxu0
        %v8538 = vadd.f32 %v8185, %v8537
        %v8539 = vpop.f32.mrf.mxu0
        %8540 = vmatprep.mubr.f32.mxu0 0.0
        %8541 = vmatmul.mubr.f32.gmra.mxu0 %v7845
        %v8542 = vpop.f32.mrf.mxu0
        %v8543 = vadd.f32 %v8190, %v8542
        %v8544 = vpop.f32.mrf.mxu0
        %8545 = vmatprep.mubr.f32.mxu0 0.0
        %8546 = vmatmul.mubr.f32.gmra.mxu0 %v7848
        %v8547 = vpop.f32.mrf.mxu0
        %v8548 = vpop.f32.mrf.mxu0
        %8549 = vmatprep.mubr.f32.mxu0 0.0
        %8550 = vmatmul.mubr.f32.gmra.mxu0 %v7851
        %v8551 = vpop.f32.mrf.mxu0
        %v8552 = vpop.f32.mrf.mxu0
        %8553 = vmatprep.mubr.f32.mxu0 0.0
        %8554 = vmatmul.mubr.f32.gmra.mxu0 %v7854
        %v8555 = vpop.f32.mrf.mxu0
        %v8556 = vadd.f32 %v8203, %v8555
        %v8557 = vpop.f32.mrf.mxu0
        %8558 = vmatprep.mubr.f32.mxu0 0.0
        %8559 = vmatmul.mubr.f32.gmra.mxu0 %v7857
        %v8560 = vpop.f32.mrf.mxu0
        %v8561 = vadd.f32 %v8208, %v8560
        %v8562 = vpop.f32.mrf.mxu0
        %8563 = vmatprep.mubr.f32.mxu0 0.0
        %8564 = vmatmul.mubr.f32.gmra.mxu0 %v7860
        %v8565 = vpop.f32.mrf.mxu0
        %v8566 = vpop.f32.mrf.mxu0
        %8567 = vdwg.mxu0
        %v8568 = vsel %vm212, %v8286, 0.0
        %v8569 = vsel %vm212, %v8291, 0.0
        %v8570 = vadd.f32 %v8568, %v8569
        %v8571 = vsel %vm212, %v8304, 0.0
        %v8572 = vadd.f32 %v8570, %v8571
        %v8573 = vsel %vm212, %v8309, 0.0
        %v8574 = vadd.f32 %v8572, %v8573
        %v8575 = vsel %vm212, %v8322, 0.0
        %v8576 = vadd.f32 %v8574, %v8575
        %v8577 = vsel %vm212, %v8327, 0.0
        %v8578 = vadd.f32 %v8576, %v8577
        %v8579 = vsel %vm212, %v8340, 0.0
        %v8580 = vadd.f32 %v8578, %v8579
        %v8581 = vsel %vm212, %v8345, 0.0
        %v8582 = vadd.f32 %v8580, %v8581
        %v8583 = vsel %vm212, %v8358, 0.0
        %v8584 = vadd.f32 %v8582, %v8583
        %v8585 = vsel %vm212, %v8363, 0.0
        %v8586 = vadd.f32 %v8584, %v8585
        %v8587 = vsel %vm212, %v8376, 0.0
        %v8588 = vadd.f32 %v8586, %v8587
        %v8589 = vsel %vm212, %v8381, 0.0
        %v8590 = vadd.f32 %v8588, %v8589
        %v8591 = vsel %vm212, %v8394, 0.0
        %v8592 = vadd.f32 %v8590, %v8591
        %v8593 = vsel %vm212, %v8399, 0.0
        %v8594 = vadd.f32 %v8592, %v8593
        %v8595 = vsel %vm212, %v8412, 0.0
        %v8596 = vadd.f32 %v8594, %v8595
        %v8597 = vsel %vm212, %v8417, 0.0
        %v8598 = vadd.f32 %v8596, %v8597
        %v8599 = vsel %vm212, %v8430, 0.0
        %v8600 = vadd.f32 %v8598, %v8599
        %v8601 = vsel %vm212, %v8435, 0.0
        %v8602 = vadd.f32 %v8600, %v8601
        %v8603 = vsel %vm212, %v8448, 0.0
        %v8604 = vadd.f32 %v8602, %v8603
        %v8605 = vsel %vm212, %v8453, 0.0
        %v8606 = vadd.f32 %v8604, %v8605
        %v8607 = vsel %vm212, %v8466, 0.0
        %v8608 = vadd.f32 %v8606, %v8607
        %v8609 = vsel %vm212, %v8471, 0.0
        %v8610 = vadd.f32 %v8608, %v8609
        %v8611 = vsel %vm212, %v8484, 0.0
        %v8612 = vadd.f32 %v8610, %v8611
        %v8613 = vsel %vm212, %v8489, 0.0
        %v8614 = vadd.f32 %v8612, %v8613
        %v8615 = vsel %vm212, %v8502, 0.0
        %v8616 = vadd.f32 %v8614, %v8615
        %v8617 = vsel %vm212, %v8507, 0.0
        %v8618 = vadd.f32 %v8616, %v8617
        %v8619 = vsel %vm212, %v8520, 0.0
        %v8620 = vadd.f32 %v8618, %v8619
        %v8621 = vsel %vm212, %v8525, 0.0
        %v8622 = vadd.f32 %v8620, %v8621
        %v8623 = vsel %vm212, %v8538, 0.0
        %v8624 = vadd.f32 %v8622, %v8623
        %v8625 = vsel %vm212, %v8543, 0.0
        %v8626 = vadd.f32 %v8624, %v8625
        %v8627 = vsel %vm212, %v8556, 0.0
        %v8628 = vadd.f32 %v8626, %v8627
        %v8629 = vsel %vm212, %v8561, 0.0
        %v8630 = vadd.f32 %v8628, %v8629
        %v8631 = vrot.slane %v8630, 4
        %v8632 = vadd.f32 %v8630, %v8631
        %v8633 = vrot.slane %v8632, 2
        %v8634 = vadd.f32 %v8632, %v8633
        %v8635 = vrot.slane %v8634, 1
        %v8636 = vadd.f32 %v8634, %v8635
        %v8637 = vadd.f32 %v8636, 0.0
        %v8638 = vmul.f32 %v8286, %v8286
        %v8639 = vmul.f32 %v8291, %v8291
        %v8640 = vmul.f32 %v8304, %v8304
        %v8641 = vmul.f32 %v8309, %v8309
        %v8642 = vmul.f32 %v8322, %v8322
        %v8643 = vmul.f32 %v8327, %v8327
        %v8644 = vmul.f32 %v8340, %v8340
        %v8645 = vmul.f32 %v8345, %v8345
        %v8646 = vmul.f32 %v8358, %v8358
        %v8647 = vmul.f32 %v8363, %v8363
        %v8648 = vmul.f32 %v8376, %v8376
        %v8649 = vmul.f32 %v8381, %v8381
        %v8650 = vmul.f32 %v8394, %v8394
        %v8651 = vmul.f32 %v8399, %v8399
        %v8652 = vmul.f32 %v8412, %v8412
        %v8653 = vmul.f32 %v8417, %v8417
        %v8654 = vmul.f32 %v8430, %v8430
        %v8655 = vmul.f32 %v8435, %v8435
        %v8656 = vmul.f32 %v8448, %v8448
        %v8657 = vmul.f32 %v8453, %v8453
        %v8658 = vmul.f32 %v8466, %v8466
        %v8659 = vmul.f32 %v8471, %v8471
        %v8660 = vmul.f32 %v8484, %v8484
        %v8661 = vmul.f32 %v8489, %v8489
        %v8662 = vmul.f32 %v8502, %v8502
        %v8663 = vmul.f32 %v8507, %v8507
        %v8664 = vmul.f32 %v8520, %v8520
        %v8665 = vmul.f32 %v8525, %v8525
        %v8666 = vmul.f32 %v8538, %v8538
        %v8667 = vmul.f32 %v8543, %v8543
        %v8668 = vmul.f32 %v8556, %v8556
        %v8669 = vmul.f32 %v8561, %v8561
        %v8670 = vsel %vm212, %v8638, 0.0
        %v8671 = vsel %vm212, %v8639, 0.0
        %v8672 = vadd.f32 %v8670, %v8671
        %v8673 = vsel %vm212, %v8640, 0.0
        %v8674 = vadd.f32 %v8672, %v8673
        %v8675 = vsel %vm212, %v8641, 0.0
        %v8676 = vadd.f32 %v8674, %v8675
        %v8677 = vsel %vm212, %v8642, 0.0
        %v8678 = vadd.f32 %v8676, %v8677
        %v8679 = vsel %vm212, %v8643, 0.0
        %v8680 = vadd.f32 %v8678, %v8679
        %v8681 = vsel %vm212, %v8644, 0.0
        %v8682 = vadd.f32 %v8680, %v8681
        %v8683 = vsel %vm212, %v8645, 0.0
        %v8684 = vadd.f32 %v8682, %v8683
        %v8685 = vsel %vm212, %v8646, 0.0
        %v8686 = vadd.f32 %v8684, %v8685
        %v8687 = vsel %vm212, %v8647, 0.0
        %v8688 = vadd.f32 %v8686, %v8687
        %v8689 = vsel %vm212, %v8648, 0.0
        %v8690 = vadd.f32 %v8688, %v8689
        %v8691 = vsel %vm212, %v8649, 0.0
        %v8692 = vadd.f32 %v8690, %v8691
        %v8693 = vsel %vm212, %v8650, 0.0
        %v8694 = vadd.f32 %v8692, %v8693
        %v8695 = vsel %vm212, %v8651, 0.0
        %v8696 = vadd.f32 %v8694, %v8695
        %v8697 = vsel %vm212, %v8652, 0.0
        %v8698 = vadd.f32 %v8696, %v8697
        %v8699 = vsel %vm212, %v8653, 0.0
        %v8700 = vadd.f32 %v8698, %v8699
        %v8701 = vsel %vm212, %v8654, 0.0
        %v8702 = vadd.f32 %v8700, %v8701
        %v8703 = vsel %vm212, %v8655, 0.0
        %v8704 = vadd.f32 %v8702, %v8703
        %v8705 = vsel %vm212, %v8656, 0.0
        %v8706 = vadd.f32 %v8704, %v8705
        %v8707 = vsel %vm212, %v8657, 0.0
        %v8708 = vadd.f32 %v8706, %v8707
        %v8709 = vsel %vm212, %v8658, 0.0
        %v8710 = vadd.f32 %v8708, %v8709
        %v8711 = vsel %vm212, %v8659, 0.0
        %v8712 = vadd.f32 %v8710, %v8711
        %v8713 = vsel %vm212, %v8660, 0.0
        %v8714 = vadd.f32 %v8712, %v8713
        %v8715 = vsel %vm212, %v8661, 0.0
        %v8716 = vadd.f32 %v8714, %v8715
        %v8717 = vsel %vm212, %v8662, 0.0
        %v8718 = vadd.f32 %v8716, %v8717
        %v8719 = vsel %vm212, %v8663, 0.0
        %v8720 = vadd.f32 %v8718, %v8719
        %v8721 = vsel %vm212, %v8664, 0.0
        %v8722 = vadd.f32 %v8720, %v8721
        %v8723 = vsel %vm212, %v8665, 0.0
        %v8724 = vadd.f32 %v8722, %v8723
        %v8725 = vsel %vm212, %v8666, 0.0
        %v8726 = vadd.f32 %v8724, %v8725
        %v8727 = vsel %vm212, %v8667, 0.0
        %v8728 = vadd.f32 %v8726, %v8727
        %v8729 = vsel %vm212, %v8668, 0.0
        %v8730 = vadd.f32 %v8728, %v8729
        %v8731 = vsel %vm212, %v8669, 0.0
        %v8732 = vadd.f32 %v8730, %v8731
        %v8733 = vrot.slane %v8732, 4
        %v8734 = vadd.f32 %v8732, %v8733
        %v8735 = vrot.slane %v8734, 2
        %v8736 = vadd.f32 %v8734, %v8735
        %v8737 = vrot.slane %v8736, 1
        %v8738 = vadd.f32 %v8736, %v8737
        %v8739 = vadd.f32 %v8738, 0.0
        %v8740 = vsel %vm212, %v8286, -inf
        %v8741 = vsel %vm212, %v8304, -inf
        %v8742 = vmax.f32 %v8740, %v8741
        %v8743 = vsel %vm212, %v8291, -inf
        %v8744 = vsel %vm212, %v8309, -inf
        %v8745 = vmax.f32 %v8743, %v8744
        %v8746 = vsel %vm212, %v8322, -inf
        %v8747 = vsel %vm212, %v8340, -inf
        %v8748 = vmax.f32 %v8746, %v8747
        %v8749 = vsel %vm212, %v8327, -inf
        %v8750 = vsel %vm212, %v8345, -inf
        %v8751 = vmax.f32 %v8749, %v8750
        %v8752 = vsel %vm212, %v8358, -inf
        %v8753 = vsel %vm212, %v8376, -inf
        %v8754 = vmax.f32 %v8752, %v8753
        %v8755 = vsel %vm212, %v8363, -inf
        %v8756 = vsel %vm212, %v8381, -inf
        %v8757 = vmax.f32 %v8755, %v8756
        %v8758 = vsel %vm212, %v8394, -inf
        %v8759 = vsel %vm212, %v8412, -inf
        %v8760 = vmax.f32 %v8758, %v8759
        %v8761 = vsel %vm212, %v8399, -inf
        %v8762 = vsel %vm212, %v8417, -inf
        %v8763 = vmax.f32 %v8761, %v8762
        %v8764 = vsel %vm212, %v8430, -inf
        %v8765 = vsel %vm212, %v8448, -inf
        %v8766 = vmax.f32 %v8764, %v8765
        %v8767 = vsel %vm212, %v8435, -inf
        %v8768 = vsel %vm212, %v8453, -inf
        %v8769 = vmax.f32 %v8767, %v8768
        %v8770 = vsel %vm212, %v8466, -inf
        %v8771 = vsel %vm212, %v8484, -inf
        %v8772 = vmax.f32 %v8770, %v8771
        %v8773 = vsel %vm212, %v8471, -inf
        %v8774 = vsel %vm212, %v8489, -inf
        %v8775 = vmax.f32 %v8773, %v8774
        %v8776 = vsel %vm212, %v8502, -inf
        %v8777 = vsel %vm212, %v8520, -inf
        %v8778 = vmax.f32 %v8776, %v8777
        %v8779 = vsel %vm212, %v8507, -inf
        %v8780 = vsel %vm212, %v8525, -inf
        %v8781 = vmax.f32 %v8779, %v8780
        %v8782 = vsel %vm212, %v8538, -inf
        %v8783 = vsel %vm212, %v8556, -inf
        %v8784 = vmax.f32 %v8782, %v8783
        %v8785 = vsel %vm212, %v8543, -inf
        %v8786 = vsel %vm212, %v8561, -inf
        %v8787 = vmax.f32 %v8785, %v8786
        %8788 = vst.msk [vmem:[#allocation4] sm:$0xff] %vm212, %v8742
        %8789 = vst.msk [vmem:[#allocation4 + $0x8] sm:$0xff] %vm212, %v8745
        %8790 = vst.msk [vmem:[#allocation4 + $0x10] sm:$0xff] %vm212, %v8748
        %8791 = vst.msk [vmem:[#allocation4 + $0x18] sm:$0xff] %vm212, %v8751
        %8792 = vst.msk [vmem:[#allocation4 + $0x20] sm:$0xff] %vm212, %v8754
        %8793 = vst.msk [vmem:[#allocation4 + $0x28] sm:$0xff] %vm212, %v8757
        %8794 = vst.msk [vmem:[#allocation4 + $0x30] sm:$0xff] %vm212, %v8760
        %8795 = vst.msk [vmem:[#allocation4 + $0x38] sm:$0xff] %vm212, %v8763
        %8796 = vst.msk [vmem:[#allocation4 + $0x40] sm:$0xff] %vm212, %v8766
        %8797 = vst.msk [vmem:[#allocation4 + $0x48] sm:$0xff] %vm212, %v8769
        %8798 = vst.msk [vmem:[#allocation4 + $0x50] sm:$0xff] %vm212, %v8772
        %8799 = vst.msk [vmem:[#allocation4 + $0x58] sm:$0xff] %vm212, %v8775
        %8800 = vst.msk [vmem:[#allocation4 + $0x60] sm:$0xff] %vm212, %v8778
        %8801 = vst.msk [vmem:[#allocation4 + $0x68] sm:$0xff] %vm212, %v8781
        %8802 = vst.msk [vmem:[#allocation4 + $0x70] sm:$0xff] %vm212, %v8784
        %8803 = vst.msk [vmem:[#allocation4 + $0x78] sm:$0xff] %vm212, %v8787
        %v8804 = vmul.f32 %v8637, 0.00390625
        %v8805 = vmul.f32 %v8739, 0.00390625
        %v8806 = vmul.f32 %v8804, %v8804
        %v8807 = vsub.f32 %v8805, %v8806
        %v8808 = vadd.f32 %v8807, 1e-05
        %v8809 = vrsqrt.pop %v8808
        %v8810 = vld [vmem:[#allocation4] sm:$0xff]
        %v8811 = vld [vmem:[#allocation4 + $0x8] sm:$0xff]
        %v8812 = vld [vmem:[#allocation4 + $0x10] sm:$0xff]
        %v8813 = vld [vmem:[#allocation4 + $0x18] sm:$0xff]
        %v8814 = vld [vmem:[#allocation4 + $0x20] sm:$0xff]
        %v8815 = vld [vmem:[#allocation4 + $0x28] sm:$0xff]
        %v8816 = vld [vmem:[#allocation4 + $0x30] sm:$0xff]
        %v8817 = vld [vmem:[#allocation4 + $0x38] sm:$0xff]
        %v8818 = vld [vmem:[#allocation4 + $0x40] sm:$0xff]
        %v8819 = vld [vmem:[#allocation4 + $0x48] sm:$0xff]
        %v8820 = vld [vmem:[#allocation4 + $0x50] sm:$0xff]
        %v8821 = vld [vmem:[#allocation4 + $0x58] sm:$0xff]
        %v8822 = vld [vmem:[#allocation4 + $0x60] sm:$0xff]
        %v8823 = vld [vmem:[#allocation4 + $0x68] sm:$0xff]
        %v8824 = vld [vmem:[#allocation4 + $0x70] sm:$0xff]
        %v8825 = vld [vmem:[#allocation4 + $0x78] sm:$0xff]
        %v8842 = vcombine.high %v8810, %v8810
        %v8844 = vunpack.c.l.s4 1983009808
        %v8845 = vunpack.c.0.s8 %v8844
        %v8846 = vlaneseq
        %v8847 = vshrl.u32 %v8846, 7
        %v8848 = vsub.s32 %v8845, %v8847
        %v8849 = vrot.slane %v8810, %v8848
        %v8851 = vunpack.c.l.s4 1983009808
        %v8852 = vunpack.c.0.s8 %v8851
        %v8853 = vlaneseq
        %v8854 = vshrl.u32 %v8853, 7
        %v8855 = vsub.s32 %v8852, %v8854
        %v8856 = vrot.slane %v8842, %v8855
        %v8857 = vcombine.high %v8849, %v8849
        %v8858 = vcombine.high %v8856, %v8856
        %v8859 = vcombine.high %v8811, %v8811
        %v8861 = vunpack.c.l.s4 1983009808
        %v8862 = vunpack.c.0.s8 %v8861
        %v8863 = vlaneseq
        %v8864 = vshrl.u32 %v8863, 7
        %v8865 = vsub.s32 %v8862, %v8864
        %v8866 = vrot.slane %v8811, %v8865
        %v8868 = vunpack.c.l.s4 1983009808
        %v8869 = vunpack.c.0.s8 %v8868
        %v8870 = vlaneseq
        %v8871 = vshrl.u32 %v8870, 7
        %v8872 = vsub.s32 %v8869, %v8871
        %v8873 = vrot.slane %v8859, %v8872
        %v8874 = vcombine.high %v8866, %v8866
        %v8875 = vcombine.high %v8873, %v8873
        %v8876 = vcombine.high %v8812, %v8812
        %v8878 = vunpack.c.l.s4 1983009808
        %v8879 = vunpack.c.0.s8 %v8878
        %v8880 = vlaneseq
        %v8881 = vshrl.u32 %v8880, 7
        %v8882 = vsub.s32 %v8879, %v8881
        %v8883 = vrot.slane %v8812, %v8882
        %v8885 = vunpack.c.l.s4 1983009808
        %v8886 = vunpack.c.0.s8 %v8885
        %v8887 = vlaneseq
        %v8888 = vshrl.u32 %v8887, 7
        %v8889 = vsub.s32 %v8886, %v8888
        %v8890 = vrot.slane %v8876, %v8889
        %v8891 = vcombine.high %v8883, %v8883
        %v8892 = vcombine.high %v8890, %v8890
        %v8893 = vcombine.high %v8813, %v8813
        %v8895 = vunpack.c.l.s4 1983009808
        %v8896 = vunpack.c.0.s8 %v8895
        %v8897 = vlaneseq
        %v8898 = vshrl.u32 %v8897, 7
        %v8899 = vsub.s32 %v8896, %v8898
        %v8900 = vrot.slane %v8813, %v8899
        %v8902 = vunpack.c.l.s4 1983009808
        %v8903 = vunpack.c.0.s8 %v8902
        %v8904 = vlaneseq
        %v8905 = vshrl.u32 %v8904, 7
        %v8906 = vsub.s32 %v8903, %v8905
        %v8907 = vrot.slane %v8893, %v8906
        %v8908 = vcombine.high %v8900, %v8900
        %v8909 = vcombine.high %v8907, %v8907
        %v8910 = vcombine.high %v8814, %v8814
        %v8912 = vunpack.c.l.s4 1983009808
        %v8913 = vunpack.c.0.s8 %v8912
        %v8914 = vlaneseq
        %v8915 = vshrl.u32 %v8914, 7
        %v8916 = vsub.s32 %v8913, %v8915
        %v8917 = vrot.slane %v8814, %v8916
        %v8919 = vunpack.c.l.s4 1983009808
        %v8920 = vunpack.c.0.s8 %v8919
        %v8921 = vlaneseq
        %v8922 = vshrl.u32 %v8921, 7
        %v8923 = vsub.s32 %v8920, %v8922
        %v8924 = vrot.slane %v8910, %v8923
        %v8925 = vcombine.high %v8917, %v8917
        %v8926 = vcombine.high %v8924, %v8924
        %v8927 = vcombine.high %v8815, %v8815
        %v8929 = vunpack.c.l.s4 1983009808
        %v8930 = vunpack.c.0.s8 %v8929
        %v8931 = vlaneseq
        %v8932 = vshrl.u32 %v8931, 7
        %v8933 = vsub.s32 %v8930, %v8932
        %v8934 = vrot.slane %v8815, %v8933
        %v8936 = vunpack.c.l.s4 1983009808
        %v8937 = vunpack.c.0.s8 %v8936
        %v8938 = vlaneseq
        %v8939 = vshrl.u32 %v8938, 7
        %v8940 = vsub.s32 %v8937, %v8939
        %v8941 = vrot.slane %v8927, %v8940
        %v8942 = vcombine.high %v8934, %v8934
        %v8943 = vcombine.high %v8941, %v8941
        %v8944 = vcombine.high %v8816, %v8816
        %v8946 = vunpack.c.l.s4 1983009808
        %v8947 = vunpack.c.0.s8 %v8946
        %v8948 = vlaneseq
        %v8949 = vshrl.u32 %v8948, 7
        %v8950 = vsub.s32 %v8947, %v8949
        %v8951 = vrot.slane %v8816, %v8950
        %v8953 = vunpack.c.l.s4 1983009808
        %v8954 = vunpack.c.0.s8 %v8953
        %v8955 = vlaneseq
        %v8956 = vshrl.u32 %v8955, 7
        %v8957 = vsub.s32 %v8954, %v8956
        %v8958 = vrot.slane %v8944, %v8957
        %v8959 = vcombine.high %v8951, %v8951
        %v8960 = vcombine.high %v8958, %v8958
        %v8961 = vcombine.high %v8817, %v8817
        %v8963 = vunpack.c.l.s4 1983009808
        %v8964 = vunpack.c.0.s8 %v8963
        %v8965 = vlaneseq
        %v8966 = vshrl.u32 %v8965, 7
        %v8967 = vsub.s32 %v8964, %v8966
        %v8968 = vrot.slane %v8817, %v8967
        %v8970 = vunpack.c.l.s4 1983009808
        %v8971 = vunpack.c.0.s8 %v8970
        %v8972 = vlaneseq
        %v8973 = vshrl.u32 %v8972, 7
        %v8974 = vsub.s32 %v8971, %v8973
        %v8975 = vrot.slane %v8961, %v8974
        %v8976 = vcombine.high %v8968, %v8968
        %v8977 = vcombine.high %v8975, %v8975
        %v8978 = vcombine.high %v8818, %v8818
        %v8980 = vunpack.c.l.s4 1983009808
        %v8981 = vunpack.c.0.s8 %v8980
        %v8982 = vlaneseq
        %v8983 = vshrl.u32 %v8982, 7
        %v8984 = vsub.s32 %v8981, %v8983
        %v8985 = vrot.slane %v8818, %v8984
        %v8987 = vunpack.c.l.s4 1983009808
        %v8988 = vunpack.c.0.s8 %v8987
        %v8989 = vlaneseq
        %v8990 = vshrl.u32 %v8989, 7
        %v8991 = vsub.s32 %v8988, %v8990
        %v8992 = vrot.slane %v8978, %v8991
        %v8993 = vcombine.high %v8985, %v8985
        %v8994 = vcombine.high %v8992, %v8992
        %v8995 = vcombine.high %v8819, %v8819
        %v8997 = vunpack.c.l.s4 1983009808
        %v8998 = vunpack.c.0.s8 %v8997
        %v8999 = vlaneseq
        %v9000 = vshrl.u32 %v8999, 7
        %v9001 = vsub.s32 %v8998, %v9000
        %v9002 = vrot.slane %v8819, %v9001
        %v9004 = vunpack.c.l.s4 1983009808
        %v9005 = vunpack.c.0.s8 %v9004
        %v9006 = vlaneseq
        %v9007 = vshrl.u32 %v9006, 7
        %v9008 = vsub.s32 %v9005, %v9007
        %v9009 = vrot.slane %v8995, %v9008
        %v9010 = vcombine.high %v9002, %v9002
        %v9011 = vcombine.high %v9009, %v9009
        %v9012 = vcombine.high %v8820, %v8820
        %v9014 = vunpack.c.l.s4 1983009808
        %v9015 = vunpack.c.0.s8 %v9014
        %v9016 = vlaneseq
        %v9017 = vshrl.u32 %v9016, 7
        %v9018 = vsub.s32 %v9015, %v9017
        %v9019 = vrot.slane %v8820, %v9018
        %v9021 = vunpack.c.l.s4 1983009808
        %v9022 = vunpack.c.0.s8 %v9021
        %v9023 = vlaneseq
        %v9024 = vshrl.u32 %v9023, 7
        %v9025 = vsub.s32 %v9022, %v9024
        %v9026 = vrot.slane %v9012, %v9025
        %v9027 = vcombine.high %v9019, %v9019
        %v9028 = vcombine.high %v9026, %v9026
        %v9029 = vcombine.high %v8821, %v8821
        %v9031 = vunpack.c.l.s4 1983009808
        %v9032 = vunpack.c.0.s8 %v9031
        %v9033 = vlaneseq
        %v9034 = vshrl.u32 %v9033, 7
        %v9035 = vsub.s32 %v9032, %v9034
        %v9036 = vrot.slane %v8821, %v9035
        %v9038 = vunpack.c.l.s4 1983009808
        %v9039 = vunpack.c.0.s8 %v9038
        %v9040 = vlaneseq
        %v9041 = vshrl.u32 %v9040, 7
        %v9042 = vsub.s32 %v9039, %v9041
        %v9043 = vrot.slane %v9029, %v9042
        %v9044 = vcombine.high %v9036, %v9036
        %v9045 = vcombine.high %v9043, %v9043
        %v9046 = vcombine.high %v8822, %v8822
        %v9048 = vunpack.c.l.s4 1983009808
        %v9049 = vunpack.c.0.s8 %v9048
        %v9050 = vlaneseq
        %v9051 = vshrl.u32 %v9050, 7
        %v9052 = vsub.s32 %v9049, %v9051
        %v9053 = vrot.slane %v8822, %v9052
        %v9055 = vunpack.c.l.s4 1983009808
        %v9056 = vunpack.c.0.s8 %v9055
        %v9057 = vlaneseq
        %v9058 = vshrl.u32 %v9057, 7
        %v9059 = vsub.s32 %v9056, %v9058
        %v9060 = vrot.slane %v9046, %v9059
        %v9061 = vcombine.high %v9053, %v9053
        %v9062 = vcombine.high %v9060, %v9060
        %v9063 = vcombine.high %v8823, %v8823
        %v9065 = vunpack.c.l.s4 1983009808
        %v9066 = vunpack.c.0.s8 %v9065
        %v9067 = vlaneseq
        %v9068 = vshrl.u32 %v9067, 7
        %v9069 = vsub.s32 %v9066, %v9068
        %v9070 = vrot.slane %v8823, %v9069
        %v9072 = vunpack.c.l.s4 1983009808
        %v9073 = vunpack.c.0.s8 %v9072
        %v9074 = vlaneseq
        %v9075 = vshrl.u32 %v9074, 7
        %v9076 = vsub.s32 %v9073, %v9075
        %v9077 = vrot.slane %v9063, %v9076
        %v9078 = vcombine.high %v9070, %v9070
        %v9079 = vcombine.high %v9077, %v9077
        %v9080 = vcombine.high %v8824, %v8824
        %v9082 = vunpack.c.l.s4 1983009808
        %v9083 = vunpack.c.0.s8 %v9082
        %v9084 = vlaneseq
        %v9085 = vshrl.u32 %v9084, 7
        %v9086 = vsub.s32 %v9083, %v9085
        %v9087 = vrot.slane %v8824, %v9086
        %v9089 = vunpack.c.l.s4 1983009808
        %v9090 = vunpack.c.0.s8 %v9089
        %v9091 = vlaneseq
        %v9092 = vshrl.u32 %v9091, 7
        %v9093 = vsub.s32 %v9090, %v9092
        %v9094 = vrot.slane %v9080, %v9093
        %v9095 = vcombine.high %v9087, %v9087
        %v9096 = vcombine.high %v9094, %v9094
        %v9097 = vcombine.high %v8825, %v8825
        %v9099 = vunpack.c.l.s4 1983009808
        %v9100 = vunpack.c.0.s8 %v9099
        %v9101 = vlaneseq
        %v9102 = vshrl.u32 %v9101, 7
        %v9103 = vsub.s32 %v9100, %v9102
        %v9104 = vrot.slane %v8825, %v9103
        %v9106 = vunpack.c.l.s4 1983009808
        %v9107 = vunpack.c.0.s8 %v9106
        %v9108 = vlaneseq
        %v9109 = vshrl.u32 %v9108, 7
        %v9110 = vsub.s32 %v9107, %v9109
        %v9111 = vrot.slane %v9097, %v9110
        %v9112 = vcombine.high %v9104, %v9104
        %v9113 = vcombine.high %v9111, %v9111
        %vm9178 = vcmask 254976
        %v9179 = vsel %vm9178, %v8849, -inf
        %v9180 = vrot.slane %v9179, 4
        %v9181 = vmax.f32 %v9179, %v9180
        %v9182 = vrot.slane %v9181, 2
        %v9183 = vmax.f32 %v9181, %v9182
        %v9184 = vrot.slane %v9183, 1
        %v9185 = vmax.f32 %v9183, %v9184
        %v9186 = vsel %vm9178, %v8857, -inf
        %v9187 = vrot.slane %v9186, 4
        %v9188 = vmax.f32 %v9186, %v9187
        %v9189 = vrot.slane %v9188, 2
        %v9190 = vmax.f32 %v9188, %v9189
        %v9191 = vrot.slane %v9190, 1
        %v9192 = vmax.f32 %v9190, %v9191
        %v9193 = vsel %vm9178, %v8856, -inf
        %v9194 = vrot.slane %v9193, 4
        %v9195 = vmax.f32 %v9193, %v9194
        %v9196 = vrot.slane %v9195, 2
        %v9197 = vmax.f32 %v9195, %v9196
        %v9198 = vrot.slane %v9197, 1
        %v9199 = vmax.f32 %v9197, %v9198
        %v9200 = vsel %vm9178, %v8858, -inf
        %v9201 = vrot.slane %v9200, 4
        %v9202 = vmax.f32 %v9200, %v9201
        %v9203 = vrot.slane %v9202, 2
        %v9204 = vmax.f32 %v9202, %v9203
        %v9205 = vrot.slane %v9204, 1
        %v9206 = vmax.f32 %v9204, %v9205
        %v9207 = vsel %vm9178, %v8866, -inf
        %v9208 = vrot.slane %v9207, 4
        %v9209 = vmax.f32 %v9207, %v9208
        %v9210 = vrot.slane %v9209, 2
        %v9211 = vmax.f32 %v9209, %v9210
        %v9212 = vrot.slane %v9211, 1
        %v9213 = vmax.f32 %v9211, %v9212
        %v9214 = vsel %vm9178, %v8874, -inf
        %v9215 = vrot.slane %v9214, 4
        %v9216 = vmax.f32 %v9214, %v9215
        %v9217 = vrot.slane %v9216, 2
        %v9218 = vmax.f32 %v9216, %v9217
        %v9219 = vrot.slane %v9218, 1
        %v9220 = vmax.f32 %v9218, %v9219
        %v9221 = vsel %vm9178, %v8873, -inf
        %v9222 = vrot.slane %v9221, 4
        %v9223 = vmax.f32 %v9221, %v9222
        %v9224 = vrot.slane %v9223, 2
        %v9225 = vmax.f32 %v9223, %v9224
        %v9226 = vrot.slane %v9225, 1
        %v9227 = vmax.f32 %v9225, %v9226
        %v9228 = vsel %vm9178, %v8875, -inf
        %v9229 = vrot.slane %v9228, 4
        %v9230 = vmax.f32 %v9228, %v9229
        %v9231 = vrot.slane %v9230, 2
        %v9232 = vmax.f32 %v9230, %v9231
        %v9233 = vrot.slane %v9232, 1
        %v9234 = vmax.f32 %v9232, %v9233
        %v9235 = vsel %vm9178, %v8883, -inf
        %v9236 = vrot.slane %v9235, 4
        %v9237 = vmax.f32 %v9235, %v9236
        %v9238 = vrot.slane %v9237, 2
        %v9239 = vmax.f32 %v9237, %v9238
        %v9240 = vrot.slane %v9239, 1
        %v9241 = vmax.f32 %v9239, %v9240
        %v9242 = vsel %vm9178, %v8891, -inf
        %v9243 = vrot.slane %v9242, 4
        %v9244 = vmax.f32 %v9242, %v9243
        %v9245 = vrot.slane %v9244, 2
        %v9246 = vmax.f32 %v9244, %v9245
        %v9247 = vrot.slane %v9246, 1
        %v9248 = vmax.f32 %v9246, %v9247
        %v9249 = vsel %vm9178, %v8890, -inf
        %v9250 = vrot.slane %v9249, 4
        %v9251 = vmax.f32 %v9249, %v9250
        %v9252 = vrot.slane %v9251, 2
        %v9253 = vmax.f32 %v9251, %v9252
        %v9254 = vrot.slane %v9253, 1
        %v9255 = vmax.f32 %v9253, %v9254
        %v9256 = vsel %vm9178, %v8892, -inf
        %v9257 = vrot.slane %v9256, 4
        %v9258 = vmax.f32 %v9256, %v9257
        %v9259 = vrot.slane %v9258, 2
        %v9260 = vmax.f32 %v9258, %v9259
        %v9261 = vrot.slane %v9260, 1
        %v9262 = vmax.f32 %v9260, %v9261
        %v9263 = vsel %vm9178, %v8900, -inf
        %v9264 = vrot.slane %v9263, 4
        %v9265 = vmax.f32 %v9263, %v9264
        %v9266 = vrot.slane %v9265, 2
        %v9267 = vmax.f32 %v9265, %v9266
        %v9268 = vrot.slane %v9267, 1
        %v9269 = vmax.f32 %v9267, %v9268
        %v9270 = vsel %vm9178, %v8908, -inf
        %v9271 = vrot.slane %v9270, 4
        %v9272 = vmax.f32 %v9270, %v9271
        %v9273 = vrot.slane %v9272, 2
        %v9274 = vmax.f32 %v9272, %v9273
        %v9275 = vrot.slane %v9274, 1
        %v9276 = vmax.f32 %v9274, %v9275
        %v9277 = vsel %vm9178, %v8907, -inf
        %v9278 = vrot.slane %v9277, 4
        %v9279 = vmax.f32 %v9277, %v9278
        %v9280 = vrot.slane %v9279, 2
        %v9281 = vmax.f32 %v9279, %v9280
        %v9282 = vrot.slane %v9281, 1
        %v9283 = vmax.f32 %v9281, %v9282
        %v9284 = vsel %vm9178, %v8909, -inf
        %v9285 = vrot.slane %v9284, 4
        %v9286 = vmax.f32 %v9284, %v9285
        %v9287 = vrot.slane %v9286, 2
        %v9288 = vmax.f32 %v9286, %v9287
        %v9289 = vrot.slane %v9288, 1
        %v9290 = vmax.f32 %v9288, %v9289
        %v9291 = vsel %vm9178, %v8917, -inf
        %v9292 = vrot.slane %v9291, 4
        %v9293 = vmax.f32 %v9291, %v9292
        %v9294 = vrot.slane %v9293, 2
        %v9295 = vmax.f32 %v9293, %v9294
        %v9296 = vrot.slane %v9295, 1
        %v9297 = vmax.f32 %v9295, %v9296
        %v9298 = vsel %vm9178, %v8925, -inf
        %v9299 = vrot.slane %v9298, 4
        %v9300 = vmax.f32 %v9298, %v9299
        %v9301 = vrot.slane %v9300, 2
        %v9302 = vmax.f32 %v9300, %v9301
        %v9303 = vrot.slane %v9302, 1
        %v9304 = vmax.f32 %v9302, %v9303
        %v9305 = vsel %vm9178, %v8924, -inf
        %v9306 = vrot.slane %v9305, 4
        %v9307 = vmax.f32 %v9305, %v9306
        %v9308 = vrot.slane %v9307, 2
        %v9309 = vmax.f32 %v9307, %v9308
        %v9310 = vrot.slane %v9309, 1
        %v9311 = vmax.f32 %v9309, %v9310
        %v9312 = vsel %vm9178, %v8926, -inf
        %v9313 = vrot.slane %v9312, 4
        %v9314 = vmax.f32 %v9312, %v9313
        %v9315 = vrot.slane %v9314, 2
        %v9316 = vmax.f32 %v9314, %v9315
        %v9317 = vrot.slane %v9316, 1
        %v9318 = vmax.f32 %v9316, %v9317
        %v9319 = vsel %vm9178, %v8934, -inf
        %v9320 = vrot.slane %v9319, 4
        %v9321 = vmax.f32 %v9319, %v9320
        %v9322 = vrot.slane %v9321, 2
        %v9323 = vmax.f32 %v9321, %v9322
        %v9324 = vrot.slane %v9323, 1
        %v9325 = vmax.f32 %v9323, %v9324
        %v9326 = vsel %vm9178, %v8942, -inf
        %v9327 = vrot.slane %v9326, 4
        %v9328 = vmax.f32 %v9326, %v9327
        %v9329 = vrot.slane %v9328, 2
        %v9330 = vmax.f32 %v9328, %v9329
        %v9331 = vrot.slane %v9330, 1
        %v9332 = vmax.f32 %v9330, %v9331
        %v9333 = vsel %vm9178, %v8941, -inf
        %v9334 = vrot.slane %v9333, 4
        %v9335 = vmax.f32 %v9333, %v9334
        %v9336 = vrot.slane %v9335, 2
        %v9337 = vmax.f32 %v9335, %v9336
        %v9338 = vrot.slane %v9337, 1
        %v9339 = vmax.f32 %v9337, %v9338
        %v9340 = vsel %vm9178, %v8943, -inf
        %v9341 = vrot.slane %v9340, 4
        %v9342 = vmax.f32 %v9340, %v9341
        %v9343 = vrot.slane %v9342, 2
        %v9344 = vmax.f32 %v9342, %v9343
        %v9345 = vrot.slane %v9344, 1
        %v9346 = vmax.f32 %v9344, %v9345
        %v9347 = vsel %vm9178, %v8951, -inf
        %v9348 = vrot.slane %v9347, 4
        %v9349 = vmax.f32 %v9347, %v9348
        %v9350 = vrot.slane %v9349, 2
        %v9351 = vmax.f32 %v9349, %v9350
        %v9352 = vrot.slane %v9351, 1
        %v9353 = vmax.f32 %v9351, %v9352
        %v9354 = vsel %vm9178, %v8959, -inf
        %v9355 = vrot.slane %v9354, 4
        %v9356 = vmax.f32 %v9354, %v9355
        %v9357 = vrot.slane %v9356, 2
        %v9358 = vmax.f32 %v9356, %v9357
        %v9359 = vrot.slane %v9358, 1
        %v9360 = vmax.f32 %v9358, %v9359
        %v9361 = vsel %vm9178, %v8958, -inf
        %v9362 = vrot.slane %v9361, 4
        %v9363 = vmax.f32 %v9361, %v9362
        %v9364 = vrot.slane %v9363, 2
        %v9365 = vmax.f32 %v9363, %v9364
        %v9366 = vrot.slane %v9365, 1
        %v9367 = vmax.f32 %v9365, %v9366
        %v9368 = vsel %vm9178, %v8960, -inf
        %v9369 = vrot.slane %v9368, 4
        %v9370 = vmax.f32 %v9368, %v9369
        %v9371 = vrot.slane %v9370, 2
        %v9372 = vmax.f32 %v9370, %v9371
        %v9373 = vrot.slane %v9372, 1
        %v9374 = vmax.f32 %v9372, %v9373
        %v9375 = vsel %vm9178, %v8968, -inf
        %v9376 = vrot.slane %v9375, 4
        %v9377 = vmax.f32 %v9375, %v9376
        %v9378 = vrot.slane %v9377, 2
        %v9379 = vmax.f32 %v9377, %v9378
        %v9380 = vrot.slane %v9379, 1
        %v9381 = vmax.f32 %v9379, %v9380
        %v9382 = vsel %vm9178, %v8976, -inf
        %v9383 = vrot.slane %v9382, 4
        %v9384 = vmax.f32 %v9382, %v9383
        %v9385 = vrot.slane %v9384, 2
        %v9386 = vmax.f32 %v9384, %v9385
        %v9387 = vrot.slane %v9386, 1
        %v9388 = vmax.f32 %v9386, %v9387
        %v9389 = vsel %vm9178, %v8975, -inf
        %v9390 = vrot.slane %v9389, 4
        %v9391 = vmax.f32 %v9389, %v9390
        %v9392 = vrot.slane %v9391, 2
        %v9393 = vmax.f32 %v9391, %v9392
        %v9394 = vrot.slane %v9393, 1
        %v9395 = vmax.f32 %v9393, %v9394
        %v9396 = vsel %vm9178, %v8977, -inf
        %v9397 = vrot.slane %v9396, 4
        %v9398 = vmax.f32 %v9396, %v9397
        %v9399 = vrot.slane %v9398, 2
        %v9400 = vmax.f32 %v9398, %v9399
        %v9401 = vrot.slane %v9400, 1
        %v9402 = vmax.f32 %v9400, %v9401
        %v9403 = vsel %vm9178, %v8985, -inf
        %v9404 = vrot.slane %v9403, 4
        %v9405 = vmax.f32 %v9403, %v9404
        %v9406 = vrot.slane %v9405, 2
        %v9407 = vmax.f32 %v9405, %v9406
        %v9408 = vrot.slane %v9407, 1
        %v9409 = vmax.f32 %v9407, %v9408
        %v9410 = vsel %vm9178, %v8993, -inf
        %v9411 = vrot.slane %v9410, 4
        %v9412 = vmax.f32 %v9410, %v9411
        %v9413 = vrot.slane %v9412, 2
        %v9414 = vmax.f32 %v9412, %v9413
        %v9415 = vrot.slane %v9414, 1
        %v9416 = vmax.f32 %v9414, %v9415
        %v9417 = vsel %vm9178, %v8992, -inf
        %v9418 = vrot.slane %v9417, 4
        %v9419 = vmax.f32 %v9417, %v9418
        %v9420 = vrot.slane %v9419, 2
        %v9421 = vmax.f32 %v9419, %v9420
        %v9422 = vrot.slane %v9421, 1
        %v9423 = vmax.f32 %v9421, %v9422
        %v9424 = vsel %vm9178, %v8994, -inf
        %v9425 = vrot.slane %v9424, 4
        %v9426 = vmax.f32 %v9424, %v9425
        %v9427 = vrot.slane %v9426, 2
        %v9428 = vmax.f32 %v9426, %v9427
        %v9429 = vrot.slane %v9428, 1
        %v9430 = vmax.f32 %v9428, %v9429
        %v9431 = vsel %vm9178, %v9002, -inf
        %v9432 = vrot.slane %v9431, 4
        %v9433 = vmax.f32 %v9431, %v9432
        %v9434 = vrot.slane %v9433, 2
        %v9435 = vmax.f32 %v9433, %v9434
        %v9436 = vrot.slane %v9435, 1
        %v9437 = vmax.f32 %v9435, %v9436
        %v9438 = vsel %vm9178, %v9010, -inf
        %v9439 = vrot.slane %v9438, 4
        %v9440 = vmax.f32 %v9438, %v9439
        %v9441 = vrot.slane %v9440, 2
        %v9442 = vmax.f32 %v9440, %v9441
        %v9443 = vrot.slane %v9442, 1
        %v9444 = vmax.f32 %v9442, %v9443
        %v9445 = vsel %vm9178, %v9009, -inf
        %v9446 = vrot.slane %v9445, 4
        %v9447 = vmax.f32 %v9445, %v9446
        %v9448 = vrot.slane %v9447, 2
        %v9449 = vmax.f32 %v9447, %v9448
        %v9450 = vrot.slane %v9449, 1
        %v9451 = vmax.f32 %v9449, %v9450
        %v9452 = vsel %vm9178, %v9011, -inf
        %v9453 = vrot.slane %v9452, 4
        %v9454 = vmax.f32 %v9452, %v9453
        %v9455 = vrot.slane %v9454, 2
        %v9456 = vmax.f32 %v9454, %v9455
        %v9457 = vrot.slane %v9456, 1
        %v9458 = vmax.f32 %v9456, %v9457
        %v9459 = vsel %vm9178, %v9019, -inf
        %v9460 = vrot.slane %v9459, 4
        %v9461 = vmax.f32 %v9459, %v9460
        %v9462 = vrot.slane %v9461, 2
        %v9463 = vmax.f32 %v9461, %v9462
        %v9464 = vrot.slane %v9463, 1
        %v9465 = vmax.f32 %v9463, %v9464
        %v9466 = vsel %vm9178, %v9027, -inf
        %v9467 = vrot.slane %v9466, 4
        %v9468 = vmax.f32 %v9466, %v9467
        %v9469 = vrot.slane %v9468, 2
        %v9470 = vmax.f32 %v9468, %v9469
        %v9471 = vrot.slane %v9470, 1
        %v9472 = vmax.f32 %v9470, %v9471
        %v9473 = vsel %vm9178, %v9026, -inf
        %v9474 = vrot.slane %v9473, 4
        %v9475 = vmax.f32 %v9473, %v9474
        %v9476 = vrot.slane %v9475, 2
        %v9477 = vmax.f32 %v9475, %v9476
        %v9478 = vrot.slane %v9477, 1
        %v9479 = vmax.f32 %v9477, %v9478
        %v9480 = vsel %vm9178, %v9028, -inf
        %v9481 = vrot.slane %v9480, 4
        %v9482 = vmax.f32 %v9480, %v9481
        %v9483 = vrot.slane %v9482, 2
        %v9484 = vmax.f32 %v9482, %v9483
        %v9485 = vrot.slane %v9484, 1
        %v9486 = vmax.f32 %v9484, %v9485
        %v9487 = vsel %vm9178, %v9036, -inf
        %v9488 = vrot.slane %v9487, 4
        %v9489 = vmax.f32 %v9487, %v9488
        %v9490 = vrot.slane %v9489, 2
        %v9491 = vmax.f32 %v9489, %v9490
        %v9492 = vrot.slane %v9491, 1
        %v9493 = vmax.f32 %v9491, %v9492
        %v9494 = vsel %vm9178, %v9044, -inf
        %v9495 = vrot.slane %v9494, 4
        %v9496 = vmax.f32 %v9494, %v9495
        %v9497 = vrot.slane %v9496, 2
        %v9498 = vmax.f32 %v9496, %v9497
        %v9499 = vrot.slane %v9498, 1
        %v9500 = vmax.f32 %v9498, %v9499
        %v9501 = vsel %vm9178, %v9043, -inf
        %v9502 = vrot.slane %v9501, 4
        %v9503 = vmax.f32 %v9501, %v9502
        %v9504 = vrot.slane %v9503, 2
        %v9505 = vmax.f32 %v9503, %v9504
        %v9506 = vrot.slane %v9505, 1
        %v9507 = vmax.f32 %v9505, %v9506
        %v9508 = vsel %vm9178, %v9045, -inf
        %v9509 = vrot.slane %v9508, 4
        %v9510 = vmax.f32 %v9508, %v9509
        %v9511 = vrot.slane %v9510, 2
        %v9512 = vmax.f32 %v9510, %v9511
        %v9513 = vrot.slane %v9512, 1
        %v9514 = vmax.f32 %v9512, %v9513
        %v9515 = vsel %vm9178, %v9053, -inf
        %v9516 = vrot.slane %v9515, 4
        %v9517 = vmax.f32 %v9515, %v9516
        %v9518 = vrot.slane %v9517, 2
        %v9519 = vmax.f32 %v9517, %v9518
        %v9520 = vrot.slane %v9519, 1
        %v9521 = vmax.f32 %v9519, %v9520
        %v9522 = vsel %vm9178, %v9061, -inf
        %v9523 = vrot.slane %v9522, 4
        %v9524 = vmax.f32 %v9522, %v9523
        %v9525 = vrot.slane %v9524, 2
        %v9526 = vmax.f32 %v9524, %v9525
        %v9527 = vrot.slane %v9526, 1
        %v9528 = vmax.f32 %v9526, %v9527
        %v9529 = vsel %vm9178, %v9060, -inf
        %v9530 = vrot.slane %v9529, 4
        %v9531 = vmax.f32 %v9529, %v9530
        %v9532 = vrot.slane %v9531, 2
        %v9533 = vmax.f32 %v9531, %v9532
        %v9534 = vrot.slane %v9533, 1
        %v9535 = vmax.f32 %v9533, %v9534
        %v9536 = vsel %vm9178, %v9062, -inf
        %v9537 = vrot.slane %v9536, 4
        %v9538 = vmax.f32 %v9536, %v9537
        %v9539 = vrot.slane %v9538, 2
        %v9540 = vmax.f32 %v9538, %v9539
        %v9541 = vrot.slane %v9540, 1
        %v9542 = vmax.f32 %v9540, %v9541
        %v9543 = vsel %vm9178, %v9070, -inf
        %v9544 = vrot.slane %v9543, 4
        %v9545 = vmax.f32 %v9543, %v9544
        %v9546 = vrot.slane %v9545, 2
        %v9547 = vmax.f32 %v9545, %v9546
        %v9548 = vrot.slane %v9547, 1
        %v9549 = vmax.f32 %v9547, %v9548
        %v9550 = vsel %vm9178, %v9078, -inf
        %v9551 = vrot.slane %v9550, 4
        %v9552 = vmax.f32 %v9550, %v9551
        %v9553 = vrot.slane %v9552, 2
        %v9554 = vmax.f32 %v9552, %v9553
        %v9555 = vrot.slane %v9554, 1
        %v9556 = vmax.f32 %v9554, %v9555
        %v9557 = vsel %vm9178, %v9077, -inf
        %v9558 = vrot.slane %v9557, 4
        %v9559 = vmax.f32 %v9557, %v9558
        %v9560 = vrot.slane %v9559, 2
        %v9561 = vmax.f32 %v9559, %v9560
        %v9562 = vrot.slane %v9561, 1
        %v9563 = vmax.f32 %v9561, %v9562
        %v9564 = vsel %vm9178, %v9079, -inf
        %v9565 = vrot.slane %v9564, 4
        %v9566 = vmax.f32 %v9564, %v9565
        %v9567 = vrot.slane %v9566, 2
        %v9568 = vmax.f32 %v9566, %v9567
        %v9569 = vrot.slane %v9568, 1
        %v9570 = vmax.f32 %v9568, %v9569
        %v9571 = vsel %vm9178, %v9087, -inf
        %v9572 = vrot.slane %v9571, 4
        %v9573 = vmax.f32 %v9571, %v9572
        %v9574 = vrot.slane %v9573, 2
        %v9575 = vmax.f32 %v9573, %v9574
        %v9576 = vrot.slane %v9575, 1
        %v9577 = vmax.f32 %v9575, %v9576
        %v9578 = vsel %vm9178, %v9095, -inf
        %v9579 = vrot.slane %v9578, 4
        %v9580 = vmax.f32 %v9578, %v9579
        %v9581 = vrot.slane %v9580, 2
        %v9582 = vmax.f32 %v9580, %v9581
        %v9583 = vrot.slane %v9582, 1
        %v9584 = vmax.f32 %v9582, %v9583
        %v9585 = vsel %vm9178, %v9094, -inf
        %v9586 = vrot.slane %v9585, 4
        %v9587 = vmax.f32 %v9585, %v9586
        %v9588 = vrot.slane %v9587, 2
        %v9589 = vmax.f32 %v9587, %v9588
        %v9590 = vrot.slane %v9589, 1
        %v9591 = vmax.f32 %v9589, %v9590
        %v9592 = vsel %vm9178, %v9096, -inf
        %v9593 = vrot.slane %v9592, 4
        %v9594 = vmax.f32 %v9592, %v9593
        %v9595 = vrot.slane %v9594, 2
        %v9596 = vmax.f32 %v9594, %v9595
        %v9597 = vrot.slane %v9596, 1
        %v9598 = vmax.f32 %v9596, %v9597
        %v9599 = vsel %vm9178, %v9104, -inf
        %v9600 = vrot.slane %v9599, 4
        %v9601 = vmax.f32 %v9599, %v9600
        %v9602 = vrot.slane %v9601, 2
        %v9603 = vmax.f32 %v9601, %v9602
        %v9604 = vrot.slane %v9603, 1
        %v9605 = vmax.f32 %v9603, %v9604
        %v9606 = vsel %vm9178, %v9112, -inf
        %v9607 = vrot.slane %v9606, 4
        %v9608 = vmax.f32 %v9606, %v9607
        %v9609 = vrot.slane %v9608, 2
        %v9610 = vmax.f32 %v9608, %v9609
        %v9611 = vrot.slane %v9610, 1
        %v9612 = vmax.f32 %v9610, %v9611
        %v9613 = vsel %vm9178, %v9111, -inf
        %v9614 = vrot.slane %v9613, 4
        %v9615 = vmax.f32 %v9613, %v9614
        %v9616 = vrot.slane %v9615, 2
        %v9617 = vmax.f32 %v9615, %v9616
        %v9618 = vrot.slane %v9617, 1
        %v9619 = vmax.f32 %v9617, %v9618
        %v9620 = vsel %vm9178, %v9113, -inf
        %v9621 = vrot.slane %v9620, 4
        %v9622 = vmax.f32 %v9620, %v9621
        %v9623 = vrot.slane %v9622, 2
        %v9624 = vmax.f32 %v9622, %v9623
        %v9625 = vrot.slane %v9624, 1
        %v9626 = vmax.f32 %v9624, %v9625
        %v9627 = vsub.f32 %v9185, %v8804
        %v9628 = vsub.f32 %v9192, %v8804
        %v9629 = vsub.f32 %v9199, %v8804
        %v9630 = vsub.f32 %v9206, %v8804
        %v9631 = vsub.f32 %v9213, %v8804
        %v9632 = vsub.f32 %v9220, %v8804
        %v9633 = vsub.f32 %v9227, %v8804
        %v9634 = vsub.f32 %v9234, %v8804
        %v9635 = vsub.f32 %v9241, %v8804
        %v9636 = vsub.f32 %v9248, %v8804
        %v9637 = vsub.f32 %v9255, %v8804
        %v9638 = vsub.f32 %v9262, %v8804
        %v9639 = vsub.f32 %v9269, %v8804
        %v9640 = vsub.f32 %v9276, %v8804
        %v9641 = vsub.f32 %v9283, %v8804
        %v9642 = vsub.f32 %v9290, %v8804
        %v9643 = vsub.f32 %v9297, %v8804
        %v9644 = vsub.f32 %v9304, %v8804
        %v9645 = vsub.f32 %v9311, %v8804
        %v9646 = vsub.f32 %v9318, %v8804
        %v9647 = vsub.f32 %v9325, %v8804
        %v9648 = vsub.f32 %v9332, %v8804
        %v9649 = vsub.f32 %v9339, %v8804
        %v9650 = vsub.f32 %v9346, %v8804
        %v9651 = vsub.f32 %v9353, %v8804
        %v9652 = vsub.f32 %v9360, %v8804
        %v9653 = vsub.f32 %v9367, %v8804
        %v9654 = vsub.f32 %v9374, %v8804
        %v9655 = vsub.f32 %v9381, %v8804
        %v9656 = vsub.f32 %v9388, %v8804
        %v9657 = vsub.f32 %v9395, %v8804
        %v9658 = vsub.f32 %v9402, %v8804
        %v9659 = vsub.f32 %v9409, %v8804
        %v9660 = vsub.f32 %v9416, %v8804
        %v9661 = vsub.f32 %v9423, %v8804
        %v9662 = vsub.f32 %v9430, %v8804
        %v9663 = vsub.f32 %v9437, %v8804
        %v9664 = vsub.f32 %v9444, %v8804
        %v9665 = vsub.f32 %v9451, %v8804
        %v9666 = vsub.f32 %v9458, %v8804
        %v9667 = vsub.f32 %v9465, %v8804
        %v9668 = vsub.f32 %v9472, %v8804
        %v9669 = vsub.f32 %v9479, %v8804
        %v9670 = vsub.f32 %v9486, %v8804
        %v9671 = vsub.f32 %v9493, %v8804
        %v9672 = vsub.f32 %v9500, %v8804
        %v9673 = vsub.f32 %v9507, %v8804
        %v9674 = vsub.f32 %v9514, %v8804
        %v9675 = vsub.f32 %v9521, %v8804
        %v9676 = vsub.f32 %v9528, %v8804
        %v9677 = vsub.f32 %v9535, %v8804
        %v9678 = vsub.f32 %v9542, %v8804
        %v9679 = vsub.f32 %v9549, %v8804
        %v9680 = vsub.f32 %v9556, %v8804
        %v9681 = vsub.f32 %v9563, %v8804
        %v9682 = vsub.f32 %v9570, %v8804
        %v9683 = vsub.f32 %v9577, %v8804
        %v9684 = vsub.f32 %v9584, %v8804
        %v9685 = vsub.f32 %v9591, %v8804
        %v9686 = vsub.f32 %v9598, %v8804
        %v9687 = vsub.f32 %v9605, %v8804
        %v9688 = vsub.f32 %v9612, %v8804
        %v9689 = vsub.f32 %v9619, %v8804
        %v9690 = vsub.f32 %v9626, %v8804
        %v9691 = vmul.f32 %v9627, %v8809
        %v9692 = vmul.f32 %v9628, %v8809
        %v9693 = vmul.f32 %v9629, %v8809
        %v9694 = vmul.f32 %v9630, %v8809
        %v9695 = vmul.f32 %v9631, %v8809
        %v9696 = vmul.f32 %v9632, %v8809
        %v9697 = vmul.f32 %v9633, %v8809
        %v9698 = vmul.f32 %v9634, %v8809
        %v9699 = vmul.f32 %v9635, %v8809
        %v9700 = vmul.f32 %v9636, %v8809
        %v9701 = vmul.f32 %v9637, %v8809
        %v9702 = vmul.f32 %v9638, %v8809
        %v9703 = vmul.f32 %v9639, %v8809
        %v9704 = vmul.f32 %v9640, %v8809
        %v9705 = vmul.f32 %v9641, %v8809
        %v9706 = vmul.f32 %v9642, %v8809
        %v9707 = vmul.f32 %v9643, %v8809
        %v9708 = vmul.f32 %v9644, %v8809
        %v9709 = vmul.f32 %v9645, %v8809
        %v9710 = vmul.f32 %v9646, %v8809
        %v9711 = vmul.f32 %v9647, %v8809
        %v9712 = vmul.f32 %v9648, %v8809
        %v9713 = vmul.f32 %v9649, %v8809
        %v9714 = vmul.f32 %v9650, %v8809
        %v9715 = vmul.f32 %v9651, %v8809
        %v9716 = vmul.f32 %v9652, %v8809
        %v9717 = vmul.f32 %v9653, %v8809
        %v9718 = vmul.f32 %v9654, %v8809
        %v9719 = vmul.f32 %v9655, %v8809
        %v9720 = vmul.f32 %v9656, %v8809
        %v9721 = vmul.f32 %v9657, %v8809
        %v9722 = vmul.f32 %v9658, %v8809
        %v9723 = vmul.f32 %v9659, %v8809
        %v9724 = vmul.f32 %v9660, %v8809
        %v9725 = vmul.f32 %v9661, %v8809
        %v9726 = vmul.f32 %v9662, %v8809
        %v9727 = vmul.f32 %v9663, %v8809
        %v9728 = vmul.f32 %v9664, %v8809
        %v9729 = vmul.f32 %v9665, %v8809
        %v9730 = vmul.f32 %v9666, %v8809
        %v9731 = vmul.f32 %v9667, %v8809
        %v9732 = vmul.f32 %v9668, %v8809
        %v9733 = vmul.f32 %v9669, %v8809
        %v9734 = vmul.f32 %v9670, %v8809
        %v9735 = vmul.f32 %v9671, %v8809
        %v9736 = vmul.f32 %v9672, %v8809
        %v9737 = vmul.f32 %v9673, %v8809
        %v9738 = vmul.f32 %v9674, %v8809
        %v9739 = vmul.f32 %v9675, %v8809
        %v9740 = vmul.f32 %v9676, %v8809
        %v9741 = vmul.f32 %v9677, %v8809
        %v9742 = vmul.f32 %v9678, %v8809
        %v9743 = vmul.f32 %v9679, %v8809
        %v9744 = vmul.f32 %v9680, %v8809
        %v9745 = vmul.f32 %v9681, %v8809
        %v9746 = vmul.f32 %v9682, %v8809
        %v9747 = vmul.f32 %v9683, %v8809
        %v9748 = vmul.f32 %v9684, %v8809
        %v9749 = vmul.f32 %v9685, %v8809
        %v9750 = vmul.f32 %v9686, %v8809
        %v9751 = vmul.f32 %v9687, %v8809
        %v9752 = vmul.f32 %v9688, %v8809
        %v9753 = vmul.f32 %v9689, %v8809
        %v9754 = vmul.f32 %v9690, %v8809
        %v9819 = vrot.slane %v9692, 7
        %vm9820 = vcmask 1041409
        %v9821 = vsel %vm9820, %v9819, %v9691
        %v9822 = vrot.slane %v9693, 6
        %vm9823 = vcmask 1042434
        %v9824 = vsel %vm9823, %v9822, %v9821
        %v9825 = vrot.slane %v9694, 5
        %vm9826 = vcmask 1043459
        %v9827 = vsel %vm9826, %v9825, %v9824
        %v9828 = vrot.slane %v9695, 4
        %vm9829 = vcmask 1044484
        %v9830 = vsel %vm9829, %v9828, %v9827
        %v9831 = vrot.slane %v9696, 3
        %vm9832 = vcmask 1045509
        %v9833 = vsel %vm9832, %v9831, %v9830
        %v9834 = vrot.slane %v9697, 2
        %vm9835 = vcmask 1046534
        %v9836 = vsel %vm9835, %v9834, %v9833
        %v9837 = vrot.slane %v9698, 1
        %vm9838 = vcmask 1047559
        %v9839 = vsel %vm9838, %v9837, %v9836
        %v9840 = vrot.slane %v9700, 7
        %v9841 = vsel %vm9820, %v9840, %v9699
        %v9842 = vrot.slane %v9701, 6
        %v9843 = vsel %vm9823, %v9842, %v9841
        %v9844 = vrot.slane %v9702, 5
        %v9845 = vsel %vm9826, %v9844, %v9843
        %v9846 = vrot.slane %v9703, 4
        %v9847 = vsel %vm9829, %v9846, %v9845
        %v9848 = vrot.slane %v9704, 3
        %v9849 = vsel %vm9832, %v9848, %v9847
        %v9850 = vrot.slane %v9705, 2
        %v9851 = vsel %vm9835, %v9850, %v9849
        %v9852 = vrot.slane %v9706, 1
        %v9853 = vsel %vm9838, %v9852, %v9851
        %v9854 = vrot.slane %v9708, 7
        %v9855 = vsel %vm9820, %v9854, %v9707
        %v9856 = vrot.slane %v9709, 6
        %v9857 = vsel %vm9823, %v9856, %v9855
        %v9858 = vrot.slane %v9710, 5
        %v9859 = vsel %vm9826, %v9858, %v9857
        %v9860 = vrot.slane %v9711, 4
        %v9861 = vsel %vm9829, %v9860, %v9859
        %v9862 = vrot.slane %v9712, 3
        %v9863 = vsel %vm9832, %v9862, %v9861
        %v9864 = vrot.slane %v9713, 2
        %v9865 = vsel %vm9835, %v9864, %v9863
        %v9866 = vrot.slane %v9714, 1
        %v9867 = vsel %vm9838, %v9866, %v9865
        %v9868 = vrot.slane %v9716, 7
        %v9869 = vsel %vm9820, %v9868, %v9715
        %v9870 = vrot.slane %v9717, 6
        %v9871 = vsel %vm9823, %v9870, %v9869
        %v9872 = vrot.slane %v9718, 5
        %v9873 = vsel %vm9826, %v9872, %v9871
        %v9874 = vrot.slane %v9719, 4
        %v9875 = vsel %vm9829, %v9874, %v9873
        %v9876 = vrot.slane %v9720, 3
        %v9877 = vsel %vm9832, %v9876, %v9875
        %v9878 = vrot.slane %v9721, 2
        %v9879 = vsel %vm9835, %v9878, %v9877
        %v9880 = vrot.slane %v9722, 1
        %v9881 = vsel %vm9838, %v9880, %v9879
        %v9882 = vrot.slane %v9724, 7
        %v9883 = vsel %vm9820, %v9882, %v9723
        %v9884 = vrot.slane %v9725, 6
        %v9885 = vsel %vm9823, %v9884, %v9883
        %v9886 = vrot.slane %v9726, 5
        %v9887 = vsel %vm9826, %v9886, %v9885
        %v9888 = vrot.slane %v9727, 4
        %v9889 = vsel %vm9829, %v9888, %v9887
        %v9890 = vrot.slane %v9728, 3
        %v9891 = vsel %vm9832, %v9890, %v9889
        %v9892 = vrot.slane %v9729, 2
        %v9893 = vsel %vm9835, %v9892, %v9891
        %v9894 = vrot.slane %v9730, 1
        %v9895 = vsel %vm9838, %v9894, %v9893
        %v9896 = vrot.slane %v9732, 7
        %v9897 = vsel %vm9820, %v9896, %v9731
        %v9898 = vrot.slane %v9733, 6
        %v9899 = vsel %vm9823, %v9898, %v9897
        %v9900 = vrot.slane %v9734, 5
        %v9901 = vsel %vm9826, %v9900, %v9899
        %v9902 = vrot.slane %v9735, 4
        %v9903 = vsel %vm9829, %v9902, %v9901
        %v9904 = vrot.slane %v9736, 3
        %v9905 = vsel %vm9832, %v9904, %v9903
        %v9906 = vrot.slane %v9737, 2
        %v9907 = vsel %vm9835, %v9906, %v9905
        %v9908 = vrot.slane %v9738, 1
        %v9909 = vsel %vm9838, %v9908, %v9907
        %v9910 = vrot.slane %v9740, 7
        %v9911 = vsel %vm9820, %v9910, %v9739
        %v9912 = vrot.slane %v9741, 6
        %v9913 = vsel %vm9823, %v9912, %v9911
        %v9914 = vrot.slane %v9742, 5
        %v9915 = vsel %vm9826, %v9914, %v9913
        %v9916 = vrot.slane %v9743, 4
        %v9917 = vsel %vm9829, %v9916, %v9915
        %v9918 = vrot.slane %v9744, 3
        %v9919 = vsel %vm9832, %v9918, %v9917
        %v9920 = vrot.slane %v9745, 2
        %v9921 = vsel %vm9835, %v9920, %v9919
        %v9922 = vrot.slane %v9746, 1
        %v9923 = vsel %vm9838, %v9922, %v9921
        %v9924 = vrot.slane %v9748, 7
        %v9925 = vsel %vm9820, %v9924, %v9747
        %v9926 = vrot.slane %v9749, 6
        %v9927 = vsel %vm9823, %v9926, %v9925
        %v9928 = vrot.slane %v9750, 5
        %v9929 = vsel %vm9826, %v9928, %v9927
        %v9930 = vrot.slane %v9751, 4
        %v9931 = vsel %vm9829, %v9930, %v9929
        %v9932 = vrot.slane %v9752, 3
        %v9933 = vsel %vm9832, %v9932, %v9931
        %v9934 = vrot.slane %v9753, 2
        %v9935 = vsel %vm9835, %v9934, %v9933
        %v9936 = vrot.slane %v9754, 1
        %v9937 = vsel %vm9838, %v9936, %v9935
        %9946 = vst.msk [vmem:[%s163] sm:$0xff] %vm212, %v9839
        %9947 = vst.msk [vmem:[%s163 + $0x8] sm:$0xff] %vm212, %v9853
        %9948 = vst.msk [vmem:[%s163 + $0x10] sm:$0xff] %vm212, %v9867
        %9949 = vst.msk [vmem:[%s163 + $0x18] sm:$0xff] %vm212, %v9881
        %9950 = vst.msk [vmem:[%s163 + $0x20] sm:$0xff] %vm212, %v9895
        %9951 = vst.msk [vmem:[%s163 + $0x28] sm:$0xff] %vm212, %v9909
        %9952 = vst.msk [vmem:[%s163 + $0x30] sm:$0xff] %vm212, %v9923
        %9953 = vst.msk [vmem:[%s163 + $0x38] sm:$0xff] %vm212, %v9937
        %s9954 = sand.u32 %s93, 1
        %s9955 = scalar_lea.sflag [#allocation6], %s9954
        %s9956 = sand.u32 %s93, 1
        %s9957 = smul.addr %s9956, 64
        %s9958 = scalar_lea.vmem [#allocation5], %s9957
        // Predicated region
        $region33: #{tpu_custom_call.1} parent=31 // pred_check
          %p9959 = pneg %p103
        $region34: #{tpu_custom_call.1} parent=31 // pred_check_branch
          %9961 = sbr.rel (%p9959) target = $region36
        $region35: #{tpu_custom_call.1} parent=31 // pred_region
          %s9963 = ssub.s32 1024, 1024
          %9964 = vsyncadd %s9955, %s9963
          %s9965 = smul.addr %s17, 8
          %s9966 = smul.addr %s9965, 128
          %s9967 = scalar_lea.hbm %s3, %s9966
          %s9968 = sshll.u32 %s9958, 4
          %s9969 = int_to_ptr.vmem [resolvable:$true] %s9968
          %9974 = dma.vmem_to_hbm [thread:$0]  %s9969, 1024, %s9967, %s9955, 128, 128, 8
        $region36: #{tpu_custom_call.1} parent=31 // pred_fallthru
          _
      $region32: #{tpu_custom_call.1} parent=5 // pred_fallthru
        _
      %p9975 = scmp.le.s32.totalorder 2, %s12
      // Predicated region
      $region37: #{tpu_custom_call.1} parent=5 // pred_check
        %p9976 = pneg %p9975
      $region38: #{tpu_custom_call.1} parent=5 // pred_check_branch
        %9978 = sbr.rel (%p9976) target = $region40
      $region39: #{tpu_custom_call.1} parent=5 // pred_region
        %s9979 = ssub.s32 %s12, 2
        // Predicated region
        $region41: #{tpu_custom_call.1} parent=39 // pred_check
          %p9980 = pneg %p109
        $region42: #{tpu_custom_call.1} parent=39 // pred_check_branch
          %9982 = sbr.rel (%p9980) target = $region44
        $region43: #{tpu_custom_call.1} parent=39 // pred_region
          %s9983 = sand.u32 %s94, 1
          %s9984 = scalar_lea.sflag [#allocation6], %s9983
          %s9985 = sand.u32 %s94, 1
          %s9986 = smul.addr %s9985, 64
          %s9987 = scalar_lea.vmem [#allocation5], %s9986
          %9988 = dma.done %s9984, 1024
        $region44: #{tpu_custom_call.1} parent=39 // pred_fallthru
          _
      $region40: #{tpu_custom_call.1} parent=5 // pred_fallthru
        _
    $region6: #{tpu_custom_call.1} parent=1 // loop_footer
      %s16 = sadd.s32 1, %s12
    $region7: #{tpu_custom_call.1} parent=1 // loop_footer_branch
      %11 = sbr.rel target = $region3
    $region8: #{tpu_custom_call.1} parent=1 // loop_exit
      _
    %9989 = vsyncpa [#allocation6], 1
    %s9990 = scalar_lea.sflag [#allocation6], 1
    %9991 = vsyncpa %s9990, 1

</llo_original>
